<compile_context>
chip_gen: v6e
topology: v6e:2x2x1
jax: 0.10.0
libtpu: 0.0.40
codegen_flags: <defaults>
</compile_context>

<pallas_src>
import functools

import jax
import jax.numpy as jnp
from jax import lax
from jax.experimental import pallas as pl
from jax.experimental.pallas import tpu as pltpu


_VMEM = pl.BlockSpec(memory_space=pltpu.MemorySpace.VMEM)


# ----------------------------------------------------------------------------
# Pallas kernels
# ----------------------------------------------------------------------------
def _trunk_kernel(*refs, bsz, hh, ww, cc, n_blocks):
    """Fused trunk: conv1 + leaky, n residual blocks, policy/value 1x1 convs + leaky.

    Inputs (refs): x[M,C], conv1_w[9,C,C], conv1_b[1,C],
                   per block: wf1[9,C,C], bf1[1,C], g1[1,C], b1[1,C],
                              wf2[9,C,C], bf2[1,C], g2[1,C], b2[1,C],
                   w_heads[C,4], b_heads[1,4]
    Output: pv[M,4]   Scratch: zero-padded feature map [B, H+2, W+2, C] in VMEM.
    """
    n_in = 5 + 8 * n_blocks
    x_ref, wc_ref, bc_ref = refs[0], refs[1], refs[2]
    wh_ref, bh_ref = refs[n_in - 2], refs[n_in - 1]
    o_ref = refs[n_in]
    pad_ref = refs[n_in + 1]

    m = bsz * hh * ww

    def leaky(z):
        return jnp.where(z > 0, z, 0.01 * z)

    def set_interior(y):
        # Write the current [M, C] feature map into the interior of the padded scratch.
        pad_ref[:, 1:1 + hh, 1:1 + ww, :] = y.reshape(bsz, hh, ww, cc)

    def conv3x3(w_ref, b_ref):
        # 3x3 "same" conv as 9 MXU dots over static tap slices of the padded scratch.
        acc = None
        for t in range(9):
            ky, kx = divmod(t, 3)
            tap = pad_ref[:, ky:ky + hh, kx:kx + ww, :].reshape(m, cc)
            d = jnp.dot(tap, w_ref[t], preferred_element_type=jnp.float32)
            acc = d if acc is None else acc + d
        return acc + b_ref[...]

    def bn(y, g_ref, bt_ref):
        # BatchNorm2d (training mode): batch statistics over N*H*W, biased variance.
        mean = jnp.mean(y, axis=0, keepdims=True)
        var = jnp.mean((y - mean) ** 2, axis=0, keepdims=True)
        return (y - mean) * lax.rsqrt(var + 1e-5) * g_ref[...] + bt_ref[...]

    # Zero the padded scratch once; only the interior is ever rewritten, so the
    # 1-pixel border stays zero for every stage.
    pad_ref[...] = jnp.zeros_like(pad_ref)

    # conv1 (input channels zero-padded to C outside the kernel) + leaky_relu
    set_interior(x_ref[...])
    hfeat = leaky(conv3x3(wc_ref, bc_ref))

    # residual blocks (depthwise 3x3 already folded into the pointwise weights)
    for blk in range(n_blocks):
        wf1, bf1, g1, b1, wf2, bf2, g2, b2 = refs[3 + 8 * blk: 3 + 8 * (blk + 1)]
        set_interior(hfeat)
        y = leaky(bn(conv3x3(wf1, bf1), g1, b1))
        set_interior(y)
        y = bn(conv3x3(wf2, bf2), g2, b2)
        hfeat = leaky(hfeat + y)

    # policy_conv + val_conv fused: [M, C] @ [C, 4] + leaky_relu
    pv = jnp.dot(hfeat, wh_ref[...], preferred_element_type=jnp.float32) + bh_ref[...]
    o_ref[...] = leaky(pv)


def _heads_kernel(p_ref, v_ref, pw_ref, pb_ref, w1_ref, b1_ref, w2_ref, b2_ref,
                  p_out_ref, v_out_ref):
    """Fused heads: policy_fc + log_softmax ; val_fc1 + leaky + val_fc2 + tanh."""
    y = jnp.dot(p_ref[...], pw_ref[...], preferred_element_type=jnp.float32) + pb_ref[...]
    mx = jnp.max(y, axis=-1, keepdims=True)
    z = y - mx
    p_out_ref[...] = z - jnp.log(jnp.sum(jnp.exp(z), axis=-1, keepdims=True))

    v = jnp.dot(v_ref[...], w1_ref[...], preferred_element_type=jnp.float32) + b1_ref[...]
    v = jnp.where(v > 0, v, 0.01 * v)
    v = jnp.dot(v, w2_ref[...], preferred_element_type=jnp.float32) + b2_ref[...]
    v_out_ref[...] = jnp.tanh(v)


# ----------------------------------------------------------------------------
# Pallas call wrappers (single grid point; everything resident in VMEM at these sizes)
# ----------------------------------------------------------------------------
def trunk(x_flat, wc, bc, block_tensors, w_heads, b_heads, *, bsz, hh, ww, cc, n_blocks):
    m = bsz * hh * ww
    kernel = functools.partial(_trunk_kernel, bsz=bsz, hh=hh, ww=ww, cc=cc,
                               n_blocks=n_blocks)
    args = [x_flat, wc, bc, *block_tensors, w_heads, b_heads]
    return pl.pallas_call(
        kernel,
        out_shape=jax.ShapeDtypeStruct((m, 4), jnp.float32),
        in_specs=[_VMEM] * len(args),
        out_specs=_VMEM,
        scratch_shapes=[pltpu.VMEM((bsz, hh + 2, ww + 2, cc), jnp.float32)],
    )(*args)


def heads(p_in, v_in, pw, pb, w1, b1, w2, b2):
    bsz = p_in.shape[0]
    hw = pw.shape[1]
    return pl.pallas_call(
        _heads_kernel,
        out_shape=(jax.ShapeDtypeStruct((bsz, hw), jnp.float32),
                   jax.ShapeDtypeStruct((bsz, 1), jnp.float32)),
        in_specs=[_VMEM] * 8,
        out_specs=(_VMEM, _VMEM),
    )(p_in, v_in, pw, pb.reshape(1, -1), w1, b1.reshape(1, -1), w2, b2.reshape(1, -1))


# ----------------------------------------------------------------------------
# Parameters (deterministic init; PyTorch-like uniform(+-1/sqrt(fan_in)))
# ----------------------------------------------------------------------------
def init_params(key, board, channels, n_blocks):
    keys = iter(jax.random.split(key, 128))

    def u(shape, fan_in):
        bound = fan_in ** -0.5
        return jax.random.uniform(next(keys), shape, jnp.float32, -bound, bound)

    c = channels
    hw = board * board
    p = {
        "conv1_w": u((3, 3, 5, c), 5 * 9),        # HWIO
        "conv1_b": u((c,), 5 * 9),
        "blocks": [],
        "pconv_w": u((c, 2), c), "pconv_b": u((2,), c),
        "pfc_w": u((2 * hw, hw), 2 * hw), "pfc_b": u((hw,), 2 * hw),
        "vconv_w": u((c, 2), c), "vconv_b": u((2,), c),
        "vfc1_w": u((2 * hw, 32), 2 * hw), "vfc1_b": u((32,), 2 * hw),
        "vfc2_w": u((32, 1), 32), "vfc2_b": u((1,), 32),
    }
    for _ in range(n_blocks):
        bp = {}
        for j in (1, 2):
            bp[f"dw{j}_w"] = u((9, 1, c), 9)       # [tap, 1, channel]
            bp[f"dw{j}_b"] = u((1, c), 9)
            bp[f"pw{j}_w"] = u((c, c), c)
            bp[f"pw{j}_b"] = u((1, c), c)
            bp[f"bn{j}_g"] = jnp.ones((1, c), jnp.float32)   # BatchNorm defaults
            bp[f"bn{j}_b"] = jnp.zeros((1, c), jnp.float32)
        p["blocks"].append(bp)
    return p


def _fold_block(bp, c):
    """Fold depthwise 3x3 into the pointwise 1x1 weights (exact algebraic fold)."""
    out = {}
    for j in (1, 2):
        wdw = bp[f"dw{j}_w"].reshape(9, c)                   # [tap, channel]
        wpw = bp[f"pw{j}_w"]                                 # [c_in, c_out]
        out[f"wf{j}"] = wdw[:, :, None] * wpw[None, :, :]    # [9, c_in, c_out]
        out[f"bf{j}"] = bp[f"dw{j}_b"].reshape(1, c) @ wpw + bp[f"pw{j}_b"]
        out[f"g{j}"] = bp[f"bn{j}_g"]
        out[f"b{j}"] = bp[f"bn{j}_b"]
    return out


# ----------------------------------------------------------------------------
# Forward pass (all hot compute in 2 Pallas kernels)
# ----------------------------------------------------------------------------
def policy_value_forward(params, x_nchw, *, board, channels, n_blocks):
    b = x_nchw.shape[0]
    h = w = board
    c = channels
    hw = h * w

    # NCHW -> NHWC, pad 5 input planes to C channels (extra channels & weight rows are 0)
    x = jnp.transpose(x_nchw, (0, 2, 3, 1)).astype(jnp.float32)
    x = jnp.pad(x, ((0, 0), (0, 0), (0, 0), (0, c - 5))).reshape(b * h * w, c)

    wc = jnp.pad(params["conv1_w"], ((0, 0), (0, 0), (0, c - 5), (0, 0))).reshape(9, c, c)
    bc = params["conv1_b"].reshape(1, c)

    block_tensors = []
    for bp in params["blocks"]:
        f = _fold_block(bp, c)
        block_tensors += [f["wf1"], f["bf1"], f["g1"], f["b1"],
                          f["wf2"], f["bf2"], f["g2"], f["b2"]]

    w_heads = jnp.concatenate([params["pconv_w"], params["vconv_w"]], axis=1)   # [C, 4]
    b_heads = jnp.concatenate([params["pconv_b"], params["vconv_b"]], axis=0).reshape(1, 4)

    # Fused trunk: conv1 + res blocks + policy/value 1x1 convs (+ leaky), output [M, 4]
    pv = trunk(x, wc, bc, block_tensors, w_heads, b_heads,
               bsz=b, hh=h, ww=w, cc=c, n_blocks=n_blocks)

    # Absorb torch's channel-major .view(-1, 2*H*W) by permuting FC weight rows:
    # our flatten order is (spatial, channel) = s*2 + ch ; torch's is ch*HW + s.
    r = jnp.arange(2 * hw)
    perm = (r % 2) * hw + (r // 2)

    p_in = pv[:, 0:2].reshape(b, 2 * hw)     # free row-major reshapes
    v_in = pv[:, 2:4].reshape(b, 2 * hw)

    p, v = heads(p_in, v_in,
                 params["pfc_w"][perm, :], params["pfc_b"],
                 params["vfc1_w"][perm, :], params["vfc1_b"],
                 params["vfc2_w"], params["vfc2_b"])
    return p, v


# ----------------------------------------------------------------------------
# Pure-JAX reference (for verification only)
# ----------------------------------------------------------------------------
def reference_forward(params, x_nchw, *, board, channels, n_blocks):
    b = x_nchw.shape[0]
    h = w = board
    c = channels
    dn = ("NHWC", "HWIO", "NHWC")

    def leaky(z):
        return jnp.where(z > 0, z, 0.01 * z)

    def conv(x, wk, bias, groups=1):
        y = lax.conv_general_dilated(x, wk, (1, 1), "SAME", dimension_numbers=dn,
                                     feature_group_count=groups,
                                     precision=lax.Precision.HIGHEST)
        return y + bias.reshape(1, 1, 1, -1)

    def bn(x, g, bt):
        m = jnp.mean(x, axis=(0, 1, 2), keepdims=True)
        v_ = jnp.mean((x - m) ** 2, axis=(0, 1, 2), keepdims=True)
        return (x - m) / jnp.sqrt(v_ + 1e-5) * g.reshape(1, 1, 1, -1) + bt.reshape(1, 1, 1, -1)

    x = jnp.transpose(x_nchw, (0, 2, 3, 1)).astype(jnp.float32)
    hf = leaky(conv(x, params["conv1_w"], params["conv1_b"]))
    for bp in params["blocks"]:
        y = leaky(bn(conv(conv(hf, bp["dw1_w"].reshape(3, 3, 1, c), bp["dw1_b"].reshape(-1), groups=c),
                          bp["pw1_w"].reshape(1, 1, c, c), bp["pw1_b"].reshape(-1)),
                     bp["bn1_g"], bp["bn1_b"]))
        y2 = bn(conv(conv(y, bp["dw2_w"].reshape(3, 3, 1, c), bp["dw2_b"].reshape(-1), groups=c),
                     bp["pw2_w"].reshape(1, 1, c, c), bp["pw2_b"].reshape(-1)),
                bp["bn2_g"], bp["bn2_b"])
        hf = leaky(hf + y2)
    p = leaky(conv(hf, params["pconv_w"].reshape(1, 1, c, 2), params["pconv_b"]))
    p = p.transpose(0, 3, 1, 2).reshape(b, 2 * h * w)
    p = jax.nn.log_softmax(p @ params["pfc_w"] + params["pfc_b"], axis=1)
    v = leaky(conv(hf, params["vconv_w"].reshape(1, 1, c, 2), params["vconv_b"]))
    v = v.transpose(0, 3, 1, 2).reshape(b, 2 * h * w)
    v = leaky(v @ params["vfc1_w"] + params["vfc1_b"])
    v = jnp.tanh(v @ params["vfc2_w"] + params["vfc2_b"])
    return p, v


# ----------------------------------------------------------------------------
if __name__ == "__main__":
    BOARD = 8          # board_size
    CHANNELS = 32      # channels (small synthetic size)
    N_BLOCKS = 2       # n_res_blocks
    BATCH = 2

    key = jax.random.PRNGKey(0)
    k_params, k_x = jax.random.split(key)
    params = init_params(k_params, BOARD, CHANNELS, N_BLOCKS)
    x = jax.random.normal(k_x, (BATCH, 5, BOARD, BOARD), jnp.float32)   # NCHW like torch

    fwd = jax.jit(functools.partial(policy_value_forward,
                                    board=BOARD, channels=CHANNELS, n_blocks=N_BLOCKS))
    p_out, v_out = fwd(params, x)
    jax.block_until_ready((p_out, v_out))

    assert p_out.shape == (BATCH, BOARD * BOARD)
    assert v_out.shape == (BATCH, 1)
    assert bool(jnp.all(jnp.isfinite(p_out))) and bool(jnp.all(jnp.isfinite(v_out)))

    # verify against a pure-JAX/XLA reference
    p_ref, v_ref = reference_forward(params, x, board=BOARD, channels=CHANNELS, n_blocks=N_BLOCKS)
    assert jnp.allclose(p_out, p_ref, atol=5e-3, rtol=5e-3), "policy mismatch"
    assert jnp.allclose(v_out, v_ref, atol=5e-3, rtol=5e-3), "value mismatch"

    print("KERNEL_OK")
</pallas_src>

<mosaic_0001>
module attributes {stable_mosaic.version = 11 : i64} {
  func.func @_trunk_kernel(%arg0: memref<128x32xf32, #tpu.memory_space<vmem>>, %arg1: memref<9x32x32xf32, #tpu.memory_space<vmem>>, %arg2: memref<1x32xf32, #tpu.memory_space<vmem>>, %arg3: memref<9x32x32xf32, #tpu.memory_space<vmem>>, %arg4: memref<1x32xf32, #tpu.memory_space<vmem>>, %arg5: memref<1x32xf32, #tpu.memory_space<vmem>>, %arg6: memref<1x32xf32, #tpu.memory_space<vmem>>, %arg7: memref<9x32x32xf32, #tpu.memory_space<vmem>>, %arg8: memref<1x32xf32, #tpu.memory_space<vmem>>, %arg9: memref<1x32xf32, #tpu.memory_space<vmem>>, %arg10: memref<1x32xf32, #tpu.memory_space<vmem>>, %arg11: memref<9x32x32xf32, #tpu.memory_space<vmem>>, %arg12: memref<1x32xf32, #tpu.memory_space<vmem>>, %arg13: memref<1x32xf32, #tpu.memory_space<vmem>>, %arg14: memref<1x32xf32, #tpu.memory_space<vmem>>, %arg15: memref<9x32x32xf32, #tpu.memory_space<vmem>>, %arg16: memref<1x32xf32, #tpu.memory_space<vmem>>, %arg17: memref<1x32xf32, #tpu.memory_space<vmem>>, %arg18: memref<1x32xf32, #tpu.memory_space<vmem>>, %arg19: memref<32x4xf32, #tpu.memory_space<vmem>>, %arg20: memref<1x4xf32, #tpu.memory_space<vmem>>, %arg21: memref<128x4xf32, #tpu.memory_space<vmem>>, %arg22: memref<2x10x10x32xf32, #tpu.memory_space<vmem>>) attributes {dimension_semantics = [], scalar_prefetch = 0 : i64, scratch_operands = 1 : i64, tpu.core_type = #tpu.core_type<tc>} {
    %cst = arith.constant 0.000000e+00 : f32
    %0 = vector.broadcast %cst : f32 to vector<2x10x10x32xf32>
    %c0 = arith.constant 0 : index
    %c0_0 = arith.constant 0 : index
    %c0_1 = arith.constant 0 : index
    %c0_2 = arith.constant 0 : index
    %1 = vector.load %arg22[%c0, %c0_0, %c0_1, %c0_2] : memref<2x10x10x32xf32, #tpu.memory_space<vmem>>, vector<2x10x10x32xf32>
    tpu.vector_store %arg22[%c0, %c0_0, %c0_1, %c0_2], %0 {strides = array<i32>} : memref<2x10x10x32xf32, #tpu.memory_space<vmem>>, vector<2x10x10x32xf32>,
    %c0_3 = arith.constant 0 : index
    %c0_4 = arith.constant 0 : index
    %2 = vector.load %arg0[%c0_3, %c0_4] : memref<128x32xf32, #tpu.memory_space<vmem>>, vector<128x32xf32>
    %3 = vector.shape_cast %2 : vector<128x32xf32> to vector<2x8x8x32xf32>
    %c0_5 = arith.constant 0 : index
    %c1 = arith.constant 1 : index
    %c1_6 = arith.constant 1 : index
    %c0_7 = arith.constant 0 : index
    %4 = vector.load %arg22[%c0_5, %c1, %c1_6, %c0_7] : memref<2x10x10x32xf32, #tpu.memory_space<vmem>>, vector<2x8x8x32xf32>
    tpu.vector_store %arg22[%c0_5, %c1, %c1_6, %c0_7], %3 {strides = array<i32>} : memref<2x10x10x32xf32, #tpu.memory_space<vmem>>, vector<2x8x8x32xf32>,
    %c0_8 = arith.constant 0 : index
    %c0_9 = arith.constant 0 : index
    %c0_10 = arith.constant 0 : index
    %c0_11 = arith.constant 0 : index
    %5 = vector.load %arg22[%c0_8, %c0_9, %c0_10, %c0_11] : memref<2x10x10x32xf32, #tpu.memory_space<vmem>>, vector<2x8x8x32xf32>
    %6 = vector.shape_cast %5 : vector<2x8x8x32xf32> to vector<128x32xf32>
    %c0_12 = arith.constant 0 : index
    %c0_13 = arith.constant 0 : index
    %c0_14 = arith.constant 0 : index
    %7 = vector.load %arg1[%c0_12, %c0_13, %c0_14] : memref<9x32x32xf32, #tpu.memory_space<vmem>>, vector<1x32x32xf32>
    %8 = vector.shape_cast %7 : vector<1x32x32xf32> to vector<32x32xf32>
    %cst_15 = arith.constant dense<0.000000e+00> : vector<128x32xf32>
    %9 = tpu.matmul %6, %8, %cst_15 {dimension_numbers = #tpu.dot_dimension_numbers<[1], [0], [0], [1], [0, 0, 1, 1], [], []>} : vector<128x32xf32>, vector<32x32xf32>, vector<128x32xf32> -> vector<128x32xf32>
    %c0_16 = arith.constant 0 : index
    %c0_17 = arith.constant 0 : index
    %c1_18 = arith.constant 1 : index
    %c0_19 = arith.constant 0 : index
    %10 = vector.load %arg22[%c0_16, %c0_17, %c1_18, %c0_19] : memref<2x10x10x32xf32, #tpu.memory_space<vmem>>, vector<2x8x8x32xf32>
    %11 = vector.shape_cast %10 : vector<2x8x8x32xf32> to vector<128x32xf32>
    %c1_20 = arith.constant 1 : index
    %c0_21 = arith.constant 0 : index
    %c0_22 = arith.constant 0 : index
    %12 = vector.load %arg1[%c1_20, %c0_21, %c0_22] : memref<9x32x32xf32, #tpu.memory_space<vmem>>, vector<1x32x32xf32>
    %13 = vector.shape_cast %12 : vector<1x32x32xf32> to vector<32x32xf32>
    %cst_23 = arith.constant dense<0.000000e+00> : vector<128x32xf32>
    %14 = tpu.matmul %11, %13, %cst_23 {dimension_numbers = #tpu.dot_dimension_numbers<[1], [0], [0], [1], [0, 0, 1, 1], [], []>} : vector<128x32xf32>, vector<32x32xf32>, vector<128x32xf32> -> vector<128x32xf32>
    %15 = arith.addf %9, %14 : vector<128x32xf32>
    %c0_24 = arith.constant 0 : index
    %c0_25 = arith.constant 0 : index
    %c2 = arith.constant 2 : index
    %c0_26 = arith.constant 0 : index
    %16 = vector.load %arg22[%c0_24, %c0_25, %c2, %c0_26] : memref<2x10x10x32xf32, #tpu.memory_space<vmem>>, vector<2x8x8x32xf32>
    %17 = vector.shape_cast %16 : vector<2x8x8x32xf32> to vector<128x32xf32>
    %c2_27 = arith.constant 2 : index
    %c0_28 = arith.constant 0 : index
    %c0_29 = arith.constant 0 : index
    %18 = vector.load %arg1[%c2_27, %c0_28, %c0_29] : memref<9x32x32xf32, #tpu.memory_space<vmem>>, vector<1x32x32xf32>
    %19 = vector.shape_cast %18 : vector<1x32x32xf32> to vector<32x32xf32>
    %cst_30 = arith.constant dense<0.000000e+00> : vector<128x32xf32>
    %20 = tpu.matmul %17, %19, %cst_30 {dimension_numbers = #tpu.dot_dimension_numbers<[1], [0], [0], [1], [0, 0, 1, 1], [], []>} : vector<128x32xf32>, vector<32x32xf32>, vector<128x32xf32> -> vector<128x32xf32>
    %21 = arith.addf %15, %20 : vector<128x32xf32>
    %c0_31 = arith.constant 0 : index
    %c1_32 = arith.constant 1 : index
    %c0_33 = arith.constant 0 : index
    %c0_34 = arith.constant 0 : index
    %22 = vector.load %arg22[%c0_31, %c1_32, %c0_33, %c0_34] : memref<2x10x10x32xf32, #tpu.memory_space<vmem>>, vector<2x8x8x32xf32>
    %23 = vector.shape_cast %22 : vector<2x8x8x32xf32> to vector<128x32xf32>
    %c3 = arith.constant 3 : index
    %c0_35 = arith.constant 0 : index
    %c0_36 = arith.constant 0 : index
    %24 = vector.load %arg1[%c3, %c0_35, %c0_36] : memref<9x32x32xf32, #tpu.memory_space<vmem>>, vector<1x32x32xf32>
    %25 = vector.shape_cast %24 : vector<1x32x32xf32> to vector<32x32xf32>
    %cst_37 = arith.constant dense<0.000000e+00> : vector<128x32xf32>
    %26 = tpu.matmul %23, %25, %cst_37 {dimension_numbers = #tpu.dot_dimension_numbers<[1], [0], [0], [1], [0, 0, 1, 1], [], []>} : vector<128x32xf32>, vector<32x32xf32>, vector<128x32xf32> -> vector<128x32xf32>
    %27 = arith.addf %21, %26 : vector<128x32xf32>
    %c0_38 = arith.constant 0 : index
    %c1_39 = arith.constant 1 : index
    %c1_40 = arith.constant 1 : index
    %c0_41 = arith.constant 0 : index
    %28 = vector.load %arg22[%c0_38, %c1_39, %c1_40, %c0_41] : memref<2x10x10x32xf32, #tpu.memory_space<vmem>>, vector<2x8x8x32xf32>
    %29 = vector.shape_cast %28 : vector<2x8x8x32xf32> to vector<128x32xf32>
    %c4 = arith.constant 4 : index
    %c0_42 = arith.constant 0 : index
    %c0_43 = arith.constant 0 : index
    %30 = vector.load %arg1[%c4, %c0_42, %c0_43] : memref<9x32x32xf32, #tpu.memory_space<vmem>>, vector<1x32x32xf32>
    %31 = vector.shape_cast %30 : vector<1x32x32xf32> to vector<32x32xf32>
    %cst_44 = arith.constant dense<0.000000e+00> : vector<128x32xf32>
    %32 = tpu.matmul %29, %31, %cst_44 {dimension_numbers = #tpu.dot_dimension_numbers<[1], [0], [0], [1], [0, 0, 1, 1], [], []>} : vector<128x32xf32>, vector<32x32xf32>, vector<128x32xf32> -> vector<128x32xf32>
    %33 = arith.addf %27, %32 : vector<128x32xf32>
    %c0_45 = arith.constant 0 : index
    %c1_46 = arith.constant 1 : index
    %c2_47 = arith.constant 2 : index
    %c0_48 = arith.constant 0 : index
    %34 = vector.load %arg22[%c0_45, %c1_46, %c2_47, %c0_48] : memref<2x10x10x32xf32, #tpu.memory_space<vmem>>, vector<2x8x8x32xf32>
    %35 = vector.shape_cast %34 : vector<2x8x8x32xf32> to vector<128x32xf32>
    %c5 = arith.constant 5 : index
    %c0_49 = arith.constant 0 : index
    %c0_50 = arith.constant 0 : index
    %36 = vector.load %arg1[%c5, %c0_49, %c0_50] : memref<9x32x32xf32, #tpu.memory_space<vmem>>, vector<1x32x32xf32>
    %37 = vector.shape_cast %36 : vector<1x32x32xf32> to vector<32x32xf32>
    %cst_51 = arith.constant dense<0.000000e+00> : vector<128x32xf32>
    %38 = tpu.matmul %35, %37, %cst_51 {dimension_numbers = #tpu.dot_dimension_numbers<[1], [0], [0], [1], [0, 0, 1, 1], [], []>} : vector<128x32xf32>, vector<32x32xf32>, vector<128x32xf32> -> vector<128x32xf32>
    %39 = arith.addf %33, %38 : vector<128x32xf32>
    %c0_52 = arith.constant 0 : index
    %c2_53 = arith.constant 2 : index
    %c0_54 = arith.constant 0 : index
    %c0_55 = arith.constant 0 : index
    %40 = vector.load %arg22[%c0_52, %c2_53, %c0_54, %c0_55] : memref<2x10x10x32xf32, #tpu.memory_space<vmem>>, vector<2x8x8x32xf32>
    %41 = vector.shape_cast %40 : vector<2x8x8x32xf32> to vector<128x32xf32>
    %c6 = arith.constant 6 : index
    %c0_56 = arith.constant 0 : index
    %c0_57 = arith.constant 0 : index
    %42 = vector.load %arg1[%c6, %c0_56, %c0_57] : memref<9x32x32xf32, #tpu.memory_space<vmem>>, vector<1x32x32xf32>
    %43 = vector.shape_cast %42 : vector<1x32x32xf32> to vector<32x32xf32>
    %cst_58 = arith.constant dense<0.000000e+00> : vector<128x32xf32>
    %44 = tpu.matmul %41, %43, %cst_58 {dimension_numbers = #tpu.dot_dimension_numbers<[1], [0], [0], [1], [0, 0, 1, 1], [], []>} : vector<128x32xf32>, vector<32x32xf32>, vector<128x32xf32> -> vector<128x32xf32>
    %45 = arith.addf %39, %44 : vector<128x32xf32>
    %c0_59 = arith.constant 0 : index
    %c2_60 = arith.constant 2 : index
    %c1_61 = arith.constant 1 : index
    %c0_62 = arith.constant 0 : index
    %46 = vector.load %arg22[%c0_59, %c2_60, %c1_61, %c0_62] : memref<2x10x10x32xf32, #tpu.memory_space<vmem>>, vector<2x8x8x32xf32>
    %47 = vector.shape_cast %46 : vector<2x8x8x32xf32> to vector<128x32xf32>
    %c7 = arith.constant 7 : index
    %c0_63 = arith.constant 0 : index
    %c0_64 = arith.constant 0 : index
    %48 = vector.load %arg1[%c7, %c0_63, %c0_64] : memref<9x32x32xf32, #tpu.memory_space<vmem>>, vector<1x32x32xf32>
    %49 = vector.shape_cast %48 : vector<1x32x32xf32> to vector<32x32xf32>
    %cst_65 = arith.constant dense<0.000000e+00> : vector<128x32xf32>
    %50 = tpu.matmul %47, %49, %cst_65 {dimension_numbers = #tpu.dot_dimension_numbers<[1], [0], [0], [1], [0, 0, 1, 1], [], []>} : vector<128x32xf32>, vector<32x32xf32>, vector<128x32xf32> -> vector<128x32xf32>
    %51 = arith.addf %45, %50 : vector<128x32xf32>
    %c0_66 = arith.constant 0 : index
    %c2_67 = arith.constant 2 : index
    %c2_68 = arith.constant 2 : index
    %c0_69 = arith.constant 0 : index
    %52 = vector.load %arg22[%c0_66, %c2_67, %c2_68, %c0_69] : memref<2x10x10x32xf32, #tpu.memory_space<vmem>>, vector<2x8x8x32xf32>
    %53 = vector.shape_cast %52 : vector<2x8x8x32xf32> to vector<128x32xf32>
    %c8 = arith.constant 8 : index
    %c0_70 = arith.constant 0 : index
    %c0_71 = arith.constant 0 : index
    %54 = vector.load %arg1[%c8, %c0_70, %c0_71] : memref<9x32x32xf32, #tpu.memory_space<vmem>>, vector<1x32x32xf32>
    %55 = vector.shape_cast %54 : vector<1x32x32xf32> to vector<32x32xf32>
    %cst_72 = arith.constant dense<0.000000e+00> : vector<128x32xf32>
    %56 = tpu.matmul %53, %55, %cst_72 {dimension_numbers = #tpu.dot_dimension_numbers<[1], [0], [0], [1], [0, 0, 1, 1], [], []>} : vector<128x32xf32>, vector<32x32xf32>, vector<128x32xf32> -> vector<128x32xf32>
    %57 = arith.addf %51, %56 : vector<128x32xf32>
    %c0_73 = arith.constant 0 : index
    %c0_74 = arith.constant 0 : index
    %58 = vector.load %arg2[%c0_73, %c0_74] : memref<1x32xf32, #tpu.memory_space<vmem>>, vector<1x32xf32>
    %59 = vector.broadcast %58 : vector<1x32xf32> to vector<128x32xf32>
    %60 = arith.addf %57, %59 : vector<128x32xf32>
    %cst_75 = arith.constant 0.000000e+00 : f32
    %61 = vector.broadcast %cst_75 : f32 to vector<128x32xf32>
    %62 = arith.cmpf ogt, %60, %61 : vector<128x32xf32>
    %cst_76 = arith.constant 0.00999999977 : f32
    %63 = vector.broadcast %cst_76 : f32 to vector<128x32xf32>
    %64 = arith.mulf %63, %60 : vector<128x32xf32>
    %65 = arith.select %62, %60, %64 : vector<128x32xi1>, vector<128x32xf32>
    %66 = vector.shape_cast %65 : vector<128x32xf32> to vector<2x8x8x32xf32>
    %c0_77 = arith.constant 0 : index
    %c1_78 = arith.constant 1 : index
    %c1_79 = arith.constant 1 : index
    %c0_80 = arith.constant 0 : index
    %67 = vector.load %arg22[%c0_77, %c1_78, %c1_79, %c0_80] : memref<2x10x10x32xf32, #tpu.memory_space<vmem>>, vector<2x8x8x32xf32>
    tpu.vector_store %arg22[%c0_77, %c1_78, %c1_79, %c0_80], %66 {strides = array<i32>} : memref<2x10x10x32xf32, #tpu.memory_space<vmem>>, vector<2x8x8x32xf32>,
    %c0_81 = arith.constant 0 : index
    %c0_82 = arith.constant 0 : index
    %c0_83 = arith.constant 0 : index
    %c0_84 = arith.constant 0 : index
    %68 = vector.load %arg22[%c0_81, %c0_82, %c0_83, %c0_84] : memref<2x10x10x32xf32, #tpu.memory_space<vmem>>, vector<2x8x8x32xf32>
    %69 = vector.shape_cast %68 : vector<2x8x8x32xf32> to vector<128x32xf32>
    %c0_85 = arith.constant 0 : index
    %c0_86 = arith.constant 0 : index
    %c0_87 = arith.constant 0 : index
    %70 = vector.load %arg3[%c0_85, %c0_86, %c0_87] : memref<9x32x32xf32, #tpu.memory_space<vmem>>, vector<1x32x32xf32>
    %71 = vector.shape_cast %70 : vector<1x32x32xf32> to vector<32x32xf32>
    %cst_88 = arith.constant dense<0.000000e+00> : vector<128x32xf32>
    %72 = tpu.matmul %69, %71, %cst_88 {dimension_numbers = #tpu.dot_dimension_numbers<[1], [0], [0], [1], [0, 0, 1, 1], [], []>} : vector<128x32xf32>, vector<32x32xf32>, vector<128x32xf32> -> vector<128x32xf32>
    %c0_89 = arith.constant 0 : index
    %c0_90 = arith.constant 0 : index
    %c1_91 = arith.constant 1 : index
    %c0_92 = arith.constant 0 : index
    %73 = vector.load %arg22[%c0_89, %c0_90, %c1_91, %c0_92] : memref<2x10x10x32xf32, #tpu.memory_space<vmem>>, vector<2x8x8x32xf32>
    %74 = vector.shape_cast %73 : vector<2x8x8x32xf32> to vector<128x32xf32>
    %c1_93 = arith.constant 1 : index
    %c0_94 = arith.constant 0 : index
    %c0_95 = arith.constant 0 : index
    %75 = vector.load %arg3[%c1_93, %c0_94, %c0_95] : memref<9x32x32xf32, #tpu.memory_space<vmem>>, vector<1x32x32xf32>
    %76 = vector.shape_cast %75 : vector<1x32x32xf32> to vector<32x32xf32>
    %cst_96 = arith.constant dense<0.000000e+00> : vector<128x32xf32>
    %77 = tpu.matmul %74, %76, %cst_96 {dimension_numbers = #tpu.dot_dimension_numbers<[1], [0], [0], [1], [0, 0, 1, 1], [], []>} : vector<128x32xf32>, vector<32x32xf32>, vector<128x32xf32> -> vector<128x32xf32>
    %78 = arith.addf %72, %77 : vector<128x32xf32>
    %c0_97 = arith.constant 0 : index
    %c0_98 = arith.constant 0 : index
    %c2_99 = arith.constant 2 : index
    %c0_100 = arith.constant 0 : index
    %79 = vector.load %arg22[%c0_97, %c0_98, %c2_99, %c0_100] : memref<2x10x10x32xf32, #tpu.memory_space<vmem>>, vector<2x8x8x32xf32>
    %80 = vector.shape_cast %79 : vector<2x8x8x32xf32> to vector<128x32xf32>
    %c2_101 = arith.constant 2 : index
    %c0_102 = arith.constant 0 : index
    %c0_103 = arith.constant 0 : index
    %81 = vector.load %arg3[%c2_101, %c0_102, %c0_103] : memref<9x32x32xf32, #tpu.memory_space<vmem>>, vector<1x32x32xf32>
    %82 = vector.shape_cast %81 : vector<1x32x32xf32> to vector<32x32xf32>
    %cst_104 = arith.constant dense<0.000000e+00> : vector<128x32xf32>
    %83 = tpu.matmul %80, %82, %cst_104 {dimension_numbers = #tpu.dot_dimension_numbers<[1], [0], [0], [1], [0, 0, 1, 1], [], []>} : vector<128x32xf32>, vector<32x32xf32>, vector<128x32xf32> -> vector<128x32xf32>
    %84 = arith.addf %78, %83 : vector<128x32xf32>
    %c0_105 = arith.constant 0 : index
    %c1_106 = arith.constant 1 : index
    %c0_107 = arith.constant 0 : index
    %c0_108 = arith.constant 0 : index
    %85 = vector.load %arg22[%c0_105, %c1_106, %c0_107, %c0_108] : memref<2x10x10x32xf32, #tpu.memory_space<vmem>>, vector<2x8x8x32xf32>
    %86 = vector.shape_cast %85 : vector<2x8x8x32xf32> to vector<128x32xf32>
    %c3_109 = arith.constant 3 : index
    %c0_110 = arith.constant 0 : index
    %c0_111 = arith.constant 0 : index
    %87 = vector.load %arg3[%c3_109, %c0_110, %c0_111] : memref<9x32x32xf32, #tpu.memory_space<vmem>>, vector<1x32x32xf32>
    %88 = vector.shape_cast %87 : vector<1x32x32xf32> to vector<32x32xf32>
    %cst_112 = arith.constant dense<0.000000e+00> : vector<128x32xf32>
    %89 = tpu.matmul %86, %88, %cst_112 {dimension_numbers = #tpu.dot_dimension_numbers<[1], [0], [0], [1], [0, 0, 1, 1], [], []>} : vector<128x32xf32>, vector<32x32xf32>, vector<128x32xf32> -> vector<128x32xf32>
    %90 = arith.addf %84, %89 : vector<128x32xf32>
    %c0_113 = arith.constant 0 : index
    %c1_114 = arith.constant 1 : index
    %c1_115 = arith.constant 1 : index
    %c0_116 = arith.constant 0 : index
    %91 = vector.load %arg22[%c0_113, %c1_114, %c1_115, %c0_116] : memref<2x10x10x32xf32, #tpu.memory_space<vmem>>, vector<2x8x8x32xf32>
    %92 = vector.shape_cast %91 : vector<2x8x8x32xf32> to vector<128x32xf32>
    %c4_117 = arith.constant 4 : index
    %c0_118 = arith.constant 0 : index
    %c0_119 = arith.constant 0 : index
    %93 = vector.load %arg3[%c4_117, %c0_118, %c0_119] : memref<9x32x32xf32, #tpu.memory_space<vmem>>, vector<1x32x32xf32>
    %94 = vector.shape_cast %93 : vector<1x32x32xf32> to vector<32x32xf32>
    %cst_120 = arith.constant dense<0.000000e+00> : vector<128x32xf32>
    %95 = tpu.matmul %92, %94, %cst_120 {dimension_numbers = #tpu.dot_dimension_numbers<[1], [0], [0], [1], [0, 0, 1, 1], [], []>} : vector<128x32xf32>, vector<32x32xf32>, vector<128x32xf32> -> vector<128x32xf32>
    %96 = arith.addf %90, %95 : vector<128x32xf32>
    %c0_121 = arith.constant 0 : index
    %c1_122 = arith.constant 1 : index
    %c2_123 = arith.constant 2 : index
    %c0_124 = arith.constant 0 : index
    %97 = vector.load %arg22[%c0_121, %c1_122, %c2_123, %c0_124] : memref<2x10x10x32xf32, #tpu.memory_space<vmem>>, vector<2x8x8x32xf32>
    %98 = vector.shape_cast %97 : vector<2x8x8x32xf32> to vector<128x32xf32>
    %c5_125 = arith.constant 5 : index
    %c0_126 = arith.constant 0 : index
    %c0_127 = arith.constant 0 : index
    %99 = vector.load %arg3[%c5_125, %c0_126, %c0_127] : memref<9x32x32xf32, #tpu.memory_space<vmem>>, vector<1x32x32xf32>
    %100 = vector.shape_cast %99 : vector<1x32x32xf32> to vector<32x32xf32>
    %cst_128 = arith.constant dense<0.000000e+00> : vector<128x32xf32>
    %101 = tpu.matmul %98, %100, %cst_128 {dimension_numbers = #tpu.dot_dimension_numbers<[1], [0], [0], [1], [0, 0, 1, 1], [], []>} : vector<128x32xf32>, vector<32x32xf32>, vector<128x32xf32> -> vector<128x32xf32>
    %102 = arith.addf %96, %101 : vector<128x32xf32>
    %c0_129 = arith.constant 0 : index
    %c2_130 = arith.constant 2 : index
    %c0_131 = arith.constant 0 : index
    %c0_132 = arith.constant 0 : index
    %103 = vector.load %arg22[%c0_129, %c2_130, %c0_131, %c0_132] : memref<2x10x10x32xf32, #tpu.memory_space<vmem>>, vector<2x8x8x32xf32>
    %104 = vector.shape_cast %103 : vector<2x8x8x32xf32> to vector<128x32xf32>
    %c6_133 = arith.constant 6 : index
    %c0_134 = arith.constant 0 : index
    %c0_135 = arith.constant 0 : index
    %105 = vector.load %arg3[%c6_133, %c0_134, %c0_135] : memref<9x32x32xf32, #tpu.memory_space<vmem>>, vector<1x32x32xf32>
    %106 = vector.shape_cast %105 : vector<1x32x32xf32> to vector<32x32xf32>
    %cst_136 = arith.constant dense<0.000000e+00> : vector<128x32xf32>
    %107 = tpu.matmul %104, %106, %cst_136 {dimension_numbers = #tpu.dot_dimension_numbers<[1], [0], [0], [1], [0, 0, 1, 1], [], []>} : vector<128x32xf32>, vector<32x32xf32>, vector<128x32xf32> -> vector<128x32xf32>
    %108 = arith.addf %102, %107 : vector<128x32xf32>
    %c0_137 = arith.constant 0 : index
    %c2_138 = arith.constant 2 : index
    %c1_139 = arith.constant 1 : index
    %c0_140 = arith.constant 0 : index
    %109 = vector.load %arg22[%c0_137, %c2_138, %c1_139, %c0_140] : memref<2x10x10x32xf32, #tpu.memory_space<vmem>>, vector<2x8x8x32xf32>
    %110 = vector.shape_cast %109 : vector<2x8x8x32xf32> to vector<128x32xf32>
    %c7_141 = arith.constant 7 : index
    %c0_142 = arith.constant 0 : index
    %c0_143 = arith.constant 0 : index
    %111 = vector.load %arg3[%c7_141, %c0_142, %c0_143] : memref<9x32x32xf32, #tpu.memory_space<vmem>>, vector<1x32x32xf32>
    %112 = vector.shape_cast %111 : vector<1x32x32xf32> to vector<32x32xf32>
    %cst_144 = arith.constant dense<0.000000e+00> : vector<128x32xf32>
    %113 = tpu.matmul %110, %112, %cst_144 {dimension_numbers = #tpu.dot_dimension_numbers<[1], [0], [0], [1], [0, 0, 1, 1], [], []>} : vector<128x32xf32>, vector<32x32xf32>, vector<128x32xf32> -> vector<128x32xf32>
    %114 = arith.addf %108, %113 : vector<128x32xf32>
    %c0_145 = arith.constant 0 : index
    %c2_146 = arith.constant 2 : index
    %c2_147 = arith.constant 2 : index
    %c0_148 = arith.constant 0 : index
    %115 = vector.load %arg22[%c0_145, %c2_146, %c2_147, %c0_148] : memref<2x10x10x32xf32, #tpu.memory_space<vmem>>, vector<2x8x8x32xf32>
    %116 = vector.shape_cast %115 : vector<2x8x8x32xf32> to vector<128x32xf32>
    %c8_149 = arith.constant 8 : index
    %c0_150 = arith.constant 0 : index
    %c0_151 = arith.constant 0 : index
    %117 = vector.load %arg3[%c8_149, %c0_150, %c0_151] : memref<9x32x32xf32, #tpu.memory_space<vmem>>, vector<1x32x32xf32>
    %118 = vector.shape_cast %117 : vector<1x32x32xf32> to vector<32x32xf32>
    %cst_152 = arith.constant dense<0.000000e+00> : vector<128x32xf32>
    %119 = tpu.matmul %116, %118, %cst_152 {dimension_numbers = #tpu.dot_dimension_numbers<[1], [0], [0], [1], [0, 0, 1, 1], [], []>} : vector<128x32xf32>, vector<32x32xf32>, vector<128x32xf32> -> vector<128x32xf32>
    %120 = arith.addf %114, %119 : vector<128x32xf32>
    %c0_153 = arith.constant 0 : index
    %c0_154 = arith.constant 0 : index
    %121 = vector.load %arg4[%c0_153, %c0_154] : memref<1x32xf32, #tpu.memory_space<vmem>>, vector<1x32xf32>
    %122 = vector.broadcast %121 : vector<1x32xf32> to vector<128x32xf32>
    %123 = arith.addf %120, %122 : vector<128x32xf32>
    %cst_155 = arith.constant dense<0.000000e+00> : vector<32xf32>
    %124 = vector.multi_reduction <add>, %123, %cst_155 [0] : vector<128x32xf32> to vector<32xf32>
    %125 = vector.shape_cast %124 : vector<32xf32> to vector<1x32xf32>
    %cst_156 = arith.constant 1.280000e+02 : f32
    %126 = vector.broadcast %cst_156 : f32 to vector<1x32xf32>
    %127 = arith.divf %125, %126 : vector<1x32xf32>
    %128 = vector.broadcast %127 : vector<1x32xf32> to vector<128x32xf32>
    %129 = arith.subf %123, %128 : vector<128x32xf32>
    %130 = arith.mulf %129, %129 : vector<128x32xf32>
    %cst_157 = arith.constant dense<0.000000e+00> : vector<32xf32>
    %131 = vector.multi_reduction <add>, %130, %cst_157 [0] : vector<128x32xf32> to vector<32xf32>
    %132 = vector.shape_cast %131 : vector<32xf32> to vector<1x32xf32>
    %cst_158 = arith.constant 1.280000e+02 : f32
    %133 = vector.broadcast %cst_158 : f32 to vector<1x32xf32>
    %134 = arith.divf %132, %133 : vector<1x32xf32>
    %135 = vector.broadcast %127 : vector<1x32xf32> to vector<128x32xf32>
    %136 = arith.subf %123, %135 : vector<128x32xf32>
    %cst_159 = arith.constant 9.99999974E-6 : f32
    %137 = vector.broadcast %cst_159 : f32 to vector<1x32xf32>
    %138 = arith.addf %134, %137 : vector<1x32xf32>
    %139 = math.rsqrt %138 : vector<1x32xf32>
    %140 = vector.broadcast %139 : vector<1x32xf32> to vector<128x32xf32>
    %141 = arith.mulf %136, %140 : vector<128x32xf32>
    %c0_160 = arith.constant 0 : index
    %c0_161 = arith.constant 0 : index
    %142 = vector.load %arg5[%c0_160, %c0_161] : memref<1x32xf32, #tpu.memory_space<vmem>>, vector<1x32xf32>
    %143 = vector.broadcast %142 : vector<1x32xf32> to vector<128x32xf32>
    %144 = arith.mulf %141, %143 : vector<128x32xf32>
    %c0_162 = arith.constant 0 : index
    %c0_163 = arith.constant 0 : index
    %145 = vector.load %arg6[%c0_162, %c0_163] : memref<1x32xf32, #tpu.memory_space<vmem>>, vector<1x32xf32>
    %146 = vector.broadcast %145 : vector<1x32xf32> to vector<128x32xf32>
    %147 = arith.addf %144, %146 : vector<128x32xf32>
    %cst_164 = arith.constant 0.000000e+00 : f32
    %148 = vector.broadcast %cst_164 : f32 to vector<128x32xf32>
    %149 = arith.cmpf ogt, %147, %148 : vector<128x32xf32>
    %cst_165 = arith.constant 0.00999999977 : f32
    %150 = vector.broadcast %cst_165 : f32 to vector<128x32xf32>
    %151 = arith.mulf %150, %147 : vector<128x32xf32>
    %152 = arith.select %149, %147, %151 : vector<128x32xi1>, vector<128x32xf32>
    %153 = vector.shape_cast %152 : vector<128x32xf32> to vector<2x8x8x32xf32>
    %c0_166 = arith.constant 0 : index
    %c1_167 = arith.constant 1 : index
    %c1_168 = arith.constant 1 : index
    %c0_169 = arith.constant 0 : index
    %154 = vector.load %arg22[%c0_166, %c1_167, %c1_168, %c0_169] : memref<2x10x10x32xf32, #tpu.memory_space<vmem>>, vector<2x8x8x32xf32>
    tpu.vector_store %arg22[%c0_166, %c1_167, %c1_168, %c0_169], %153 {strides = array<i32>} : memref<2x10x10x32xf32, #tpu.memory_space<vmem>>, vector<2x8x8x32xf32>,
    %c0_170 = arith.constant 0 : index
    %c0_171 = arith.constant 0 : index
    %c0_172 = arith.constant 0 : index
    %c0_173 = arith.constant 0 : index
    %155 = vector.load %arg22[%c0_170, %c0_171, %c0_172, %c0_173] : memref<2x10x10x32xf32, #tpu.memory_space<vmem>>, vector<2x8x8x32xf32>
    %156 = vector.shape_cast %155 : vector<2x8x8x32xf32> to vector<128x32xf32>
    %c0_174 = arith.constant 0 : index
    %c0_175 = arith.constant 0 : index
    %c0_176 = arith.constant 0 : index
    %157 = vector.load %arg7[%c0_174, %c0_175, %c0_176] : memref<9x32x32xf32, #tpu.memory_space<vmem>>, vector<1x32x32xf32>
    %158 = vector.shape_cast %157 : vector<1x32x32xf32> to vector<32x32xf32>
    %cst_177 = arith.constant dense<0.000000e+00> : vector<128x32xf32>
    %159 = tpu.matmul %156, %158, %cst_177 {dimension_numbers = #tpu.dot_dimension_numbers<[1], [0], [0], [1], [0, 0, 1, 1], [], []>} : vector<128x32xf32>, vector<32x32xf32>, vector<128x32xf32> -> vector<128x32xf32>
    %c0_178 = arith.constant 0 : index
    %c0_179 = arith.constant 0 : index
    %c1_180 = arith.constant 1 : index
    %c0_181 = arith.constant 0 : index
    %160 = vector.load %arg22[%c0_178, %c0_179, %c1_180, %c0_181] : memref<2x10x10x32xf32, #tpu.memory_space<vmem>>, vector<2x8x8x32xf32>
    %161 = vector.shape_cast %160 : vector<2x8x8x32xf32> to vector<128x32xf32>
    %c1_182 = arith.constant 1 : index
    %c0_183 = arith.constant 0 : index
    %c0_184 = arith.constant 0 : index
    %162 = vector.load %arg7[%c1_182, %c0_183, %c0_184] : memref<9x32x32xf32, #tpu.memory_space<vmem>>, vector<1x32x32xf32>
    %163 = vector.shape_cast %162 : vector<1x32x32xf32> to vector<32x32xf32>
    %cst_185 = arith.constant dense<0.000000e+00> : vector<128x32xf32>
    %164 = tpu.matmul %161, %163, %cst_185 {dimension_numbers = #tpu.dot_dimension_numbers<[1], [0], [0], [1], [0, 0, 1, 1], [], []>} : vector<128x32xf32>, vector<32x32xf32>, vector<128x32xf32> -> vector<128x32xf32>
    %165 = arith.addf %159, %164 : vector<128x32xf32>
    %c0_186 = arith.constant 0 : index
    %c0_187 = arith.constant 0 : index
    %c2_188 = arith.constant 2 : index
    %c0_189 = arith.constant 0 : index
    %166 = vector.load %arg22[%c0_186, %c0_187, %c2_188, %c0_189] : memref<2x10x10x32xf32, #tpu.memory_space<vmem>>, vector<2x8x8x32xf32>
    %167 = vector.shape_cast %166 : vector<2x8x8x32xf32> to vector<128x32xf32>
    %c2_190 = arith.constant 2 : index
    %c0_191 = arith.constant 0 : index
    %c0_192 = arith.constant 0 : index
    %168 = vector.load %arg7[%c2_190, %c0_191, %c0_192] : memref<9x32x32xf32, #tpu.memory_space<vmem>>, vector<1x32x32xf32>
    %169 = vector.shape_cast %168 : vector<1x32x32xf32> to vector<32x32xf32>
    %cst_193 = arith.constant dense<0.000000e+00> : vector<128x32xf32>
    %170 = tpu.matmul %167, %169, %cst_193 {dimension_numbers = #tpu.dot_dimension_numbers<[1], [0], [0], [1], [0, 0, 1, 1], [], []>} : vector<128x32xf32>, vector<32x32xf32>, vector<128x32xf32> -> vector<128x32xf32>
    %171 = arith.addf %165, %170 : vector<128x32xf32>
    %c0_194 = arith.constant 0 : index
    %c1_195 = arith.constant 1 : index
    %c0_196 = arith.constant 0 : index
    %c0_197 = arith.constant 0 : index
    %172 = vector.load %arg22[%c0_194, %c1_195, %c0_196, %c0_197] : memref<2x10x10x32xf32, #tpu.memory_space<vmem>>, vector<2x8x8x32xf32>
    %173 = vector.shape_cast %172 : vector<2x8x8x32xf32> to vector<128x32xf32>
    %c3_198 = arith.constant 3 : index
    %c0_199 = arith.constant 0 : index
    %c0_200 = arith.constant 0 : index
    %174 = vector.load %arg7[%c3_198, %c0_199, %c0_200] : memref<9x32x32xf32, #tpu.memory_space<vmem>>, vector<1x32x32xf32>
    %175 = vector.shape_cast %174 : vector<1x32x32xf32> to vector<32x32xf32>
    %cst_201 = arith.constant dense<0.000000e+00> : vector<128x32xf32>
    %176 = tpu.matmul %173, %175, %cst_201 {dimension_numbers = #tpu.dot_dimension_numbers<[1], [0], [0], [1], [0, 0, 1, 1], [], []>} : vector<128x32xf32>, vector<32x32xf32>, vector<128x32xf32> -> vector<128x32xf32>
    %177 = arith.addf %171, %176 : vector<128x32xf32>
    %c0_202 = arith.constant 0 : index
    %c1_203 = arith.constant 1 : index
    %c1_204 = arith.constant 1 : index
    %c0_205 = arith.constant 0 : index
    %178 = vector.load %arg22[%c0_202, %c1_203, %c1_204, %c0_205] : memref<2x10x10x32xf32, #tpu.memory_space<vmem>>, vector<2x8x8x32xf32>
    %179 = vector.shape_cast %178 : vector<2x8x8x32xf32> to vector<128x32xf32>
    %c4_206 = arith.constant 4 : index
    %c0_207 = arith.constant 0 : index
    %c0_208 = arith.constant 0 : index
    %180 = vector.load %arg7[%c4_206, %c0_207, %c0_208] : memref<9x32x32xf32, #tpu.memory_space<vmem>>, vector<1x32x32xf32>
    %181 = vector.shape_cast %180 : vector<1x32x32xf32> to vector<32x32xf32>
    %cst_209 = arith.constant dense<0.000000e+00> : vector<128x32xf32>
    %182 = tpu.matmul %179, %181, %cst_209 {dimension_numbers = #tpu.dot_dimension_numbers<[1], [0], [0], [1], [0, 0, 1, 1], [], []>} : vector<128x32xf32>, vector<32x32xf32>, vector<128x32xf32> -> vector<128x32xf32>
    %183 = arith.addf %177, %182 : vector<128x32xf32>
    %c0_210 = arith.constant 0 : index
    %c1_211 = arith.constant 1 : index
    %c2_212 = arith.constant 2 : index
    %c0_213 = arith.constant 0 : index
    %184 = vector.load %arg22[%c0_210, %c1_211, %c2_212, %c0_213] : memref<2x10x10x32xf32, #tpu.memory_space<vmem>>, vector<2x8x8x32xf32>
    %185 = vector.shape_cast %184 : vector<2x8x8x32xf32> to vector<128x32xf32>
    %c5_214 = arith.constant 5 : index
    %c0_215 = arith.constant 0 : index
    %c0_216 = arith.constant 0 : index
    %186 = vector.load %arg7[%c5_214, %c0_215, %c0_216] : memref<9x32x32xf32, #tpu.memory_space<vmem>>, vector<1x32x32xf32>
    %187 = vector.shape_cast %186 : vector<1x32x32xf32> to vector<32x32xf32>
    %cst_217 = arith.constant dense<0.000000e+00> : vector<128x32xf32>
    %188 = tpu.matmul %185, %187, %cst_217 {dimension_numbers = #tpu.dot_dimension_numbers<[1], [0], [0], [1], [0, 0, 1, 1], [], []>} : vector<128x32xf32>, vector<32x32xf32>, vector<128x32xf32> -> vector<128x32xf32>
    %189 = arith.addf %183, %188 : vector<128x32xf32>
    %c0_218 = arith.constant 0 : index
    %c2_219 = arith.constant 2 : index
    %c0_220 = arith.constant 0 : index
    %c0_221 = arith.constant 0 : index
    %190 = vector.load %arg22[%c0_218, %c2_219, %c0_220, %c0_221] : memref<2x10x10x32xf32, #tpu.memory_space<vmem>>, vector<2x8x8x32xf32>
    %191 = vector.shape_cast %190 : vector<2x8x8x32xf32> to vector<128x32xf32>
    %c6_222 = arith.constant 6 : index
    %c0_223 = arith.constant 0 : index
    %c0_224 = arith.constant 0 : index
    %192 = vector.load %arg7[%c6_222, %c0_223, %c0_224] : memref<9x32x32xf32, #tpu.memory_space<vmem>>, vector<1x32x32xf32>
    %193 = vector.shape_cast %192 : vector<1x32x32xf32> to vector<32x32xf32>
    %cst_225 = arith.constant dense<0.000000e+00> : vector<128x32xf32>
    %194 = tpu.matmul %191, %193, %cst_225 {dimension_numbers = #tpu.dot_dimension_numbers<[1], [0], [0], [1], [0, 0, 1, 1], [], []>} : vector<128x32xf32>, vector<32x32xf32>, vector<128x32xf32> -> vector<128x32xf32>
    %195 = arith.addf %189, %194 : vector<128x32xf32>
    %c0_226 = arith.constant 0 : index
    %c2_227 = arith.constant 2 : index
    %c1_228 = arith.constant 1 : index
    %c0_229 = arith.constant 0 : index
    %196 = vector.load %arg22[%c0_226, %c2_227, %c1_228, %c0_229] : memref<2x10x10x32xf32, #tpu.memory_space<vmem>>, vector<2x8x8x32xf32>
    %197 = vector.shape_cast %196 : vector<2x8x8x32xf32> to vector<128x32xf32>
    %c7_230 = arith.constant 7 : index
    %c0_231 = arith.constant 0 : index
    %c0_232 = arith.constant 0 : index
    %198 = vector.load %arg7[%c7_230, %c0_231, %c0_232] : memref<9x32x32xf32, #tpu.memory_space<vmem>>, vector<1x32x32xf32>
    %199 = vector.shape_cast %198 : vector<1x32x32xf32> to vector<32x32xf32>
    %cst_233 = arith.constant dense<0.000000e+00> : vector<128x32xf32>
    %200 = tpu.matmul %197, %199, %cst_233 {dimension_numbers = #tpu.dot_dimension_numbers<[1], [0], [0], [1], [0, 0, 1, 1], [], []>} : vector<128x32xf32>, vector<32x32xf32>, vector<128x32xf32> -> vector<128x32xf32>
    %201 = arith.addf %195, %200 : vector<128x32xf32>
    %c0_234 = arith.constant 0 : index
    %c2_235 = arith.constant 2 : index
    %c2_236 = arith.constant 2 : index
    %c0_237 = arith.constant 0 : index
    %202 = vector.load %arg22[%c0_234, %c2_235, %c2_236, %c0_237] : memref<2x10x10x32xf32, #tpu.memory_space<vmem>>, vector<2x8x8x32xf32>
    %203 = vector.shape_cast %202 : vector<2x8x8x32xf32> to vector<128x32xf32>
    %c8_238 = arith.constant 8 : index
    %c0_239 = arith.constant 0 : index
    %c0_240 = arith.constant 0 : index
    %204 = vector.load %arg7[%c8_238, %c0_239, %c0_240] : memref<9x32x32xf32, #tpu.memory_space<vmem>>, vector<1x32x32xf32>
    %205 = vector.shape_cast %204 : vector<1x32x32xf32> to vector<32x32xf32>
    %cst_241 = arith.constant dense<0.000000e+00> : vector<128x32xf32>
    %206 = tpu.matmul %203, %205, %cst_241 {dimension_numbers = #tpu.dot_dimension_numbers<[1], [0], [0], [1], [0, 0, 1, 1], [], []>} : vector<128x32xf32>, vector<32x32xf32>, vector<128x32xf32> -> vector<128x32xf32>
    %207 = arith.addf %201, %206 : vector<128x32xf32>
    %c0_242 = arith.constant 0 : index
    %c0_243 = arith.constant 0 : index
    %208 = vector.load %arg8[%c0_242, %c0_243] : memref<1x32xf32, #tpu.memory_space<vmem>>, vector<1x32xf32>
    %209 = vector.broadcast %208 : vector<1x32xf32> to vector<128x32xf32>
    %210 = arith.addf %207, %209 : vector<128x32xf32>
    %cst_244 = arith.constant dense<0.000000e+00> : vector<32xf32>
    %211 = vector.multi_reduction <add>, %210, %cst_244 [0] : vector<128x32xf32> to vector<32xf32>
    %212 = vector.shape_cast %211 : vector<32xf32> to vector<1x32xf32>
    %cst_245 = arith.constant 1.280000e+02 : f32
    %213 = vector.broadcast %cst_245 : f32 to vector<1x32xf32>
    %214 = arith.divf %212, %213 : vector<1x32xf32>
    %215 = vector.broadcast %214 : vector<1x32xf32> to vector<128x32xf32>
    %216 = arith.subf %210, %215 : vector<128x32xf32>
    %217 = arith.mulf %216, %216 : vector<128x32xf32>
    %cst_246 = arith.constant dense<0.000000e+00> : vector<32xf32>
    %218 = vector.multi_reduction <add>, %217, %cst_246 [0] : vector<128x32xf32> to vector<32xf32>
    %219 = vector.shape_cast %218 : vector<32xf32> to vector<1x32xf32>
    %cst_247 = arith.constant 1.280000e+02 : f32
    %220 = vector.broadcast %cst_247 : f32 to vector<1x32xf32>
    %221 = arith.divf %219, %220 : vector<1x32xf32>
    %222 = vector.broadcast %214 : vector<1x32xf32> to vector<128x32xf32>
    %223 = arith.subf %210, %222 : vector<128x32xf32>
    %cst_248 = arith.constant 9.99999974E-6 : f32
    %224 = vector.broadcast %cst_248 : f32 to vector<1x32xf32>
    %225 = arith.addf %221, %224 : vector<1x32xf32>
    %226 = math.rsqrt %225 : vector<1x32xf32>
    %227 = vector.broadcast %226 : vector<1x32xf32> to vector<128x32xf32>
    %228 = arith.mulf %223, %227 : vector<128x32xf32>
    %c0_249 = arith.constant 0 : index
    %c0_250 = arith.constant 0 : index
    %229 = vector.load %arg9[%c0_249, %c0_250] : memref<1x32xf32, #tpu.memory_space<vmem>>, vector<1x32xf32>
    %230 = vector.broadcast %229 : vector<1x32xf32> to vector<128x32xf32>
    %231 = arith.mulf %228, %230 : vector<128x32xf32>
    %c0_251 = arith.constant 0 : index
    %c0_252 = arith.constant 0 : index
    %232 = vector.load %arg10[%c0_251, %c0_252] : memref<1x32xf32, #tpu.memory_space<vmem>>, vector<1x32xf32>
    %233 = vector.broadcast %232 : vector<1x32xf32> to vector<128x32xf32>
    %234 = arith.addf %231, %233 : vector<128x32xf32>
    %235 = arith.addf %65, %234 : vector<128x32xf32>
    %cst_253 = arith.constant 0.000000e+00 : f32
    %236 = vector.broadcast %cst_253 : f32 to vector<128x32xf32>
    %237 = arith.cmpf ogt, %235, %236 : vector<128x32xf32>
    %cst_254 = arith.constant 0.00999999977 : f32
    %238 = vector.broadcast %cst_254 : f32 to vector<128x32xf32>
    %239 = arith.mulf %238, %235 : vector<128x32xf32>
    %240 = arith.select %237, %235, %239 : vector<128x32xi1>, vector<128x32xf32>
    %241 = vector.shape_cast %240 : vector<128x32xf32> to vector<2x8x8x32xf32>
    %c0_255 = arith.constant 0 : index
    %c1_256 = arith.constant 1 : index
    %c1_257 = arith.constant 1 : index
    %c0_258 = arith.constant 0 : index
    %242 = vector.load %arg22[%c0_255, %c1_256, %c1_257, %c0_258] : memref<2x10x10x32xf32, #tpu.memory_space<vmem>>, vector<2x8x8x32xf32>
    tpu.vector_store %arg22[%c0_255, %c1_256, %c1_257, %c0_258], %241 {strides = array<i32>} : memref<2x10x10x32xf32, #tpu.memory_space<vmem>>, vector<2x8x8x32xf32>,
    %c0_259 = arith.constant 0 : index
    %c0_260 = arith.constant 0 : index
    %c0_261 = arith.constant 0 : index
    %c0_262 = arith.constant 0 : index
    %243 = vector.load %arg22[%c0_259, %c0_260, %c0_261, %c0_262] : memref<2x10x10x32xf32, #tpu.memory_space<vmem>>, vector<2x8x8x32xf32>
    %244 = vector.shape_cast %243 : vector<2x8x8x32xf32> to vector<128x32xf32>
    %c0_263 = arith.constant 0 : index
    %c0_264 = arith.constant 0 : index
    %c0_265 = arith.constant 0 : index
    %245 = vector.load %arg11[%c0_263, %c0_264, %c0_265] : memref<9x32x32xf32, #tpu.memory_space<vmem>>, vector<1x32x32xf32>
    %246 = vector.shape_cast %245 : vector<1x32x32xf32> to vector<32x32xf32>
    %cst_266 = arith.constant dense<0.000000e+00> : vector<128x32xf32>
    %247 = tpu.matmul %244, %246, %cst_266 {dimension_numbers = #tpu.dot_dimension_numbers<[1], [0], [0], [1], [0, 0, 1, 1], [], []>} : vector<128x32xf32>, vector<32x32xf32>, vector<128x32xf32> -> vector<128x32xf32>
    %c0_267 = arith.constant 0 : index
    %c0_268 = arith.constant 0 : index
    %c1_269 = arith.constant 1 : index
    %c0_270 = arith.constant 0 : index
    %248 = vector.load %arg22[%c0_267, %c0_268, %c1_269, %c0_270] : memref<2x10x10x32xf32, #tpu.memory_space<vmem>>, vector<2x8x8x32xf32>
    %249 = vector.shape_cast %248 : vector<2x8x8x32xf32> to vector<128x32xf32>
    %c1_271 = arith.constant 1 : index
    %c0_272 = arith.constant 0 : index
    %c0_273 = arith.constant 0 : index
    %250 = vector.load %arg11[%c1_271, %c0_272, %c0_273] : memref<9x32x32xf32, #tpu.memory_space<vmem>>, vector<1x32x32xf32>
    %251 = vector.shape_cast %250 : vector<1x32x32xf32> to vector<32x32xf32>
    %cst_274 = arith.constant dense<0.000000e+00> : vector<128x32xf32>
    %252 = tpu.matmul %249, %251, %cst_274 {dimension_numbers = #tpu.dot_dimension_numbers<[1], [0], [0], [1], [0, 0, 1, 1], [], []>} : vector<128x32xf32>, vector<32x32xf32>, vector<128x32xf32> -> vector<128x32xf32>
    %253 = arith.addf %247, %252 : vector<128x32xf32>
    %c0_275 = arith.constant 0 : index
    %c0_276 = arith.constant 0 : index
    %c2_277 = arith.constant 2 : index
    %c0_278 = arith.constant 0 : index
    %254 = vector.load %arg22[%c0_275, %c0_276, %c2_277, %c0_278] : memref<2x10x10x32xf32, #tpu.memory_space<vmem>>, vector<2x8x8x32xf32>
    %255 = vector.shape_cast %254 : vector<2x8x8x32xf32> to vector<128x32xf32>
    %c2_279 = arith.constant 2 : index
    %c0_280 = arith.constant 0 : index
    %c0_281 = arith.constant 0 : index
    %256 = vector.load %arg11[%c2_279, %c0_280, %c0_281] : memref<9x32x32xf32, #tpu.memory_space<vmem>>, vector<1x32x32xf32>
    %257 = vector.shape_cast %256 : vector<1x32x32xf32> to vector<32x32xf32>
    %cst_282 = arith.constant dense<0.000000e+00> : vector<128x32xf32>
    %258 = tpu.matmul %255, %257, %cst_282 {dimension_numbers = #tpu.dot_dimension_numbers<[1], [0], [0], [1], [0, 0, 1, 1], [], []>} : vector<128x32xf32>, vector<32x32xf32>, vector<128x32xf32> -> vector<128x32xf32>
    %259 = arith.addf %253, %258 : vector<128x32xf32>
    %c0_283 = arith.constant 0 : index
    %c1_284 = arith.constant 1 : index
    %c0_285 = arith.constant 0 : index
    %c0_286 = arith.constant 0 : index
    %260 = vector.load %arg22[%c0_283, %c1_284, %c0_285, %c0_286] : memref<2x10x10x32xf32, #tpu.memory_space<vmem>>, vector<2x8x8x32xf32>
    %261 = vector.shape_cast %260 : vector<2x8x8x32xf32> to vector<128x32xf32>
    %c3_287 = arith.constant 3 : index
    %c0_288 = arith.constant 0 : index
    %c0_289 = arith.constant 0 : index
    %262 = vector.load %arg11[%c3_287, %c0_288, %c0_289] : memref<9x32x32xf32, #tpu.memory_space<vmem>>, vector<1x32x32xf32>
    %263 = vector.shape_cast %262 : vector<1x32x32xf32> to vector<32x32xf32>
    %cst_290 = arith.constant dense<0.000000e+00> : vector<128x32xf32>
    %264 = tpu.matmul %261, %263, %cst_290 {dimension_numbers = #tpu.dot_dimension_numbers<[1], [0], [0], [1], [0, 0, 1, 1], [], []>} : vector<128x32xf32>, vector<32x32xf32>, vector<128x32xf32> -> vector<128x32xf32>
    %265 = arith.addf %259, %264 : vector<128x32xf32>
    %c0_291 = arith.constant 0 : index
    %c1_292 = arith.constant 1 : index
    %c1_293 = arith.constant 1 : index
    %c0_294 = arith.constant 0 : index
    %266 = vector.load %arg22[%c0_291, %c1_292, %c1_293, %c0_294] : memref<2x10x10x32xf32, #tpu.memory_space<vmem>>, vector<2x8x8x32xf32>
    %267 = vector.shape_cast %266 : vector<2x8x8x32xf32> to vector<128x32xf32>
    %c4_295 = arith.constant 4 : index
    %c0_296 = arith.constant 0 : index
    %c0_297 = arith.constant 0 : index
    %268 = vector.load %arg11[%c4_295, %c0_296, %c0_297] : memref<9x32x32xf32, #tpu.memory_space<vmem>>, vector<1x32x32xf32>
    %269 = vector.shape_cast %268 : vector<1x32x32xf32> to vector<32x32xf32>
    %cst_298 = arith.constant dense<0.000000e+00> : vector<128x32xf32>
    %270 = tpu.matmul %267, %269, %cst_298 {dimension_numbers = #tpu.dot_dimension_numbers<[1], [0], [0], [1], [0, 0, 1, 1], [], []>} : vector<128x32xf32>, vector<32x32xf32>, vector<128x32xf32> -> vector<128x32xf32>
    %271 = arith.addf %265, %270 : vector<128x32xf32>
    %c0_299 = arith.constant 0 : index
    %c1_300 = arith.constant 1 : index
    %c2_301 = arith.constant 2 : index
    %c0_302 = arith.constant 0 : index
    %272 = vector.load %arg22[%c0_299, %c1_300, %c2_301, %c0_302] : memref<2x10x10x32xf32, #tpu.memory_space<vmem>>, vector<2x8x8x32xf32>
    %273 = vector.shape_cast %272 : vector<2x8x8x32xf32> to vector<128x32xf32>
    %c5_303 = arith.constant 5 : index
    %c0_304 = arith.constant 0 : index
    %c0_305 = arith.constant 0 : index
    %274 = vector.load %arg11[%c5_303, %c0_304, %c0_305] : memref<9x32x32xf32, #tpu.memory_space<vmem>>, vector<1x32x32xf32>
    %275 = vector.shape_cast %274 : vector<1x32x32xf32> to vector<32x32xf32>
    %cst_306 = arith.constant dense<0.000000e+00> : vector<128x32xf32>
    %276 = tpu.matmul %273, %275, %cst_306 {dimension_numbers = #tpu.dot_dimension_numbers<[1], [0], [0], [1], [0, 0, 1, 1], [], []>} : vector<128x32xf32>, vector<32x32xf32>, vector<128x32xf32> -> vector<128x32xf32>
    %277 = arith.addf %271, %276 : vector<128x32xf32>
    %c0_307 = arith.constant 0 : index
    %c2_308 = arith.constant 2 : index
    %c0_309 = arith.constant 0 : index
    %c0_310 = arith.constant 0 : index
    %278 = vector.load %arg22[%c0_307, %c2_308, %c0_309, %c0_310] : memref<2x10x10x32xf32, #tpu.memory_space<vmem>>, vector<2x8x8x32xf32>
    %279 = vector.shape_cast %278 : vector<2x8x8x32xf32> to vector<128x32xf32>
    %c6_311 = arith.constant 6 : index
    %c0_312 = arith.constant 0 : index
    %c0_313 = arith.constant 0 : index
    %280 = vector.load %arg11[%c6_311, %c0_312, %c0_313] : memref<9x32x32xf32, #tpu.memory_space<vmem>>, vector<1x32x32xf32>
    %281 = vector.shape_cast %280 : vector<1x32x32xf32> to vector<32x32xf32>
    %cst_314 = arith.constant dense<0.000000e+00> : vector<128x32xf32>
    %282 = tpu.matmul %279, %281, %cst_314 {dimension_numbers = #tpu.dot_dimension_numbers<[1], [0], [0], [1], [0, 0, 1, 1], [], []>} : vector<128x32xf32>, vector<32x32xf32>, vector<128x32xf32> -> vector<128x32xf32>
    %283 = arith.addf %277, %282 : vector<128x32xf32>
    %c0_315 = arith.constant 0 : index
    %c2_316 = arith.constant 2 : index
    %c1_317 = arith.constant 1 : index
    %c0_318 = arith.constant 0 : index
    %284 = vector.load %arg22[%c0_315, %c2_316, %c1_317, %c0_318] : memref<2x10x10x32xf32, #tpu.memory_space<vmem>>, vector<2x8x8x32xf32>
    %285 = vector.shape_cast %284 : vector<2x8x8x32xf32> to vector<128x32xf32>
    %c7_319 = arith.constant 7 : index
    %c0_320 = arith.constant 0 : index
    %c0_321 = arith.constant 0 : index
    %286 = vector.load %arg11[%c7_319, %c0_320, %c0_321] : memref<9x32x32xf32, #tpu.memory_space<vmem>>, vector<1x32x32xf32>
    %287 = vector.shape_cast %286 : vector<1x32x32xf32> to vector<32x32xf32>
    %cst_322 = arith.constant dense<0.000000e+00> : vector<128x32xf32>
    %288 = tpu.matmul %285, %287, %cst_322 {dimension_numbers = #tpu.dot_dimension_numbers<[1], [0], [0], [1], [0, 0, 1, 1], [], []>} : vector<128x32xf32>, vector<32x32xf32>, vector<128x32xf32> -> vector<128x32xf32>
    %289 = arith.addf %283, %288 : vector<128x32xf32>
    %c0_323 = arith.constant 0 : index
    %c2_324 = arith.constant 2 : index
    %c2_325 = arith.constant 2 : index
    %c0_326 = arith.constant 0 : index
    %290 = vector.load %arg22[%c0_323, %c2_324, %c2_325, %c0_326] : memref<2x10x10x32xf32, #tpu.memory_space<vmem>>, vector<2x8x8x32xf32>
    %291 = vector.shape_cast %290 : vector<2x8x8x32xf32> to vector<128x32xf32>
    %c8_327 = arith.constant 8 : index
    %c0_328 = arith.constant 0 : index
    %c0_329 = arith.constant 0 : index
    %292 = vector.load %arg11[%c8_327, %c0_328, %c0_329] : memref<9x32x32xf32, #tpu.memory_space<vmem>>, vector<1x32x32xf32>
    %293 = vector.shape_cast %292 : vector<1x32x32xf32> to vector<32x32xf32>
    %cst_330 = arith.constant dense<0.000000e+00> : vector<128x32xf32>
    %294 = tpu.matmul %291, %293, %cst_330 {dimension_numbers = #tpu.dot_dimension_numbers<[1], [0], [0], [1], [0, 0, 1, 1], [], []>} : vector<128x32xf32>, vector<32x32xf32>, vector<128x32xf32> -> vector<128x32xf32>
    %295 = arith.addf %289, %294 : vector<128x32xf32>
    %c0_331 = arith.constant 0 : index
    %c0_332 = arith.constant 0 : index
    %296 = vector.load %arg12[%c0_331, %c0_332] : memref<1x32xf32, #tpu.memory_space<vmem>>, vector<1x32xf32>
    %297 = vector.broadcast %296 : vector<1x32xf32> to vector<128x32xf32>
    %298 = arith.addf %295, %297 : vector<128x32xf32>
    %cst_333 = arith.constant dense<0.000000e+00> : vector<32xf32>
    %299 = vector.multi_reduction <add>, %298, %cst_333 [0] : vector<128x32xf32> to vector<32xf32>
    %300 = vector.shape_cast %299 : vector<32xf32> to vector<1x32xf32>
    %cst_334 = arith.constant 1.280000e+02 : f32
    %301 = vector.broadcast %cst_334 : f32 to vector<1x32xf32>
    %302 = arith.divf %300, %301 : vector<1x32xf32>
    %303 = vector.broadcast %302 : vector<1x32xf32> to vector<128x32xf32>
    %304 = arith.subf %298, %303 : vector<128x32xf32>
    %305 = arith.mulf %304, %304 : vector<128x32xf32>
    %cst_335 = arith.constant dense<0.000000e+00> : vector<32xf32>
    %306 = vector.multi_reduction <add>, %305, %cst_335 [0] : vector<128x32xf32> to vector<32xf32>
    %307 = vector.shape_cast %306 : vector<32xf32> to vector<1x32xf32>
    %cst_336 = arith.constant 1.280000e+02 : f32
    %308 = vector.broadcast %cst_336 : f32 to vector<1x32xf32>
    %309 = arith.divf %307, %308 : vector<1x32xf32>
    %310 = vector.broadcast %302 : vector<1x32xf32> to vector<128x32xf32>
    %311 = arith.subf %298, %310 : vector<128x32xf32>
    %cst_337 = arith.constant 9.99999974E-6 : f32
    %312 = vector.broadcast %cst_337 : f32 to vector<1x32xf32>
    %313 = arith.addf %309, %312 : vector<1x32xf32>
    %314 = math.rsqrt %313 : vector<1x32xf32>
    %315 = vector.broadcast %314 : vector<1x32xf32> to vector<128x32xf32>
    %316 = arith.mulf %311, %315 : vector<128x32xf32>
    %c0_338 = arith.constant 0 : index
    %c0_339 = arith.constant 0 : index
    %317 = vector.load %arg13[%c0_338, %c0_339] : memref<1x32xf32, #tpu.memory_space<vmem>>, vector<1x32xf32>
    %318 = vector.broadcast %317 : vector<1x32xf32> to vector<128x32xf32>
    %319 = arith.mulf %316, %318 : vector<128x32xf32>
    %c0_340 = arith.constant 0 : index
    %c0_341 = arith.constant 0 : index
    %320 = vector.load %arg14[%c0_340, %c0_341] : memref<1x32xf32, #tpu.memory_space<vmem>>, vector<1x32xf32>
    %321 = vector.broadcast %320 : vector<1x32xf32> to vector<128x32xf32>
    %322 = arith.addf %319, %321 : vector<128x32xf32>
    %cst_342 = arith.constant 0.000000e+00 : f32
    %323 = vector.broadcast %cst_342 : f32 to vector<128x32xf32>
    %324 = arith.cmpf ogt, %322, %323 : vector<128x32xf32>
    %cst_343 = arith.constant 0.00999999977 : f32
    %325 = vector.broadcast %cst_343 : f32 to vector<128x32xf32>
    %326 = arith.mulf %325, %322 : vector<128x32xf32>
    %327 = arith.select %324, %322, %326 : vector<128x32xi1>, vector<128x32xf32>
    %328 = vector.shape_cast %327 : vector<128x32xf32> to vector<2x8x8x32xf32>
    %c0_344 = arith.constant 0 : index
    %c1_345 = arith.constant 1 : index
    %c1_346 = arith.constant 1 : index
    %c0_347 = arith.constant 0 : index
    %329 = vector.load %arg22[%c0_344, %c1_345, %c1_346, %c0_347] : memref<2x10x10x32xf32, #tpu.memory_space<vmem>>, vector<2x8x8x32xf32>
    tpu.vector_store %arg22[%c0_344, %c1_345, %c1_346, %c0_347], %328 {strides = array<i32>} : memref<2x10x10x32xf32, #tpu.memory_space<vmem>>, vector<2x8x8x32xf32>,
    %c0_348 = arith.constant 0 : index
    %c0_349 = arith.constant 0 : index
    %c0_350 = arith.constant 0 : index
    %c0_351 = arith.constant 0 : index
    %330 = vector.load %arg22[%c0_348, %c0_349, %c0_350, %c0_351] : memref<2x10x10x32xf32, #tpu.memory_space<vmem>>, vector<2x8x8x32xf32>
    %331 = vector.shape_cast %330 : vector<2x8x8x32xf32> to vector<128x32xf32>
    %c0_352 = arith.constant 0 : index
    %c0_353 = arith.constant 0 : index
    %c0_354 = arith.constant 0 : index
    %332 = vector.load %arg15[%c0_352, %c0_353, %c0_354] : memref<9x32x32xf32, #tpu.memory_space<vmem>>, vector<1x32x32xf32>
    %333 = vector.shape_cast %332 : vector<1x32x32xf32> to vector<32x32xf32>
    %cst_355 = arith.constant dense<0.000000e+00> : vector<128x32xf32>
    %334 = tpu.matmul %331, %333, %cst_355 {dimension_numbers = #tpu.dot_dimension_numbers<[1], [0], [0], [1], [0, 0, 1, 1], [], []>} : vector<128x32xf32>, vector<32x32xf32>, vector<128x32xf32> -> vector<128x32xf32>
    %c0_356 = arith.constant 0 : index
    %c0_357 = arith.constant 0 : index
    %c1_358 = arith.constant 1 : index
    %c0_359 = arith.constant 0 : index
    %335 = vector.load %arg22[%c0_356, %c0_357, %c1_358, %c0_359] : memref<2x10x10x32xf32, #tpu.memory_space<vmem>>, vector<2x8x8x32xf32>
    %336 = vector.shape_cast %335 : vector<2x8x8x32xf32> to vector<128x32xf32>
    %c1_360 = arith.constant 1 : index
    %c0_361 = arith.constant 0 : index
    %c0_362 = arith.constant 0 : index
    %337 = vector.load %arg15[%c1_360, %c0_361, %c0_362] : memref<9x32x32xf32, #tpu.memory_space<vmem>>, vector<1x32x32xf32>
    %338 = vector.shape_cast %337 : vector<1x32x32xf32> to vector<32x32xf32>
    %cst_363 = arith.constant dense<0.000000e+00> : vector<128x32xf32>
    %339 = tpu.matmul %336, %338, %cst_363 {dimension_numbers = #tpu.dot_dimension_numbers<[1], [0], [0], [1], [0, 0, 1, 1], [], []>} : vector<128x32xf32>, vector<32x32xf32>, vector<128x32xf32> -> vector<128x32xf32>
    %340 = arith.addf %334, %339 : vector<128x32xf32>
    %c0_364 = arith.constant 0 : index
    %c0_365 = arith.constant 0 : index
    %c2_366 = arith.constant 2 : index
    %c0_367 = arith.constant 0 : index
    %341 = vector.load %arg22[%c0_364, %c0_365, %c2_366, %c0_367] : memref<2x10x10x32xf32, #tpu.memory_space<vmem>>, vector<2x8x8x32xf32>
    %342 = vector.shape_cast %341 : vector<2x8x8x32xf32> to vector<128x32xf32>
    %c2_368 = arith.constant 2 : index
    %c0_369 = arith.constant 0 : index
    %c0_370 = arith.constant 0 : index
    %343 = vector.load %arg15[%c2_368, %c0_369, %c0_370] : memref<9x32x32xf32, #tpu.memory_space<vmem>>, vector<1x32x32xf32>
    %344 = vector.shape_cast %343 : vector<1x32x32xf32> to vector<32x32xf32>
    %cst_371 = arith.constant dense<0.000000e+00> : vector<128x32xf32>
    %345 = tpu.matmul %342, %344, %cst_371 {dimension_numbers = #tpu.dot_dimension_numbers<[1], [0], [0], [1], [0, 0, 1, 1], [], []>} : vector<128x32xf32>, vector<32x32xf32>, vector<128x32xf32> -> vector<128x32xf32>
    %346 = arith.addf %340, %345 : vector<128x32xf32>
    %c0_372 = arith.constant 0 : index
    %c1_373 = arith.constant 1 : index
    %c0_374 = arith.constant 0 : index
    %c0_375 = arith.constant 0 : index
    %347 = vector.load %arg22[%c0_372, %c1_373, %c0_374, %c0_375] : memref<2x10x10x32xf32, #tpu.memory_space<vmem>>, vector<2x8x8x32xf32>
    %348 = vector.shape_cast %347 : vector<2x8x8x32xf32> to vector<128x32xf32>
    %c3_376 = arith.constant 3 : index
    %c0_377 = arith.constant 0 : index
    %c0_378 = arith.constant 0 : index
    %349 = vector.load %arg15[%c3_376, %c0_377, %c0_378] : memref<9x32x32xf32, #tpu.memory_space<vmem>>, vector<1x32x32xf32>
    %350 = vector.shape_cast %349 : vector<1x32x32xf32> to vector<32x32xf32>
    %cst_379 = arith.constant dense<0.000000e+00> : vector<128x32xf32>
    %351 = tpu.matmul %348, %350, %cst_379 {dimension_numbers = #tpu.dot_dimension_numbers<[1], [0], [0], [1], [0, 0, 1, 1], [], []>} : vector<128x32xf32>, vector<32x32xf32>, vector<128x32xf32> -> vector<128x32xf32>
    %352 = arith.addf %346, %351 : vector<128x32xf32>
    %c0_380 = arith.constant 0 : index
    %c1_381 = arith.constant 1 : index
    %c1_382 = arith.constant 1 : index
    %c0_383 = arith.constant 0 : index
    %353 = vector.load %arg22[%c0_380, %c1_381, %c1_382, %c0_383] : memref<2x10x10x32xf32, #tpu.memory_space<vmem>>, vector<2x8x8x32xf32>
    %354 = vector.shape_cast %353 : vector<2x8x8x32xf32> to vector<128x32xf32>
    %c4_384 = arith.constant 4 : index
    %c0_385 = arith.constant 0 : index
    %c0_386 = arith.constant 0 : index
    %355 = vector.load %arg15[%c4_384, %c0_385, %c0_386] : memref<9x32x32xf32, #tpu.memory_space<vmem>>, vector<1x32x32xf32>
    %356 = vector.shape_cast %355 : vector<1x32x32xf32> to vector<32x32xf32>
    %cst_387 = arith.constant dense<0.000000e+00> : vector<128x32xf32>
    %357 = tpu.matmul %354, %356, %cst_387 {dimension_numbers = #tpu.dot_dimension_numbers<[1], [0], [0], [1], [0, 0, 1, 1], [], []>} : vector<128x32xf32>, vector<32x32xf32>, vector<128x32xf32> -> vector<128x32xf32>
    %358 = arith.addf %352, %357 : vector<128x32xf32>
    %c0_388 = arith.constant 0 : index
    %c1_389 = arith.constant 1 : index
    %c2_390 = arith.constant 2 : index
    %c0_391 = arith.constant 0 : index
    %359 = vector.load %arg22[%c0_388, %c1_389, %c2_390, %c0_391] : memref<2x10x10x32xf32, #tpu.memory_space<vmem>>, vector<2x8x8x32xf32>
    %360 = vector.shape_cast %359 : vector<2x8x8x32xf32> to vector<128x32xf32>
    %c5_392 = arith.constant 5 : index
    %c0_393 = arith.constant 0 : index
    %c0_394 = arith.constant 0 : index
    %361 = vector.load %arg15[%c5_392, %c0_393, %c0_394] : memref<9x32x32xf32, #tpu.memory_space<vmem>>, vector<1x32x32xf32>
    %362 = vector.shape_cast %361 : vector<1x32x32xf32> to vector<32x32xf32>
    %cst_395 = arith.constant dense<0.000000e+00> : vector<128x32xf32>
    %363 = tpu.matmul %360, %362, %cst_395 {dimension_numbers = #tpu.dot_dimension_numbers<[1], [0], [0], [1], [0, 0, 1, 1], [], []>} : vector<128x32xf32>, vector<32x32xf32>, vector<128x32xf32> -> vector<128x32xf32>
    %364 = arith.addf %358, %363 : vector<128x32xf32>
    %c0_396 = arith.constant 0 : index
    %c2_397 = arith.constant 2 : index
    %c0_398 = arith.constant 0 : index
    %c0_399 = arith.constant 0 : index
    %365 = vector.load %arg22[%c0_396, %c2_397, %c0_398, %c0_399] : memref<2x10x10x32xf32, #tpu.memory_space<vmem>>, vector<2x8x8x32xf32>
    %366 = vector.shape_cast %365 : vector<2x8x8x32xf32> to vector<128x32xf32>
    %c6_400 = arith.constant 6 : index
    %c0_401 = arith.constant 0 : index
    %c0_402 = arith.constant 0 : index
    %367 = vector.load %arg15[%c6_400, %c0_401, %c0_402] : memref<9x32x32xf32, #tpu.memory_space<vmem>>, vector<1x32x32xf32>
    %368 = vector.shape_cast %367 : vector<1x32x32xf32> to vector<32x32xf32>
    %cst_403 = arith.constant dense<0.000000e+00> : vector<128x32xf32>
    %369 = tpu.matmul %366, %368, %cst_403 {dimension_numbers = #tpu.dot_dimension_numbers<[1], [0], [0], [1], [0, 0, 1, 1], [], []>} : vector<128x32xf32>, vector<32x32xf32>, vector<128x32xf32> -> vector<128x32xf32>
    %370 = arith.addf %364, %369 : vector<128x32xf32>
    %c0_404 = arith.constant 0 : index
    %c2_405 = arith.constant 2 : index
    %c1_406 = arith.constant 1 : index
    %c0_407 = arith.constant 0 : index
    %371 = vector.load %arg22[%c0_404, %c2_405, %c1_406, %c0_407] : memref<2x10x10x32xf32, #tpu.memory_space<vmem>>, vector<2x8x8x32xf32>
    %372 = vector.shape_cast %371 : vector<2x8x8x32xf32> to vector<128x32xf32>
    %c7_408 = arith.constant 7 : index
    %c0_409 = arith.constant 0 : index
    %c0_410 = arith.constant 0 : index
    %373 = vector.load %arg15[%c7_408, %c0_409, %c0_410] : memref<9x32x32xf32, #tpu.memory_space<vmem>>, vector<1x32x32xf32>
    %374 = vector.shape_cast %373 : vector<1x32x32xf32> to vector<32x32xf32>
    %cst_411 = arith.constant dense<0.000000e+00> : vector<128x32xf32>
    %375 = tpu.matmul %372, %374, %cst_411 {dimension_numbers = #tpu.dot_dimension_numbers<[1], [0], [0], [1], [0, 0, 1, 1], [], []>} : vector<128x32xf32>, vector<32x32xf32>, vector<128x32xf32> -> vector<128x32xf32>
    %376 = arith.addf %370, %375 : vector<128x32xf32>
    %c0_412 = arith.constant 0 : index
    %c2_413 = arith.constant 2 : index
    %c2_414 = arith.constant 2 : index
    %c0_415 = arith.constant 0 : index
    %377 = vector.load %arg22[%c0_412, %c2_413, %c2_414, %c0_415] : memref<2x10x10x32xf32, #tpu.memory_space<vmem>>, vector<2x8x8x32xf32>
    %378 = vector.shape_cast %377 : vector<2x8x8x32xf32> to vector<128x32xf32>
    %c8_416 = arith.constant 8 : index
    %c0_417 = arith.constant 0 : index
    %c0_418 = arith.constant 0 : index
    %379 = vector.load %arg15[%c8_416, %c0_417, %c0_418] : memref<9x32x32xf32, #tpu.memory_space<vmem>>, vector<1x32x32xf32>
    %380 = vector.shape_cast %379 : vector<1x32x32xf32> to vector<32x32xf32>
    %cst_419 = arith.constant dense<0.000000e+00> : vector<128x32xf32>
    %381 = tpu.matmul %378, %380, %cst_419 {dimension_numbers = #tpu.dot_dimension_numbers<[1], [0], [0], [1], [0, 0, 1, 1], [], []>} : vector<128x32xf32>, vector<32x32xf32>, vector<128x32xf32> -> vector<128x32xf32>
    %382 = arith.addf %376, %381 : vector<128x32xf32>
    %c0_420 = arith.constant 0 : index
    %c0_421 = arith.constant 0 : index
    %383 = vector.load %arg16[%c0_420, %c0_421] : memref<1x32xf32, #tpu.memory_space<vmem>>, vector<1x32xf32>
    %384 = vector.broadcast %383 : vector<1x32xf32> to vector<128x32xf32>
    %385 = arith.addf %382, %384 : vector<128x32xf32>
    %cst_422 = arith.constant dense<0.000000e+00> : vector<32xf32>
    %386 = vector.multi_reduction <add>, %385, %cst_422 [0] : vector<128x32xf32> to vector<32xf32>
    %387 = vector.shape_cast %386 : vector<32xf32> to vector<1x32xf32>
    %cst_423 = arith.constant 1.280000e+02 : f32
    %388 = vector.broadcast %cst_423 : f32 to vector<1x32xf32>
    %389 = arith.divf %387, %388 : vector<1x32xf32>
    %390 = vector.broadcast %389 : vector<1x32xf32> to vector<128x32xf32>
    %391 = arith.subf %385, %390 : vector<128x32xf32>
    %392 = arith.mulf %391, %391 : vector<128x32xf32>
    %cst_424 = arith.constant dense<0.000000e+00> : vector<32xf32>
    %393 = vector.multi_reduction <add>, %392, %cst_424 [0] : vector<128x32xf32> to vector<32xf32>
    %394 = vector.shape_cast %393 : vector<32xf32> to vector<1x32xf32>
    %cst_425 = arith.constant 1.280000e+02 : f32
    %395 = vector.broadcast %cst_425 : f32 to vector<1x32xf32>
    %396 = arith.divf %394, %395 : vector<1x32xf32>
    %397 = vector.broadcast %389 : vector<1x32xf32> to vector<128x32xf32>
    %398 = arith.subf %385, %397 : vector<128x32xf32>
    %cst_426 = arith.constant 9.99999974E-6 : f32
    %399 = vector.broadcast %cst_426 : f32 to vector<1x32xf32>
    %400 = arith.addf %396, %399 : vector<1x32xf32>
    %401 = math.rsqrt %400 : vector<1x32xf32>
    %402 = vector.broadcast %401 : vector<1x32xf32> to vector<128x32xf32>
    %403 = arith.mulf %398, %402 : vector<128x32xf32>
    %c0_427 = arith.constant 0 : index
    %c0_428 = arith.constant 0 : index
    %404 = vector.load %arg17[%c0_427, %c0_428] : memref<1x32xf32, #tpu.memory_space<vmem>>, vector<1x32xf32>
    %405 = vector.broadcast %404 : vector<1x32xf32> to vector<128x32xf32>
    %406 = arith.mulf %403, %405 : vector<128x32xf32>
    %c0_429 = arith.constant 0 : index
    %c0_430 = arith.constant 0 : index
    %407 = vector.load %arg18[%c0_429, %c0_430] : memref<1x32xf32, #tpu.memory_space<vmem>>, vector<1x32xf32>
    %408 = vector.broadcast %407 : vector<1x32xf32> to vector<128x32xf32>
    %409 = arith.addf %406, %408 : vector<128x32xf32>
    %410 = arith.addf %240, %409 : vector<128x32xf32>
    %cst_431 = arith.constant 0.000000e+00 : f32
    %411 = vector.broadcast %cst_431 : f32 to vector<128x32xf32>
    %412 = arith.cmpf ogt, %410, %411 : vector<128x32xf32>
    %cst_432 = arith.constant 0.00999999977 : f32
    %413 = vector.broadcast %cst_432 : f32 to vector<128x32xf32>
    %414 = arith.mulf %413, %410 : vector<128x32xf32>
    %415 = arith.select %412, %410, %414 : vector<128x32xi1>, vector<128x32xf32>
    %c0_433 = arith.constant 0 : index
    %c0_434 = arith.constant 0 : index
    %416 = vector.load %arg19[%c0_433, %c0_434] : memref<32x4xf32, #tpu.memory_space<vmem>>, vector<32x4xf32>
    %cst_435 = arith.constant dense<0.000000e+00> : vector<128x4xf32>
    %417 = tpu.matmul %415, %416, %cst_435 {dimension_numbers = #tpu.dot_dimension_numbers<[1], [0], [0], [1], [0, 0, 1, 1], [], []>} : vector<128x32xf32>, vector<32x4xf32>, vector<128x4xf32> -> vector<128x4xf32>
    %c0_436 = arith.constant 0 : index
    %c0_437 = arith.constant 0 : index
    %418 = vector.load %arg20[%c0_436, %c0_437] : memref<1x4xf32, #tpu.memory_space<vmem>>, vector<1x4xf32>
    %419 = vector.broadcast %418 : vector<1x4xf32> to vector<128x4xf32>
    %420 = arith.addf %417, %419 : vector<128x4xf32>
    %cst_438 = arith.constant 0.000000e+00 : f32
    %421 = vector.broadcast %cst_438 : f32 to vector<128x4xf32>
    %422 = arith.cmpf ogt, %420, %421 : vector<128x4xf32>
    %cst_439 = arith.constant 0.00999999977 : f32
    %423 = vector.broadcast %cst_439 : f32 to vector<128x4xf32>
    %424 = arith.mulf %423, %420 : vector<128x4xf32>
    %425 = arith.select %422, %420, %424 : vector<128x4xi1>, vector<128x4xf32>
    %c0_440 = arith.constant 0 : index
    %c0_441 = arith.constant 0 : index
    %426 = vector.load %arg21[%c0_440, %c0_441] : memref<128x4xf32, #tpu.memory_space<vmem>>, vector<128x4xf32>
    tpu.vector_store %arg21[%c0_440, %c0_441], %425 {strides = array<i32>} : memref<128x4xf32, #tpu.memory_space<vmem>>, vector<128x4xf32>,
    return
  }
}

module attributes {stable_mosaic.version = 11 : i64} {
  func.func @_heads_kernel(%arg0: memref<2x128xf32, #tpu.memory_space<vmem>>, %arg1: memref<2x128xf32, #tpu.memory_space<vmem>>, %arg2: memref<128x64xf32, #tpu.memory_space<vmem>>, %arg3: memref<1x64xf32, #tpu.memory_space<vmem>>, %arg4: memref<128x32xf32, #tpu.memory_space<vmem>>, %arg5: memref<1x32xf32, #tpu.memory_space<vmem>>, %arg6: memref<32x1xf32, #tpu.memory_space<vmem>>, %arg7: memref<1x1xf32, #tpu.memory_space<vmem>>, %arg8: memref<2x64xf32, #tpu.memory_space<vmem>>, %arg9: memref<2x1xf32, #tpu.memory_space<vmem>>) attributes {dimension_semantics = [], scalar_prefetch = 0 : i64, scratch_operands = 0 : i64, tpu.core_type = #tpu.core_type<tc>} {
    %c0 = arith.constant 0 : index
    %c0_0 = arith.constant 0 : index
    %0 = vector.load %arg0[%c0, %c0_0] : memref<2x128xf32, #tpu.memory_space<vmem>>, vector<2x128xf32>
    %c0_1 = arith.constant 0 : index
    %c0_2 = arith.constant 0 : index
    %1 = vector.load %arg2[%c0_1, %c0_2] : memref<128x64xf32, #tpu.memory_space<vmem>>, vector<128x64xf32>
    %cst = arith.constant dense<0.000000e+00> : vector<2x64xf32>
    %2 = tpu.matmul %0, %1, %cst {dimension_numbers = #tpu.dot_dimension_numbers<[1], [0], [0], [1], [0, 0, 1, 1], [], []>} : vector<2x128xf32>, vector<128x64xf32>, vector<2x64xf32> -> vector<2x64xf32>
    %c0_3 = arith.constant 0 : index
    %c0_4 = arith.constant 0 : index
    %3 = vector.load %arg3[%c0_3, %c0_4] : memref<1x64xf32, #tpu.memory_space<vmem>>, vector<1x64xf32>
    %4 = vector.broadcast %3 : vector<1x64xf32> to vector<2x64xf32>
    %5 = arith.addf %2, %4 : vector<2x64xf32>
    %cst_5 = arith.constant dense<0xFF800000> : vector<2xf32>
    %6 = vector.multi_reduction <maximumf>, %5, %cst_5 [1] : vector<2x64xf32> to vector<2xf32>
    %7 = vector.shape_cast %6 : vector<2xf32> to vector<2x1xf32>
    %8 = vector.broadcast %7 : vector<2x1xf32> to vector<2x64xf32>
    %9 = arith.subf %5, %8 : vector<2x64xf32>
    %10 = math.exp %9 : vector<2x64xf32>
    %cst_6 = arith.constant dense<0.000000e+00> : vector<2xf32>
    %11 = vector.multi_reduction <add>, %10, %cst_6 [1] : vector<2x64xf32> to vector<2xf32>
    %12 = vector.shape_cast %11 : vector<2xf32> to vector<2x1xf32>
    %13 = math.log %12 : vector<2x1xf32>
    %14 = vector.broadcast %13 : vector<2x1xf32> to vector<2x64xf32>
    %15 = arith.subf %9, %14 : vector<2x64xf32>
    %c0_7 = arith.constant 0 : index
    %c0_8 = arith.constant 0 : index
    %16 = vector.load %arg8[%c0_7, %c0_8] : memref<2x64xf32, #tpu.memory_space<vmem>>, vector<2x64xf32>
    tpu.vector_store %arg8[%c0_7, %c0_8], %15 {strides = array<i32>} : memref<2x64xf32, #tpu.memory_space<vmem>>, vector<2x64xf32>,
    %c0_9 = arith.constant 0 : index
    %c0_10 = arith.constant 0 : index
    %17 = vector.load %arg1[%c0_9, %c0_10] : memref<2x128xf32, #tpu.memory_space<vmem>>, vector<2x128xf32>
    %c0_11 = arith.constant 0 : index
    %c0_12 = arith.constant 0 : index
    %18 = vector.load %arg4[%c0_11, %c0_12] : memref<128x32xf32, #tpu.memory_space<vmem>>, vector<128x32xf32>
    %cst_13 = arith.constant dense<0.000000e+00> : vector<2x32xf32>
    %19 = tpu.matmul %17, %18, %cst_13 {dimension_numbers = #tpu.dot_dimension_numbers<[1], [0], [0], [1], [0, 0, 1, 1], [], []>} : vector<2x128xf32>, vector<128x32xf32>, vector<2x32xf32> -> vector<2x32xf32>
    %c0_14 = arith.constant 0 : index
    %c0_15 = arith.constant 0 : index
    %20 = vector.load %arg5[%c0_14, %c0_15] : memref<1x32xf32, #tpu.memory_space<vmem>>, vector<1x32xf32>
    %21 = vector.broadcast %20 : vector<1x32xf32> to vector<2x32xf32>
    %22 = arith.addf %19, %21 : vector<2x32xf32>
    %cst_16 = arith.constant 0.000000e+00 : f32
    %23 = vector.broadcast %cst_16 : f32 to vector<2x32xf32>
    %24 = arith.cmpf ogt, %22, %23 : vector<2x32xf32>
    %cst_17 = arith.constant 0.00999999977 : f32
    %25 = vector.broadcast %cst_17 : f32 to vector<2x32xf32>
    %26 = arith.mulf %25, %22 : vector<2x32xf32>
    %27 = arith.select %24, %22, %26 : vector<2x32xi1>, vector<2x32xf32>
    %c0_18 = arith.constant 0 : index
    %c0_19 = arith.constant 0 : index
    %28 = vector.load %arg6[%c0_18, %c0_19] : memref<32x1xf32, #tpu.memory_space<vmem>>, vector<32x1xf32>
    %cst_20 = arith.constant dense<0.000000e+00> : vector<2x1xf32>
    %29 = tpu.matmul %27, %28, %cst_20 {dimension_numbers = #tpu.dot_dimension_numbers<[1], [0], [0], [1], [0, 0, 1, 1], [], []>} : vector<2x32xf32>, vector<32x1xf32>, vector<2x1xf32> -> vector<2x1xf32>
    %c0_21 = arith.constant 0 : index
    %c0_22 = arith.constant 0 : index
    %30 = vector.load %arg7[%c0_21, %c0_22] : memref<1x1xf32, #tpu.memory_space<vmem>>, vector<1x1xf32>
    %31 = vector.broadcast %30 : vector<1x1xf32> to vector<2x1xf32>
    %32 = arith.addf %29, %31 : vector<2x1xf32>
    %33 = math.tanh %32 : vector<2x1xf32>
    %c0_23 = arith.constant 0 : index
    %c0_24 = arith.constant 0 : index
    %34 = vector.load %arg9[%c0_23, %c0_24] : memref<2x1xf32, #tpu.memory_space<vmem>>, vector<2x1xf32>
    tpu.vector_store %arg9[%c0_23, %c0_24], %33 {strides = array<i32>} : memref<2x1xf32, #tpu.memory_space<vmem>>, vector<2x1xf32>,
    return
  }
}

</mosaic_0001>

<llo_original>
// kernel: policy_value_forward.3
$region0: #{policy_value_forward.3}
  #allocation0 [shape = 'u32[]', space=smem, size = 0x4, offset = 0x4, fixed_abs, tag = 'smem constant byte address 0x4 - core index']
  #allocation1 [shape = 'u32[144,128]{1,0:T(1,128)}', space=vmem, size = 0x12000, scoped, tag = 'internal scratch']
  #allocation2 [shape = 'f32[1,1]{1,0:T(1,128)S(1)}', space=vmem, size = 0x200, scoped, tag = 'scoped memory for policy_value_forward.3']
  %s0 = inlined_call_operand.vmem [shape: f32[2,128], index: 0, kind: input, shape index: {}]
  %s1 = inlined_call_operand.vmem [shape: f32[2,128], index: 1, kind: input, shape index: {}]
  %s2 = inlined_call_operand.vmem [shape: f32[128,64], index: 2, kind: input, shape index: {}]
  %s3 = inlined_call_operand.vmem [shape: f32[1,64], index: 3, kind: input, shape index: {}]
  %s4 = inlined_call_operand.vmem [shape: f32[128,32], index: 4, kind: input, shape index: {}]
  %s5 = inlined_call_operand.vmem [shape: f32[1,32], index: 5, kind: input, shape index: {}]
  %s6 = inlined_call_operand.vmem [shape: f32[32,1], index: 6, kind: input, shape index: {}]
  %s7 = inlined_call_operand.<no memory space> [shape: f32[1,1], index: 7, kind: input, shape index: {}]
  %s8 = inlined_call_operand.hbm [shape: f32[2,64], index: 8, kind: output, shape index: {0}]
  %s9 = inlined_call_operand.vmem [shape: f32[2,1], index: 9, kind: output, shape index: {1}]
  %10 = xla_tuple %s8, %s9
  %s11 = sld [smem:[#allocation0]]
  $region50: #{policy_value_forward.3} parent=0
    _
  %s13 = ssub.s32 1, %s11
  %s14 = scalar_select 0, %s13, %s11
  %v15 = vstv %s7
  %16 = vst [vmem:[#allocation2] sm:$0x1] %v15
  $region1: #{policy_value_forward.3} parent=0
    #allocation3 [shape = 'u8[1024]{0}', space=vmem, size = 0x400, scoped, tag = 'output window, operand 0, single buffered']
    #allocation4 [shape = 's32[1]{0}', space=sflag, size = 0x4, scoped, tag = 'scoped memory for policy_value_forward.3']
    %17 = vsyncpa [#allocation4], 0
    // Predicated region
    $region2: #{policy_value_forward.3} parent=1 // pred_check
      _
    $region3: #{policy_value_forward.3} parent=1 // pred_check_branch
      %19 = sbr.rel (0) target = $region5
    $region4: #{policy_value_forward.3} parent=1 // pred_region
      _
    $region5: #{policy_value_forward.3} parent=1 // pred_fallthru
      _
    // Predicated region
    $region6: #{policy_value_forward.3} parent=1 // pred_check
      _
    $region7: #{policy_value_forward.3} parent=1 // pred_check_branch
      %21 = sbr.rel (0) target = $region9
    $region8: #{policy_value_forward.3} parent=1 // pred_region
      _
    $region9: #{policy_value_forward.3} parent=1 // pred_fallthru
      _
    // Predicated region
    $region10: #{policy_value_forward.3} parent=1 // pred_check
      _
    $region11: #{policy_value_forward.3} parent=1 // pred_check_branch
      %23 = sbr.rel (0) target = $region13
    $region12: #{policy_value_forward.3} parent=1 // pred_region
      _
    $region13: #{policy_value_forward.3} parent=1 // pred_fallthru
      _
    // Predicated region
    $region14: #{policy_value_forward.3} parent=1 // pred_check
      _
    $region15: #{policy_value_forward.3} parent=1 // pred_check_branch
      %25 = sbr.rel (0) target = $region17
    $region16: #{policy_value_forward.3} parent=1 // pred_region
      _
    $region17: #{policy_value_forward.3} parent=1 // pred_fallthru
      _
    // Predicated region
    $region18: #{policy_value_forward.3} parent=1 // pred_check
      _
    $region19: #{policy_value_forward.3} parent=1 // pred_check_branch
      %27 = sbr.rel (0) target = $region21
    $region20: #{policy_value_forward.3} parent=1 // pred_region
      _
    $region21: #{policy_value_forward.3} parent=1 // pred_fallthru
      _
    // Predicated region
    $region22: #{policy_value_forward.3} parent=1 // pred_check
      _
    $region23: #{policy_value_forward.3} parent=1 // pred_check_branch
      %29 = sbr.rel (0) target = $region25
    $region24: #{policy_value_forward.3} parent=1 // pred_region
      _
    $region25: #{policy_value_forward.3} parent=1 // pred_fallthru
      _
    // Predicated region
    $region26: #{policy_value_forward.3} parent=1 // pred_check
      _
    $region27: #{policy_value_forward.3} parent=1 // pred_check_branch
      %31 = sbr.rel (0) target = $region29
    $region28: #{policy_value_forward.3} parent=1 // pred_region
      _
    $region29: #{policy_value_forward.3} parent=1 // pred_fallthru
      _
    // Predicated region
    $region30: #{policy_value_forward.3} parent=1 // pred_check
      _
    $region31: #{policy_value_forward.3} parent=1 // pred_check_branch
      %33 = sbr.rel (0) target = $region33
    $region32: #{policy_value_forward.3} parent=1 // pred_region
      _
    $region33: #{policy_value_forward.3} parent=1 // pred_fallthru
      _
    %v34 = vld [vmem:[%s0] sm:$0x3]
    %v35 = vld [vmem:[%s2] sm:$0xff]
    %v36 = vld [vmem:[%s2 + $0x8] sm:$0xff]
    %v37 = vld [vmem:[%s2 + $0x10] sm:$0xff]
    %v38 = vld [vmem:[%s2 + $0x18] sm:$0xff]
    %v39 = vld [vmem:[%s2 + $0x20] sm:$0xff]
    %v40 = vld [vmem:[%s2 + $0x28] sm:$0xff]
    %v41 = vld [vmem:[%s2 + $0x30] sm:$0xff]
    %v42 = vld [vmem:[%s2 + $0x38] sm:$0xff]
    %v43 = vld [vmem:[%s2 + $0x40] sm:$0xff]
    %v44 = vld [vmem:[%s2 + $0x48] sm:$0xff]
    %v45 = vld [vmem:[%s2 + $0x50] sm:$0xff]
    %v46 = vld [vmem:[%s2 + $0x58] sm:$0xff]
    %v47 = vld [vmem:[%s2 + $0x60] sm:$0xff]
    %v48 = vld [vmem:[%s2 + $0x68] sm:$0xff]
    %v49 = vld [vmem:[%s2 + $0x70] sm:$0xff]
    %v50 = vld [vmem:[%s2 + $0x78] sm:$0xff]
    %v51 = vld [vmem:[%s3] sm:$0x1]
    %v53 = vlaneseq
    %v54 = vshrl.u32 %v53, 7
    %v55 = vsub.s32 0, %v54
    %v56 = vrot.slane %v51, %v55
    %58 = vmatprep.subr.mxu0 0.0
    %59 = vmatpush1.msra.mxu0 %v50
    %60 = vmatprep.subr.mxu0 0.0
    %61 = vmatpush1.msra.mxu0 %v49
    %62 = vmatprep.subr.mxu0 0.0
    %63 = vmatpush1.msra.mxu0 %v48
    %64 = vmatprep.subr.mxu0 0.0
    %65 = vmatpush1.msra.mxu0 %v47
    %66 = vmatprep.subr.mxu0 0.0
    %67 = vmatpush1.msra.mxu0 %v46
    %68 = vmatprep.subr.mxu0 0.0
    %69 = vmatpush1.msra.mxu0 %v45
    %70 = vmatprep.subr.mxu0 0.0
    %71 = vmatpush1.msra.mxu0 %v44
    %72 = vmatprep.subr.mxu0 0.0
    %73 = vmatpush1.msra.mxu0 %v43
    %74 = vmatprep.subr.mxu0 0.0
    %75 = vmatpush1.msra.mxu0 %v42
    %76 = vmatprep.subr.mxu0 0.0
    %77 = vmatpush1.msra.mxu0 %v41
    %78 = vmatprep.subr.mxu0 0.0
    %79 = vmatpush1.msra.mxu0 %v40
    %80 = vmatprep.subr.mxu0 0.0
    %81 = vmatpush1.msra.mxu0 %v39
    %82 = vmatprep.subr.mxu0 0.0
    %83 = vmatpush1.msra.mxu0 %v38
    %84 = vmatprep.subr.mxu0 0.0
    %85 = vmatpush1.msra.mxu0 %v37
    %86 = vmatprep.subr.mxu0 0.0
    %87 = vmatpush1.msra.mxu0 %v36
    %88 = vmatprep.subr.mxu0 0.0
    %89 = vmatpush1.msra.mxu0 %v35
    %90 = vmatprep.subr.mxu0 0.0
    %91 = vmatpush2.msra.mxu0 0.0
    %92 = vmatprep.subr.mxu0 0.0
    %93 = vmatpush2.msra.mxu0 0.0
    %94 = vmatprep.subr.mxu0 0.0
    %95 = vmatpush2.msra.mxu0 0.0
    %96 = vmatprep.subr.mxu0 0.0
    %97 = vmatpush2.msra.mxu0 0.0
    %98 = vmatprep.subr.mxu0 0.0
    %99 = vmatpush2.msra.mxu0 0.0
    %100 = vmatprep.subr.mxu0 0.0
    %101 = vmatpush2.msra.mxu0 0.0
    %102 = vmatprep.subr.mxu0 0.0
    %103 = vmatpush2.msra.mxu0 0.0
    %104 = vmatprep.subr.mxu0 0.0
    %105 = vmatpush2.msra.mxu0 0.0
    %106 = vmatprep.subr.mxu0 0.0
    %107 = vmatpush2.msra.mxu0 0.0
    %108 = vmatprep.subr.mxu0 0.0
    %109 = vmatpush2.msra.mxu0 0.0
    %110 = vmatprep.subr.mxu0 0.0
    %111 = vmatpush2.msra.mxu0 0.0
    %112 = vmatprep.subr.mxu0 0.0
    %113 = vmatpush2.msra.mxu0 0.0
    %114 = vmatprep.subr.mxu0 0.0
    %115 = vmatpush2.msra.mxu0 0.0
    %116 = vmatprep.subr.mxu0 0.0
    %117 = vmatpush2.msra.mxu0 0.0
    %118 = vmatprep.subr.mxu0 0.0
    %119 = vmatpush2.msra.mxu0 0.0
    %120 = vmatprep.subr.mxu0 0.0
    %121 = vmatpush2.msra.mxu0 0.0
    %122 = vmatprep.mubr.f32.mxu0 0.0
    %123 = vmatmul.mubr.f32.gmra.mxu0 %v34
    %v124 = vpop.f32.mrf.mxu0
    %v125 = vadd.f32 %v56, %v124
    %v126 = vpop.f32.mrf.mxu0
    %127 = vdwg.mxu0
    %vm128 = vcmask 517120
    %v129 = vsel %vm128, %v125, -inf
    %130 = vmax.xlane.f32.xlu0 %v129
    %v131 = vpop.xlane.xlu0 %130
    %v132 = vsub.f32 %v125, %v131
    %v133 = vmul.f32 %v132, 1.442695
    %v134 = vpow.pop %v133
    %v135 = vsel %vm128, %v134, 0.0
    %136 = vadd.xlane.f32.xlu0 %v135
    %v137 = vpop.xlane.xlu0 %136
    %v138 = vlog2.pop %v137
    %v139 = vmul.f32 %v138, 0.6931472
    %v140 = vsub.f32 %v132, %v139
    %141 = vst.msk [vmem:[#allocation3] sm:$0x3] %vm128, %v140
    %v142 = vld [vmem:[%s1] sm:$0x3]
    %v143 = vld [vmem:[%s4] sm:$0xff]
    %v144 = vld [vmem:[%s4 + $0x8] sm:$0xff]
    %v145 = vld [vmem:[%s4 + $0x10] sm:$0xff]
    %v146 = vld [vmem:[%s4 + $0x18] sm:$0xff]
    %v147 = vld [vmem:[%s4 + $0x20] sm:$0xff]
    %v148 = vld [vmem:[%s4 + $0x28] sm:$0xff]
    %v149 = vld [vmem:[%s4 + $0x30] sm:$0xff]
    %v150 = vld [vmem:[%s4 + $0x38] sm:$0xff]
    %v151 = vld [vmem:[%s4 + $0x40] sm:$0xff]
    %v152 = vld [vmem:[%s4 + $0x48] sm:$0xff]
    %v153 = vld [vmem:[%s4 + $0x50] sm:$0xff]
    %v154 = vld [vmem:[%s4 + $0x58] sm:$0xff]
    %v155 = vld [vmem:[%s4 + $0x60] sm:$0xff]
    %v156 = vld [vmem:[%s4 + $0x68] sm:$0xff]
    %v157 = vld [vmem:[%s4 + $0x70] sm:$0xff]
    %v158 = vld [vmem:[%s4 + $0x78] sm:$0xff]
    %v159 = vld [vmem:[%s5] sm:$0x1]
    %v161 = vlaneseq
    %v162 = vshrl.u32 %v161, 7
    %v163 = vsub.s32 0, %v162
    %v164 = vrot.slane %v159, %v163
    %166 = vmatprep.subr.mxu0 0.0
    %167 = vmatpush1.msra.mxu0 %v158
    %168 = vmatprep.subr.mxu0 0.0
    %169 = vmatpush1.msra.mxu0 %v157
    %170 = vmatprep.subr.mxu0 0.0
    %171 = vmatpush1.msra.mxu0 %v156
    %172 = vmatprep.subr.mxu0 0.0
    %173 = vmatpush1.msra.mxu0 %v155
    %174 = vmatprep.subr.mxu0 0.0
    %175 = vmatpush1.msra.mxu0 %v154
    %176 = vmatprep.subr.mxu0 0.0
    %177 = vmatpush1.msra.mxu0 %v153
    %178 = vmatprep.subr.mxu0 0.0
    %179 = vmatpush1.msra.mxu0 %v152
    %180 = vmatprep.subr.mxu0 0.0
    %181 = vmatpush1.msra.mxu0 %v151
    %182 = vmatprep.subr.mxu0 0.0
    %183 = vmatpush1.msra.mxu0 %v150
    %184 = vmatprep.subr.mxu0 0.0
    %185 = vmatpush1.msra.mxu0 %v149
    %186 = vmatprep.subr.mxu0 0.0
    %187 = vmatpush1.msra.mxu0 %v148
    %188 = vmatprep.subr.mxu0 0.0
    %189 = vmatpush1.msra.mxu0 %v147
    %190 = vmatprep.subr.mxu0 0.0
    %191 = vmatpush1.msra.mxu0 %v146
    %192 = vmatprep.subr.mxu0 0.0
    %193 = vmatpush1.msra.mxu0 %v145
    %194 = vmatprep.subr.mxu0 0.0
    %195 = vmatpush1.msra.mxu0 %v144
    %196 = vmatprep.subr.mxu0 0.0
    %197 = vmatpush1.msra.mxu0 %v143
    %198 = vmatprep.subr.mxu0 0.0
    %199 = vmatpush2.msra.mxu0 0.0
    %200 = vmatprep.subr.mxu0 0.0
    %201 = vmatpush2.msra.mxu0 0.0
    %202 = vmatprep.subr.mxu0 0.0
    %203 = vmatpush2.msra.mxu0 0.0
    %204 = vmatprep.subr.mxu0 0.0
    %205 = vmatpush2.msra.mxu0 0.0
    %206 = vmatprep.subr.mxu0 0.0
    %207 = vmatpush2.msra.mxu0 0.0
    %208 = vmatprep.subr.mxu0 0.0
    %209 = vmatpush2.msra.mxu0 0.0
    %210 = vmatprep.subr.mxu0 0.0
    %211 = vmatpush2.msra.mxu0 0.0
    %212 = vmatprep.subr.mxu0 0.0
    %213 = vmatpush2.msra.mxu0 0.0
    %214 = vmatprep.subr.mxu0 0.0
    %215 = vmatpush2.msra.mxu0 0.0
    %216 = vmatprep.subr.mxu0 0.0
    %217 = vmatpush2.msra.mxu0 0.0
    %218 = vmatprep.subr.mxu0 0.0
    %219 = vmatpush2.msra.mxu0 0.0
    %220 = vmatprep.subr.mxu0 0.0
    %221 = vmatpush2.msra.mxu0 0.0
    %222 = vmatprep.subr.mxu0 0.0
    %223 = vmatpush2.msra.mxu0 0.0
    %224 = vmatprep.subr.mxu0 0.0
    %225 = vmatpush2.msra.mxu0 0.0
    %226 = vmatprep.subr.mxu0 0.0
    %227 = vmatpush2.msra.mxu0 0.0
    %228 = vmatprep.subr.mxu0 0.0
    %229 = vmatpush2.msra.mxu0 0.0
    %230 = vmatprep.mubr.f32.mxu0 0.0
    %231 = vmatmul.mubr.f32.gmra.mxu0 %v142
    %v232 = vpop.f32.mrf.mxu0
    %v233 = vadd.f32 %v164, %v232
    %v234 = vpop.f32.mrf.mxu0
    %235 = vdwg.mxu0
    %vm236 = vcmp.gt.f32.partialorder %v233, 0.0
    %v237 = vmul.f32 %v233, 0.01
    %v238 = vsel %vm236, %v233, %v237
    %v239 = vld [vmem:[%s6] sm:$0xff]
    %v240 = vld [vmem:[%s6 + $0x8] sm:$0xff]
    %v241 = vld [vmem:[%s6 + $0x10] sm:$0xff]
    %v242 = vld [vmem:[%s6 + $0x18] sm:$0xff]
    %v243 = vld [vmem:[#allocation2] sm:$0x1]
    %v245 = vlaneseq
    %v246 = vshrl.u32 %v245, 7
    %v247 = vsub.s32 0, %v246
    %v248 = vrot.slane %v243, %v247
    %vm250 = vcmask 261120
    %v252 = vsel %vm250, %v238, 0
    %254 = vmatprep.subr.mxu0 0.0
    %255 = vmatpush1.msra.mxu0 0.0
    %256 = vmatprep.subr.mxu0 0.0
    %257 = vmatpush1.msra.mxu0 0.0
    %258 = vmatprep.subr.mxu0 0.0
    %259 = vmatpush1.msra.mxu0 0.0
    %260 = vmatprep.subr.mxu0 0.0
    %261 = vmatpush1.msra.mxu0 0.0
    %262 = vmatprep.subr.mxu0 0.0
    %263 = vmatpush1.msra.mxu0 0.0
    %264 = vmatprep.subr.mxu0 0.0
    %265 = vmatpush1.msra.mxu0 0.0
    %266 = vmatprep.subr.mxu0 0.0
    %267 = vmatpush1.msra.mxu0 0.0
    %268 = vmatprep.subr.mxu0 0.0
    %269 = vmatpush1.msra.mxu0 0.0
    %270 = vmatprep.subr.mxu0 0.0
    %271 = vmatpush1.msra.mxu0 0.0
    %272 = vmatprep.subr.mxu0 0.0
    %273 = vmatpush1.msra.mxu0 0.0
    %274 = vmatprep.subr.mxu0 0.0
    %275 = vmatpush1.msra.mxu0 0.0
    %276 = vmatprep.subr.mxu0 0.0
    %277 = vmatpush1.msra.mxu0 0.0
    %278 = vmatprep.subr.mxu0 0.0
    %279 = vmatpush1.msra.mxu0 %v242
    %280 = vmatprep.subr.mxu0 0.0
    %281 = vmatpush1.msra.mxu0 %v241
    %282 = vmatprep.subr.mxu0 0.0
    %283 = vmatpush1.msra.mxu0 %v240
    %284 = vmatprep.subr.mxu0 0.0
    %285 = vmatpush1.msra.mxu0 %v239
    %286 = vmatprep.subr.mxu0 0.0
    %287 = vmatpush2.msra.mxu0 0.0
    %288 = vmatprep.subr.mxu0 0.0
    %289 = vmatpush2.msra.mxu0 0.0
    %290 = vmatprep.subr.mxu0 0.0
    %291 = vmatpush2.msra.mxu0 0.0
    %292 = vmatprep.subr.mxu0 0.0
    %293 = vmatpush2.msra.mxu0 0.0
    %294 = vmatprep.subr.mxu0 0.0
    %295 = vmatpush2.msra.mxu0 0.0
    %296 = vmatprep.subr.mxu0 0.0
    %297 = vmatpush2.msra.mxu0 0.0
    %298 = vmatprep.subr.mxu0 0.0
    %299 = vmatpush2.msra.mxu0 0.0
    %300 = vmatprep.subr.mxu0 0.0
    %301 = vmatpush2.msra.mxu0 0.0
    %302 = vmatprep.subr.mxu0 0.0
    %303 = vmatpush2.msra.mxu0 0.0
    %304 = vmatprep.subr.mxu0 0.0
    %305 = vmatpush2.msra.mxu0 0.0
    %306 = vmatprep.subr.mxu0 0.0
    %307 = vmatpush2.msra.mxu0 0.0
    %308 = vmatprep.subr.mxu0 0.0
    %309 = vmatpush2.msra.mxu0 0.0
    %310 = vmatprep.subr.mxu0 0.0
    %311 = vmatpush2.msra.mxu0 0.0
    %312 = vmatprep.subr.mxu0 0.0
    %313 = vmatpush2.msra.mxu0 0.0
    %314 = vmatprep.subr.mxu0 0.0
    %315 = vmatpush2.msra.mxu0 0.0
    %316 = vmatprep.subr.mxu0 0.0
    %317 = vmatpush2.msra.mxu0 0.0
    %318 = vmatprep.mubr.f32.mxu0 0.0
    %319 = vmatmul.mubr.f32.gmra.mxu0 %v252
    %v320 = vpop.f32.mrf.mxu0
    %v321 = vadd.f32 %v248, %v320
    %v322 = vpop.f32.mrf.mxu0
    %323 = vdwg.mxu0
    %v324 = vtanh.pop %v321
    %vm325 = vcmask 1024
    %326 = vst.msk [vmem:[%s9] sm:$0x3] %vm325, %v324
    // Predicated region
    $region34: #{policy_value_forward.3} parent=1 // pred_check
      _
    $region35: #{policy_value_forward.3} parent=1 // pred_check_branch
      %328 = sbr.rel (0) target = $region37
    $region36: #{policy_value_forward.3} parent=1 // pred_region
      %s330 = ssub.s32 32, 32
      %331 = vsyncadd [#allocation4], %s330
      %s333 = sshll.u32 [#allocation3], 4
      %s334 = int_to_ptr.vmem [resolvable:$true] %s333
      %336 = dma.vmem_to_hbm [thread:$0]  %s334, 32, %s8, [#allocation4]
    $region37: #{policy_value_forward.3} parent=1 // pred_fallthru
      _
    // Predicated region
    $region38: #{policy_value_forward.3} parent=1 // pred_check
      _
    $region39: #{policy_value_forward.3} parent=1 // pred_check_branch
      %338 = sbr.rel (0) target = $region41
    $region40: #{policy_value_forward.3} parent=1 // pred_region
      _
    $region41: #{policy_value_forward.3} parent=1 // pred_fallthru
      _
    // Predicated region
    $region42: #{policy_value_forward.3} parent=1 // pred_check
      _
    $region43: #{policy_value_forward.3} parent=1 // pred_check_branch
      %340 = sbr.rel (0) target = $region45
    $region44: #{policy_value_forward.3} parent=1 // pred_region
      %341 = dma.done [#allocation4], 32
    $region45: #{policy_value_forward.3} parent=1 // pred_fallthru
      _
    // Predicated region
    $region46: #{policy_value_forward.3} parent=1 // pred_check
      _
    $region47: #{policy_value_forward.3} parent=1 // pred_check_branch
      %343 = sbr.rel (0) target = $region49
    $region48: #{policy_value_forward.3} parent=1 // pred_region
      _
    $region49: #{policy_value_forward.3} parent=1 // pred_fallthru
      _
    %344 = vsyncpa [#allocation4], 1

// kernel: policy_value_forward.2
$region0: #{policy_value_forward.2}
  #allocation0 [shape = 'u32[]', space=smem, size = 0x4, offset = 0x4, fixed_abs, tag = 'smem constant byte address 0x4 - core index']
  #allocation1 [shape = 'u32[144,128]{1,0:T(1,128)}', space=vmem, size = 0x12000, scoped, tag = 'internal scratch']
  #allocation2 [shape = 'f32[2,10,10,32]{3,2,1,0:T(8,128)}', space=vmem, size = 0x28000, scoped, tag = 'scratch operand']
  %s0 = inlined_call_operand.vmem [shape: f32[128,32], index: 0, kind: input, shape index: {}]
  %s1 = inlined_call_operand.vmem [shape: f32[9,32,32], index: 1, kind: input, shape index: {}]
  %s2 = inlined_call_operand.vmem [shape: f32[1,32], index: 2, kind: input, shape index: {}]
  %s3 = inlined_call_operand.vmem [shape: f32[9,32,32], index: 3, kind: input, shape index: {}]
  %s4 = inlined_call_operand.vmem [shape: f32[1,32], index: 4, kind: input, shape index: {}]
  %s5 = inlined_call_operand.vmem [shape: f32[1,32], index: 5, kind: input, shape index: {}]
  %s6 = inlined_call_operand.vmem [shape: f32[1,32], index: 6, kind: input, shape index: {}]
  %s7 = inlined_call_operand.vmem [shape: f32[9,32,32], index: 7, kind: input, shape index: {}]
  %s8 = inlined_call_operand.vmem [shape: f32[1,32], index: 8, kind: input, shape index: {}]
  %s9 = inlined_call_operand.vmem [shape: f32[1,32], index: 9, kind: input, shape index: {}]
  %s10 = inlined_call_operand.vmem [shape: f32[1,32], index: 10, kind: input, shape index: {}]
  %s11 = inlined_call_operand.vmem [shape: f32[9,32,32], index: 11, kind: input, shape index: {}]
  %s12 = inlined_call_operand.vmem [shape: f32[1,32], index: 12, kind: input, shape index: {}]
  %s13 = inlined_call_operand.vmem [shape: f32[1,32], index: 13, kind: input, shape index: {}]
  %s14 = inlined_call_operand.vmem [shape: f32[1,32], index: 14, kind: input, shape index: {}]
  %s15 = inlined_call_operand.vmem [shape: f32[9,32,32], index: 15, kind: input, shape index: {}]
  %s16 = inlined_call_operand.vmem [shape: f32[1,32], index: 16, kind: input, shape index: {}]
  %s17 = inlined_call_operand.vmem [shape: f32[1,32], index: 17, kind: input, shape index: {}]
  %s18 = inlined_call_operand.vmem [shape: f32[1,32], index: 18, kind: input, shape index: {}]
  %s19 = inlined_call_operand.vmem [shape: f32[32,4], index: 19, kind: input, shape index: {}]
  %s20 = inlined_call_operand.vmem [shape: f32[1,4], index: 20, kind: input, shape index: {}]
  %s21 = inlined_call_operand.vmem [shape: f32[128,4], index: 21, kind: output, shape index: {}]
  %s22 = sld [smem:[#allocation0]]
  $region94: #{policy_value_forward.2} parent=0
    _
  %s24 = ssub.s32 1, %s22
  %s25 = scalar_select 0, %s24, %s22
  // Predicated region
  $region2: #{policy_value_forward.2} parent=0 // pred_check
    _
  $region3: #{policy_value_forward.2} parent=0 // pred_check_branch
    %27 = sbr.rel (0) target = $region5
  $region4: #{policy_value_forward.2} parent=0 // pred_region
    _
  $region5: #{policy_value_forward.2} parent=0 // pred_fallthru
    _
  // Predicated region
  $region6: #{policy_value_forward.2} parent=0 // pred_check
    _
  $region7: #{policy_value_forward.2} parent=0 // pred_check_branch
    %29 = sbr.rel (0) target = $region9
  $region8: #{policy_value_forward.2} parent=0 // pred_region
    _
  $region9: #{policy_value_forward.2} parent=0 // pred_fallthru
    _
  // Predicated region
  $region10: #{policy_value_forward.2} parent=0 // pred_check
    _
  $region11: #{policy_value_forward.2} parent=0 // pred_check_branch
    %31 = sbr.rel (0) target = $region13
  $region12: #{policy_value_forward.2} parent=0 // pred_region
    _
  $region13: #{policy_value_forward.2} parent=0 // pred_fallthru
    _
  // Predicated region
  $region14: #{policy_value_forward.2} parent=0 // pred_check
    _
  $region15: #{policy_value_forward.2} parent=0 // pred_check_branch
    %33 = sbr.rel (0) target = $region17
  $region16: #{policy_value_forward.2} parent=0 // pred_region
    _
  $region17: #{policy_value_forward.2} parent=0 // pred_fallthru
    _
  // Predicated region
  $region18: #{policy_value_forward.2} parent=0 // pred_check
    _
  $region19: #{policy_value_forward.2} parent=0 // pred_check_branch
    %35 = sbr.rel (0) target = $region21
  $region20: #{policy_value_forward.2} parent=0 // pred_region
    _
  $region21: #{policy_value_forward.2} parent=0 // pred_fallthru
    _
  // Predicated region
  $region22: #{policy_value_forward.2} parent=0 // pred_check
    _
  $region23: #{policy_value_forward.2} parent=0 // pred_check_branch
    %37 = sbr.rel (0) target = $region25
  $region24: #{policy_value_forward.2} parent=0 // pred_region
    _
  $region25: #{policy_value_forward.2} parent=0 // pred_fallthru
    _
  // Predicated region
  $region26: #{policy_value_forward.2} parent=0 // pred_check
    _
  $region27: #{policy_value_forward.2} parent=0 // pred_check_branch
    %39 = sbr.rel (0) target = $region29
  $region28: #{policy_value_forward.2} parent=0 // pred_region
    _
  $region29: #{policy_value_forward.2} parent=0 // pred_fallthru
    _
  // Predicated region
  $region30: #{policy_value_forward.2} parent=0 // pred_check
    _
  $region31: #{policy_value_forward.2} parent=0 // pred_check_branch
    %41 = sbr.rel (0) target = $region33
  $region32: #{policy_value_forward.2} parent=0 // pred_region
    _
  $region33: #{policy_value_forward.2} parent=0 // pred_fallthru
    _
  // Predicated region
  $region34: #{policy_value_forward.2} parent=0 // pred_check
    _
  $region35: #{policy_value_forward.2} parent=0 // pred_check_branch
    %43 = sbr.rel (0) target = $region37
  $region36: #{policy_value_forward.2} parent=0 // pred_region
    _
  $region37: #{policy_value_forward.2} parent=0 // pred_fallthru
    _
  // Predicated region
  $region38: #{policy_value_forward.2} parent=0 // pred_check
    _
  $region39: #{policy_value_forward.2} parent=0 // pred_check_branch
    %45 = sbr.rel (0) target = $region41
  $region40: #{policy_value_forward.2} parent=0 // pred_region
    _
  $region41: #{policy_value_forward.2} parent=0 // pred_fallthru
    _
  // Predicated region
  $region42: #{policy_value_forward.2} parent=0 // pred_check
    _
  $region43: #{policy_value_forward.2} parent=0 // pred_check_branch
    %47 = sbr.rel (0) target = $region45
  $region44: #{policy_value_forward.2} parent=0 // pred_region
    _
  $region45: #{policy_value_forward.2} parent=0 // pred_fallthru
    _
  // Predicated region
  $region46: #{policy_value_forward.2} parent=0 // pred_check
    _
  $region47: #{policy_value_forward.2} parent=0 // pred_check_branch
    %49 = sbr.rel (0) target = $region49
  $region48: #{policy_value_forward.2} parent=0 // pred_region
    _
  $region49: #{policy_value_forward.2} parent=0 // pred_fallthru
    _
  // Predicated region
  $region50: #{policy_value_forward.2} parent=0 // pred_check
    _
  $region51: #{policy_value_forward.2} parent=0 // pred_check_branch
    %51 = sbr.rel (0) target = $region53
  $region52: #{policy_value_forward.2} parent=0 // pred_region
    _
  $region53: #{policy_value_forward.2} parent=0 // pred_fallthru
    _
  // Predicated region
  $region54: #{policy_value_forward.2} parent=0 // pred_check
    _
  $region55: #{policy_value_forward.2} parent=0 // pred_check_branch
    %53 = sbr.rel (0) target = $region57
  $region56: #{policy_value_forward.2} parent=0 // pred_region
    _
  $region57: #{policy_value_forward.2} parent=0 // pred_fallthru
    _
  // Predicated region
  $region58: #{policy_value_forward.2} parent=0 // pred_check
    _
  $region59: #{policy_value_forward.2} parent=0 // pred_check_branch
    %55 = sbr.rel (0) target = $region61
  $region60: #{policy_value_forward.2} parent=0 // pred_region
    _
  $region61: #{policy_value_forward.2} parent=0 // pred_fallthru
    _
  // Predicated region
  $region62: #{policy_value_forward.2} parent=0 // pred_check
    _
  $region63: #{policy_value_forward.2} parent=0 // pred_check_branch
    %57 = sbr.rel (0) target = $region65
  $region64: #{policy_value_forward.2} parent=0 // pred_region
    _
  $region65: #{policy_value_forward.2} parent=0 // pred_fallthru
    _
  // Predicated region
  $region66: #{policy_value_forward.2} parent=0 // pred_check
    _
  $region67: #{policy_value_forward.2} parent=0 // pred_check_branch
    %59 = sbr.rel (0) target = $region69
  $region68: #{policy_value_forward.2} parent=0 // pred_region
    _
  $region69: #{policy_value_forward.2} parent=0 // pred_fallthru
    _
  // Predicated region
  $region70: #{policy_value_forward.2} parent=0 // pred_check
    _
  $region71: #{policy_value_forward.2} parent=0 // pred_check_branch
    %61 = sbr.rel (0) target = $region73
  $region72: #{policy_value_forward.2} parent=0 // pred_region
    _
  $region73: #{policy_value_forward.2} parent=0 // pred_fallthru
    _
  // Predicated region
  $region74: #{policy_value_forward.2} parent=0 // pred_check
    _
  $region75: #{policy_value_forward.2} parent=0 // pred_check_branch
    %63 = sbr.rel (0) target = $region77
  $region76: #{policy_value_forward.2} parent=0 // pred_region
    _
  $region77: #{policy_value_forward.2} parent=0 // pred_fallthru
    _
  // Predicated region
  $region78: #{policy_value_forward.2} parent=0 // pred_check
    _
  $region79: #{policy_value_forward.2} parent=0 // pred_check_branch
    %65 = sbr.rel (0) target = $region81
  $region80: #{policy_value_forward.2} parent=0 // pred_region
    _
  $region81: #{policy_value_forward.2} parent=0 // pred_fallthru
    _
  // Predicated region
  $region82: #{policy_value_forward.2} parent=0 // pred_check
    _
  $region83: #{policy_value_forward.2} parent=0 // pred_check_branch
    %67 = sbr.rel (0) target = $region85
  $region84: #{policy_value_forward.2} parent=0 // pred_region
    _
  $region85: #{policy_value_forward.2} parent=0 // pred_fallthru
    _
  %vm68 = vcmask 261120
  %69 = vst.msk [vmem:[#allocation2] sm:$0xff] %vm68, 0.0
  %vm70 = vcmask 254976
  %71 = vst.msk [vmem:[#allocation2 + $0x8] sm:$0x3] %vm70, 0.0
  %72 = vst.msk [vmem:[#allocation2 + $0x10] sm:$0xff] %vm68, 0.0
  %73 = vst.msk [vmem:[#allocation2 + $0x18] sm:$0x3] %vm70, 0.0
  %74 = vst.msk [vmem:[#allocation2 + $0x20] sm:$0xff] %vm68, 0.0
  %75 = vst.msk [vmem:[#allocation2 + $0x28] sm:$0x3] %vm70, 0.0
  %76 = vst.msk [vmem:[#allocation2 + $0x30] sm:$0xff] %vm68, 0.0
  %77 = vst.msk [vmem:[#allocation2 + $0x38] sm:$0x3] %vm70, 0.0
  %78 = vst.msk [vmem:[#allocation2 + $0x40] sm:$0xff] %vm68, 0.0
  %79 = vst.msk [vmem:[#allocation2 + $0x48] sm:$0x3] %vm70, 0.0
  %80 = vst.msk [vmem:[#allocation2 + $0x50] sm:$0xff] %vm68, 0.0
  %81 = vst.msk [vmem:[#allocation2 + $0x58] sm:$0x3] %vm70, 0.0
  %82 = vst.msk [vmem:[#allocation2 + $0x60] sm:$0xff] %vm68, 0.0
  %83 = vst.msk [vmem:[#allocation2 + $0x68] sm:$0x3] %vm70, 0.0
  %84 = vst.msk [vmem:[#allocation2 + $0x70] sm:$0xff] %vm68, 0.0
  %85 = vst.msk [vmem:[#allocation2 + $0x78] sm:$0x3] %vm70, 0.0
  %86 = vst.msk [vmem:[#allocation2 + $0x80] sm:$0xff] %vm68, 0.0
  %87 = vst.msk [vmem:[#allocation2 + $0x88] sm:$0x3] %vm70, 0.0
  %88 = vst.msk [vmem:[#allocation2 + $0x90] sm:$0xff] %vm68, 0.0
  %89 = vst.msk [vmem:[#allocation2 + $0x98] sm:$0x3] %vm70, 0.0
  %90 = vst.msk [vmem:[#allocation2 + $0xa0] sm:$0xff] %vm68, 0.0
  %91 = vst.msk [vmem:[#allocation2 + $0xa8] sm:$0x3] %vm70, 0.0
  %92 = vst.msk [vmem:[#allocation2 + $0xb0] sm:$0xff] %vm68, 0.0
  %93 = vst.msk [vmem:[#allocation2 + $0xb8] sm:$0x3] %vm70, 0.0
  %94 = vst.msk [vmem:[#allocation2 + $0xc0] sm:$0xff] %vm68, 0.0
  %95 = vst.msk [vmem:[#allocation2 + $0xc8] sm:$0x3] %vm70, 0.0
  %96 = vst.msk [vmem:[#allocation2 + $0xd0] sm:$0xff] %vm68, 0.0
  %97 = vst.msk [vmem:[#allocation2 + $0xd8] sm:$0x3] %vm70, 0.0
  %98 = vst.msk [vmem:[#allocation2 + $0xe0] sm:$0xff] %vm68, 0.0
  %99 = vst.msk [vmem:[#allocation2 + $0xe8] sm:$0x3] %vm70, 0.0
  %100 = vst.msk [vmem:[#allocation2 + $0xf0] sm:$0xff] %vm68, 0.0
  %101 = vst.msk [vmem:[#allocation2 + $0xf8] sm:$0x3] %vm70, 0.0
  %102 = vst.msk [vmem:[#allocation2 + $0x100] sm:$0xff] %vm68, 0.0
  %103 = vst.msk [vmem:[#allocation2 + $0x108] sm:$0x3] %vm70, 0.0
  %104 = vst.msk [vmem:[#allocation2 + $0x110] sm:$0xff] %vm68, 0.0
  %105 = vst.msk [vmem:[#allocation2 + $0x118] sm:$0x3] %vm70, 0.0
  %106 = vst.msk [vmem:[#allocation2 + $0x120] sm:$0xff] %vm68, 0.0
  %107 = vst.msk [vmem:[#allocation2 + $0x128] sm:$0x3] %vm70, 0.0
  %108 = vst.msk [vmem:[#allocation2 + $0x130] sm:$0xff] %vm68, 0.0
  %109 = vst.msk [vmem:[#allocation2 + $0x138] sm:$0x3] %vm70, 0.0
  %v110 = vld [vmem:[%s0] sm:$0xff]
  %v111 = vld [vmem:[%s0 + $0x8] sm:$0xff]
  %v112 = vld [vmem:[%s0 + $0x10] sm:$0xff]
  %v113 = vld [vmem:[%s0 + $0x18] sm:$0xff]
  %v114 = vld [vmem:[%s0 + $0x20] sm:$0xff]
  %v115 = vld [vmem:[%s0 + $0x28] sm:$0xff]
  %v116 = vld [vmem:[%s0 + $0x30] sm:$0xff]
  %v117 = vld [vmem:[%s0 + $0x38] sm:$0xff]
  %v118 = vld [vmem:[%s0 + $0x40] sm:$0xff]
  %v119 = vld [vmem:[%s0 + $0x48] sm:$0xff]
  %v120 = vld [vmem:[%s0 + $0x50] sm:$0xff]
  %v121 = vld [vmem:[%s0 + $0x58] sm:$0xff]
  %v122 = vld [vmem:[%s0 + $0x60] sm:$0xff]
  %v123 = vld [vmem:[%s0 + $0x68] sm:$0xff]
  %v124 = vld [vmem:[%s0 + $0x70] sm:$0xff]
  %v125 = vld [vmem:[%s0 + $0x78] sm:$0xff]
  %s126 = scalar_lea.vmem [#allocation2], 16
  %127 = vst.msk [vmem:[%s126 + $0x1] sm:$0xff] %vm68, %v110
  %128 = vst.msk [vmem:[%s126 + $0x11] sm:$0xff] %vm68, %v111
  %129 = vst.msk [vmem:[%s126 + $0x21] sm:$0xff] %vm68, %v112
  %130 = vst.msk [vmem:[%s126 + $0x31] sm:$0xff] %vm68, %v113
  %131 = vst.msk [vmem:[%s126 + $0x41] sm:$0xff] %vm68, %v114
  %132 = vst.msk [vmem:[%s126 + $0x51] sm:$0xff] %vm68, %v115
  %133 = vst.msk [vmem:[%s126 + $0x61] sm:$0xff] %vm68, %v116
  %134 = vst.msk [vmem:[%s126 + $0x71] sm:$0xff] %vm68, %v117
  %135 = vst.msk [vmem:[%s126 + $0xa1] sm:$0xff] %vm68, %v118
  %136 = vst.msk [vmem:[%s126 + $0xb1] sm:$0xff] %vm68, %v119
  %137 = vst.msk [vmem:[%s126 + $0xc1] sm:$0xff] %vm68, %v120
  %138 = vst.msk [vmem:[%s126 + $0xd1] sm:$0xff] %vm68, %v121
  %139 = vst.msk [vmem:[%s126 + $0xe1] sm:$0xff] %vm68, %v122
  %140 = vst.msk [vmem:[%s126 + $0xf1] sm:$0xff] %vm68, %v123
  %141 = vst.msk [vmem:[%s126 + $0x101] sm:$0xff] %vm68, %v124
  %142 = vst.msk [vmem:[%s126 + $0x111] sm:$0xff] %vm68, %v125
  %v143 = vld [vmem:[#allocation2] sm:$0xff]
  %v144 = vld [vmem:[#allocation2 + $0x10] sm:$0xff]
  %v145 = vld [vmem:[#allocation2 + $0x20] sm:$0xff]
  %v146 = vld [vmem:[#allocation2 + $0x30] sm:$0xff]
  %v147 = vld [vmem:[#allocation2 + $0x40] sm:$0xff]
  %v148 = vld [vmem:[#allocation2 + $0x50] sm:$0xff]
  %v149 = vld [vmem:[#allocation2 + $0x60] sm:$0xff]
  %v150 = vld [vmem:[#allocation2 + $0x70] sm:$0xff]
  %v151 = vld [vmem:[#allocation2 + $0xa0] sm:$0xff]
  %v152 = vld [vmem:[#allocation2 + $0xb0] sm:$0xff]
  %v153 = vld [vmem:[#allocation2 + $0xc0] sm:$0xff]
  %v154 = vld [vmem:[#allocation2 + $0xd0] sm:$0xff]
  %v155 = vld [vmem:[#allocation2 + $0xe0] sm:$0xff]
  %v156 = vld [vmem:[#allocation2 + $0xf0] sm:$0xff]
  %v157 = vld [vmem:[#allocation2 + $0x100] sm:$0xff]
  %v158 = vld [vmem:[#allocation2 + $0x110] sm:$0xff]
  %v159 = vld [vmem:[%s1] sm:$0xff]
  %v160 = vld [vmem:[%s1 + $0x8] sm:$0xff]
  %v161 = vld [vmem:[%s1 + $0x10] sm:$0xff]
  %v162 = vld [vmem:[%s1 + $0x18] sm:$0xff]
  %v163 = vld [vmem:[#allocation2 + $0x1] sm:$0xff]
  %v164 = vld [vmem:[#allocation2 + $0x11] sm:$0xff]
  %v165 = vld [vmem:[#allocation2 + $0x21] sm:$0xff]
  %v166 = vld [vmem:[#allocation2 + $0x31] sm:$0xff]
  %v167 = vld [vmem:[#allocation2 + $0x41] sm:$0xff]
  %v168 = vld [vmem:[#allocation2 + $0x51] sm:$0xff]
  %v169 = vld [vmem:[#allocation2 + $0x61] sm:$0xff]
  %v170 = vld [vmem:[#allocation2 + $0x71] sm:$0xff]
  %v171 = vld [vmem:[#allocation2 + $0xa1] sm:$0xff]
  %v172 = vld [vmem:[#allocation2 + $0xb1] sm:$0xff]
  %v173 = vld [vmem:[#allocation2 + $0xc1] sm:$0xff]
  %v174 = vld [vmem:[#allocation2 + $0xd1] sm:$0xff]
  %v175 = vld [vmem:[#allocation2 + $0xe1] sm:$0xff]
  %v176 = vld [vmem:[#allocation2 + $0xf1] sm:$0xff]
  %v177 = vld [vmem:[#allocation2 + $0x101] sm:$0xff]
  %v178 = vld [vmem:[#allocation2 + $0x111] sm:$0xff]
  %s179 = scalar_lea.vmem %s1, 32
  %v180 = vld [vmem:[%s179] sm:$0xff]
  %v181 = vld [vmem:[%s179 + $0x8] sm:$0xff]
  %v182 = vld [vmem:[%s179 + $0x10] sm:$0xff]
  %v183 = vld [vmem:[%s179 + $0x18] sm:$0xff]
  %v185 = vsel %vm68, %v163, 0
  %v188 = vsel %vm68, %v164, 0
  %v191 = vsel %vm68, %v165, 0
  %v194 = vsel %vm68, %v166, 0
  %v197 = vsel %vm68, %v167, 0
  %v200 = vsel %vm68, %v168, 0
  %v203 = vsel %vm68, %v169, 0
  %v206 = vsel %vm68, %v170, 0
  %v209 = vsel %vm68, %v171, 0
  %v212 = vsel %vm68, %v172, 0
  %v215 = vsel %vm68, %v173, 0
  %v218 = vsel %vm68, %v174, 0
  %v221 = vsel %vm68, %v175, 0
  %v224 = vsel %vm68, %v176, 0
  %v227 = vsel %vm68, %v177, 0
  %v230 = vsel %vm68, %v178, 0
  %232 = vmatprep.subr.mxu0 0.0
  %233 = vmatpush1.msra.mxu0 0.0
  %234 = vmatprep.subr.mxu0 0.0
  %235 = vmatpush1.msra.mxu0 0.0
  %236 = vmatprep.subr.mxu0 0.0
  %237 = vmatpush1.msra.mxu0 0.0
  %238 = vmatprep.subr.mxu0 0.0
  %239 = vmatpush1.msra.mxu0 0.0
  %240 = vmatprep.subr.mxu0 0.0
  %241 = vmatpush1.msra.mxu0 0.0
  %242 = vmatprep.subr.mxu0 0.0
  %243 = vmatpush1.msra.mxu0 0.0
  %244 = vmatprep.subr.mxu0 0.0
  %245 = vmatpush1.msra.mxu0 0.0
  %246 = vmatprep.subr.mxu0 0.0
  %247 = vmatpush1.msra.mxu0 0.0
  %248 = vmatprep.subr.mxu0 0.0
  %249 = vmatpush1.msra.mxu0 0.0
  %250 = vmatprep.subr.mxu0 0.0
  %251 = vmatpush1.msra.mxu0 0.0
  %252 = vmatprep.subr.mxu0 0.0
  %253 = vmatpush1.msra.mxu0 0.0
  %254 = vmatprep.subr.mxu0 0.0
  %255 = vmatpush1.msra.mxu0 0.0
  %256 = vmatprep.subr.mxu0 0.0
  %257 = vmatpush1.msra.mxu0 %v183
  %258 = vmatprep.subr.mxu0 0.0
  %259 = vmatpush1.msra.mxu0 %v182
  %260 = vmatprep.subr.mxu0 0.0
  %261 = vmatpush1.msra.mxu0 %v181
  %262 = vmatprep.subr.mxu0 0.0
  %263 = vmatpush1.msra.mxu0 %v180
  %264 = vmatprep.subr.mxu0 0.0
  %265 = vmatpush2.msra.mxu0 0.0
  %266 = vmatprep.subr.mxu0 0.0
  %267 = vmatpush2.msra.mxu0 0.0
  %268 = vmatprep.subr.mxu0 0.0
  %269 = vmatpush2.msra.mxu0 0.0
  %270 = vmatprep.subr.mxu0 0.0
  %271 = vmatpush2.msra.mxu0 0.0
  %272 = vmatprep.subr.mxu0 0.0
  %273 = vmatpush2.msra.mxu0 0.0
  %274 = vmatprep.subr.mxu0 0.0
  %275 = vmatpush2.msra.mxu0 0.0
  %276 = vmatprep.subr.mxu0 0.0
  %277 = vmatpush2.msra.mxu0 0.0
  %278 = vmatprep.subr.mxu0 0.0
  %279 = vmatpush2.msra.mxu0 0.0
  %280 = vmatprep.subr.mxu0 0.0
  %281 = vmatpush2.msra.mxu0 0.0
  %282 = vmatprep.subr.mxu0 0.0
  %283 = vmatpush2.msra.mxu0 0.0
  %284 = vmatprep.subr.mxu0 0.0
  %285 = vmatpush2.msra.mxu0 0.0
  %286 = vmatprep.subr.mxu0 0.0
  %287 = vmatpush2.msra.mxu0 0.0
  %288 = vmatprep.subr.mxu0 0.0
  %289 = vmatpush2.msra.mxu0 0.0
  %290 = vmatprep.subr.mxu0 0.0
  %291 = vmatpush2.msra.mxu0 0.0
  %292 = vmatprep.subr.mxu0 0.0
  %293 = vmatpush2.msra.mxu0 0.0
  %294 = vmatprep.subr.mxu0 0.0
  %295 = vmatpush2.msra.mxu0 0.0
  %296 = vmatprep.mubr.f32.mxu0 0.0
  %297 = vmatmul.mubr.f32.gmra.mxu0 %v185
  %v298 = vpop.f32.mrf.mxu0
  %v299 = vadd.f32 0.0, %v298
  %v300 = vpop.f32.mrf.mxu0
  %301 = vmatprep.mubr.f32.mxu0 0.0
  %302 = vmatmul.mubr.f32.gmra.mxu0 %v188
  %v303 = vpop.f32.mrf.mxu0
  %v304 = vadd.f32 0.0, %v303
  %v305 = vpop.f32.mrf.mxu0
  %306 = vmatprep.mubr.f32.mxu0 0.0
  %307 = vmatmul.mubr.f32.gmra.mxu0 %v191
  %v308 = vpop.f32.mrf.mxu0
  %v309 = vadd.f32 0.0, %v308
  %v310 = vpop.f32.mrf.mxu0
  %311 = vmatprep.mubr.f32.mxu0 0.0
  %312 = vmatmul.mubr.f32.gmra.mxu0 %v194
  %v313 = vpop.f32.mrf.mxu0
  %v314 = vadd.f32 0.0, %v313
  %v315 = vpop.f32.mrf.mxu0
  %316 = vmatprep.mubr.f32.mxu0 0.0
  %317 = vmatmul.mubr.f32.gmra.mxu0 %v197
  %v318 = vpop.f32.mrf.mxu0
  %v319 = vadd.f32 0.0, %v318
  %v320 = vpop.f32.mrf.mxu0
  %321 = vmatprep.mubr.f32.mxu0 0.0
  %322 = vmatmul.mubr.f32.gmra.mxu0 %v200
  %v323 = vpop.f32.mrf.mxu0
  %v324 = vadd.f32 0.0, %v323
  %v325 = vpop.f32.mrf.mxu0
  %326 = vmatprep.mubr.f32.mxu0 0.0
  %327 = vmatmul.mubr.f32.gmra.mxu0 %v203
  %v328 = vpop.f32.mrf.mxu0
  %v329 = vadd.f32 0.0, %v328
  %v330 = vpop.f32.mrf.mxu0
  %331 = vmatprep.mubr.f32.mxu0 0.0
  %332 = vmatmul.mubr.f32.gmra.mxu0 %v206
  %v333 = vpop.f32.mrf.mxu0
  %v334 = vadd.f32 0.0, %v333
  %v335 = vpop.f32.mrf.mxu0
  %336 = vmatprep.mubr.f32.mxu0 0.0
  %337 = vmatmul.mubr.f32.gmra.mxu0 %v209
  %v338 = vpop.f32.mrf.mxu0
  %v339 = vadd.f32 0.0, %v338
  %v340 = vpop.f32.mrf.mxu0
  %341 = vmatprep.mubr.f32.mxu0 0.0
  %342 = vmatmul.mubr.f32.gmra.mxu0 %v212
  %v343 = vpop.f32.mrf.mxu0
  %v344 = vadd.f32 0.0, %v343
  %v345 = vpop.f32.mrf.mxu0
  %346 = vmatprep.mubr.f32.mxu0 0.0
  %347 = vmatmul.mubr.f32.gmra.mxu0 %v215
  %v348 = vpop.f32.mrf.mxu0
  %v349 = vadd.f32 0.0, %v348
  %v350 = vpop.f32.mrf.mxu0
  %351 = vmatprep.mubr.f32.mxu0 0.0
  %352 = vmatmul.mubr.f32.gmra.mxu0 %v218
  %v353 = vpop.f32.mrf.mxu0
  %v354 = vadd.f32 0.0, %v353
  %v355 = vpop.f32.mrf.mxu0
  %356 = vmatprep.mubr.f32.mxu0 0.0
  %357 = vmatmul.mubr.f32.gmra.mxu0 %v221
  %v358 = vpop.f32.mrf.mxu0
  %v359 = vadd.f32 0.0, %v358
  %v360 = vpop.f32.mrf.mxu0
  %361 = vmatprep.mubr.f32.mxu0 0.0
  %362 = vmatmul.mubr.f32.gmra.mxu0 %v224
  %v363 = vpop.f32.mrf.mxu0
  %v364 = vadd.f32 0.0, %v363
  %v365 = vpop.f32.mrf.mxu0
  %366 = vmatprep.mubr.f32.mxu0 0.0
  %367 = vmatmul.mubr.f32.gmra.mxu0 %v227
  %v368 = vpop.f32.mrf.mxu0
  %v369 = vadd.f32 0.0, %v368
  %v370 = vpop.f32.mrf.mxu0
  %371 = vmatprep.mubr.f32.mxu0 0.0
  %372 = vmatmul.mubr.f32.gmra.mxu0 %v230
  %v373 = vpop.f32.mrf.mxu0
  %v374 = vadd.f32 0.0, %v373
  %v375 = vpop.f32.mrf.mxu0
  %376 = vdwg.mxu0
  %v378 = vsel %vm68, %v143, 0
  %v381 = vsel %vm68, %v144, 0
  %v384 = vsel %vm68, %v145, 0
  %v387 = vsel %vm68, %v146, 0
  %v390 = vsel %vm68, %v147, 0
  %v393 = vsel %vm68, %v148, 0
  %v396 = vsel %vm68, %v149, 0
  %v399 = vsel %vm68, %v150, 0
  %v402 = vsel %vm68, %v151, 0
  %v405 = vsel %vm68, %v152, 0
  %v408 = vsel %vm68, %v153, 0
  %v411 = vsel %vm68, %v154, 0
  %v414 = vsel %vm68, %v155, 0
  %v417 = vsel %vm68, %v156, 0
  %v420 = vsel %vm68, %v157, 0
  %v423 = vsel %vm68, %v158, 0
  %425 = vmatprep.subr.mxu0 0.0
  %426 = vmatpush1.msra.mxu0 0.0
  %427 = vmatprep.subr.mxu0 0.0
  %428 = vmatpush1.msra.mxu0 0.0
  %429 = vmatprep.subr.mxu0 0.0
  %430 = vmatpush1.msra.mxu0 0.0
  %431 = vmatprep.subr.mxu0 0.0
  %432 = vmatpush1.msra.mxu0 0.0
  %433 = vmatprep.subr.mxu0 0.0
  %434 = vmatpush1.msra.mxu0 0.0
  %435 = vmatprep.subr.mxu0 0.0
  %436 = vmatpush1.msra.mxu0 0.0
  %437 = vmatprep.subr.mxu0 0.0
  %438 = vmatpush1.msra.mxu0 0.0
  %439 = vmatprep.subr.mxu0 0.0
  %440 = vmatpush1.msra.mxu0 0.0
  %441 = vmatprep.subr.mxu0 0.0
  %442 = vmatpush1.msra.mxu0 0.0
  %443 = vmatprep.subr.mxu0 0.0
  %444 = vmatpush1.msra.mxu0 0.0
  %445 = vmatprep.subr.mxu0 0.0
  %446 = vmatpush1.msra.mxu0 0.0
  %447 = vmatprep.subr.mxu0 0.0
  %448 = vmatpush1.msra.mxu0 0.0
  %449 = vmatprep.subr.mxu0 0.0
  %450 = vmatpush1.msra.mxu0 %v162
  %451 = vmatprep.subr.mxu0 0.0
  %452 = vmatpush1.msra.mxu0 %v161
  %453 = vmatprep.subr.mxu0 0.0
  %454 = vmatpush1.msra.mxu0 %v160
  %455 = vmatprep.subr.mxu0 0.0
  %456 = vmatpush1.msra.mxu0 %v159
  %457 = vmatprep.subr.mxu0 0.0
  %458 = vmatpush2.msra.mxu0 0.0
  %459 = vmatprep.subr.mxu0 0.0
  %460 = vmatpush2.msra.mxu0 0.0
  %461 = vmatprep.subr.mxu0 0.0
  %462 = vmatpush2.msra.mxu0 0.0
  %463 = vmatprep.subr.mxu0 0.0
  %464 = vmatpush2.msra.mxu0 0.0
  %465 = vmatprep.subr.mxu0 0.0
  %466 = vmatpush2.msra.mxu0 0.0
  %467 = vmatprep.subr.mxu0 0.0
  %468 = vmatpush2.msra.mxu0 0.0
  %469 = vmatprep.subr.mxu0 0.0
  %470 = vmatpush2.msra.mxu0 0.0
  %471 = vmatprep.subr.mxu0 0.0
  %472 = vmatpush2.msra.mxu0 0.0
  %473 = vmatprep.subr.mxu0 0.0
  %474 = vmatpush2.msra.mxu0 0.0
  %475 = vmatprep.subr.mxu0 0.0
  %476 = vmatpush2.msra.mxu0 0.0
  %477 = vmatprep.subr.mxu0 0.0
  %478 = vmatpush2.msra.mxu0 0.0
  %479 = vmatprep.subr.mxu0 0.0
  %480 = vmatpush2.msra.mxu0 0.0
  %481 = vmatprep.subr.mxu0 0.0
  %482 = vmatpush2.msra.mxu0 0.0
  %483 = vmatprep.subr.mxu0 0.0
  %484 = vmatpush2.msra.mxu0 0.0
  %485 = vmatprep.subr.mxu0 0.0
  %486 = vmatpush2.msra.mxu0 0.0
  %487 = vmatprep.subr.mxu0 0.0
  %488 = vmatpush2.msra.mxu0 0.0
  %489 = vmatprep.mubr.f32.mxu0 0.0
  %490 = vmatmul.mubr.f32.gmra.mxu0 %v378
  %v491 = vpop.f32.mrf.mxu0
  %v492 = vadd.f32 %v299, %v491
  %v493 = vpop.f32.mrf.mxu0
  %494 = vmatprep.mubr.f32.mxu0 0.0
  %495 = vmatmul.mubr.f32.gmra.mxu0 %v381
  %v496 = vpop.f32.mrf.mxu0
  %v497 = vadd.f32 %v304, %v496
  %v498 = vpop.f32.mrf.mxu0
  %499 = vmatprep.mubr.f32.mxu0 0.0
  %500 = vmatmul.mubr.f32.gmra.mxu0 %v384
  %v501 = vpop.f32.mrf.mxu0
  %v502 = vadd.f32 %v309, %v501
  %v503 = vpop.f32.mrf.mxu0
  %504 = vmatprep.mubr.f32.mxu0 0.0
  %505 = vmatmul.mubr.f32.gmra.mxu0 %v387
  %v506 = vpop.f32.mrf.mxu0
  %v507 = vadd.f32 %v314, %v506
  %v508 = vpop.f32.mrf.mxu0
  %509 = vmatprep.mubr.f32.mxu0 0.0
  %510 = vmatmul.mubr.f32.gmra.mxu0 %v390
  %v511 = vpop.f32.mrf.mxu0
  %v512 = vadd.f32 %v319, %v511
  %v513 = vpop.f32.mrf.mxu0
  %514 = vmatprep.mubr.f32.mxu0 0.0
  %515 = vmatmul.mubr.f32.gmra.mxu0 %v393
  %v516 = vpop.f32.mrf.mxu0
  %v517 = vadd.f32 %v324, %v516
  %v518 = vpop.f32.mrf.mxu0
  %519 = vmatprep.mubr.f32.mxu0 0.0
  %520 = vmatmul.mubr.f32.gmra.mxu0 %v396
  %v521 = vpop.f32.mrf.mxu0
  %v522 = vadd.f32 %v329, %v521
  %v523 = vpop.f32.mrf.mxu0
  %524 = vmatprep.mubr.f32.mxu0 0.0
  %525 = vmatmul.mubr.f32.gmra.mxu0 %v399
  %v526 = vpop.f32.mrf.mxu0
  %v527 = vadd.f32 %v334, %v526
  %v528 = vpop.f32.mrf.mxu0
  %529 = vmatprep.mubr.f32.mxu0 0.0
  %530 = vmatmul.mubr.f32.gmra.mxu0 %v402
  %v531 = vpop.f32.mrf.mxu0
  %v532 = vadd.f32 %v339, %v531
  %v533 = vpop.f32.mrf.mxu0
  %534 = vmatprep.mubr.f32.mxu0 0.0
  %535 = vmatmul.mubr.f32.gmra.mxu0 %v405
  %v536 = vpop.f32.mrf.mxu0
  %v537 = vadd.f32 %v344, %v536
  %v538 = vpop.f32.mrf.mxu0
  %539 = vmatprep.mubr.f32.mxu0 0.0
  %540 = vmatmul.mubr.f32.gmra.mxu0 %v408
  %v541 = vpop.f32.mrf.mxu0
  %v542 = vadd.f32 %v349, %v541
  %v543 = vpop.f32.mrf.mxu0
  %544 = vmatprep.mubr.f32.mxu0 0.0
  %545 = vmatmul.mubr.f32.gmra.mxu0 %v411
  %v546 = vpop.f32.mrf.mxu0
  %v547 = vadd.f32 %v354, %v546
  %v548 = vpop.f32.mrf.mxu0
  %549 = vmatprep.mubr.f32.mxu0 0.0
  %550 = vmatmul.mubr.f32.gmra.mxu0 %v414
  %v551 = vpop.f32.mrf.mxu0
  %v552 = vadd.f32 %v359, %v551
  %v553 = vpop.f32.mrf.mxu0
  %554 = vmatprep.mubr.f32.mxu0 0.0
  %555 = vmatmul.mubr.f32.gmra.mxu0 %v417
  %v556 = vpop.f32.mrf.mxu0
  %v557 = vadd.f32 %v364, %v556
  %v558 = vpop.f32.mrf.mxu0
  %559 = vmatprep.mubr.f32.mxu0 0.0
  %560 = vmatmul.mubr.f32.gmra.mxu0 %v420
  %v561 = vpop.f32.mrf.mxu0
  %v562 = vadd.f32 %v369, %v561
  %v563 = vpop.f32.mrf.mxu0
  %564 = vmatprep.mubr.f32.mxu0 0.0
  %565 = vmatmul.mubr.f32.gmra.mxu0 %v423
  %v566 = vpop.f32.mrf.mxu0
  %v567 = vadd.f32 %v374, %v566
  %v568 = vpop.f32.mrf.mxu0
  %569 = vdwg.mxu0
  %v570 = vld [vmem:[#allocation2 + $0x2] sm:$0xff]
  %v571 = vld [vmem:[#allocation2 + $0x12] sm:$0xff]
  %v572 = vld [vmem:[#allocation2 + $0x22] sm:$0xff]
  %v573 = vld [vmem:[#allocation2 + $0x32] sm:$0xff]
  %v574 = vld [vmem:[#allocation2 + $0x42] sm:$0xff]
  %v575 = vld [vmem:[#allocation2 + $0x52] sm:$0xff]
  %v576 = vld [vmem:[#allocation2 + $0x62] sm:$0xff]
  %v577 = vld [vmem:[#allocation2 + $0x72] sm:$0xff]
  %v578 = vld [vmem:[#allocation2 + $0xa2] sm:$0xff]
  %v579 = vld [vmem:[#allocation2 + $0xb2] sm:$0xff]
  %v580 = vld [vmem:[#allocation2 + $0xc2] sm:$0xff]
  %v581 = vld [vmem:[#allocation2 + $0xd2] sm:$0xff]
  %v582 = vld [vmem:[#allocation2 + $0xe2] sm:$0xff]
  %v583 = vld [vmem:[#allocation2 + $0xf2] sm:$0xff]
  %v584 = vld [vmem:[#allocation2 + $0x102] sm:$0xff]
  %v585 = vld [vmem:[#allocation2 + $0x112] sm:$0xff]
  %s586 = scalar_lea.vmem %s1, 64
  %v587 = vld [vmem:[%s586] sm:$0xff]
  %v588 = vld [vmem:[%s586 + $0x8] sm:$0xff]
  %v589 = vld [vmem:[%s586 + $0x10] sm:$0xff]
  %v590 = vld [vmem:[%s586 + $0x18] sm:$0xff]
  %v592 = vsel %vm68, %v570, 0
  %v595 = vsel %vm68, %v571, 0
  %v598 = vsel %vm68, %v572, 0
  %v601 = vsel %vm68, %v573, 0
  %v604 = vsel %vm68, %v574, 0
  %v607 = vsel %vm68, %v575, 0
  %v610 = vsel %vm68, %v576, 0
  %v613 = vsel %vm68, %v577, 0
  %v616 = vsel %vm68, %v578, 0
  %v619 = vsel %vm68, %v579, 0
  %v622 = vsel %vm68, %v580, 0
  %v625 = vsel %vm68, %v581, 0
  %v628 = vsel %vm68, %v582, 0
  %v631 = vsel %vm68, %v583, 0
  %v634 = vsel %vm68, %v584, 0
  %v637 = vsel %vm68, %v585, 0
  %639 = vmatprep.subr.mxu0 0.0
  %640 = vmatpush1.msra.mxu0 0.0
  %641 = vmatprep.subr.mxu0 0.0
  %642 = vmatpush1.msra.mxu0 0.0
  %643 = vmatprep.subr.mxu0 0.0
  %644 = vmatpush1.msra.mxu0 0.0
  %645 = vmatprep.subr.mxu0 0.0
  %646 = vmatpush1.msra.mxu0 0.0
  %647 = vmatprep.subr.mxu0 0.0
  %648 = vmatpush1.msra.mxu0 0.0
  %649 = vmatprep.subr.mxu0 0.0
  %650 = vmatpush1.msra.mxu0 0.0
  %651 = vmatprep.subr.mxu0 0.0
  %652 = vmatpush1.msra.mxu0 0.0
  %653 = vmatprep.subr.mxu0 0.0
  %654 = vmatpush1.msra.mxu0 0.0
  %655 = vmatprep.subr.mxu0 0.0
  %656 = vmatpush1.msra.mxu0 0.0
  %657 = vmatprep.subr.mxu0 0.0
  %658 = vmatpush1.msra.mxu0 0.0
  %659 = vmatprep.subr.mxu0 0.0
  %660 = vmatpush1.msra.mxu0 0.0
  %661 = vmatprep.subr.mxu0 0.0
  %662 = vmatpush1.msra.mxu0 0.0
  %663 = vmatprep.subr.mxu0 0.0
  %664 = vmatpush1.msra.mxu0 %v590
  %665 = vmatprep.subr.mxu0 0.0
  %666 = vmatpush1.msra.mxu0 %v589
  %667 = vmatprep.subr.mxu0 0.0
  %668 = vmatpush1.msra.mxu0 %v588
  %669 = vmatprep.subr.mxu0 0.0
  %670 = vmatpush1.msra.mxu0 %v587
  %671 = vmatprep.subr.mxu0 0.0
  %672 = vmatpush2.msra.mxu0 0.0
  %673 = vmatprep.subr.mxu0 0.0
  %674 = vmatpush2.msra.mxu0 0.0
  %675 = vmatprep.subr.mxu0 0.0
  %676 = vmatpush2.msra.mxu0 0.0
  %677 = vmatprep.subr.mxu0 0.0
  %678 = vmatpush2.msra.mxu0 0.0
  %679 = vmatprep.subr.mxu0 0.0
  %680 = vmatpush2.msra.mxu0 0.0
  %681 = vmatprep.subr.mxu0 0.0
  %682 = vmatpush2.msra.mxu0 0.0
  %683 = vmatprep.subr.mxu0 0.0
  %684 = vmatpush2.msra.mxu0 0.0
  %685 = vmatprep.subr.mxu0 0.0
  %686 = vmatpush2.msra.mxu0 0.0
  %687 = vmatprep.subr.mxu0 0.0
  %688 = vmatpush2.msra.mxu0 0.0
  %689 = vmatprep.subr.mxu0 0.0
  %690 = vmatpush2.msra.mxu0 0.0
  %691 = vmatprep.subr.mxu0 0.0
  %692 = vmatpush2.msra.mxu0 0.0
  %693 = vmatprep.subr.mxu0 0.0
  %694 = vmatpush2.msra.mxu0 0.0
  %695 = vmatprep.subr.mxu0 0.0
  %696 = vmatpush2.msra.mxu0 0.0
  %697 = vmatprep.subr.mxu0 0.0
  %698 = vmatpush2.msra.mxu0 0.0
  %699 = vmatprep.subr.mxu0 0.0
  %700 = vmatpush2.msra.mxu0 0.0
  %701 = vmatprep.subr.mxu0 0.0
  %702 = vmatpush2.msra.mxu0 0.0
  %703 = vmatprep.mubr.f32.mxu0 0.0
  %704 = vmatmul.mubr.f32.gmra.mxu0 %v592
  %v705 = vpop.f32.mrf.mxu0
  %v706 = vadd.f32 0.0, %v705
  %v707 = vpop.f32.mrf.mxu0
  %708 = vmatprep.mubr.f32.mxu0 0.0
  %709 = vmatmul.mubr.f32.gmra.mxu0 %v595
  %v710 = vpop.f32.mrf.mxu0
  %v711 = vadd.f32 0.0, %v710
  %v712 = vpop.f32.mrf.mxu0
  %713 = vmatprep.mubr.f32.mxu0 0.0
  %714 = vmatmul.mubr.f32.gmra.mxu0 %v598
  %v715 = vpop.f32.mrf.mxu0
  %v716 = vadd.f32 0.0, %v715
  %v717 = vpop.f32.mrf.mxu0
  %718 = vmatprep.mubr.f32.mxu0 0.0
  %719 = vmatmul.mubr.f32.gmra.mxu0 %v601
  %v720 = vpop.f32.mrf.mxu0
  %v721 = vadd.f32 0.0, %v720
  %v722 = vpop.f32.mrf.mxu0
  %723 = vmatprep.mubr.f32.mxu0 0.0
  %724 = vmatmul.mubr.f32.gmra.mxu0 %v604
  %v725 = vpop.f32.mrf.mxu0
  %v726 = vadd.f32 0.0, %v725
  %v727 = vpop.f32.mrf.mxu0
  %728 = vmatprep.mubr.f32.mxu0 0.0
  %729 = vmatmul.mubr.f32.gmra.mxu0 %v607
  %v730 = vpop.f32.mrf.mxu0
  %v731 = vadd.f32 0.0, %v730
  %v732 = vpop.f32.mrf.mxu0
  %733 = vmatprep.mubr.f32.mxu0 0.0
  %734 = vmatmul.mubr.f32.gmra.mxu0 %v610
  %v735 = vpop.f32.mrf.mxu0
  %v736 = vadd.f32 0.0, %v735
  %v737 = vpop.f32.mrf.mxu0
  %738 = vmatprep.mubr.f32.mxu0 0.0
  %739 = vmatmul.mubr.f32.gmra.mxu0 %v613
  %v740 = vpop.f32.mrf.mxu0
  %v741 = vadd.f32 0.0, %v740
  %v742 = vpop.f32.mrf.mxu0
  %743 = vmatprep.mubr.f32.mxu0 0.0
  %744 = vmatmul.mubr.f32.gmra.mxu0 %v616
  %v745 = vpop.f32.mrf.mxu0
  %v746 = vadd.f32 0.0, %v745
  %v747 = vpop.f32.mrf.mxu0
  %748 = vmatprep.mubr.f32.mxu0 0.0
  %749 = vmatmul.mubr.f32.gmra.mxu0 %v619
  %v750 = vpop.f32.mrf.mxu0
  %v751 = vadd.f32 0.0, %v750
  %v752 = vpop.f32.mrf.mxu0
  %753 = vmatprep.mubr.f32.mxu0 0.0
  %754 = vmatmul.mubr.f32.gmra.mxu0 %v622
  %v755 = vpop.f32.mrf.mxu0
  %v756 = vadd.f32 0.0, %v755
  %v757 = vpop.f32.mrf.mxu0
  %758 = vmatprep.mubr.f32.mxu0 0.0
  %759 = vmatmul.mubr.f32.gmra.mxu0 %v625
  %v760 = vpop.f32.mrf.mxu0
  %v761 = vadd.f32 0.0, %v760
  %v762 = vpop.f32.mrf.mxu0
  %763 = vmatprep.mubr.f32.mxu0 0.0
  %764 = vmatmul.mubr.f32.gmra.mxu0 %v628
  %v765 = vpop.f32.mrf.mxu0
  %v766 = vadd.f32 0.0, %v765
  %v767 = vpop.f32.mrf.mxu0
  %768 = vmatprep.mubr.f32.mxu0 0.0
  %769 = vmatmul.mubr.f32.gmra.mxu0 %v631
  %v770 = vpop.f32.mrf.mxu0
  %v771 = vadd.f32 0.0, %v770
  %v772 = vpop.f32.mrf.mxu0
  %773 = vmatprep.mubr.f32.mxu0 0.0
  %774 = vmatmul.mubr.f32.gmra.mxu0 %v634
  %v775 = vpop.f32.mrf.mxu0
  %v776 = vadd.f32 0.0, %v775
  %v777 = vpop.f32.mrf.mxu0
  %778 = vmatprep.mubr.f32.mxu0 0.0
  %779 = vmatmul.mubr.f32.gmra.mxu0 %v637
  %v780 = vpop.f32.mrf.mxu0
  %v781 = vadd.f32 0.0, %v780
  %v782 = vpop.f32.mrf.mxu0
  %783 = vdwg.mxu0
  %v784 = vadd.f32 %v492, %v706
  %v785 = vadd.f32 %v497, %v711
  %v786 = vadd.f32 %v502, %v716
  %v787 = vadd.f32 %v507, %v721
  %v788 = vadd.f32 %v512, %v726
  %v789 = vadd.f32 %v517, %v731
  %v790 = vadd.f32 %v522, %v736
  %v791 = vadd.f32 %v527, %v741
  %v792 = vadd.f32 %v532, %v746
  %v793 = vadd.f32 %v537, %v751
  %v794 = vadd.f32 %v542, %v756
  %v795 = vadd.f32 %v547, %v761
  %v796 = vadd.f32 %v552, %v766
  %v797 = vadd.f32 %v557, %v771
  %v798 = vadd.f32 %v562, %v776
  %v799 = vadd.f32 %v567, %v781
  %v800 = vld [vmem:[%s126] sm:$0xff]
  %v801 = vld [vmem:[%s126 + $0x10] sm:$0xff]
  %v802 = vld [vmem:[%s126 + $0x20] sm:$0xff]
  %v803 = vld [vmem:[%s126 + $0x30] sm:$0xff]
  %v804 = vld [vmem:[%s126 + $0x40] sm:$0xff]
  %v805 = vld [vmem:[%s126 + $0x50] sm:$0xff]
  %v806 = vld [vmem:[%s126 + $0x60] sm:$0xff]
  %v807 = vld [vmem:[%s126 + $0x70] sm:$0xff]
  %v808 = vld [vmem:[%s126 + $0xa0] sm:$0xff]
  %v809 = vld [vmem:[%s126 + $0xb0] sm:$0xff]
  %v810 = vld [vmem:[%s126 + $0xc0] sm:$0xff]
  %v811 = vld [vmem:[%s126 + $0xd0] sm:$0xff]
  %v812 = vld [vmem:[%s126 + $0xe0] sm:$0xff]
  %v813 = vld [vmem:[%s126 + $0xf0] sm:$0xff]
  %v814 = vld [vmem:[%s126 + $0x100] sm:$0xff]
  %v815 = vld [vmem:[%s126 + $0x110] sm:$0xff]
  %s816 = scalar_lea.vmem %s1, 96
  %v817 = vld [vmem:[%s816] sm:$0xff]
  %v818 = vld [vmem:[%s816 + $0x8] sm:$0xff]
  %v819 = vld [vmem:[%s816 + $0x10] sm:$0xff]
  %v820 = vld [vmem:[%s816 + $0x18] sm:$0xff]
  %v822 = vsel %vm68, %v800, 0
  %v825 = vsel %vm68, %v801, 0
  %v828 = vsel %vm68, %v802, 0
  %v831 = vsel %vm68, %v803, 0
  %v834 = vsel %vm68, %v804, 0
  %v837 = vsel %vm68, %v805, 0
  %v840 = vsel %vm68, %v806, 0
  %v843 = vsel %vm68, %v807, 0
  %v846 = vsel %vm68, %v808, 0
  %v849 = vsel %vm68, %v809, 0
  %v852 = vsel %vm68, %v810, 0
  %v855 = vsel %vm68, %v811, 0
  %v858 = vsel %vm68, %v812, 0
  %v861 = vsel %vm68, %v813, 0
  %v864 = vsel %vm68, %v814, 0
  %v867 = vsel %vm68, %v815, 0
  %869 = vmatprep.subr.mxu0 0.0
  %870 = vmatpush1.msra.mxu0 0.0
  %871 = vmatprep.subr.mxu0 0.0
  %872 = vmatpush1.msra.mxu0 0.0
  %873 = vmatprep.subr.mxu0 0.0
  %874 = vmatpush1.msra.mxu0 0.0
  %875 = vmatprep.subr.mxu0 0.0
  %876 = vmatpush1.msra.mxu0 0.0
  %877 = vmatprep.subr.mxu0 0.0
  %878 = vmatpush1.msra.mxu0 0.0
  %879 = vmatprep.subr.mxu0 0.0
  %880 = vmatpush1.msra.mxu0 0.0
  %881 = vmatprep.subr.mxu0 0.0
  %882 = vmatpush1.msra.mxu0 0.0
  %883 = vmatprep.subr.mxu0 0.0
  %884 = vmatpush1.msra.mxu0 0.0
  %885 = vmatprep.subr.mxu0 0.0
  %886 = vmatpush1.msra.mxu0 0.0
  %887 = vmatprep.subr.mxu0 0.0
  %888 = vmatpush1.msra.mxu0 0.0
  %889 = vmatprep.subr.mxu0 0.0
  %890 = vmatpush1.msra.mxu0 0.0
  %891 = vmatprep.subr.mxu0 0.0
  %892 = vmatpush1.msra.mxu0 0.0
  %893 = vmatprep.subr.mxu0 0.0
  %894 = vmatpush1.msra.mxu0 %v820
  %895 = vmatprep.subr.mxu0 0.0
  %896 = vmatpush1.msra.mxu0 %v819
  %897 = vmatprep.subr.mxu0 0.0
  %898 = vmatpush1.msra.mxu0 %v818
  %899 = vmatprep.subr.mxu0 0.0
  %900 = vmatpush1.msra.mxu0 %v817
  %901 = vmatprep.subr.mxu0 0.0
  %902 = vmatpush2.msra.mxu0 0.0
  %903 = vmatprep.subr.mxu0 0.0
  %904 = vmatpush2.msra.mxu0 0.0
  %905 = vmatprep.subr.mxu0 0.0
  %906 = vmatpush2.msra.mxu0 0.0
  %907 = vmatprep.subr.mxu0 0.0
  %908 = vmatpush2.msra.mxu0 0.0
  %909 = vmatprep.subr.mxu0 0.0
  %910 = vmatpush2.msra.mxu0 0.0
  %911 = vmatprep.subr.mxu0 0.0
  %912 = vmatpush2.msra.mxu0 0.0
  %913 = vmatprep.subr.mxu0 0.0
  %914 = vmatpush2.msra.mxu0 0.0
  %915 = vmatprep.subr.mxu0 0.0
  %916 = vmatpush2.msra.mxu0 0.0
  %917 = vmatprep.subr.mxu0 0.0
  %918 = vmatpush2.msra.mxu0 0.0
  %919 = vmatprep.subr.mxu0 0.0
  %920 = vmatpush2.msra.mxu0 0.0
  %921 = vmatprep.subr.mxu0 0.0
  %922 = vmatpush2.msra.mxu0 0.0
  %923 = vmatprep.subr.mxu0 0.0
  %924 = vmatpush2.msra.mxu0 0.0
  %925 = vmatprep.subr.mxu0 0.0
  %926 = vmatpush2.msra.mxu0 0.0
  %927 = vmatprep.subr.mxu0 0.0
  %928 = vmatpush2.msra.mxu0 0.0
  %929 = vmatprep.subr.mxu0 0.0
  %930 = vmatpush2.msra.mxu0 0.0
  %931 = vmatprep.subr.mxu0 0.0
  %932 = vmatpush2.msra.mxu0 0.0
  %933 = vmatprep.mubr.f32.mxu0 0.0
  %934 = vmatmul.mubr.f32.gmra.mxu0 %v822
  %v935 = vpop.f32.mrf.mxu0
  %v936 = vadd.f32 0.0, %v935
  %v937 = vpop.f32.mrf.mxu0
  %938 = vmatprep.mubr.f32.mxu0 0.0
  %939 = vmatmul.mubr.f32.gmra.mxu0 %v825
  %v940 = vpop.f32.mrf.mxu0
  %v941 = vadd.f32 0.0, %v940
  %v942 = vpop.f32.mrf.mxu0
  %943 = vmatprep.mubr.f32.mxu0 0.0
  %944 = vmatmul.mubr.f32.gmra.mxu0 %v828
  %v945 = vpop.f32.mrf.mxu0
  %v946 = vadd.f32 0.0, %v945
  %v947 = vpop.f32.mrf.mxu0
  %948 = vmatprep.mubr.f32.mxu0 0.0
  %949 = vmatmul.mubr.f32.gmra.mxu0 %v831
  %v950 = vpop.f32.mrf.mxu0
  %v951 = vadd.f32 0.0, %v950
  %v952 = vpop.f32.mrf.mxu0
  %953 = vmatprep.mubr.f32.mxu0 0.0
  %954 = vmatmul.mubr.f32.gmra.mxu0 %v834
  %v955 = vpop.f32.mrf.mxu0
  %v956 = vadd.f32 0.0, %v955
  %v957 = vpop.f32.mrf.mxu0
  %958 = vmatprep.mubr.f32.mxu0 0.0
  %959 = vmatmul.mubr.f32.gmra.mxu0 %v837
  %v960 = vpop.f32.mrf.mxu0
  %v961 = vadd.f32 0.0, %v960
  %v962 = vpop.f32.mrf.mxu0
  %963 = vmatprep.mubr.f32.mxu0 0.0
  %964 = vmatmul.mubr.f32.gmra.mxu0 %v840
  %v965 = vpop.f32.mrf.mxu0
  %v966 = vadd.f32 0.0, %v965
  %v967 = vpop.f32.mrf.mxu0
  %968 = vmatprep.mubr.f32.mxu0 0.0
  %969 = vmatmul.mubr.f32.gmra.mxu0 %v843
  %v970 = vpop.f32.mrf.mxu0
  %v971 = vadd.f32 0.0, %v970
  %v972 = vpop.f32.mrf.mxu0
  %973 = vmatprep.mubr.f32.mxu0 0.0
  %974 = vmatmul.mubr.f32.gmra.mxu0 %v846
  %v975 = vpop.f32.mrf.mxu0
  %v976 = vadd.f32 0.0, %v975
  %v977 = vpop.f32.mrf.mxu0
  %978 = vmatprep.mubr.f32.mxu0 0.0
  %979 = vmatmul.mubr.f32.gmra.mxu0 %v849
  %v980 = vpop.f32.mrf.mxu0
  %v981 = vadd.f32 0.0, %v980
  %v982 = vpop.f32.mrf.mxu0
  %983 = vmatprep.mubr.f32.mxu0 0.0
  %984 = vmatmul.mubr.f32.gmra.mxu0 %v852
  %v985 = vpop.f32.mrf.mxu0
  %v986 = vadd.f32 0.0, %v985
  %v987 = vpop.f32.mrf.mxu0
  %988 = vmatprep.mubr.f32.mxu0 0.0
  %989 = vmatmul.mubr.f32.gmra.mxu0 %v855
  %v990 = vpop.f32.mrf.mxu0
  %v991 = vadd.f32 0.0, %v990
  %v992 = vpop.f32.mrf.mxu0
  %993 = vmatprep.mubr.f32.mxu0 0.0
  %994 = vmatmul.mubr.f32.gmra.mxu0 %v858
  %v995 = vpop.f32.mrf.mxu0
  %v996 = vadd.f32 0.0, %v995
  %v997 = vpop.f32.mrf.mxu0
  %998 = vmatprep.mubr.f32.mxu0 0.0
  %999 = vmatmul.mubr.f32.gmra.mxu0 %v861
  %v1000 = vpop.f32.mrf.mxu0
  %v1001 = vadd.f32 0.0, %v1000
  %v1002 = vpop.f32.mrf.mxu0
  %1003 = vmatprep.mubr.f32.mxu0 0.0
  %1004 = vmatmul.mubr.f32.gmra.mxu0 %v864
  %v1005 = vpop.f32.mrf.mxu0
  %v1006 = vadd.f32 0.0, %v1005
  %v1007 = vpop.f32.mrf.mxu0
  %1008 = vmatprep.mubr.f32.mxu0 0.0
  %1009 = vmatmul.mubr.f32.gmra.mxu0 %v867
  %v1010 = vpop.f32.mrf.mxu0
  %v1011 = vadd.f32 0.0, %v1010
  %v1012 = vpop.f32.mrf.mxu0
  %1013 = vdwg.mxu0
  %v1014 = vadd.f32 %v784, %v936
  %v1015 = vadd.f32 %v785, %v941
  %v1016 = vadd.f32 %v786, %v946
  %v1017 = vadd.f32 %v787, %v951
  %v1018 = vadd.f32 %v788, %v956
  %v1019 = vadd.f32 %v789, %v961
  %v1020 = vadd.f32 %v790, %v966
  %v1021 = vadd.f32 %v791, %v971
  %v1022 = vadd.f32 %v792, %v976
  %v1023 = vadd.f32 %v793, %v981
  %v1024 = vadd.f32 %v794, %v986
  %v1025 = vadd.f32 %v795, %v991
  %v1026 = vadd.f32 %v796, %v996
  %v1027 = vadd.f32 %v797, %v1001
  %v1028 = vadd.f32 %v798, %v1006
  %v1029 = vadd.f32 %v799, %v1011
  %v1030 = vld [vmem:[%s126 + $0x1] sm:$0xff]
  %v1031 = vld [vmem:[%s126 + $0x11] sm:$0xff]
  %v1032 = vld [vmem:[%s126 + $0x21] sm:$0xff]
  %v1033 = vld [vmem:[%s126 + $0x31] sm:$0xff]
  %v1034 = vld [vmem:[%s126 + $0x41] sm:$0xff]
  %v1035 = vld [vmem:[%s126 + $0x51] sm:$0xff]
  %v1036 = vld [vmem:[%s126 + $0x61] sm:$0xff]
  %v1037 = vld [vmem:[%s126 + $0x71] sm:$0xff]
  %v1038 = vld [vmem:[%s126 + $0xa1] sm:$0xff]
  %v1039 = vld [vmem:[%s126 + $0xb1] sm:$0xff]
  %v1040 = vld [vmem:[%s126 + $0xc1] sm:$0xff]
  %v1041 = vld [vmem:[%s126 + $0xd1] sm:$0xff]
  %v1042 = vld [vmem:[%s126 + $0xe1] sm:$0xff]
  %v1043 = vld [vmem:[%s126 + $0xf1] sm:$0xff]
  %v1044 = vld [vmem:[%s126 + $0x101] sm:$0xff]
  %v1045 = vld [vmem:[%s126 + $0x111] sm:$0xff]
  %s1046 = scalar_lea.vmem %s1, 128
  %v1047 = vld [vmem:[%s1046] sm:$0xff]
  %v1048 = vld [vmem:[%s1046 + $0x8] sm:$0xff]
  %v1049 = vld [vmem:[%s1046 + $0x10] sm:$0xff]
  %v1050 = vld [vmem:[%s1046 + $0x18] sm:$0xff]
  %v1052 = vsel %vm68, %v1030, 0
  %v1055 = vsel %vm68, %v1031, 0
  %v1058 = vsel %vm68, %v1032, 0
  %v1061 = vsel %vm68, %v1033, 0
  %v1064 = vsel %vm68, %v1034, 0
  %v1067 = vsel %vm68, %v1035, 0
  %v1070 = vsel %vm68, %v1036, 0
  %v1073 = vsel %vm68, %v1037, 0
  %v1076 = vsel %vm68, %v1038, 0
  %v1079 = vsel %vm68, %v1039, 0
  %v1082 = vsel %vm68, %v1040, 0
  %v1085 = vsel %vm68, %v1041, 0
  %v1088 = vsel %vm68, %v1042, 0
  %v1091 = vsel %vm68, %v1043, 0
  %v1094 = vsel %vm68, %v1044, 0
  %v1097 = vsel %vm68, %v1045, 0
  %1099 = vmatprep.subr.mxu0 0.0
  %1100 = vmatpush1.msra.mxu0 0.0
  %1101 = vmatprep.subr.mxu0 0.0
  %1102 = vmatpush1.msra.mxu0 0.0
  %1103 = vmatprep.subr.mxu0 0.0
  %1104 = vmatpush1.msra.mxu0 0.0
  %1105 = vmatprep.subr.mxu0 0.0
  %1106 = vmatpush1.msra.mxu0 0.0
  %1107 = vmatprep.subr.mxu0 0.0
  %1108 = vmatpush1.msra.mxu0 0.0
  %1109 = vmatprep.subr.mxu0 0.0
  %1110 = vmatpush1.msra.mxu0 0.0
  %1111 = vmatprep.subr.mxu0 0.0
  %1112 = vmatpush1.msra.mxu0 0.0
  %1113 = vmatprep.subr.mxu0 0.0
  %1114 = vmatpush1.msra.mxu0 0.0
  %1115 = vmatprep.subr.mxu0 0.0
  %1116 = vmatpush1.msra.mxu0 0.0
  %1117 = vmatprep.subr.mxu0 0.0
  %1118 = vmatpush1.msra.mxu0 0.0
  %1119 = vmatprep.subr.mxu0 0.0
  %1120 = vmatpush1.msra.mxu0 0.0
  %1121 = vmatprep.subr.mxu0 0.0
  %1122 = vmatpush1.msra.mxu0 0.0
  %1123 = vmatprep.subr.mxu0 0.0
  %1124 = vmatpush1.msra.mxu0 %v1050
  %1125 = vmatprep.subr.mxu0 0.0
  %1126 = vmatpush1.msra.mxu0 %v1049
  %1127 = vmatprep.subr.mxu0 0.0
  %1128 = vmatpush1.msra.mxu0 %v1048
  %1129 = vmatprep.subr.mxu0 0.0
  %1130 = vmatpush1.msra.mxu0 %v1047
  %1131 = vmatprep.subr.mxu0 0.0
  %1132 = vmatpush2.msra.mxu0 0.0
  %1133 = vmatprep.subr.mxu0 0.0
  %1134 = vmatpush2.msra.mxu0 0.0
  %1135 = vmatprep.subr.mxu0 0.0
  %1136 = vmatpush2.msra.mxu0 0.0
  %1137 = vmatprep.subr.mxu0 0.0
  %1138 = vmatpush2.msra.mxu0 0.0
  %1139 = vmatprep.subr.mxu0 0.0
  %1140 = vmatpush2.msra.mxu0 0.0
  %1141 = vmatprep.subr.mxu0 0.0
  %1142 = vmatpush2.msra.mxu0 0.0
  %1143 = vmatprep.subr.mxu0 0.0
  %1144 = vmatpush2.msra.mxu0 0.0
  %1145 = vmatprep.subr.mxu0 0.0
  %1146 = vmatpush2.msra.mxu0 0.0
  %1147 = vmatprep.subr.mxu0 0.0
  %1148 = vmatpush2.msra.mxu0 0.0
  %1149 = vmatprep.subr.mxu0 0.0
  %1150 = vmatpush2.msra.mxu0 0.0
  %1151 = vmatprep.subr.mxu0 0.0
  %1152 = vmatpush2.msra.mxu0 0.0
  %1153 = vmatprep.subr.mxu0 0.0
  %1154 = vmatpush2.msra.mxu0 0.0
  %1155 = vmatprep.subr.mxu0 0.0
  %1156 = vmatpush2.msra.mxu0 0.0
  %1157 = vmatprep.subr.mxu0 0.0
  %1158 = vmatpush2.msra.mxu0 0.0
  %1159 = vmatprep.subr.mxu0 0.0
  %1160 = vmatpush2.msra.mxu0 0.0
  %1161 = vmatprep.subr.mxu0 0.0
  %1162 = vmatpush2.msra.mxu0 0.0
  %1163 = vmatprep.mubr.f32.mxu0 0.0
  %1164 = vmatmul.mubr.f32.gmra.mxu0 %v1052
  %v1165 = vpop.f32.mrf.mxu0
  %v1166 = vadd.f32 0.0, %v1165
  %v1167 = vpop.f32.mrf.mxu0
  %1168 = vmatprep.mubr.f32.mxu0 0.0
  %1169 = vmatmul.mubr.f32.gmra.mxu0 %v1055
  %v1170 = vpop.f32.mrf.mxu0
  %v1171 = vadd.f32 0.0, %v1170
  %v1172 = vpop.f32.mrf.mxu0
  %1173 = vmatprep.mubr.f32.mxu0 0.0
  %1174 = vmatmul.mubr.f32.gmra.mxu0 %v1058
  %v1175 = vpop.f32.mrf.mxu0
  %v1176 = vadd.f32 0.0, %v1175
  %v1177 = vpop.f32.mrf.mxu0
  %1178 = vmatprep.mubr.f32.mxu0 0.0
  %1179 = vmatmul.mubr.f32.gmra.mxu0 %v1061
  %v1180 = vpop.f32.mrf.mxu0
  %v1181 = vadd.f32 0.0, %v1180
  %v1182 = vpop.f32.mrf.mxu0
  %1183 = vmatprep.mubr.f32.mxu0 0.0
  %1184 = vmatmul.mubr.f32.gmra.mxu0 %v1064
  %v1185 = vpop.f32.mrf.mxu0
  %v1186 = vadd.f32 0.0, %v1185
  %v1187 = vpop.f32.mrf.mxu0
  %1188 = vmatprep.mubr.f32.mxu0 0.0
  %1189 = vmatmul.mubr.f32.gmra.mxu0 %v1067
  %v1190 = vpop.f32.mrf.mxu0
  %v1191 = vadd.f32 0.0, %v1190
  %v1192 = vpop.f32.mrf.mxu0
  %1193 = vmatprep.mubr.f32.mxu0 0.0
  %1194 = vmatmul.mubr.f32.gmra.mxu0 %v1070
  %v1195 = vpop.f32.mrf.mxu0
  %v1196 = vadd.f32 0.0, %v1195
  %v1197 = vpop.f32.mrf.mxu0
  %1198 = vmatprep.mubr.f32.mxu0 0.0
  %1199 = vmatmul.mubr.f32.gmra.mxu0 %v1073
  %v1200 = vpop.f32.mrf.mxu0
  %v1201 = vadd.f32 0.0, %v1200
  %v1202 = vpop.f32.mrf.mxu0
  %1203 = vmatprep.mubr.f32.mxu0 0.0
  %1204 = vmatmul.mubr.f32.gmra.mxu0 %v1076
  %v1205 = vpop.f32.mrf.mxu0
  %v1206 = vadd.f32 0.0, %v1205
  %v1207 = vpop.f32.mrf.mxu0
  %1208 = vmatprep.mubr.f32.mxu0 0.0
  %1209 = vmatmul.mubr.f32.gmra.mxu0 %v1079
  %v1210 = vpop.f32.mrf.mxu0
  %v1211 = vadd.f32 0.0, %v1210
  %v1212 = vpop.f32.mrf.mxu0
  %1213 = vmatprep.mubr.f32.mxu0 0.0
  %1214 = vmatmul.mubr.f32.gmra.mxu0 %v1082
  %v1215 = vpop.f32.mrf.mxu0
  %v1216 = vadd.f32 0.0, %v1215
  %v1217 = vpop.f32.mrf.mxu0
  %1218 = vmatprep.mubr.f32.mxu0 0.0
  %1219 = vmatmul.mubr.f32.gmra.mxu0 %v1085
  %v1220 = vpop.f32.mrf.mxu0
  %v1221 = vadd.f32 0.0, %v1220
  %v1222 = vpop.f32.mrf.mxu0
  %1223 = vmatprep.mubr.f32.mxu0 0.0
  %1224 = vmatmul.mubr.f32.gmra.mxu0 %v1088
  %v1225 = vpop.f32.mrf.mxu0
  %v1226 = vadd.f32 0.0, %v1225
  %v1227 = vpop.f32.mrf.mxu0
  %1228 = vmatprep.mubr.f32.mxu0 0.0
  %1229 = vmatmul.mubr.f32.gmra.mxu0 %v1091
  %v1230 = vpop.f32.mrf.mxu0
  %v1231 = vadd.f32 0.0, %v1230
  %v1232 = vpop.f32.mrf.mxu0
  %1233 = vmatprep.mubr.f32.mxu0 0.0
  %1234 = vmatmul.mubr.f32.gmra.mxu0 %v1094
  %v1235 = vpop.f32.mrf.mxu0
  %v1236 = vadd.f32 0.0, %v1235
  %v1237 = vpop.f32.mrf.mxu0
  %1238 = vmatprep.mubr.f32.mxu0 0.0
  %1239 = vmatmul.mubr.f32.gmra.mxu0 %v1097
  %v1240 = vpop.f32.mrf.mxu0
  %v1241 = vadd.f32 0.0, %v1240
  %v1242 = vpop.f32.mrf.mxu0
  %1243 = vdwg.mxu0
  %v1244 = vadd.f32 %v1014, %v1166
  %v1245 = vadd.f32 %v1015, %v1171
  %v1246 = vadd.f32 %v1016, %v1176
  %v1247 = vadd.f32 %v1017, %v1181
  %v1248 = vadd.f32 %v1018, %v1186
  %v1249 = vadd.f32 %v1019, %v1191
  %v1250 = vadd.f32 %v1020, %v1196
  %v1251 = vadd.f32 %v1021, %v1201
  %v1252 = vadd.f32 %v1022, %v1206
  %v1253 = vadd.f32 %v1023, %v1211
  %v1254 = vadd.f32 %v1024, %v1216
  %v1255 = vadd.f32 %v1025, %v1221
  %v1256 = vadd.f32 %v1026, %v1226
  %v1257 = vadd.f32 %v1027, %v1231
  %v1258 = vadd.f32 %v1028, %v1236
  %v1259 = vadd.f32 %v1029, %v1241
  %v1260 = vld [vmem:[%s126 + $0x2] sm:$0xff]
  %v1261 = vld [vmem:[%s126 + $0x12] sm:$0xff]
  %v1262 = vld [vmem:[%s126 + $0x22] sm:$0xff]
  %v1263 = vld [vmem:[%s126 + $0x32] sm:$0xff]
  %v1264 = vld [vmem:[%s126 + $0x42] sm:$0xff]
  %v1265 = vld [vmem:[%s126 + $0x52] sm:$0xff]
  %v1266 = vld [vmem:[%s126 + $0x62] sm:$0xff]
  %v1267 = vld [vmem:[%s126 + $0x72] sm:$0xff]
  %v1268 = vld [vmem:[%s126 + $0xa2] sm:$0xff]
  %v1269 = vld [vmem:[%s126 + $0xb2] sm:$0xff]
  %v1270 = vld [vmem:[%s126 + $0xc2] sm:$0xff]
  %v1271 = vld [vmem:[%s126 + $0xd2] sm:$0xff]
  %v1272 = vld [vmem:[%s126 + $0xe2] sm:$0xff]
  %v1273 = vld [vmem:[%s126 + $0xf2] sm:$0xff]
  %v1274 = vld [vmem:[%s126 + $0x102] sm:$0xff]
  %v1275 = vld [vmem:[%s126 + $0x112] sm:$0xff]
  %s1276 = scalar_lea.vmem %s1, 160
  %v1277 = vld [vmem:[%s1276] sm:$0xff]
  %v1278 = vld [vmem:[%s1276 + $0x8] sm:$0xff]
  %v1279 = vld [vmem:[%s1276 + $0x10] sm:$0xff]
  %v1280 = vld [vmem:[%s1276 + $0x18] sm:$0xff]
  %v1282 = vsel %vm68, %v1260, 0
  %v1285 = vsel %vm68, %v1261, 0
  %v1288 = vsel %vm68, %v1262, 0
  %v1291 = vsel %vm68, %v1263, 0
  %v1294 = vsel %vm68, %v1264, 0
  %v1297 = vsel %vm68, %v1265, 0
  %v1300 = vsel %vm68, %v1266, 0
  %v1303 = vsel %vm68, %v1267, 0
  %v1306 = vsel %vm68, %v1268, 0
  %v1309 = vsel %vm68, %v1269, 0
  %v1312 = vsel %vm68, %v1270, 0
  %v1315 = vsel %vm68, %v1271, 0
  %v1318 = vsel %vm68, %v1272, 0
  %v1321 = vsel %vm68, %v1273, 0
  %v1324 = vsel %vm68, %v1274, 0
  %v1327 = vsel %vm68, %v1275, 0
  %1329 = vmatprep.subr.mxu0 0.0
  %1330 = vmatpush1.msra.mxu0 0.0
  %1331 = vmatprep.subr.mxu0 0.0
  %1332 = vmatpush1.msra.mxu0 0.0
  %1333 = vmatprep.subr.mxu0 0.0
  %1334 = vmatpush1.msra.mxu0 0.0
  %1335 = vmatprep.subr.mxu0 0.0
  %1336 = vmatpush1.msra.mxu0 0.0
  %1337 = vmatprep.subr.mxu0 0.0
  %1338 = vmatpush1.msra.mxu0 0.0
  %1339 = vmatprep.subr.mxu0 0.0
  %1340 = vmatpush1.msra.mxu0 0.0
  %1341 = vmatprep.subr.mxu0 0.0
  %1342 = vmatpush1.msra.mxu0 0.0
  %1343 = vmatprep.subr.mxu0 0.0
  %1344 = vmatpush1.msra.mxu0 0.0
  %1345 = vmatprep.subr.mxu0 0.0
  %1346 = vmatpush1.msra.mxu0 0.0
  %1347 = vmatprep.subr.mxu0 0.0
  %1348 = vmatpush1.msra.mxu0 0.0
  %1349 = vmatprep.subr.mxu0 0.0
  %1350 = vmatpush1.msra.mxu0 0.0
  %1351 = vmatprep.subr.mxu0 0.0
  %1352 = vmatpush1.msra.mxu0 0.0
  %1353 = vmatprep.subr.mxu0 0.0
  %1354 = vmatpush1.msra.mxu0 %v1280
  %1355 = vmatprep.subr.mxu0 0.0
  %1356 = vmatpush1.msra.mxu0 %v1279
  %1357 = vmatprep.subr.mxu0 0.0
  %1358 = vmatpush1.msra.mxu0 %v1278
  %1359 = vmatprep.subr.mxu0 0.0
  %1360 = vmatpush1.msra.mxu0 %v1277
  %1361 = vmatprep.subr.mxu0 0.0
  %1362 = vmatpush2.msra.mxu0 0.0
  %1363 = vmatprep.subr.mxu0 0.0
  %1364 = vmatpush2.msra.mxu0 0.0
  %1365 = vmatprep.subr.mxu0 0.0
  %1366 = vmatpush2.msra.mxu0 0.0
  %1367 = vmatprep.subr.mxu0 0.0
  %1368 = vmatpush2.msra.mxu0 0.0
  %1369 = vmatprep.subr.mxu0 0.0
  %1370 = vmatpush2.msra.mxu0 0.0
  %1371 = vmatprep.subr.mxu0 0.0
  %1372 = vmatpush2.msra.mxu0 0.0
  %1373 = vmatprep.subr.mxu0 0.0
  %1374 = vmatpush2.msra.mxu0 0.0
  %1375 = vmatprep.subr.mxu0 0.0
  %1376 = vmatpush2.msra.mxu0 0.0
  %1377 = vmatprep.subr.mxu0 0.0
  %1378 = vmatpush2.msra.mxu0 0.0
  %1379 = vmatprep.subr.mxu0 0.0
  %1380 = vmatpush2.msra.mxu0 0.0
  %1381 = vmatprep.subr.mxu0 0.0
  %1382 = vmatpush2.msra.mxu0 0.0
  %1383 = vmatprep.subr.mxu0 0.0
  %1384 = vmatpush2.msra.mxu0 0.0
  %1385 = vmatprep.subr.mxu0 0.0
  %1386 = vmatpush2.msra.mxu0 0.0
  %1387 = vmatprep.subr.mxu0 0.0
  %1388 = vmatpush2.msra.mxu0 0.0
  %1389 = vmatprep.subr.mxu0 0.0
  %1390 = vmatpush2.msra.mxu0 0.0
  %1391 = vmatprep.subr.mxu0 0.0
  %1392 = vmatpush2.msra.mxu0 0.0
  %1393 = vmatprep.mubr.f32.mxu0 0.0
  %1394 = vmatmul.mubr.f32.gmra.mxu0 %v1282
  %v1395 = vpop.f32.mrf.mxu0
  %v1396 = vadd.f32 0.0, %v1395
  %v1397 = vpop.f32.mrf.mxu0
  %1398 = vmatprep.mubr.f32.mxu0 0.0
  %1399 = vmatmul.mubr.f32.gmra.mxu0 %v1285
  %v1400 = vpop.f32.mrf.mxu0
  %v1401 = vadd.f32 0.0, %v1400
  %v1402 = vpop.f32.mrf.mxu0
  %1403 = vmatprep.mubr.f32.mxu0 0.0
  %1404 = vmatmul.mubr.f32.gmra.mxu0 %v1288
  %v1405 = vpop.f32.mrf.mxu0
  %v1406 = vadd.f32 0.0, %v1405
  %v1407 = vpop.f32.mrf.mxu0
  %1408 = vmatprep.mubr.f32.mxu0 0.0
  %1409 = vmatmul.mubr.f32.gmra.mxu0 %v1291
  %v1410 = vpop.f32.mrf.mxu0
  %v1411 = vadd.f32 0.0, %v1410
  %v1412 = vpop.f32.mrf.mxu0
  %1413 = vmatprep.mubr.f32.mxu0 0.0
  %1414 = vmatmul.mubr.f32.gmra.mxu0 %v1294
  %v1415 = vpop.f32.mrf.mxu0
  %v1416 = vadd.f32 0.0, %v1415
  %v1417 = vpop.f32.mrf.mxu0
  %1418 = vmatprep.mubr.f32.mxu0 0.0
  %1419 = vmatmul.mubr.f32.gmra.mxu0 %v1297
  %v1420 = vpop.f32.mrf.mxu0
  %v1421 = vadd.f32 0.0, %v1420
  %v1422 = vpop.f32.mrf.mxu0
  %1423 = vmatprep.mubr.f32.mxu0 0.0
  %1424 = vmatmul.mubr.f32.gmra.mxu0 %v1300
  %v1425 = vpop.f32.mrf.mxu0
  %v1426 = vadd.f32 0.0, %v1425
  %v1427 = vpop.f32.mrf.mxu0
  %1428 = vmatprep.mubr.f32.mxu0 0.0
  %1429 = vmatmul.mubr.f32.gmra.mxu0 %v1303
  %v1430 = vpop.f32.mrf.mxu0
  %v1431 = vadd.f32 0.0, %v1430
  %v1432 = vpop.f32.mrf.mxu0
  %1433 = vmatprep.mubr.f32.mxu0 0.0
  %1434 = vmatmul.mubr.f32.gmra.mxu0 %v1306
  %v1435 = vpop.f32.mrf.mxu0
  %v1436 = vadd.f32 0.0, %v1435
  %v1437 = vpop.f32.mrf.mxu0
  %1438 = vmatprep.mubr.f32.mxu0 0.0
  %1439 = vmatmul.mubr.f32.gmra.mxu0 %v1309
  %v1440 = vpop.f32.mrf.mxu0
  %v1441 = vadd.f32 0.0, %v1440
  %v1442 = vpop.f32.mrf.mxu0
  %1443 = vmatprep.mubr.f32.mxu0 0.0
  %1444 = vmatmul.mubr.f32.gmra.mxu0 %v1312
  %v1445 = vpop.f32.mrf.mxu0
  %v1446 = vadd.f32 0.0, %v1445
  %v1447 = vpop.f32.mrf.mxu0
  %1448 = vmatprep.mubr.f32.mxu0 0.0
  %1449 = vmatmul.mubr.f32.gmra.mxu0 %v1315
  %v1450 = vpop.f32.mrf.mxu0
  %v1451 = vadd.f32 0.0, %v1450
  %v1452 = vpop.f32.mrf.mxu0
  %1453 = vmatprep.mubr.f32.mxu0 0.0
  %1454 = vmatmul.mubr.f32.gmra.mxu0 %v1318
  %v1455 = vpop.f32.mrf.mxu0
  %v1456 = vadd.f32 0.0, %v1455
  %v1457 = vpop.f32.mrf.mxu0
  %1458 = vmatprep.mubr.f32.mxu0 0.0
  %1459 = vmatmul.mubr.f32.gmra.mxu0 %v1321
  %v1460 = vpop.f32.mrf.mxu0
  %v1461 = vadd.f32 0.0, %v1460
  %v1462 = vpop.f32.mrf.mxu0
  %1463 = vmatprep.mubr.f32.mxu0 0.0
  %1464 = vmatmul.mubr.f32.gmra.mxu0 %v1324
  %v1465 = vpop.f32.mrf.mxu0
  %v1466 = vadd.f32 0.0, %v1465
  %v1467 = vpop.f32.mrf.mxu0
  %1468 = vmatprep.mubr.f32.mxu0 0.0
  %1469 = vmatmul.mubr.f32.gmra.mxu0 %v1327
  %v1470 = vpop.f32.mrf.mxu0
  %v1471 = vadd.f32 0.0, %v1470
  %v1472 = vpop.f32.mrf.mxu0
  %1473 = vdwg.mxu0
  %v1474 = vadd.f32 %v1244, %v1396
  %v1475 = vadd.f32 %v1245, %v1401
  %v1476 = vadd.f32 %v1246, %v1406
  %v1477 = vadd.f32 %v1247, %v1411
  %v1478 = vadd.f32 %v1248, %v1416
  %v1479 = vadd.f32 %v1249, %v1421
  %v1480 = vadd.f32 %v1250, %v1426
  %v1481 = vadd.f32 %v1251, %v1431
  %v1482 = vadd.f32 %v1252, %v1436
  %v1483 = vadd.f32 %v1253, %v1441
  %v1484 = vadd.f32 %v1254, %v1446
  %v1485 = vadd.f32 %v1255, %v1451
  %v1486 = vadd.f32 %v1256, %v1456
  %v1487 = vadd.f32 %v1257, %v1461
  %v1488 = vadd.f32 %v1258, %v1466
  %v1489 = vadd.f32 %v1259, %v1471
  %s1490 = scalar_lea.vmem [#allocation2], 32
  %v1491 = vld [vmem:[%s1490] sm:$0xff]
  %v1492 = vld [vmem:[%s1490 + $0x10] sm:$0xff]
  %v1493 = vld [vmem:[%s1490 + $0x20] sm:$0xff]
  %v1494 = vld [vmem:[%s1490 + $0x30] sm:$0xff]
  %v1495 = vld [vmem:[%s1490 + $0x40] sm:$0xff]
  %v1496 = vld [vmem:[%s1490 + $0x50] sm:$0xff]
  %v1497 = vld [vmem:[%s1490 + $0x60] sm:$0xff]
  %v1498 = vld [vmem:[%s1490 + $0x70] sm:$0xff]
  %v1499 = vld [vmem:[%s1490 + $0xa0] sm:$0xff]
  %v1500 = vld [vmem:[%s1490 + $0xb0] sm:$0xff]
  %v1501 = vld [vmem:[%s1490 + $0xc0] sm:$0xff]
  %v1502 = vld [vmem:[%s1490 + $0xd0] sm:$0xff]
  %v1503 = vld [vmem:[%s1490 + $0xe0] sm:$0xff]
  %v1504 = vld [vmem:[%s1490 + $0xf0] sm:$0xff]
  %v1505 = vld [vmem:[%s1490 + $0x100] sm:$0xff]
  %v1506 = vld [vmem:[%s1490 + $0x110] sm:$0xff]
  %s1507 = scalar_lea.vmem %s1, 192
  %v1508 = vld [vmem:[%s1507] sm:$0xff]
  %v1509 = vld [vmem:[%s1507 + $0x8] sm:$0xff]
  %v1510 = vld [vmem:[%s1507 + $0x10] sm:$0xff]
  %v1511 = vld [vmem:[%s1507 + $0x18] sm:$0xff]
  %v1513 = vsel %vm68, %v1491, 0
  %v1516 = vsel %vm68, %v1492, 0
  %v1519 = vsel %vm68, %v1493, 0
  %v1522 = vsel %vm68, %v1494, 0
  %v1525 = vsel %vm68, %v1495, 0
  %v1528 = vsel %vm68, %v1496, 0
  %v1531 = vsel %vm68, %v1497, 0
  %v1534 = vsel %vm68, %v1498, 0
  %v1537 = vsel %vm68, %v1499, 0
  %v1540 = vsel %vm68, %v1500, 0
  %v1543 = vsel %vm68, %v1501, 0
  %v1546 = vsel %vm68, %v1502, 0
  %v1549 = vsel %vm68, %v1503, 0
  %v1552 = vsel %vm68, %v1504, 0
  %v1555 = vsel %vm68, %v1505, 0
  %v1558 = vsel %vm68, %v1506, 0
  %1560 = vmatprep.subr.mxu0 0.0
  %1561 = vmatpush1.msra.mxu0 0.0
  %1562 = vmatprep.subr.mxu0 0.0
  %1563 = vmatpush1.msra.mxu0 0.0
  %1564 = vmatprep.subr.mxu0 0.0
  %1565 = vmatpush1.msra.mxu0 0.0
  %1566 = vmatprep.subr.mxu0 0.0
  %1567 = vmatpush1.msra.mxu0 0.0
  %1568 = vmatprep.subr.mxu0 0.0
  %1569 = vmatpush1.msra.mxu0 0.0
  %1570 = vmatprep.subr.mxu0 0.0
  %1571 = vmatpush1.msra.mxu0 0.0
  %1572 = vmatprep.subr.mxu0 0.0
  %1573 = vmatpush1.msra.mxu0 0.0
  %1574 = vmatprep.subr.mxu0 0.0
  %1575 = vmatpush1.msra.mxu0 0.0
  %1576 = vmatprep.subr.mxu0 0.0
  %1577 = vmatpush1.msra.mxu0 0.0
  %1578 = vmatprep.subr.mxu0 0.0
  %1579 = vmatpush1.msra.mxu0 0.0
  %1580 = vmatprep.subr.mxu0 0.0
  %1581 = vmatpush1.msra.mxu0 0.0
  %1582 = vmatprep.subr.mxu0 0.0
  %1583 = vmatpush1.msra.mxu0 0.0
  %1584 = vmatprep.subr.mxu0 0.0
  %1585 = vmatpush1.msra.mxu0 %v1511
  %1586 = vmatprep.subr.mxu0 0.0
  %1587 = vmatpush1.msra.mxu0 %v1510
  %1588 = vmatprep.subr.mxu0 0.0
  %1589 = vmatpush1.msra.mxu0 %v1509
  %1590 = vmatprep.subr.mxu0 0.0
  %1591 = vmatpush1.msra.mxu0 %v1508
  %1592 = vmatprep.subr.mxu0 0.0
  %1593 = vmatpush2.msra.mxu0 0.0
  %1594 = vmatprep.subr.mxu0 0.0
  %1595 = vmatpush2.msra.mxu0 0.0
  %1596 = vmatprep.subr.mxu0 0.0
  %1597 = vmatpush2.msra.mxu0 0.0
  %1598 = vmatprep.subr.mxu0 0.0
  %1599 = vmatpush2.msra.mxu0 0.0
  %1600 = vmatprep.subr.mxu0 0.0
  %1601 = vmatpush2.msra.mxu0 0.0
  %1602 = vmatprep.subr.mxu0 0.0
  %1603 = vmatpush2.msra.mxu0 0.0
  %1604 = vmatprep.subr.mxu0 0.0
  %1605 = vmatpush2.msra.mxu0 0.0
  %1606 = vmatprep.subr.mxu0 0.0
  %1607 = vmatpush2.msra.mxu0 0.0
  %1608 = vmatprep.subr.mxu0 0.0
  %1609 = vmatpush2.msra.mxu0 0.0
  %1610 = vmatprep.subr.mxu0 0.0
  %1611 = vmatpush2.msra.mxu0 0.0
  %1612 = vmatprep.subr.mxu0 0.0
  %1613 = vmatpush2.msra.mxu0 0.0
  %1614 = vmatprep.subr.mxu0 0.0
  %1615 = vmatpush2.msra.mxu0 0.0
  %1616 = vmatprep.subr.mxu0 0.0
  %1617 = vmatpush2.msra.mxu0 0.0
  %1618 = vmatprep.subr.mxu0 0.0
  %1619 = vmatpush2.msra.mxu0 0.0
  %1620 = vmatprep.subr.mxu0 0.0
  %1621 = vmatpush2.msra.mxu0 0.0
  %1622 = vmatprep.subr.mxu0 0.0
  %1623 = vmatpush2.msra.mxu0 0.0
  %1624 = vmatprep.mubr.f32.mxu0 0.0
  %1625 = vmatmul.mubr.f32.gmra.mxu0 %v1513
  %v1626 = vpop.f32.mrf.mxu0
  %v1627 = vadd.f32 0.0, %v1626
  %v1628 = vpop.f32.mrf.mxu0
  %1629 = vmatprep.mubr.f32.mxu0 0.0
  %1630 = vmatmul.mubr.f32.gmra.mxu0 %v1516
  %v1631 = vpop.f32.mrf.mxu0
  %v1632 = vadd.f32 0.0, %v1631
  %v1633 = vpop.f32.mrf.mxu0
  %1634 = vmatprep.mubr.f32.mxu0 0.0
  %1635 = vmatmul.mubr.f32.gmra.mxu0 %v1519
  %v1636 = vpop.f32.mrf.mxu0
  %v1637 = vadd.f32 0.0, %v1636
  %v1638 = vpop.f32.mrf.mxu0
  %1639 = vmatprep.mubr.f32.mxu0 0.0
  %1640 = vmatmul.mubr.f32.gmra.mxu0 %v1522
  %v1641 = vpop.f32.mrf.mxu0
  %v1642 = vadd.f32 0.0, %v1641
  %v1643 = vpop.f32.mrf.mxu0
  %1644 = vmatprep.mubr.f32.mxu0 0.0
  %1645 = vmatmul.mubr.f32.gmra.mxu0 %v1525
  %v1646 = vpop.f32.mrf.mxu0
  %v1647 = vadd.f32 0.0, %v1646
  %v1648 = vpop.f32.mrf.mxu0
  %1649 = vmatprep.mubr.f32.mxu0 0.0
  %1650 = vmatmul.mubr.f32.gmra.mxu0 %v1528
  %v1651 = vpop.f32.mrf.mxu0
  %v1652 = vadd.f32 0.0, %v1651
  %v1653 = vpop.f32.mrf.mxu0
  %1654 = vmatprep.mubr.f32.mxu0 0.0
  %1655 = vmatmul.mubr.f32.gmra.mxu0 %v1531
  %v1656 = vpop.f32.mrf.mxu0
  %v1657 = vadd.f32 0.0, %v1656
  %v1658 = vpop.f32.mrf.mxu0
  %1659 = vmatprep.mubr.f32.mxu0 0.0
  %1660 = vmatmul.mubr.f32.gmra.mxu0 %v1534
  %v1661 = vpop.f32.mrf.mxu0
  %v1662 = vadd.f32 0.0, %v1661
  %v1663 = vpop.f32.mrf.mxu0
  %1664 = vmatprep.mubr.f32.mxu0 0.0
  %1665 = vmatmul.mubr.f32.gmra.mxu0 %v1537
  %v1666 = vpop.f32.mrf.mxu0
  %v1667 = vadd.f32 0.0, %v1666
  %v1668 = vpop.f32.mrf.mxu0
  %1669 = vmatprep.mubr.f32.mxu0 0.0
  %1670 = vmatmul.mubr.f32.gmra.mxu0 %v1540
  %v1671 = vpop.f32.mrf.mxu0
  %v1672 = vadd.f32 0.0, %v1671
  %v1673 = vpop.f32.mrf.mxu0
  %1674 = vmatprep.mubr.f32.mxu0 0.0
  %1675 = vmatmul.mubr.f32.gmra.mxu0 %v1543
  %v1676 = vpop.f32.mrf.mxu0
  %v1677 = vadd.f32 0.0, %v1676
  %v1678 = vpop.f32.mrf.mxu0
  %1679 = vmatprep.mubr.f32.mxu0 0.0
  %1680 = vmatmul.mubr.f32.gmra.mxu0 %v1546
  %v1681 = vpop.f32.mrf.mxu0
  %v1682 = vadd.f32 0.0, %v1681
  %v1683 = vpop.f32.mrf.mxu0
  %1684 = vmatprep.mubr.f32.mxu0 0.0
  %1685 = vmatmul.mubr.f32.gmra.mxu0 %v1549
  %v1686 = vpop.f32.mrf.mxu0
  %v1687 = vadd.f32 0.0, %v1686
  %v1688 = vpop.f32.mrf.mxu0
  %1689 = vmatprep.mubr.f32.mxu0 0.0
  %1690 = vmatmul.mubr.f32.gmra.mxu0 %v1552
  %v1691 = vpop.f32.mrf.mxu0
  %v1692 = vadd.f32 0.0, %v1691
  %v1693 = vpop.f32.mrf.mxu0
  %1694 = vmatprep.mubr.f32.mxu0 0.0
  %1695 = vmatmul.mubr.f32.gmra.mxu0 %v1555
  %v1696 = vpop.f32.mrf.mxu0
  %v1697 = vadd.f32 0.0, %v1696
  %v1698 = vpop.f32.mrf.mxu0
  %1699 = vmatprep.mubr.f32.mxu0 0.0
  %1700 = vmatmul.mubr.f32.gmra.mxu0 %v1558
  %v1701 = vpop.f32.mrf.mxu0
  %v1702 = vadd.f32 0.0, %v1701
  %v1703 = vpop.f32.mrf.mxu0
  %1704 = vdwg.mxu0
  %v1705 = vadd.f32 %v1474, %v1627
  %v1706 = vadd.f32 %v1475, %v1632
  %v1707 = vadd.f32 %v1476, %v1637
  %v1708 = vadd.f32 %v1477, %v1642
  %v1709 = vadd.f32 %v1478, %v1647
  %v1710 = vadd.f32 %v1479, %v1652
  %v1711 = vadd.f32 %v1480, %v1657
  %v1712 = vadd.f32 %v1481, %v1662
  %v1713 = vadd.f32 %v1482, %v1667
  %v1714 = vadd.f32 %v1483, %v1672
  %v1715 = vadd.f32 %v1484, %v1677
  %v1716 = vadd.f32 %v1485, %v1682
  %v1717 = vadd.f32 %v1486, %v1687
  %v1718 = vadd.f32 %v1487, %v1692
  %v1719 = vadd.f32 %v1488, %v1697
  %v1720 = vadd.f32 %v1489, %v1702
  %v1721 = vld [vmem:[%s1490 + $0x1] sm:$0xff]
  %v1722 = vld [vmem:[%s1490 + $0x11] sm:$0xff]
  %v1723 = vld [vmem:[%s1490 + $0x21] sm:$0xff]
  %v1724 = vld [vmem:[%s1490 + $0x31] sm:$0xff]
  %v1725 = vld [vmem:[%s1490 + $0x41] sm:$0xff]
  %v1726 = vld [vmem:[%s1490 + $0x51] sm:$0xff]
  %v1727 = vld [vmem:[%s1490 + $0x61] sm:$0xff]
  %v1728 = vld [vmem:[%s1490 + $0x71] sm:$0xff]
  %v1729 = vld [vmem:[%s1490 + $0xa1] sm:$0xff]
  %v1730 = vld [vmem:[%s1490 + $0xb1] sm:$0xff]
  %v1731 = vld [vmem:[%s1490 + $0xc1] sm:$0xff]
  %v1732 = vld [vmem:[%s1490 + $0xd1] sm:$0xff]
  %v1733 = vld [vmem:[%s1490 + $0xe1] sm:$0xff]
  %v1734 = vld [vmem:[%s1490 + $0xf1] sm:$0xff]
  %v1735 = vld [vmem:[%s1490 + $0x101] sm:$0xff]
  %v1736 = vld [vmem:[%s1490 + $0x111] sm:$0xff]
  %s1737 = scalar_lea.vmem %s1, 224
  %v1738 = vld [vmem:[%s1737] sm:$0xff]
  %v1739 = vld [vmem:[%s1737 + $0x8] sm:$0xff]
  %v1740 = vld [vmem:[%s1737 + $0x10] sm:$0xff]
  %v1741 = vld [vmem:[%s1737 + $0x18] sm:$0xff]
  %v1743 = vsel %vm68, %v1721, 0
  %v1746 = vsel %vm68, %v1722, 0
  %v1749 = vsel %vm68, %v1723, 0
  %v1752 = vsel %vm68, %v1724, 0
  %v1755 = vsel %vm68, %v1725, 0
  %v1758 = vsel %vm68, %v1726, 0
  %v1761 = vsel %vm68, %v1727, 0
  %v1764 = vsel %vm68, %v1728, 0
  %v1767 = vsel %vm68, %v1729, 0
  %v1770 = vsel %vm68, %v1730, 0
  %v1773 = vsel %vm68, %v1731, 0
  %v1776 = vsel %vm68, %v1732, 0
  %v1779 = vsel %vm68, %v1733, 0
  %v1782 = vsel %vm68, %v1734, 0
  %v1785 = vsel %vm68, %v1735, 0
  %v1788 = vsel %vm68, %v1736, 0
  %1790 = vmatprep.subr.mxu0 0.0
  %1791 = vmatpush1.msra.mxu0 0.0
  %1792 = vmatprep.subr.mxu0 0.0
  %1793 = vmatpush1.msra.mxu0 0.0
  %1794 = vmatprep.subr.mxu0 0.0
  %1795 = vmatpush1.msra.mxu0 0.0
  %1796 = vmatprep.subr.mxu0 0.0
  %1797 = vmatpush1.msra.mxu0 0.0
  %1798 = vmatprep.subr.mxu0 0.0
  %1799 = vmatpush1.msra.mxu0 0.0
  %1800 = vmatprep.subr.mxu0 0.0
  %1801 = vmatpush1.msra.mxu0 0.0
  %1802 = vmatprep.subr.mxu0 0.0
  %1803 = vmatpush1.msra.mxu0 0.0
  %1804 = vmatprep.subr.mxu0 0.0
  %1805 = vmatpush1.msra.mxu0 0.0
  %1806 = vmatprep.subr.mxu0 0.0
  %1807 = vmatpush1.msra.mxu0 0.0
  %1808 = vmatprep.subr.mxu0 0.0
  %1809 = vmatpush1.msra.mxu0 0.0
  %1810 = vmatprep.subr.mxu0 0.0
  %1811 = vmatpush1.msra.mxu0 0.0
  %1812 = vmatprep.subr.mxu0 0.0
  %1813 = vmatpush1.msra.mxu0 0.0
  %1814 = vmatprep.subr.mxu0 0.0
  %1815 = vmatpush1.msra.mxu0 %v1741
  %1816 = vmatprep.subr.mxu0 0.0
  %1817 = vmatpush1.msra.mxu0 %v1740
  %1818 = vmatprep.subr.mxu0 0.0
  %1819 = vmatpush1.msra.mxu0 %v1739
  %1820 = vmatprep.subr.mxu0 0.0
  %1821 = vmatpush1.msra.mxu0 %v1738
  %1822 = vmatprep.subr.mxu0 0.0
  %1823 = vmatpush2.msra.mxu0 0.0
  %1824 = vmatprep.subr.mxu0 0.0
  %1825 = vmatpush2.msra.mxu0 0.0
  %1826 = vmatprep.subr.mxu0 0.0
  %1827 = vmatpush2.msra.mxu0 0.0
  %1828 = vmatprep.subr.mxu0 0.0
  %1829 = vmatpush2.msra.mxu0 0.0
  %1830 = vmatprep.subr.mxu0 0.0
  %1831 = vmatpush2.msra.mxu0 0.0
  %1832 = vmatprep.subr.mxu0 0.0
  %1833 = vmatpush2.msra.mxu0 0.0
  %1834 = vmatprep.subr.mxu0 0.0
  %1835 = vmatpush2.msra.mxu0 0.0
  %1836 = vmatprep.subr.mxu0 0.0
  %1837 = vmatpush2.msra.mxu0 0.0
  %1838 = vmatprep.subr.mxu0 0.0
  %1839 = vmatpush2.msra.mxu0 0.0
  %1840 = vmatprep.subr.mxu0 0.0
  %1841 = vmatpush2.msra.mxu0 0.0
  %1842 = vmatprep.subr.mxu0 0.0
  %1843 = vmatpush2.msra.mxu0 0.0
  %1844 = vmatprep.subr.mxu0 0.0
  %1845 = vmatpush2.msra.mxu0 0.0
  %1846 = vmatprep.subr.mxu0 0.0
  %1847 = vmatpush2.msra.mxu0 0.0
  %1848 = vmatprep.subr.mxu0 0.0
  %1849 = vmatpush2.msra.mxu0 0.0
  %1850 = vmatprep.subr.mxu0 0.0
  %1851 = vmatpush2.msra.mxu0 0.0
  %1852 = vmatprep.subr.mxu0 0.0
  %1853 = vmatpush2.msra.mxu0 0.0
  %1854 = vmatprep.mubr.f32.mxu0 0.0
  %1855 = vmatmul.mubr.f32.gmra.mxu0 %v1743
  %v1856 = vpop.f32.mrf.mxu0
  %v1857 = vadd.f32 0.0, %v1856
  %v1858 = vpop.f32.mrf.mxu0
  %1859 = vmatprep.mubr.f32.mxu0 0.0
  %1860 = vmatmul.mubr.f32.gmra.mxu0 %v1746
  %v1861 = vpop.f32.mrf.mxu0
  %v1862 = vadd.f32 0.0, %v1861
  %v1863 = vpop.f32.mrf.mxu0
  %1864 = vmatprep.mubr.f32.mxu0 0.0
  %1865 = vmatmul.mubr.f32.gmra.mxu0 %v1749
  %v1866 = vpop.f32.mrf.mxu0
  %v1867 = vadd.f32 0.0, %v1866
  %v1868 = vpop.f32.mrf.mxu0
  %1869 = vmatprep.mubr.f32.mxu0 0.0
  %1870 = vmatmul.mubr.f32.gmra.mxu0 %v1752
  %v1871 = vpop.f32.mrf.mxu0
  %v1872 = vadd.f32 0.0, %v1871
  %v1873 = vpop.f32.mrf.mxu0
  %1874 = vmatprep.mubr.f32.mxu0 0.0
  %1875 = vmatmul.mubr.f32.gmra.mxu0 %v1755
  %v1876 = vpop.f32.mrf.mxu0
  %v1877 = vadd.f32 0.0, %v1876
  %v1878 = vpop.f32.mrf.mxu0
  %1879 = vmatprep.mubr.f32.mxu0 0.0
  %1880 = vmatmul.mubr.f32.gmra.mxu0 %v1758
  %v1881 = vpop.f32.mrf.mxu0
  %v1882 = vadd.f32 0.0, %v1881
  %v1883 = vpop.f32.mrf.mxu0
  %1884 = vmatprep.mubr.f32.mxu0 0.0
  %1885 = vmatmul.mubr.f32.gmra.mxu0 %v1761
  %v1886 = vpop.f32.mrf.mxu0
  %v1887 = vadd.f32 0.0, %v1886
  %v1888 = vpop.f32.mrf.mxu0
  %1889 = vmatprep.mubr.f32.mxu0 0.0
  %1890 = vmatmul.mubr.f32.gmra.mxu0 %v1764
  %v1891 = vpop.f32.mrf.mxu0
  %v1892 = vadd.f32 0.0, %v1891
  %v1893 = vpop.f32.mrf.mxu0
  %1894 = vmatprep.mubr.f32.mxu0 0.0
  %1895 = vmatmul.mubr.f32.gmra.mxu0 %v1767
  %v1896 = vpop.f32.mrf.mxu0
  %v1897 = vadd.f32 0.0, %v1896
  %v1898 = vpop.f32.mrf.mxu0
  %1899 = vmatprep.mubr.f32.mxu0 0.0
  %1900 = vmatmul.mubr.f32.gmra.mxu0 %v1770
  %v1901 = vpop.f32.mrf.mxu0
  %v1902 = vadd.f32 0.0, %v1901
  %v1903 = vpop.f32.mrf.mxu0
  %1904 = vmatprep.mubr.f32.mxu0 0.0
  %1905 = vmatmul.mubr.f32.gmra.mxu0 %v1773
  %v1906 = vpop.f32.mrf.mxu0
  %v1907 = vadd.f32 0.0, %v1906
  %v1908 = vpop.f32.mrf.mxu0
  %1909 = vmatprep.mubr.f32.mxu0 0.0
  %1910 = vmatmul.mubr.f32.gmra.mxu0 %v1776
  %v1911 = vpop.f32.mrf.mxu0
  %v1912 = vadd.f32 0.0, %v1911
  %v1913 = vpop.f32.mrf.mxu0
  %1914 = vmatprep.mubr.f32.mxu0 0.0
  %1915 = vmatmul.mubr.f32.gmra.mxu0 %v1779
  %v1916 = vpop.f32.mrf.mxu0
  %v1917 = vadd.f32 0.0, %v1916
  %v1918 = vpop.f32.mrf.mxu0
  %1919 = vmatprep.mubr.f32.mxu0 0.0
  %1920 = vmatmul.mubr.f32.gmra.mxu0 %v1782
  %v1921 = vpop.f32.mrf.mxu0
  %v1922 = vadd.f32 0.0, %v1921
  %v1923 = vpop.f32.mrf.mxu0
  %1924 = vmatprep.mubr.f32.mxu0 0.0
  %1925 = vmatmul.mubr.f32.gmra.mxu0 %v1785
  %v1926 = vpop.f32.mrf.mxu0
  %v1927 = vadd.f32 0.0, %v1926
  %v1928 = vpop.f32.mrf.mxu0
  %1929 = vmatprep.mubr.f32.mxu0 0.0
  %1930 = vmatmul.mubr.f32.gmra.mxu0 %v1788
  %v1931 = vpop.f32.mrf.mxu0
  %v1932 = vadd.f32 0.0, %v1931
  %v1933 = vpop.f32.mrf.mxu0
  %1934 = vdwg.mxu0
  %v1935 = vadd.f32 %v1705, %v1857
  %v1936 = vadd.f32 %v1706, %v1862
  %v1937 = vadd.f32 %v1707, %v1867
  %v1938 = vadd.f32 %v1708, %v1872
  %v1939 = vadd.f32 %v1709, %v1877
  %v1940 = vadd.f32 %v1710, %v1882
  %v1941 = vadd.f32 %v1711, %v1887
  %v1942 = vadd.f32 %v1712, %v1892
  %v1943 = vadd.f32 %v1713, %v1897
  %v1944 = vadd.f32 %v1714, %v1902
  %v1945 = vadd.f32 %v1715, %v1907
  %v1946 = vadd.f32 %v1716, %v1912
  %v1947 = vadd.f32 %v1717, %v1917
  %v1948 = vadd.f32 %v1718, %v1922
  %v1949 = vadd.f32 %v1719, %v1927
  %v1950 = vadd.f32 %v1720, %v1932
  %v1951 = vld [vmem:[%s1490 + $0x2] sm:$0xff]
  %v1952 = vld [vmem:[%s1490 + $0x12] sm:$0xff]
  %v1953 = vld [vmem:[%s1490 + $0x22] sm:$0xff]
  %v1954 = vld [vmem:[%s1490 + $0x32] sm:$0xff]
  %v1955 = vld [vmem:[%s1490 + $0x42] sm:$0xff]
  %v1956 = vld [vmem:[%s1490 + $0x52] sm:$0xff]
  %v1957 = vld [vmem:[%s1490 + $0x62] sm:$0xff]
  %v1958 = vld [vmem:[%s1490 + $0x72] sm:$0xff]
  %v1959 = vld [vmem:[%s1490 + $0xa2] sm:$0xff]
  %v1960 = vld [vmem:[%s1490 + $0xb2] sm:$0xff]
  %v1961 = vld [vmem:[%s1490 + $0xc2] sm:$0xff]
  %v1962 = vld [vmem:[%s1490 + $0xd2] sm:$0xff]
  %v1963 = vld [vmem:[%s1490 + $0xe2] sm:$0xff]
  %v1964 = vld [vmem:[%s1490 + $0xf2] sm:$0xff]
  %v1965 = vld [vmem:[%s1490 + $0x102] sm:$0xff]
  %v1966 = vld [vmem:[%s1490 + $0x112] sm:$0xff]
  %s1967 = scalar_lea.vmem %s1, 256
  %v1968 = vld [vmem:[%s1967] sm:$0xff]
  %v1969 = vld [vmem:[%s1967 + $0x8] sm:$0xff]
  %v1970 = vld [vmem:[%s1967 + $0x10] sm:$0xff]
  %v1971 = vld [vmem:[%s1967 + $0x18] sm:$0xff]
  %v1973 = vsel %vm68, %v1951, 0
  %v1976 = vsel %vm68, %v1952, 0
  %v1979 = vsel %vm68, %v1953, 0
  %v1982 = vsel %vm68, %v1954, 0
  %v1985 = vsel %vm68, %v1955, 0
  %v1988 = vsel %vm68, %v1956, 0
  %v1991 = vsel %vm68, %v1957, 0
  %v1994 = vsel %vm68, %v1958, 0
  %v1997 = vsel %vm68, %v1959, 0
  %v2000 = vsel %vm68, %v1960, 0
  %v2003 = vsel %vm68, %v1961, 0
  %v2006 = vsel %vm68, %v1962, 0
  %v2009 = vsel %vm68, %v1963, 0
  %v2012 = vsel %vm68, %v1964, 0
  %v2015 = vsel %vm68, %v1965, 0
  %v2018 = vsel %vm68, %v1966, 0
  %2020 = vmatprep.subr.mxu0 0.0
  %2021 = vmatpush1.msra.mxu0 0.0
  %2022 = vmatprep.subr.mxu0 0.0
  %2023 = vmatpush1.msra.mxu0 0.0
  %2024 = vmatprep.subr.mxu0 0.0
  %2025 = vmatpush1.msra.mxu0 0.0
  %2026 = vmatprep.subr.mxu0 0.0
  %2027 = vmatpush1.msra.mxu0 0.0
  %2028 = vmatprep.subr.mxu0 0.0
  %2029 = vmatpush1.msra.mxu0 0.0
  %2030 = vmatprep.subr.mxu0 0.0
  %2031 = vmatpush1.msra.mxu0 0.0
  %2032 = vmatprep.subr.mxu0 0.0
  %2033 = vmatpush1.msra.mxu0 0.0
  %2034 = vmatprep.subr.mxu0 0.0
  %2035 = vmatpush1.msra.mxu0 0.0
  %2036 = vmatprep.subr.mxu0 0.0
  %2037 = vmatpush1.msra.mxu0 0.0
  %2038 = vmatprep.subr.mxu0 0.0
  %2039 = vmatpush1.msra.mxu0 0.0
  %2040 = vmatprep.subr.mxu0 0.0
  %2041 = vmatpush1.msra.mxu0 0.0
  %2042 = vmatprep.subr.mxu0 0.0
  %2043 = vmatpush1.msra.mxu0 0.0
  %2044 = vmatprep.subr.mxu0 0.0
  %2045 = vmatpush1.msra.mxu0 %v1971
  %2046 = vmatprep.subr.mxu0 0.0
  %2047 = vmatpush1.msra.mxu0 %v1970
  %2048 = vmatprep.subr.mxu0 0.0
  %2049 = vmatpush1.msra.mxu0 %v1969
  %2050 = vmatprep.subr.mxu0 0.0
  %2051 = vmatpush1.msra.mxu0 %v1968
  %2052 = vmatprep.subr.mxu0 0.0
  %2053 = vmatpush2.msra.mxu0 0.0
  %2054 = vmatprep.subr.mxu0 0.0
  %2055 = vmatpush2.msra.mxu0 0.0
  %2056 = vmatprep.subr.mxu0 0.0
  %2057 = vmatpush2.msra.mxu0 0.0
  %2058 = vmatprep.subr.mxu0 0.0
  %2059 = vmatpush2.msra.mxu0 0.0
  %2060 = vmatprep.subr.mxu0 0.0
  %2061 = vmatpush2.msra.mxu0 0.0
  %2062 = vmatprep.subr.mxu0 0.0
  %2063 = vmatpush2.msra.mxu0 0.0
  %2064 = vmatprep.subr.mxu0 0.0
  %2065 = vmatpush2.msra.mxu0 0.0
  %2066 = vmatprep.subr.mxu0 0.0
  %2067 = vmatpush2.msra.mxu0 0.0
  %2068 = vmatprep.subr.mxu0 0.0
  %2069 = vmatpush2.msra.mxu0 0.0
  %2070 = vmatprep.subr.mxu0 0.0
  %2071 = vmatpush2.msra.mxu0 0.0
  %2072 = vmatprep.subr.mxu0 0.0
  %2073 = vmatpush2.msra.mxu0 0.0
  %2074 = vmatprep.subr.mxu0 0.0
  %2075 = vmatpush2.msra.mxu0 0.0
  %2076 = vmatprep.subr.mxu0 0.0
  %2077 = vmatpush2.msra.mxu0 0.0
  %2078 = vmatprep.subr.mxu0 0.0
  %2079 = vmatpush2.msra.mxu0 0.0
  %2080 = vmatprep.subr.mxu0 0.0
  %2081 = vmatpush2.msra.mxu0 0.0
  %2082 = vmatprep.subr.mxu0 0.0
  %2083 = vmatpush2.msra.mxu0 0.0
  %2084 = vmatprep.mubr.f32.mxu0 0.0
  %2085 = vmatmul.mubr.f32.gmra.mxu0 %v1973
  %v2086 = vpop.f32.mrf.mxu0
  %v2087 = vadd.f32 0.0, %v2086
  %v2088 = vpop.f32.mrf.mxu0
  %2089 = vmatprep.mubr.f32.mxu0 0.0
  %2090 = vmatmul.mubr.f32.gmra.mxu0 %v1976
  %v2091 = vpop.f32.mrf.mxu0
  %v2092 = vadd.f32 0.0, %v2091
  %v2093 = vpop.f32.mrf.mxu0
  %2094 = vmatprep.mubr.f32.mxu0 0.0
  %2095 = vmatmul.mubr.f32.gmra.mxu0 %v1979
  %v2096 = vpop.f32.mrf.mxu0
  %v2097 = vadd.f32 0.0, %v2096
  %v2098 = vpop.f32.mrf.mxu0
  %2099 = vmatprep.mubr.f32.mxu0 0.0
  %2100 = vmatmul.mubr.f32.gmra.mxu0 %v1982
  %v2101 = vpop.f32.mrf.mxu0
  %v2102 = vadd.f32 0.0, %v2101
  %v2103 = vpop.f32.mrf.mxu0
  %2104 = vmatprep.mubr.f32.mxu0 0.0
  %2105 = vmatmul.mubr.f32.gmra.mxu0 %v1985
  %v2106 = vpop.f32.mrf.mxu0
  %v2107 = vadd.f32 0.0, %v2106
  %v2108 = vpop.f32.mrf.mxu0
  %2109 = vmatprep.mubr.f32.mxu0 0.0
  %2110 = vmatmul.mubr.f32.gmra.mxu0 %v1988
  %v2111 = vpop.f32.mrf.mxu0
  %v2112 = vadd.f32 0.0, %v2111
  %v2113 = vpop.f32.mrf.mxu0
  %2114 = vmatprep.mubr.f32.mxu0 0.0
  %2115 = vmatmul.mubr.f32.gmra.mxu0 %v1991
  %v2116 = vpop.f32.mrf.mxu0
  %v2117 = vadd.f32 0.0, %v2116
  %v2118 = vpop.f32.mrf.mxu0
  %2119 = vmatprep.mubr.f32.mxu0 0.0
  %2120 = vmatmul.mubr.f32.gmra.mxu0 %v1994
  %v2121 = vpop.f32.mrf.mxu0
  %v2122 = vadd.f32 0.0, %v2121
  %v2123 = vpop.f32.mrf.mxu0
  %2124 = vmatprep.mubr.f32.mxu0 0.0
  %2125 = vmatmul.mubr.f32.gmra.mxu0 %v1997
  %v2126 = vpop.f32.mrf.mxu0
  %v2127 = vadd.f32 0.0, %v2126
  %v2128 = vpop.f32.mrf.mxu0
  %2129 = vmatprep.mubr.f32.mxu0 0.0
  %2130 = vmatmul.mubr.f32.gmra.mxu0 %v2000
  %v2131 = vpop.f32.mrf.mxu0
  %v2132 = vadd.f32 0.0, %v2131
  %v2133 = vpop.f32.mrf.mxu0
  %2134 = vmatprep.mubr.f32.mxu0 0.0
  %2135 = vmatmul.mubr.f32.gmra.mxu0 %v2003
  %v2136 = vpop.f32.mrf.mxu0
  %v2137 = vadd.f32 0.0, %v2136
  %v2138 = vpop.f32.mrf.mxu0
  %2139 = vmatprep.mubr.f32.mxu0 0.0
  %2140 = vmatmul.mubr.f32.gmra.mxu0 %v2006
  %v2141 = vpop.f32.mrf.mxu0
  %v2142 = vadd.f32 0.0, %v2141
  %v2143 = vpop.f32.mrf.mxu0
  %2144 = vmatprep.mubr.f32.mxu0 0.0
  %2145 = vmatmul.mubr.f32.gmra.mxu0 %v2009
  %v2146 = vpop.f32.mrf.mxu0
  %v2147 = vadd.f32 0.0, %v2146
  %v2148 = vpop.f32.mrf.mxu0
  %2149 = vmatprep.mubr.f32.mxu0 0.0
  %2150 = vmatmul.mubr.f32.gmra.mxu0 %v2012
  %v2151 = vpop.f32.mrf.mxu0
  %v2152 = vadd.f32 0.0, %v2151
  %v2153 = vpop.f32.mrf.mxu0
  %2154 = vmatprep.mubr.f32.mxu0 0.0
  %2155 = vmatmul.mubr.f32.gmra.mxu0 %v2015
  %v2156 = vpop.f32.mrf.mxu0
  %v2157 = vadd.f32 0.0, %v2156
  %v2158 = vpop.f32.mrf.mxu0
  %2159 = vmatprep.mubr.f32.mxu0 0.0
  %2160 = vmatmul.mubr.f32.gmra.mxu0 %v2018
  %v2161 = vpop.f32.mrf.mxu0
  %v2162 = vadd.f32 0.0, %v2161
  %v2163 = vpop.f32.mrf.mxu0
  %2164 = vdwg.mxu0
  %v2165 = vadd.f32 %v1935, %v2087
  %v2166 = vadd.f32 %v1936, %v2092
  %v2167 = vadd.f32 %v1937, %v2097
  %v2168 = vadd.f32 %v1938, %v2102
  %v2169 = vadd.f32 %v1939, %v2107
  %v2170 = vadd.f32 %v1940, %v2112
  %v2171 = vadd.f32 %v1941, %v2117
  %v2172 = vadd.f32 %v1942, %v2122
  %v2173 = vadd.f32 %v1943, %v2127
  %v2174 = vadd.f32 %v1944, %v2132
  %v2175 = vadd.f32 %v1945, %v2137
  %v2176 = vadd.f32 %v1946, %v2142
  %v2177 = vadd.f32 %v1947, %v2147
  %v2178 = vadd.f32 %v1948, %v2152
  %v2179 = vadd.f32 %v1949, %v2157
  %v2180 = vadd.f32 %v1950, %v2162
  %v2181 = vld [vmem:[%s2] sm:$0x1]
  %v2183 = vlaneseq
  %v2184 = vshrl.u32 %v2183, 7
  %v2185 = vsub.s32 0, %v2184
  %v2186 = vrot.slane %v2181, %v2185
  %v2188 = vadd.f32 %v2165, %v2186
  %v2189 = vadd.f32 %v2166, %v2186
  %v2190 = vadd.f32 %v2167, %v2186
  %v2191 = vadd.f32 %v2168, %v2186
  %v2192 = vadd.f32 %v2169, %v2186
  %v2193 = vadd.f32 %v2170, %v2186
  %v2194 = vadd.f32 %v2171, %v2186
  %v2195 = vadd.f32 %v2172, %v2186
  %v2196 = vadd.f32 %v2173, %v2186
  %v2197 = vadd.f32 %v2174, %v2186
  %v2198 = vadd.f32 %v2175, %v2186
  %v2199 = vadd.f32 %v2176, %v2186
  %v2200 = vadd.f32 %v2177, %v2186
  %v2201 = vadd.f32 %v2178, %v2186
  %v2202 = vadd.f32 %v2179, %v2186
  %v2203 = vadd.f32 %v2180, %v2186
  %vm2204 = vcmp.gt.f32.partialorder %v2188, 0.0
  %vm2205 = vcmp.gt.f32.partialorder %v2189, 0.0
  %vm2206 = vcmp.gt.f32.partialorder %v2190, 0.0
  %vm2207 = vcmp.gt.f32.partialorder %v2191, 0.0
  %vm2208 = vcmp.gt.f32.partialorder %v2192, 0.0
  %vm2209 = vcmp.gt.f32.partialorder %v2193, 0.0
  %vm2210 = vcmp.gt.f32.partialorder %v2194, 0.0
  %vm2211 = vcmp.gt.f32.partialorder %v2195, 0.0
  %vm2212 = vcmp.gt.f32.partialorder %v2196, 0.0
  %vm2213 = vcmp.gt.f32.partialorder %v2197, 0.0
  %vm2214 = vcmp.gt.f32.partialorder %v2198, 0.0
  %vm2215 = vcmp.gt.f32.partialorder %v2199, 0.0
  %vm2216 = vcmp.gt.f32.partialorder %v2200, 0.0
  %vm2217 = vcmp.gt.f32.partialorder %v2201, 0.0
  %vm2218 = vcmp.gt.f32.partialorder %v2202, 0.0
  %vm2219 = vcmp.gt.f32.partialorder %v2203, 0.0
  %v2220 = vmul.f32 %v2188, 0.01
  %v2221 = vmul.f32 %v2189, 0.01
  %v2222 = vmul.f32 %v2190, 0.01
  %v2223 = vmul.f32 %v2191, 0.01
  %v2224 = vmul.f32 %v2192, 0.01
  %v2225 = vmul.f32 %v2193, 0.01
  %v2226 = vmul.f32 %v2194, 0.01
  %v2227 = vmul.f32 %v2195, 0.01
  %v2228 = vmul.f32 %v2196, 0.01
  %v2229 = vmul.f32 %v2197, 0.01
  %v2230 = vmul.f32 %v2198, 0.01
  %v2231 = vmul.f32 %v2199, 0.01
  %v2232 = vmul.f32 %v2200, 0.01
  %v2233 = vmul.f32 %v2201, 0.01
  %v2234 = vmul.f32 %v2202, 0.01
  %v2235 = vmul.f32 %v2203, 0.01
  %v2236 = vsel %vm2204, %v2188, %v2220
  %v2237 = vsel %vm2205, %v2189, %v2221
  %v2238 = vsel %vm2206, %v2190, %v2222
  %v2239 = vsel %vm2207, %v2191, %v2223
  %v2240 = vsel %vm2208, %v2192, %v2224
  %v2241 = vsel %vm2209, %v2193, %v2225
  %v2242 = vsel %vm2210, %v2194, %v2226
  %v2243 = vsel %vm2211, %v2195, %v2227
  %v2244 = vsel %vm2212, %v2196, %v2228
  %v2245 = vsel %vm2213, %v2197, %v2229
  %v2246 = vsel %vm2214, %v2198, %v2230
  %v2247 = vsel %vm2215, %v2199, %v2231
  %v2248 = vsel %vm2216, %v2200, %v2232
  %v2249 = vsel %vm2217, %v2201, %v2233
  %v2250 = vsel %vm2218, %v2202, %v2234
  %v2251 = vsel %vm2219, %v2203, %v2235
  %2252 = vst.msk [vmem:[%s126 + $0x1] sm:$0xff] %vm68, %v2236
  %2253 = vst.msk [vmem:[%s126 + $0x11] sm:$0xff] %vm68, %v2237
  %2254 = vst.msk [vmem:[%s126 + $0x21] sm:$0xff] %vm68, %v2238
  %2255 = vst.msk [vmem:[%s126 + $0x31] sm:$0xff] %vm68, %v2239
  %2256 = vst.msk [vmem:[%s126 + $0x41] sm:$0xff] %vm68, %v2240
  %2257 = vst.msk [vmem:[%s126 + $0x51] sm:$0xff] %vm68, %v2241
  %2258 = vst.msk [vmem:[%s126 + $0x61] sm:$0xff] %vm68, %v2242
  %2259 = vst.msk [vmem:[%s126 + $0x71] sm:$0xff] %vm68, %v2243
  %2260 = vst.msk [vmem:[%s126 + $0xa1] sm:$0xff] %vm68, %v2244
  %2261 = vst.msk [vmem:[%s126 + $0xb1] sm:$0xff] %vm68, %v2245
  %2262 = vst.msk [vmem:[%s126 + $0xc1] sm:$0xff] %vm68, %v2246
  %2263 = vst.msk [vmem:[%s126 + $0xd1] sm:$0xff] %vm68, %v2247
  %2264 = vst.msk [vmem:[%s126 + $0xe1] sm:$0xff] %vm68, %v2248
  %2265 = vst.msk [vmem:[%s126 + $0xf1] sm:$0xff] %vm68, %v2249
  %2266 = vst.msk [vmem:[%s126 + $0x101] sm:$0xff] %vm68, %v2250
  %2267 = vst.msk [vmem:[%s126 + $0x111] sm:$0xff] %vm68, %v2251
  %v2268 = vld [vmem:[#allocation2] sm:$0xff]
  %v2269 = vld [vmem:[#allocation2 + $0x10] sm:$0xff]
  %v2270 = vld [vmem:[#allocation2 + $0x20] sm:$0xff]
  %v2271 = vld [vmem:[#allocation2 + $0x30] sm:$0xff]
  %v2272 = vld [vmem:[#allocation2 + $0x40] sm:$0xff]
  %v2273 = vld [vmem:[#allocation2 + $0x50] sm:$0xff]
  %v2274 = vld [vmem:[#allocation2 + $0x60] sm:$0xff]
  %v2275 = vld [vmem:[#allocation2 + $0x70] sm:$0xff]
  %v2276 = vld [vmem:[#allocation2 + $0xa0] sm:$0xff]
  %v2277 = vld [vmem:[#allocation2 + $0xb0] sm:$0xff]
  %v2278 = vld [vmem:[#allocation2 + $0xc0] sm:$0xff]
  %v2279 = vld [vmem:[#allocation2 + $0xd0] sm:$0xff]
  %v2280 = vld [vmem:[#allocation2 + $0xe0] sm:$0xff]
  %v2281 = vld [vmem:[#allocation2 + $0xf0] sm:$0xff]
  %v2282 = vld [vmem:[#allocation2 + $0x100] sm:$0xff]
  %v2283 = vld [vmem:[#allocation2 + $0x110] sm:$0xff]
  %v2284 = vld [vmem:[%s3] sm:$0xff]
  %v2285 = vld [vmem:[%s3 + $0x8] sm:$0xff]
  %v2286 = vld [vmem:[%s3 + $0x10] sm:$0xff]
  %v2287 = vld [vmem:[%s3 + $0x18] sm:$0xff]
  %v2288 = vld [vmem:[#allocation2 + $0x1] sm:$0xff]
  %v2289 = vld [vmem:[#allocation2 + $0x11] sm:$0xff]
  %v2290 = vld [vmem:[#allocation2 + $0x21] sm:$0xff]
  %v2291 = vld [vmem:[#allocation2 + $0x31] sm:$0xff]
  %v2292 = vld [vmem:[#allocation2 + $0x41] sm:$0xff]
  %v2293 = vld [vmem:[#allocation2 + $0x51] sm:$0xff]
  %v2294 = vld [vmem:[#allocation2 + $0x61] sm:$0xff]
  %v2295 = vld [vmem:[#allocation2 + $0x71] sm:$0xff]
  %v2296 = vld [vmem:[#allocation2 + $0xa1] sm:$0xff]
  %v2297 = vld [vmem:[#allocation2 + $0xb1] sm:$0xff]
  %v2298 = vld [vmem:[#allocation2 + $0xc1] sm:$0xff]
  %v2299 = vld [vmem:[#allocation2 + $0xd1] sm:$0xff]
  %v2300 = vld [vmem:[#allocation2 + $0xe1] sm:$0xff]
  %v2301 = vld [vmem:[#allocation2 + $0xf1] sm:$0xff]
  %v2302 = vld [vmem:[#allocation2 + $0x101] sm:$0xff]
  %v2303 = vld [vmem:[#allocation2 + $0x111] sm:$0xff]
  %s2304 = scalar_lea.vmem %s3, 32
  %v2305 = vld [vmem:[%s2304] sm:$0xff]
  %v2306 = vld [vmem:[%s2304 + $0x8] sm:$0xff]
  %v2307 = vld [vmem:[%s2304 + $0x10] sm:$0xff]
  %v2308 = vld [vmem:[%s2304 + $0x18] sm:$0xff]
  %v2310 = vsel %vm68, %v2288, 0
  %v2313 = vsel %vm68, %v2289, 0
  %v2316 = vsel %vm68, %v2290, 0
  %v2319 = vsel %vm68, %v2291, 0
  %v2322 = vsel %vm68, %v2292, 0
  %v2325 = vsel %vm68, %v2293, 0
  %v2328 = vsel %vm68, %v2294, 0
  %v2331 = vsel %vm68, %v2295, 0
  %v2334 = vsel %vm68, %v2296, 0
  %v2337 = vsel %vm68, %v2297, 0
  %v2340 = vsel %vm68, %v2298, 0
  %v2343 = vsel %vm68, %v2299, 0
  %v2346 = vsel %vm68, %v2300, 0
  %v2349 = vsel %vm68, %v2301, 0
  %v2352 = vsel %vm68, %v2302, 0
  %v2355 = vsel %vm68, %v2303, 0
  %2357 = vmatprep.subr.mxu0 0.0
  %2358 = vmatpush1.msra.mxu0 0.0
  %2359 = vmatprep.subr.mxu0 0.0
  %2360 = vmatpush1.msra.mxu0 0.0
  %2361 = vmatprep.subr.mxu0 0.0
  %2362 = vmatpush1.msra.mxu0 0.0
  %2363 = vmatprep.subr.mxu0 0.0
  %2364 = vmatpush1.msra.mxu0 0.0
  %2365 = vmatprep.subr.mxu0 0.0
  %2366 = vmatpush1.msra.mxu0 0.0
  %2367 = vmatprep.subr.mxu0 0.0
  %2368 = vmatpush1.msra.mxu0 0.0
  %2369 = vmatprep.subr.mxu0 0.0
  %2370 = vmatpush1.msra.mxu0 0.0
  %2371 = vmatprep.subr.mxu0 0.0
  %2372 = vmatpush1.msra.mxu0 0.0
  %2373 = vmatprep.subr.mxu0 0.0
  %2374 = vmatpush1.msra.mxu0 0.0
  %2375 = vmatprep.subr.mxu0 0.0
  %2376 = vmatpush1.msra.mxu0 0.0
  %2377 = vmatprep.subr.mxu0 0.0
  %2378 = vmatpush1.msra.mxu0 0.0
  %2379 = vmatprep.subr.mxu0 0.0
  %2380 = vmatpush1.msra.mxu0 0.0
  %2381 = vmatprep.subr.mxu0 0.0
  %2382 = vmatpush1.msra.mxu0 %v2308
  %2383 = vmatprep.subr.mxu0 0.0
  %2384 = vmatpush1.msra.mxu0 %v2307
  %2385 = vmatprep.subr.mxu0 0.0
  %2386 = vmatpush1.msra.mxu0 %v2306
  %2387 = vmatprep.subr.mxu0 0.0
  %2388 = vmatpush1.msra.mxu0 %v2305
  %2389 = vmatprep.subr.mxu0 0.0
  %2390 = vmatpush2.msra.mxu0 0.0
  %2391 = vmatprep.subr.mxu0 0.0
  %2392 = vmatpush2.msra.mxu0 0.0
  %2393 = vmatprep.subr.mxu0 0.0
  %2394 = vmatpush2.msra.mxu0 0.0
  %2395 = vmatprep.subr.mxu0 0.0
  %2396 = vmatpush2.msra.mxu0 0.0
  %2397 = vmatprep.subr.mxu0 0.0
  %2398 = vmatpush2.msra.mxu0 0.0
  %2399 = vmatprep.subr.mxu0 0.0
  %2400 = vmatpush2.msra.mxu0 0.0
  %2401 = vmatprep.subr.mxu0 0.0
  %2402 = vmatpush2.msra.mxu0 0.0
  %2403 = vmatprep.subr.mxu0 0.0
  %2404 = vmatpush2.msra.mxu0 0.0
  %2405 = vmatprep.subr.mxu0 0.0
  %2406 = vmatpush2.msra.mxu0 0.0
  %2407 = vmatprep.subr.mxu0 0.0
  %2408 = vmatpush2.msra.mxu0 0.0
  %2409 = vmatprep.subr.mxu0 0.0
  %2410 = vmatpush2.msra.mxu0 0.0
  %2411 = vmatprep.subr.mxu0 0.0
  %2412 = vmatpush2.msra.mxu0 0.0
  %2413 = vmatprep.subr.mxu0 0.0
  %2414 = vmatpush2.msra.mxu0 0.0
  %2415 = vmatprep.subr.mxu0 0.0
  %2416 = vmatpush2.msra.mxu0 0.0
  %2417 = vmatprep.subr.mxu0 0.0
  %2418 = vmatpush2.msra.mxu0 0.0
  %2419 = vmatprep.subr.mxu0 0.0
  %2420 = vmatpush2.msra.mxu0 0.0
  %2421 = vmatprep.mubr.f32.mxu0 0.0
  %2422 = vmatmul.mubr.f32.gmra.mxu0 %v2310
  %v2423 = vpop.f32.mrf.mxu0
  %v2424 = vadd.f32 0.0, %v2423
  %v2425 = vpop.f32.mrf.mxu0
  %2426 = vmatprep.mubr.f32.mxu0 0.0
  %2427 = vmatmul.mubr.f32.gmra.mxu0 %v2313
  %v2428 = vpop.f32.mrf.mxu0
  %v2429 = vadd.f32 0.0, %v2428
  %v2430 = vpop.f32.mrf.mxu0
  %2431 = vmatprep.mubr.f32.mxu0 0.0
  %2432 = vmatmul.mubr.f32.gmra.mxu0 %v2316
  %v2433 = vpop.f32.mrf.mxu0
  %v2434 = vadd.f32 0.0, %v2433
  %v2435 = vpop.f32.mrf.mxu0
  %2436 = vmatprep.mubr.f32.mxu0 0.0
  %2437 = vmatmul.mubr.f32.gmra.mxu0 %v2319
  %v2438 = vpop.f32.mrf.mxu0
  %v2439 = vadd.f32 0.0, %v2438
  %v2440 = vpop.f32.mrf.mxu0
  %2441 = vmatprep.mubr.f32.mxu0 0.0
  %2442 = vmatmul.mubr.f32.gmra.mxu0 %v2322
  %v2443 = vpop.f32.mrf.mxu0
  %v2444 = vadd.f32 0.0, %v2443
  %v2445 = vpop.f32.mrf.mxu0
  %2446 = vmatprep.mubr.f32.mxu0 0.0
  %2447 = vmatmul.mubr.f32.gmra.mxu0 %v2325
  %v2448 = vpop.f32.mrf.mxu0
  %v2449 = vadd.f32 0.0, %v2448
  %v2450 = vpop.f32.mrf.mxu0
  %2451 = vmatprep.mubr.f32.mxu0 0.0
  %2452 = vmatmul.mubr.f32.gmra.mxu0 %v2328
  %v2453 = vpop.f32.mrf.mxu0
  %v2454 = vadd.f32 0.0, %v2453
  %v2455 = vpop.f32.mrf.mxu0
  %2456 = vmatprep.mubr.f32.mxu0 0.0
  %2457 = vmatmul.mubr.f32.gmra.mxu0 %v2331
  %v2458 = vpop.f32.mrf.mxu0
  %v2459 = vadd.f32 0.0, %v2458
  %v2460 = vpop.f32.mrf.mxu0
  %2461 = vmatprep.mubr.f32.mxu0 0.0
  %2462 = vmatmul.mubr.f32.gmra.mxu0 %v2334
  %v2463 = vpop.f32.mrf.mxu0
  %v2464 = vadd.f32 0.0, %v2463
  %v2465 = vpop.f32.mrf.mxu0
  %2466 = vmatprep.mubr.f32.mxu0 0.0
  %2467 = vmatmul.mubr.f32.gmra.mxu0 %v2337
  %v2468 = vpop.f32.mrf.mxu0
  %v2469 = vadd.f32 0.0, %v2468
  %v2470 = vpop.f32.mrf.mxu0
  %2471 = vmatprep.mubr.f32.mxu0 0.0
  %2472 = vmatmul.mubr.f32.gmra.mxu0 %v2340
  %v2473 = vpop.f32.mrf.mxu0
  %v2474 = vadd.f32 0.0, %v2473
  %v2475 = vpop.f32.mrf.mxu0
  %2476 = vmatprep.mubr.f32.mxu0 0.0
  %2477 = vmatmul.mubr.f32.gmra.mxu0 %v2343
  %v2478 = vpop.f32.mrf.mxu0
  %v2479 = vadd.f32 0.0, %v2478
  %v2480 = vpop.f32.mrf.mxu0
  %2481 = vmatprep.mubr.f32.mxu0 0.0
  %2482 = vmatmul.mubr.f32.gmra.mxu0 %v2346
  %v2483 = vpop.f32.mrf.mxu0
  %v2484 = vadd.f32 0.0, %v2483
  %v2485 = vpop.f32.mrf.mxu0
  %2486 = vmatprep.mubr.f32.mxu0 0.0
  %2487 = vmatmul.mubr.f32.gmra.mxu0 %v2349
  %v2488 = vpop.f32.mrf.mxu0
  %v2489 = vadd.f32 0.0, %v2488
  %v2490 = vpop.f32.mrf.mxu0
  %2491 = vmatprep.mubr.f32.mxu0 0.0
  %2492 = vmatmul.mubr.f32.gmra.mxu0 %v2352
  %v2493 = vpop.f32.mrf.mxu0
  %v2494 = vadd.f32 0.0, %v2493
  %v2495 = vpop.f32.mrf.mxu0
  %2496 = vmatprep.mubr.f32.mxu0 0.0
  %2497 = vmatmul.mubr.f32.gmra.mxu0 %v2355
  %v2498 = vpop.f32.mrf.mxu0
  %v2499 = vadd.f32 0.0, %v2498
  %v2500 = vpop.f32.mrf.mxu0
  %2501 = vdwg.mxu0
  %v2503 = vsel %vm68, %v2268, 0
  %v2506 = vsel %vm68, %v2269, 0
  %v2509 = vsel %vm68, %v2270, 0
  %v2512 = vsel %vm68, %v2271, 0
  %v2515 = vsel %vm68, %v2272, 0
  %v2518 = vsel %vm68, %v2273, 0
  %v2521 = vsel %vm68, %v2274, 0
  %v2524 = vsel %vm68, %v2275, 0
  %v2527 = vsel %vm68, %v2276, 0
  %v2530 = vsel %vm68, %v2277, 0
  %v2533 = vsel %vm68, %v2278, 0
  %v2536 = vsel %vm68, %v2279, 0
  %v2539 = vsel %vm68, %v2280, 0
  %v2542 = vsel %vm68, %v2281, 0
  %v2545 = vsel %vm68, %v2282, 0
  %v2548 = vsel %vm68, %v2283, 0
  %2550 = vmatprep.subr.mxu0 0.0
  %2551 = vmatpush1.msra.mxu0 0.0
  %2552 = vmatprep.subr.mxu0 0.0
  %2553 = vmatpush1.msra.mxu0 0.0
  %2554 = vmatprep.subr.mxu0 0.0
  %2555 = vmatpush1.msra.mxu0 0.0
  %2556 = vmatprep.subr.mxu0 0.0
  %2557 = vmatpush1.msra.mxu0 0.0
  %2558 = vmatprep.subr.mxu0 0.0
  %2559 = vmatpush1.msra.mxu0 0.0
  %2560 = vmatprep.subr.mxu0 0.0
  %2561 = vmatpush1.msra.mxu0 0.0
  %2562 = vmatprep.subr.mxu0 0.0
  %2563 = vmatpush1.msra.mxu0 0.0
  %2564 = vmatprep.subr.mxu0 0.0
  %2565 = vmatpush1.msra.mxu0 0.0
  %2566 = vmatprep.subr.mxu0 0.0
  %2567 = vmatpush1.msra.mxu0 0.0
  %2568 = vmatprep.subr.mxu0 0.0
  %2569 = vmatpush1.msra.mxu0 0.0
  %2570 = vmatprep.subr.mxu0 0.0
  %2571 = vmatpush1.msra.mxu0 0.0
  %2572 = vmatprep.subr.mxu0 0.0
  %2573 = vmatpush1.msra.mxu0 0.0
  %2574 = vmatprep.subr.mxu0 0.0
  %2575 = vmatpush1.msra.mxu0 %v2287
  %2576 = vmatprep.subr.mxu0 0.0
  %2577 = vmatpush1.msra.mxu0 %v2286
  %2578 = vmatprep.subr.mxu0 0.0
  %2579 = vmatpush1.msra.mxu0 %v2285
  %2580 = vmatprep.subr.mxu0 0.0
  %2581 = vmatpush1.msra.mxu0 %v2284
  %2582 = vmatprep.subr.mxu0 0.0
  %2583 = vmatpush2.msra.mxu0 0.0
  %2584 = vmatprep.subr.mxu0 0.0
  %2585 = vmatpush2.msra.mxu0 0.0
  %2586 = vmatprep.subr.mxu0 0.0
  %2587 = vmatpush2.msra.mxu0 0.0
  %2588 = vmatprep.subr.mxu0 0.0
  %2589 = vmatpush2.msra.mxu0 0.0
  %2590 = vmatprep.subr.mxu0 0.0
  %2591 = vmatpush2.msra.mxu0 0.0
  %2592 = vmatprep.subr.mxu0 0.0
  %2593 = vmatpush2.msra.mxu0 0.0
  %2594 = vmatprep.subr.mxu0 0.0
  %2595 = vmatpush2.msra.mxu0 0.0
  %2596 = vmatprep.subr.mxu0 0.0
  %2597 = vmatpush2.msra.mxu0 0.0
  %2598 = vmatprep.subr.mxu0 0.0
  %2599 = vmatpush2.msra.mxu0 0.0
  %2600 = vmatprep.subr.mxu0 0.0
  %2601 = vmatpush2.msra.mxu0 0.0
  %2602 = vmatprep.subr.mxu0 0.0
  %2603 = vmatpush2.msra.mxu0 0.0
  %2604 = vmatprep.subr.mxu0 0.0
  %2605 = vmatpush2.msra.mxu0 0.0
  %2606 = vmatprep.subr.mxu0 0.0
  %2607 = vmatpush2.msra.mxu0 0.0
  %2608 = vmatprep.subr.mxu0 0.0
  %2609 = vmatpush2.msra.mxu0 0.0
  %2610 = vmatprep.subr.mxu0 0.0
  %2611 = vmatpush2.msra.mxu0 0.0
  %2612 = vmatprep.subr.mxu0 0.0
  %2613 = vmatpush2.msra.mxu0 0.0
  %2614 = vmatprep.mubr.f32.mxu0 0.0
  %2615 = vmatmul.mubr.f32.gmra.mxu0 %v2503
  %v2616 = vpop.f32.mrf.mxu0
  %v2617 = vadd.f32 %v2424, %v2616
  %v2618 = vpop.f32.mrf.mxu0
  %2619 = vmatprep.mubr.f32.mxu0 0.0
  %2620 = vmatmul.mubr.f32.gmra.mxu0 %v2506
  %v2621 = vpop.f32.mrf.mxu0
  %v2622 = vadd.f32 %v2429, %v2621
  %v2623 = vpop.f32.mrf.mxu0
  %2624 = vmatprep.mubr.f32.mxu0 0.0
  %2625 = vmatmul.mubr.f32.gmra.mxu0 %v2509
  %v2626 = vpop.f32.mrf.mxu0
  %v2627 = vadd.f32 %v2434, %v2626
  %v2628 = vpop.f32.mrf.mxu0
  %2629 = vmatprep.mubr.f32.mxu0 0.0
  %2630 = vmatmul.mubr.f32.gmra.mxu0 %v2512
  %v2631 = vpop.f32.mrf.mxu0
  %v2632 = vadd.f32 %v2439, %v2631
  %v2633 = vpop.f32.mrf.mxu0
  %2634 = vmatprep.mubr.f32.mxu0 0.0
  %2635 = vmatmul.mubr.f32.gmra.mxu0 %v2515
  %v2636 = vpop.f32.mrf.mxu0
  %v2637 = vadd.f32 %v2444, %v2636
  %v2638 = vpop.f32.mrf.mxu0
  %2639 = vmatprep.mubr.f32.mxu0 0.0
  %2640 = vmatmul.mubr.f32.gmra.mxu0 %v2518
  %v2641 = vpop.f32.mrf.mxu0
  %v2642 = vadd.f32 %v2449, %v2641
  %v2643 = vpop.f32.mrf.mxu0
  %2644 = vmatprep.mubr.f32.mxu0 0.0
  %2645 = vmatmul.mubr.f32.gmra.mxu0 %v2521
  %v2646 = vpop.f32.mrf.mxu0
  %v2647 = vadd.f32 %v2454, %v2646
  %v2648 = vpop.f32.mrf.mxu0
  %2649 = vmatprep.mubr.f32.mxu0 0.0
  %2650 = vmatmul.mubr.f32.gmra.mxu0 %v2524
  %v2651 = vpop.f32.mrf.mxu0
  %v2652 = vadd.f32 %v2459, %v2651
  %v2653 = vpop.f32.mrf.mxu0
  %2654 = vmatprep.mubr.f32.mxu0 0.0
  %2655 = vmatmul.mubr.f32.gmra.mxu0 %v2527
  %v2656 = vpop.f32.mrf.mxu0
  %v2657 = vadd.f32 %v2464, %v2656
  %v2658 = vpop.f32.mrf.mxu0
  %2659 = vmatprep.mubr.f32.mxu0 0.0
  %2660 = vmatmul.mubr.f32.gmra.mxu0 %v2530
  %v2661 = vpop.f32.mrf.mxu0
  %v2662 = vadd.f32 %v2469, %v2661
  %v2663 = vpop.f32.mrf.mxu0
  %2664 = vmatprep.mubr.f32.mxu0 0.0
  %2665 = vmatmul.mubr.f32.gmra.mxu0 %v2533
  %v2666 = vpop.f32.mrf.mxu0
  %v2667 = vadd.f32 %v2474, %v2666
  %v2668 = vpop.f32.mrf.mxu0
  %2669 = vmatprep.mubr.f32.mxu0 0.0
  %2670 = vmatmul.mubr.f32.gmra.mxu0 %v2536
  %v2671 = vpop.f32.mrf.mxu0
  %v2672 = vadd.f32 %v2479, %v2671
  %v2673 = vpop.f32.mrf.mxu0
  %2674 = vmatprep.mubr.f32.mxu0 0.0
  %2675 = vmatmul.mubr.f32.gmra.mxu0 %v2539
  %v2676 = vpop.f32.mrf.mxu0
  %v2677 = vadd.f32 %v2484, %v2676
  %v2678 = vpop.f32.mrf.mxu0
  %2679 = vmatprep.mubr.f32.mxu0 0.0
  %2680 = vmatmul.mubr.f32.gmra.mxu0 %v2542
  %v2681 = vpop.f32.mrf.mxu0
  %v2682 = vadd.f32 %v2489, %v2681
  %v2683 = vpop.f32.mrf.mxu0
  %2684 = vmatprep.mubr.f32.mxu0 0.0
  %2685 = vmatmul.mubr.f32.gmra.mxu0 %v2545
  %v2686 = vpop.f32.mrf.mxu0
  %v2687 = vadd.f32 %v2494, %v2686
  %v2688 = vpop.f32.mrf.mxu0
  %2689 = vmatprep.mubr.f32.mxu0 0.0
  %2690 = vmatmul.mubr.f32.gmra.mxu0 %v2548
  %v2691 = vpop.f32.mrf.mxu0
  %v2692 = vadd.f32 %v2499, %v2691
  %v2693 = vpop.f32.mrf.mxu0
  %2694 = vdwg.mxu0
  %v2695 = vld [vmem:[#allocation2 + $0x2] sm:$0xff]
  %v2696 = vld [vmem:[#allocation2 + $0x12] sm:$0xff]
  %v2697 = vld [vmem:[#allocation2 + $0x22] sm:$0xff]
  %v2698 = vld [vmem:[#allocation2 + $0x32] sm:$0xff]
  %v2699 = vld [vmem:[#allocation2 + $0x42] sm:$0xff]
  %v2700 = vld [vmem:[#allocation2 + $0x52] sm:$0xff]
  %v2701 = vld [vmem:[#allocation2 + $0x62] sm:$0xff]
  %v2702 = vld [vmem:[#allocation2 + $0x72] sm:$0xff]
  %v2703 = vld [vmem:[#allocation2 + $0xa2] sm:$0xff]
  %v2704 = vld [vmem:[#allocation2 + $0xb2] sm:$0xff]
  %v2705 = vld [vmem:[#allocation2 + $0xc2] sm:$0xff]
  %v2706 = vld [vmem:[#allocation2 + $0xd2] sm:$0xff]
  %v2707 = vld [vmem:[#allocation2 + $0xe2] sm:$0xff]
  %v2708 = vld [vmem:[#allocation2 + $0xf2] sm:$0xff]
  %v2709 = vld [vmem:[#allocation2 + $0x102] sm:$0xff]
  %v2710 = vld [vmem:[#allocation2 + $0x112] sm:$0xff]
  %s2711 = scalar_lea.vmem %s3, 64
  %v2712 = vld [vmem:[%s2711] sm:$0xff]
  %v2713 = vld [vmem:[%s2711 + $0x8] sm:$0xff]
  %v2714 = vld [vmem:[%s2711 + $0x10] sm:$0xff]
  %v2715 = vld [vmem:[%s2711 + $0x18] sm:$0xff]
  %v2717 = vsel %vm68, %v2695, 0
  %v2720 = vsel %vm68, %v2696, 0
  %v2723 = vsel %vm68, %v2697, 0
  %v2726 = vsel %vm68, %v2698, 0
  %v2729 = vsel %vm68, %v2699, 0
  %v2732 = vsel %vm68, %v2700, 0
  %v2735 = vsel %vm68, %v2701, 0
  %v2738 = vsel %vm68, %v2702, 0
  %v2741 = vsel %vm68, %v2703, 0
  %v2744 = vsel %vm68, %v2704, 0
  %v2747 = vsel %vm68, %v2705, 0
  %v2750 = vsel %vm68, %v2706, 0
  %v2753 = vsel %vm68, %v2707, 0
  %v2756 = vsel %vm68, %v2708, 0
  %v2759 = vsel %vm68, %v2709, 0
  %v2762 = vsel %vm68, %v2710, 0
  %2764 = vmatprep.subr.mxu0 0.0
  %2765 = vmatpush1.msra.mxu0 0.0
  %2766 = vmatprep.subr.mxu0 0.0
  %2767 = vmatpush1.msra.mxu0 0.0
  %2768 = vmatprep.subr.mxu0 0.0
  %2769 = vmatpush1.msra.mxu0 0.0
  %2770 = vmatprep.subr.mxu0 0.0
  %2771 = vmatpush1.msra.mxu0 0.0
  %2772 = vmatprep.subr.mxu0 0.0
  %2773 = vmatpush1.msra.mxu0 0.0
  %2774 = vmatprep.subr.mxu0 0.0
  %2775 = vmatpush1.msra.mxu0 0.0
  %2776 = vmatprep.subr.mxu0 0.0
  %2777 = vmatpush1.msra.mxu0 0.0
  %2778 = vmatprep.subr.mxu0 0.0
  %2779 = vmatpush1.msra.mxu0 0.0
  %2780 = vmatprep.subr.mxu0 0.0
  %2781 = vmatpush1.msra.mxu0 0.0
  %2782 = vmatprep.subr.mxu0 0.0
  %2783 = vmatpush1.msra.mxu0 0.0
  %2784 = vmatprep.subr.mxu0 0.0
  %2785 = vmatpush1.msra.mxu0 0.0
  %2786 = vmatprep.subr.mxu0 0.0
  %2787 = vmatpush1.msra.mxu0 0.0
  %2788 = vmatprep.subr.mxu0 0.0
  %2789 = vmatpush1.msra.mxu0 %v2715
  %2790 = vmatprep.subr.mxu0 0.0
  %2791 = vmatpush1.msra.mxu0 %v2714
  %2792 = vmatprep.subr.mxu0 0.0
  %2793 = vmatpush1.msra.mxu0 %v2713
  %2794 = vmatprep.subr.mxu0 0.0
  %2795 = vmatpush1.msra.mxu0 %v2712
  %2796 = vmatprep.subr.mxu0 0.0
  %2797 = vmatpush2.msra.mxu0 0.0
  %2798 = vmatprep.subr.mxu0 0.0
  %2799 = vmatpush2.msra.mxu0 0.0
  %2800 = vmatprep.subr.mxu0 0.0
  %2801 = vmatpush2.msra.mxu0 0.0
  %2802 = vmatprep.subr.mxu0 0.0
  %2803 = vmatpush2.msra.mxu0 0.0
  %2804 = vmatprep.subr.mxu0 0.0
  %2805 = vmatpush2.msra.mxu0 0.0
  %2806 = vmatprep.subr.mxu0 0.0
  %2807 = vmatpush2.msra.mxu0 0.0
  %2808 = vmatprep.subr.mxu0 0.0
  %2809 = vmatpush2.msra.mxu0 0.0
  %2810 = vmatprep.subr.mxu0 0.0
  %2811 = vmatpush2.msra.mxu0 0.0
  %2812 = vmatprep.subr.mxu0 0.0
  %2813 = vmatpush2.msra.mxu0 0.0
  %2814 = vmatprep.subr.mxu0 0.0
  %2815 = vmatpush2.msra.mxu0 0.0
  %2816 = vmatprep.subr.mxu0 0.0
  %2817 = vmatpush2.msra.mxu0 0.0
  %2818 = vmatprep.subr.mxu0 0.0
  %2819 = vmatpush2.msra.mxu0 0.0
  %2820 = vmatprep.subr.mxu0 0.0
  %2821 = vmatpush2.msra.mxu0 0.0
  %2822 = vmatprep.subr.mxu0 0.0
  %2823 = vmatpush2.msra.mxu0 0.0
  %2824 = vmatprep.subr.mxu0 0.0
  %2825 = vmatpush2.msra.mxu0 0.0
  %2826 = vmatprep.subr.mxu0 0.0
  %2827 = vmatpush2.msra.mxu0 0.0
  %2828 = vmatprep.mubr.f32.mxu0 0.0
  %2829 = vmatmul.mubr.f32.gmra.mxu0 %v2717
  %v2830 = vpop.f32.mrf.mxu0
  %v2831 = vadd.f32 0.0, %v2830
  %v2832 = vpop.f32.mrf.mxu0
  %2833 = vmatprep.mubr.f32.mxu0 0.0
  %2834 = vmatmul.mubr.f32.gmra.mxu0 %v2720
  %v2835 = vpop.f32.mrf.mxu0
  %v2836 = vadd.f32 0.0, %v2835
  %v2837 = vpop.f32.mrf.mxu0
  %2838 = vmatprep.mubr.f32.mxu0 0.0
  %2839 = vmatmul.mubr.f32.gmra.mxu0 %v2723
  %v2840 = vpop.f32.mrf.mxu0
  %v2841 = vadd.f32 0.0, %v2840
  %v2842 = vpop.f32.mrf.mxu0
  %2843 = vmatprep.mubr.f32.mxu0 0.0
  %2844 = vmatmul.mubr.f32.gmra.mxu0 %v2726
  %v2845 = vpop.f32.mrf.mxu0
  %v2846 = vadd.f32 0.0, %v2845
  %v2847 = vpop.f32.mrf.mxu0
  %2848 = vmatprep.mubr.f32.mxu0 0.0
  %2849 = vmatmul.mubr.f32.gmra.mxu0 %v2729
  %v2850 = vpop.f32.mrf.mxu0
  %v2851 = vadd.f32 0.0, %v2850
  %v2852 = vpop.f32.mrf.mxu0
  %2853 = vmatprep.mubr.f32.mxu0 0.0
  %2854 = vmatmul.mubr.f32.gmra.mxu0 %v2732
  %v2855 = vpop.f32.mrf.mxu0
  %v2856 = vadd.f32 0.0, %v2855
  %v2857 = vpop.f32.mrf.mxu0
  %2858 = vmatprep.mubr.f32.mxu0 0.0
  %2859 = vmatmul.mubr.f32.gmra.mxu0 %v2735
  %v2860 = vpop.f32.mrf.mxu0
  %v2861 = vadd.f32 0.0, %v2860
  %v2862 = vpop.f32.mrf.mxu0
  %2863 = vmatprep.mubr.f32.mxu0 0.0
  %2864 = vmatmul.mubr.f32.gmra.mxu0 %v2738
  %v2865 = vpop.f32.mrf.mxu0
  %v2866 = vadd.f32 0.0, %v2865
  %v2867 = vpop.f32.mrf.mxu0
  %2868 = vmatprep.mubr.f32.mxu0 0.0
  %2869 = vmatmul.mubr.f32.gmra.mxu0 %v2741
  %v2870 = vpop.f32.mrf.mxu0
  %v2871 = vadd.f32 0.0, %v2870
  %v2872 = vpop.f32.mrf.mxu0
  %2873 = vmatprep.mubr.f32.mxu0 0.0
  %2874 = vmatmul.mubr.f32.gmra.mxu0 %v2744
  %v2875 = vpop.f32.mrf.mxu0
  %v2876 = vadd.f32 0.0, %v2875
  %v2877 = vpop.f32.mrf.mxu0
  %2878 = vmatprep.mubr.f32.mxu0 0.0
  %2879 = vmatmul.mubr.f32.gmra.mxu0 %v2747
  %v2880 = vpop.f32.mrf.mxu0
  %v2881 = vadd.f32 0.0, %v2880
  %v2882 = vpop.f32.mrf.mxu0
  %2883 = vmatprep.mubr.f32.mxu0 0.0
  %2884 = vmatmul.mubr.f32.gmra.mxu0 %v2750
  %v2885 = vpop.f32.mrf.mxu0
  %v2886 = vadd.f32 0.0, %v2885
  %v2887 = vpop.f32.mrf.mxu0
  %2888 = vmatprep.mubr.f32.mxu0 0.0
  %2889 = vmatmul.mubr.f32.gmra.mxu0 %v2753
  %v2890 = vpop.f32.mrf.mxu0
  %v2891 = vadd.f32 0.0, %v2890
  %v2892 = vpop.f32.mrf.mxu0
  %2893 = vmatprep.mubr.f32.mxu0 0.0
  %2894 = vmatmul.mubr.f32.gmra.mxu0 %v2756
  %v2895 = vpop.f32.mrf.mxu0
  %v2896 = vadd.f32 0.0, %v2895
  %v2897 = vpop.f32.mrf.mxu0
  %2898 = vmatprep.mubr.f32.mxu0 0.0
  %2899 = vmatmul.mubr.f32.gmra.mxu0 %v2759
  %v2900 = vpop.f32.mrf.mxu0
  %v2901 = vadd.f32 0.0, %v2900
  %v2902 = vpop.f32.mrf.mxu0
  %2903 = vmatprep.mubr.f32.mxu0 0.0
  %2904 = vmatmul.mubr.f32.gmra.mxu0 %v2762
  %v2905 = vpop.f32.mrf.mxu0
  %v2906 = vadd.f32 0.0, %v2905
  %v2907 = vpop.f32.mrf.mxu0
  %2908 = vdwg.mxu0
  %v2909 = vadd.f32 %v2617, %v2831
  %v2910 = vadd.f32 %v2622, %v2836
  %v2911 = vadd.f32 %v2627, %v2841
  %v2912 = vadd.f32 %v2632, %v2846
  %v2913 = vadd.f32 %v2637, %v2851
  %v2914 = vadd.f32 %v2642, %v2856
  %v2915 = vadd.f32 %v2647, %v2861
  %v2916 = vadd.f32 %v2652, %v2866
  %v2917 = vadd.f32 %v2657, %v2871
  %v2918 = vadd.f32 %v2662, %v2876
  %v2919 = vadd.f32 %v2667, %v2881
  %v2920 = vadd.f32 %v2672, %v2886
  %v2921 = vadd.f32 %v2677, %v2891
  %v2922 = vadd.f32 %v2682, %v2896
  %v2923 = vadd.f32 %v2687, %v2901
  %v2924 = vadd.f32 %v2692, %v2906
  %v2925 = vld [vmem:[%s126] sm:$0xff]
  %v2926 = vld [vmem:[%s126 + $0x10] sm:$0xff]
  %v2927 = vld [vmem:[%s126 + $0x20] sm:$0xff]
  %v2928 = vld [vmem:[%s126 + $0x30] sm:$0xff]
  %v2929 = vld [vmem:[%s126 + $0x40] sm:$0xff]
  %v2930 = vld [vmem:[%s126 + $0x50] sm:$0xff]
  %v2931 = vld [vmem:[%s126 + $0x60] sm:$0xff]
  %v2932 = vld [vmem:[%s126 + $0x70] sm:$0xff]
  %v2933 = vld [vmem:[%s126 + $0xa0] sm:$0xff]
  %v2934 = vld [vmem:[%s126 + $0xb0] sm:$0xff]
  %v2935 = vld [vmem:[%s126 + $0xc0] sm:$0xff]
  %v2936 = vld [vmem:[%s126 + $0xd0] sm:$0xff]
  %v2937 = vld [vmem:[%s126 + $0xe0] sm:$0xff]
  %v2938 = vld [vmem:[%s126 + $0xf0] sm:$0xff]
  %v2939 = vld [vmem:[%s126 + $0x100] sm:$0xff]
  %v2940 = vld [vmem:[%s126 + $0x110] sm:$0xff]
  %s2941 = scalar_lea.vmem %s3, 96
  %v2942 = vld [vmem:[%s2941] sm:$0xff]
  %v2943 = vld [vmem:[%s2941 + $0x8] sm:$0xff]
  %v2944 = vld [vmem:[%s2941 + $0x10] sm:$0xff]
  %v2945 = vld [vmem:[%s2941 + $0x18] sm:$0xff]
  %v2947 = vsel %vm68, %v2925, 0
  %v2950 = vsel %vm68, %v2926, 0
  %v2953 = vsel %vm68, %v2927, 0
  %v2956 = vsel %vm68, %v2928, 0
  %v2959 = vsel %vm68, %v2929, 0
  %v2962 = vsel %vm68, %v2930, 0
  %v2965 = vsel %vm68, %v2931, 0
  %v2968 = vsel %vm68, %v2932, 0
  %v2971 = vsel %vm68, %v2933, 0
  %v2974 = vsel %vm68, %v2934, 0
  %v2977 = vsel %vm68, %v2935, 0
  %v2980 = vsel %vm68, %v2936, 0
  %v2983 = vsel %vm68, %v2937, 0
  %v2986 = vsel %vm68, %v2938, 0
  %v2989 = vsel %vm68, %v2939, 0
  %v2992 = vsel %vm68, %v2940, 0
  %2994 = vmatprep.subr.mxu0 0.0
  %2995 = vmatpush1.msra.mxu0 0.0
  %2996 = vmatprep.subr.mxu0 0.0
  %2997 = vmatpush1.msra.mxu0 0.0
  %2998 = vmatprep.subr.mxu0 0.0
  %2999 = vmatpush1.msra.mxu0 0.0
  %3000 = vmatprep.subr.mxu0 0.0
  %3001 = vmatpush1.msra.mxu0 0.0
  %3002 = vmatprep.subr.mxu0 0.0
  %3003 = vmatpush1.msra.mxu0 0.0
  %3004 = vmatprep.subr.mxu0 0.0
  %3005 = vmatpush1.msra.mxu0 0.0
  %3006 = vmatprep.subr.mxu0 0.0
  %3007 = vmatpush1.msra.mxu0 0.0
  %3008 = vmatprep.subr.mxu0 0.0
  %3009 = vmatpush1.msra.mxu0 0.0
  %3010 = vmatprep.subr.mxu0 0.0
  %3011 = vmatpush1.msra.mxu0 0.0
  %3012 = vmatprep.subr.mxu0 0.0
  %3013 = vmatpush1.msra.mxu0 0.0
  %3014 = vmatprep.subr.mxu0 0.0
  %3015 = vmatpush1.msra.mxu0 0.0
  %3016 = vmatprep.subr.mxu0 0.0
  %3017 = vmatpush1.msra.mxu0 0.0
  %3018 = vmatprep.subr.mxu0 0.0
  %3019 = vmatpush1.msra.mxu0 %v2945
  %3020 = vmatprep.subr.mxu0 0.0
  %3021 = vmatpush1.msra.mxu0 %v2944
  %3022 = vmatprep.subr.mxu0 0.0
  %3023 = vmatpush1.msra.mxu0 %v2943
  %3024 = vmatprep.subr.mxu0 0.0
  %3025 = vmatpush1.msra.mxu0 %v2942
  %3026 = vmatprep.subr.mxu0 0.0
  %3027 = vmatpush2.msra.mxu0 0.0
  %3028 = vmatprep.subr.mxu0 0.0
  %3029 = vmatpush2.msra.mxu0 0.0
  %3030 = vmatprep.subr.mxu0 0.0
  %3031 = vmatpush2.msra.mxu0 0.0
  %3032 = vmatprep.subr.mxu0 0.0
  %3033 = vmatpush2.msra.mxu0 0.0
  %3034 = vmatprep.subr.mxu0 0.0
  %3035 = vmatpush2.msra.mxu0 0.0
  %3036 = vmatprep.subr.mxu0 0.0
  %3037 = vmatpush2.msra.mxu0 0.0
  %3038 = vmatprep.subr.mxu0 0.0
  %3039 = vmatpush2.msra.mxu0 0.0
  %3040 = vmatprep.subr.mxu0 0.0
  %3041 = vmatpush2.msra.mxu0 0.0
  %3042 = vmatprep.subr.mxu0 0.0
  %3043 = vmatpush2.msra.mxu0 0.0
  %3044 = vmatprep.subr.mxu0 0.0
  %3045 = vmatpush2.msra.mxu0 0.0
  %3046 = vmatprep.subr.mxu0 0.0
  %3047 = vmatpush2.msra.mxu0 0.0
  %3048 = vmatprep.subr.mxu0 0.0
  %3049 = vmatpush2.msra.mxu0 0.0
  %3050 = vmatprep.subr.mxu0 0.0
  %3051 = vmatpush2.msra.mxu0 0.0
  %3052 = vmatprep.subr.mxu0 0.0
  %3053 = vmatpush2.msra.mxu0 0.0
  %3054 = vmatprep.subr.mxu0 0.0
  %3055 = vmatpush2.msra.mxu0 0.0
  %3056 = vmatprep.subr.mxu0 0.0
  %3057 = vmatpush2.msra.mxu0 0.0
  %3058 = vmatprep.mubr.f32.mxu0 0.0
  %3059 = vmatmul.mubr.f32.gmra.mxu0 %v2947
  %v3060 = vpop.f32.mrf.mxu0
  %v3061 = vadd.f32 0.0, %v3060
  %v3062 = vpop.f32.mrf.mxu0
  %3063 = vmatprep.mubr.f32.mxu0 0.0
  %3064 = vmatmul.mubr.f32.gmra.mxu0 %v2950
  %v3065 = vpop.f32.mrf.mxu0
  %v3066 = vadd.f32 0.0, %v3065
  %v3067 = vpop.f32.mrf.mxu0
  %3068 = vmatprep.mubr.f32.mxu0 0.0
  %3069 = vmatmul.mubr.f32.gmra.mxu0 %v2953
  %v3070 = vpop.f32.mrf.mxu0
  %v3071 = vadd.f32 0.0, %v3070
  %v3072 = vpop.f32.mrf.mxu0
  %3073 = vmatprep.mubr.f32.mxu0 0.0
  %3074 = vmatmul.mubr.f32.gmra.mxu0 %v2956
  %v3075 = vpop.f32.mrf.mxu0
  %v3076 = vadd.f32 0.0, %v3075
  %v3077 = vpop.f32.mrf.mxu0
  %3078 = vmatprep.mubr.f32.mxu0 0.0
  %3079 = vmatmul.mubr.f32.gmra.mxu0 %v2959
  %v3080 = vpop.f32.mrf.mxu0
  %v3081 = vadd.f32 0.0, %v3080
  %v3082 = vpop.f32.mrf.mxu0
  %3083 = vmatprep.mubr.f32.mxu0 0.0
  %3084 = vmatmul.mubr.f32.gmra.mxu0 %v2962
  %v3085 = vpop.f32.mrf.mxu0
  %v3086 = vadd.f32 0.0, %v3085
  %v3087 = vpop.f32.mrf.mxu0
  %3088 = vmatprep.mubr.f32.mxu0 0.0
  %3089 = vmatmul.mubr.f32.gmra.mxu0 %v2965
  %v3090 = vpop.f32.mrf.mxu0
  %v3091 = vadd.f32 0.0, %v3090
  %v3092 = vpop.f32.mrf.mxu0
  %3093 = vmatprep.mubr.f32.mxu0 0.0
  %3094 = vmatmul.mubr.f32.gmra.mxu0 %v2968
  %v3095 = vpop.f32.mrf.mxu0
  %v3096 = vadd.f32 0.0, %v3095
  %v3097 = vpop.f32.mrf.mxu0
  %3098 = vmatprep.mubr.f32.mxu0 0.0
  %3099 = vmatmul.mubr.f32.gmra.mxu0 %v2971
  %v3100 = vpop.f32.mrf.mxu0
  %v3101 = vadd.f32 0.0, %v3100
  %v3102 = vpop.f32.mrf.mxu0
  %3103 = vmatprep.mubr.f32.mxu0 0.0
  %3104 = vmatmul.mubr.f32.gmra.mxu0 %v2974
  %v3105 = vpop.f32.mrf.mxu0
  %v3106 = vadd.f32 0.0, %v3105
  %v3107 = vpop.f32.mrf.mxu0
  %3108 = vmatprep.mubr.f32.mxu0 0.0
  %3109 = vmatmul.mubr.f32.gmra.mxu0 %v2977
  %v3110 = vpop.f32.mrf.mxu0
  %v3111 = vadd.f32 0.0, %v3110
  %v3112 = vpop.f32.mrf.mxu0
  %3113 = vmatprep.mubr.f32.mxu0 0.0
  %3114 = vmatmul.mubr.f32.gmra.mxu0 %v2980
  %v3115 = vpop.f32.mrf.mxu0
  %v3116 = vadd.f32 0.0, %v3115
  %v3117 = vpop.f32.mrf.mxu0
  %3118 = vmatprep.mubr.f32.mxu0 0.0
  %3119 = vmatmul.mubr.f32.gmra.mxu0 %v2983
  %v3120 = vpop.f32.mrf.mxu0
  %v3121 = vadd.f32 0.0, %v3120
  %v3122 = vpop.f32.mrf.mxu0
  %3123 = vmatprep.mubr.f32.mxu0 0.0
  %3124 = vmatmul.mubr.f32.gmra.mxu0 %v2986
  %v3125 = vpop.f32.mrf.mxu0
  %v3126 = vadd.f32 0.0, %v3125
  %v3127 = vpop.f32.mrf.mxu0
  %3128 = vmatprep.mubr.f32.mxu0 0.0
  %3129 = vmatmul.mubr.f32.gmra.mxu0 %v2989
  %v3130 = vpop.f32.mrf.mxu0
  %v3131 = vadd.f32 0.0, %v3130
  %v3132 = vpop.f32.mrf.mxu0
  %3133 = vmatprep.mubr.f32.mxu0 0.0
  %3134 = vmatmul.mubr.f32.gmra.mxu0 %v2992
  %v3135 = vpop.f32.mrf.mxu0
  %v3136 = vadd.f32 0.0, %v3135
  %v3137 = vpop.f32.mrf.mxu0
  %3138 = vdwg.mxu0
  %v3139 = vadd.f32 %v2909, %v3061
  %v3140 = vadd.f32 %v2910, %v3066
  %v3141 = vadd.f32 %v2911, %v3071
  %v3142 = vadd.f32 %v2912, %v3076
  %v3143 = vadd.f32 %v2913, %v3081
  %v3144 = vadd.f32 %v2914, %v3086
  %v3145 = vadd.f32 %v2915, %v3091
  %v3146 = vadd.f32 %v2916, %v3096
  %v3147 = vadd.f32 %v2917, %v3101
  %v3148 = vadd.f32 %v2918, %v3106
  %v3149 = vadd.f32 %v2919, %v3111
  %v3150 = vadd.f32 %v2920, %v3116
  %v3151 = vadd.f32 %v2921, %v3121
  %v3152 = vadd.f32 %v2922, %v3126
  %v3153 = vadd.f32 %v2923, %v3131
  %v3154 = vadd.f32 %v2924, %v3136
  %v3155 = vld [vmem:[%s126 + $0x1] sm:$0xff]
  %v3156 = vld [vmem:[%s126 + $0x11] sm:$0xff]
  %v3157 = vld [vmem:[%s126 + $0x21] sm:$0xff]
  %v3158 = vld [vmem:[%s126 + $0x31] sm:$0xff]
  %v3159 = vld [vmem:[%s126 + $0x41] sm:$0xff]
  %v3160 = vld [vmem:[%s126 + $0x51] sm:$0xff]
  %v3161 = vld [vmem:[%s126 + $0x61] sm:$0xff]
  %v3162 = vld [vmem:[%s126 + $0x71] sm:$0xff]
  %v3163 = vld [vmem:[%s126 + $0xa1] sm:$0xff]
  %v3164 = vld [vmem:[%s126 + $0xb1] sm:$0xff]
  %v3165 = vld [vmem:[%s126 + $0xc1] sm:$0xff]
  %v3166 = vld [vmem:[%s126 + $0xd1] sm:$0xff]
  %v3167 = vld [vmem:[%s126 + $0xe1] sm:$0xff]
  %v3168 = vld [vmem:[%s126 + $0xf1] sm:$0xff]
  %v3169 = vld [vmem:[%s126 + $0x101] sm:$0xff]
  %v3170 = vld [vmem:[%s126 + $0x111] sm:$0xff]
  %s3171 = scalar_lea.vmem %s3, 128
  %v3172 = vld [vmem:[%s3171] sm:$0xff]
  %v3173 = vld [vmem:[%s3171 + $0x8] sm:$0xff]
  %v3174 = vld [vmem:[%s3171 + $0x10] sm:$0xff]
  %v3175 = vld [vmem:[%s3171 + $0x18] sm:$0xff]
  %v3177 = vsel %vm68, %v3155, 0
  %v3180 = vsel %vm68, %v3156, 0
  %v3183 = vsel %vm68, %v3157, 0
  %v3186 = vsel %vm68, %v3158, 0
  %v3189 = vsel %vm68, %v3159, 0
  %v3192 = vsel %vm68, %v3160, 0
  %v3195 = vsel %vm68, %v3161, 0
  %v3198 = vsel %vm68, %v3162, 0
  %v3201 = vsel %vm68, %v3163, 0
  %v3204 = vsel %vm68, %v3164, 0
  %v3207 = vsel %vm68, %v3165, 0
  %v3210 = vsel %vm68, %v3166, 0
  %v3213 = vsel %vm68, %v3167, 0
  %v3216 = vsel %vm68, %v3168, 0
  %v3219 = vsel %vm68, %v3169, 0
  %v3222 = vsel %vm68, %v3170, 0
  %3224 = vmatprep.subr.mxu0 0.0
  %3225 = vmatpush1.msra.mxu0 0.0
  %3226 = vmatprep.subr.mxu0 0.0
  %3227 = vmatpush1.msra.mxu0 0.0
  %3228 = vmatprep.subr.mxu0 0.0
  %3229 = vmatpush1.msra.mxu0 0.0
  %3230 = vmatprep.subr.mxu0 0.0
  %3231 = vmatpush1.msra.mxu0 0.0
  %3232 = vmatprep.subr.mxu0 0.0
  %3233 = vmatpush1.msra.mxu0 0.0
  %3234 = vmatprep.subr.mxu0 0.0
  %3235 = vmatpush1.msra.mxu0 0.0
  %3236 = vmatprep.subr.mxu0 0.0
  %3237 = vmatpush1.msra.mxu0 0.0
  %3238 = vmatprep.subr.mxu0 0.0
  %3239 = vmatpush1.msra.mxu0 0.0
  %3240 = vmatprep.subr.mxu0 0.0
  %3241 = vmatpush1.msra.mxu0 0.0
  %3242 = vmatprep.subr.mxu0 0.0
  %3243 = vmatpush1.msra.mxu0 0.0
  %3244 = vmatprep.subr.mxu0 0.0
  %3245 = vmatpush1.msra.mxu0 0.0
  %3246 = vmatprep.subr.mxu0 0.0
  %3247 = vmatpush1.msra.mxu0 0.0
  %3248 = vmatprep.subr.mxu0 0.0
  %3249 = vmatpush1.msra.mxu0 %v3175
  %3250 = vmatprep.subr.mxu0 0.0
  %3251 = vmatpush1.msra.mxu0 %v3174
  %3252 = vmatprep.subr.mxu0 0.0
  %3253 = vmatpush1.msra.mxu0 %v3173
  %3254 = vmatprep.subr.mxu0 0.0
  %3255 = vmatpush1.msra.mxu0 %v3172
  %3256 = vmatprep.subr.mxu0 0.0
  %3257 = vmatpush2.msra.mxu0 0.0
  %3258 = vmatprep.subr.mxu0 0.0
  %3259 = vmatpush2.msra.mxu0 0.0
  %3260 = vmatprep.subr.mxu0 0.0
  %3261 = vmatpush2.msra.mxu0 0.0
  %3262 = vmatprep.subr.mxu0 0.0
  %3263 = vmatpush2.msra.mxu0 0.0
  %3264 = vmatprep.subr.mxu0 0.0
  %3265 = vmatpush2.msra.mxu0 0.0
  %3266 = vmatprep.subr.mxu0 0.0
  %3267 = vmatpush2.msra.mxu0 0.0
  %3268 = vmatprep.subr.mxu0 0.0
  %3269 = vmatpush2.msra.mxu0 0.0
  %3270 = vmatprep.subr.mxu0 0.0
  %3271 = vmatpush2.msra.mxu0 0.0
  %3272 = vmatprep.subr.mxu0 0.0
  %3273 = vmatpush2.msra.mxu0 0.0
  %3274 = vmatprep.subr.mxu0 0.0
  %3275 = vmatpush2.msra.mxu0 0.0
  %3276 = vmatprep.subr.mxu0 0.0
  %3277 = vmatpush2.msra.mxu0 0.0
  %3278 = vmatprep.subr.mxu0 0.0
  %3279 = vmatpush2.msra.mxu0 0.0
  %3280 = vmatprep.subr.mxu0 0.0
  %3281 = vmatpush2.msra.mxu0 0.0
  %3282 = vmatprep.subr.mxu0 0.0
  %3283 = vmatpush2.msra.mxu0 0.0
  %3284 = vmatprep.subr.mxu0 0.0
  %3285 = vmatpush2.msra.mxu0 0.0
  %3286 = vmatprep.subr.mxu0 0.0
  %3287 = vmatpush2.msra.mxu0 0.0
  %3288 = vmatprep.mubr.f32.mxu0 0.0
  %3289 = vmatmul.mubr.f32.gmra.mxu0 %v3177
  %v3290 = vpop.f32.mrf.mxu0
  %v3291 = vadd.f32 0.0, %v3290
  %v3292 = vpop.f32.mrf.mxu0
  %3293 = vmatprep.mubr.f32.mxu0 0.0
  %3294 = vmatmul.mubr.f32.gmra.mxu0 %v3180
  %v3295 = vpop.f32.mrf.mxu0
  %v3296 = vadd.f32 0.0, %v3295
  %v3297 = vpop.f32.mrf.mxu0
  %3298 = vmatprep.mubr.f32.mxu0 0.0
  %3299 = vmatmul.mubr.f32.gmra.mxu0 %v3183
  %v3300 = vpop.f32.mrf.mxu0
  %v3301 = vadd.f32 0.0, %v3300
  %v3302 = vpop.f32.mrf.mxu0
  %3303 = vmatprep.mubr.f32.mxu0 0.0
  %3304 = vmatmul.mubr.f32.gmra.mxu0 %v3186
  %v3305 = vpop.f32.mrf.mxu0
  %v3306 = vadd.f32 0.0, %v3305
  %v3307 = vpop.f32.mrf.mxu0
  %3308 = vmatprep.mubr.f32.mxu0 0.0
  %3309 = vmatmul.mubr.f32.gmra.mxu0 %v3189
  %v3310 = vpop.f32.mrf.mxu0
  %v3311 = vadd.f32 0.0, %v3310
  %v3312 = vpop.f32.mrf.mxu0
  %3313 = vmatprep.mubr.f32.mxu0 0.0
  %3314 = vmatmul.mubr.f32.gmra.mxu0 %v3192
  %v3315 = vpop.f32.mrf.mxu0
  %v3316 = vadd.f32 0.0, %v3315
  %v3317 = vpop.f32.mrf.mxu0
  %3318 = vmatprep.mubr.f32.mxu0 0.0
  %3319 = vmatmul.mubr.f32.gmra.mxu0 %v3195
  %v3320 = vpop.f32.mrf.mxu0
  %v3321 = vadd.f32 0.0, %v3320
  %v3322 = vpop.f32.mrf.mxu0
  %3323 = vmatprep.mubr.f32.mxu0 0.0
  %3324 = vmatmul.mubr.f32.gmra.mxu0 %v3198
  %v3325 = vpop.f32.mrf.mxu0
  %v3326 = vadd.f32 0.0, %v3325
  %v3327 = vpop.f32.mrf.mxu0
  %3328 = vmatprep.mubr.f32.mxu0 0.0
  %3329 = vmatmul.mubr.f32.gmra.mxu0 %v3201
  %v3330 = vpop.f32.mrf.mxu0
  %v3331 = vadd.f32 0.0, %v3330
  %v3332 = vpop.f32.mrf.mxu0
  %3333 = vmatprep.mubr.f32.mxu0 0.0
  %3334 = vmatmul.mubr.f32.gmra.mxu0 %v3204
  %v3335 = vpop.f32.mrf.mxu0
  %v3336 = vadd.f32 0.0, %v3335
  %v3337 = vpop.f32.mrf.mxu0
  %3338 = vmatprep.mubr.f32.mxu0 0.0
  %3339 = vmatmul.mubr.f32.gmra.mxu0 %v3207
  %v3340 = vpop.f32.mrf.mxu0
  %v3341 = vadd.f32 0.0, %v3340
  %v3342 = vpop.f32.mrf.mxu0
  %3343 = vmatprep.mubr.f32.mxu0 0.0
  %3344 = vmatmul.mubr.f32.gmra.mxu0 %v3210
  %v3345 = vpop.f32.mrf.mxu0
  %v3346 = vadd.f32 0.0, %v3345
  %v3347 = vpop.f32.mrf.mxu0
  %3348 = vmatprep.mubr.f32.mxu0 0.0
  %3349 = vmatmul.mubr.f32.gmra.mxu0 %v3213
  %v3350 = vpop.f32.mrf.mxu0
  %v3351 = vadd.f32 0.0, %v3350
  %v3352 = vpop.f32.mrf.mxu0
  %3353 = vmatprep.mubr.f32.mxu0 0.0
  %3354 = vmatmul.mubr.f32.gmra.mxu0 %v3216
  %v3355 = vpop.f32.mrf.mxu0
  %v3356 = vadd.f32 0.0, %v3355
  %v3357 = vpop.f32.mrf.mxu0
  %3358 = vmatprep.mubr.f32.mxu0 0.0
  %3359 = vmatmul.mubr.f32.gmra.mxu0 %v3219
  %v3360 = vpop.f32.mrf.mxu0
  %v3361 = vadd.f32 0.0, %v3360
  %v3362 = vpop.f32.mrf.mxu0
  %3363 = vmatprep.mubr.f32.mxu0 0.0
  %3364 = vmatmul.mubr.f32.gmra.mxu0 %v3222
  %v3365 = vpop.f32.mrf.mxu0
  %v3366 = vadd.f32 0.0, %v3365
  %v3367 = vpop.f32.mrf.mxu0
  %3368 = vdwg.mxu0
  %v3369 = vadd.f32 %v3139, %v3291
  %v3370 = vadd.f32 %v3140, %v3296
  %v3371 = vadd.f32 %v3141, %v3301
  %v3372 = vadd.f32 %v3142, %v3306
  %v3373 = vadd.f32 %v3143, %v3311
  %v3374 = vadd.f32 %v3144, %v3316
  %v3375 = vadd.f32 %v3145, %v3321
  %v3376 = vadd.f32 %v3146, %v3326
  %v3377 = vadd.f32 %v3147, %v3331
  %v3378 = vadd.f32 %v3148, %v3336
  %v3379 = vadd.f32 %v3149, %v3341
  %v3380 = vadd.f32 %v3150, %v3346
  %v3381 = vadd.f32 %v3151, %v3351
  %v3382 = vadd.f32 %v3152, %v3356
  %v3383 = vadd.f32 %v3153, %v3361
  %v3384 = vadd.f32 %v3154, %v3366
  %v3385 = vld [vmem:[%s126 + $0x2] sm:$0xff]
  %v3386 = vld [vmem:[%s126 + $0x12] sm:$0xff]
  %v3387 = vld [vmem:[%s126 + $0x22] sm:$0xff]
  %v3388 = vld [vmem:[%s126 + $0x32] sm:$0xff]
  %v3389 = vld [vmem:[%s126 + $0x42] sm:$0xff]
  %v3390 = vld [vmem:[%s126 + $0x52] sm:$0xff]
  %v3391 = vld [vmem:[%s126 + $0x62] sm:$0xff]
  %v3392 = vld [vmem:[%s126 + $0x72] sm:$0xff]
  %v3393 = vld [vmem:[%s126 + $0xa2] sm:$0xff]
  %v3394 = vld [vmem:[%s126 + $0xb2] sm:$0xff]
  %v3395 = vld [vmem:[%s126 + $0xc2] sm:$0xff]
  %v3396 = vld [vmem:[%s126 + $0xd2] sm:$0xff]
  %v3397 = vld [vmem:[%s126 + $0xe2] sm:$0xff]
  %v3398 = vld [vmem:[%s126 + $0xf2] sm:$0xff]
  %v3399 = vld [vmem:[%s126 + $0x102] sm:$0xff]
  %v3400 = vld [vmem:[%s126 + $0x112] sm:$0xff]
  %s3401 = scalar_lea.vmem %s3, 160
  %v3402 = vld [vmem:[%s3401] sm:$0xff]
  %v3403 = vld [vmem:[%s3401 + $0x8] sm:$0xff]
  %v3404 = vld [vmem:[%s3401 + $0x10] sm:$0xff]
  %v3405 = vld [vmem:[%s3401 + $0x18] sm:$0xff]
  %v3407 = vsel %vm68, %v3385, 0
  %v3410 = vsel %vm68, %v3386, 0
  %v3413 = vsel %vm68, %v3387, 0
  %v3416 = vsel %vm68, %v3388, 0
  %v3419 = vsel %vm68, %v3389, 0
  %v3422 = vsel %vm68, %v3390, 0
  %v3425 = vsel %vm68, %v3391, 0
  %v3428 = vsel %vm68, %v3392, 0
  %v3431 = vsel %vm68, %v3393, 0
  %v3434 = vsel %vm68, %v3394, 0
  %v3437 = vsel %vm68, %v3395, 0
  %v3440 = vsel %vm68, %v3396, 0
  %v3443 = vsel %vm68, %v3397, 0
  %v3446 = vsel %vm68, %v3398, 0
  %v3449 = vsel %vm68, %v3399, 0
  %v3452 = vsel %vm68, %v3400, 0
  %3454 = vmatprep.subr.mxu0 0.0
  %3455 = vmatpush1.msra.mxu0 0.0
  %3456 = vmatprep.subr.mxu0 0.0
  %3457 = vmatpush1.msra.mxu0 0.0
  %3458 = vmatprep.subr.mxu0 0.0
  %3459 = vmatpush1.msra.mxu0 0.0
  %3460 = vmatprep.subr.mxu0 0.0
  %3461 = vmatpush1.msra.mxu0 0.0
  %3462 = vmatprep.subr.mxu0 0.0
  %3463 = vmatpush1.msra.mxu0 0.0
  %3464 = vmatprep.subr.mxu0 0.0
  %3465 = vmatpush1.msra.mxu0 0.0
  %3466 = vmatprep.subr.mxu0 0.0
  %3467 = vmatpush1.msra.mxu0 0.0
  %3468 = vmatprep.subr.mxu0 0.0
  %3469 = vmatpush1.msra.mxu0 0.0
  %3470 = vmatprep.subr.mxu0 0.0
  %3471 = vmatpush1.msra.mxu0 0.0
  %3472 = vmatprep.subr.mxu0 0.0
  %3473 = vmatpush1.msra.mxu0 0.0
  %3474 = vmatprep.subr.mxu0 0.0
  %3475 = vmatpush1.msra.mxu0 0.0
  %3476 = vmatprep.subr.mxu0 0.0
  %3477 = vmatpush1.msra.mxu0 0.0
  %3478 = vmatprep.subr.mxu0 0.0
  %3479 = vmatpush1.msra.mxu0 %v3405
  %3480 = vmatprep.subr.mxu0 0.0
  %3481 = vmatpush1.msra.mxu0 %v3404
  %3482 = vmatprep.subr.mxu0 0.0
  %3483 = vmatpush1.msra.mxu0 %v3403
  %3484 = vmatprep.subr.mxu0 0.0
  %3485 = vmatpush1.msra.mxu0 %v3402
  %3486 = vmatprep.subr.mxu0 0.0
  %3487 = vmatpush2.msra.mxu0 0.0
  %3488 = vmatprep.subr.mxu0 0.0
  %3489 = vmatpush2.msra.mxu0 0.0
  %3490 = vmatprep.subr.mxu0 0.0
  %3491 = vmatpush2.msra.mxu0 0.0
  %3492 = vmatprep.subr.mxu0 0.0
  %3493 = vmatpush2.msra.mxu0 0.0
  %3494 = vmatprep.subr.mxu0 0.0
  %3495 = vmatpush2.msra.mxu0 0.0
  %3496 = vmatprep.subr.mxu0 0.0
  %3497 = vmatpush2.msra.mxu0 0.0
  %3498 = vmatprep.subr.mxu0 0.0
  %3499 = vmatpush2.msra.mxu0 0.0
  %3500 = vmatprep.subr.mxu0 0.0
  %3501 = vmatpush2.msra.mxu0 0.0
  %3502 = vmatprep.subr.mxu0 0.0
  %3503 = vmatpush2.msra.mxu0 0.0
  %3504 = vmatprep.subr.mxu0 0.0
  %3505 = vmatpush2.msra.mxu0 0.0
  %3506 = vmatprep.subr.mxu0 0.0
  %3507 = vmatpush2.msra.mxu0 0.0
  %3508 = vmatprep.subr.mxu0 0.0
  %3509 = vmatpush2.msra.mxu0 0.0
  %3510 = vmatprep.subr.mxu0 0.0
  %3511 = vmatpush2.msra.mxu0 0.0
  %3512 = vmatprep.subr.mxu0 0.0
  %3513 = vmatpush2.msra.mxu0 0.0
  %3514 = vmatprep.subr.mxu0 0.0
  %3515 = vmatpush2.msra.mxu0 0.0
  %3516 = vmatprep.subr.mxu0 0.0
  %3517 = vmatpush2.msra.mxu0 0.0
  %3518 = vmatprep.mubr.f32.mxu0 0.0
  %3519 = vmatmul.mubr.f32.gmra.mxu0 %v3407
  %v3520 = vpop.f32.mrf.mxu0
  %v3521 = vadd.f32 0.0, %v3520
  %v3522 = vpop.f32.mrf.mxu0
  %3523 = vmatprep.mubr.f32.mxu0 0.0
  %3524 = vmatmul.mubr.f32.gmra.mxu0 %v3410
  %v3525 = vpop.f32.mrf.mxu0
  %v3526 = vadd.f32 0.0, %v3525
  %v3527 = vpop.f32.mrf.mxu0
  %3528 = vmatprep.mubr.f32.mxu0 0.0
  %3529 = vmatmul.mubr.f32.gmra.mxu0 %v3413
  %v3530 = vpop.f32.mrf.mxu0
  %v3531 = vadd.f32 0.0, %v3530
  %v3532 = vpop.f32.mrf.mxu0
  %3533 = vmatprep.mubr.f32.mxu0 0.0
  %3534 = vmatmul.mubr.f32.gmra.mxu0 %v3416
  %v3535 = vpop.f32.mrf.mxu0
  %v3536 = vadd.f32 0.0, %v3535
  %v3537 = vpop.f32.mrf.mxu0
  %3538 = vmatprep.mubr.f32.mxu0 0.0
  %3539 = vmatmul.mubr.f32.gmra.mxu0 %v3419
  %v3540 = vpop.f32.mrf.mxu0
  %v3541 = vadd.f32 0.0, %v3540
  %v3542 = vpop.f32.mrf.mxu0
  %3543 = vmatprep.mubr.f32.mxu0 0.0
  %3544 = vmatmul.mubr.f32.gmra.mxu0 %v3422
  %v3545 = vpop.f32.mrf.mxu0
  %v3546 = vadd.f32 0.0, %v3545
  %v3547 = vpop.f32.mrf.mxu0
  %3548 = vmatprep.mubr.f32.mxu0 0.0
  %3549 = vmatmul.mubr.f32.gmra.mxu0 %v3425
  %v3550 = vpop.f32.mrf.mxu0
  %v3551 = vadd.f32 0.0, %v3550
  %v3552 = vpop.f32.mrf.mxu0
  %3553 = vmatprep.mubr.f32.mxu0 0.0
  %3554 = vmatmul.mubr.f32.gmra.mxu0 %v3428
  %v3555 = vpop.f32.mrf.mxu0
  %v3556 = vadd.f32 0.0, %v3555
  %v3557 = vpop.f32.mrf.mxu0
  %3558 = vmatprep.mubr.f32.mxu0 0.0
  %3559 = vmatmul.mubr.f32.gmra.mxu0 %v3431
  %v3560 = vpop.f32.mrf.mxu0
  %v3561 = vadd.f32 0.0, %v3560
  %v3562 = vpop.f32.mrf.mxu0
  %3563 = vmatprep.mubr.f32.mxu0 0.0
  %3564 = vmatmul.mubr.f32.gmra.mxu0 %v3434
  %v3565 = vpop.f32.mrf.mxu0
  %v3566 = vadd.f32 0.0, %v3565
  %v3567 = vpop.f32.mrf.mxu0
  %3568 = vmatprep.mubr.f32.mxu0 0.0
  %3569 = vmatmul.mubr.f32.gmra.mxu0 %v3437
  %v3570 = vpop.f32.mrf.mxu0
  %v3571 = vadd.f32 0.0, %v3570
  %v3572 = vpop.f32.mrf.mxu0
  %3573 = vmatprep.mubr.f32.mxu0 0.0
  %3574 = vmatmul.mubr.f32.gmra.mxu0 %v3440
  %v3575 = vpop.f32.mrf.mxu0
  %v3576 = vadd.f32 0.0, %v3575
  %v3577 = vpop.f32.mrf.mxu0
  %3578 = vmatprep.mubr.f32.mxu0 0.0
  %3579 = vmatmul.mubr.f32.gmra.mxu0 %v3443
  %v3580 = vpop.f32.mrf.mxu0
  %v3581 = vadd.f32 0.0, %v3580
  %v3582 = vpop.f32.mrf.mxu0
  %3583 = vmatprep.mubr.f32.mxu0 0.0
  %3584 = vmatmul.mubr.f32.gmra.mxu0 %v3446
  %v3585 = vpop.f32.mrf.mxu0
  %v3586 = vadd.f32 0.0, %v3585
  %v3587 = vpop.f32.mrf.mxu0
  %3588 = vmatprep.mubr.f32.mxu0 0.0
  %3589 = vmatmul.mubr.f32.gmra.mxu0 %v3449
  %v3590 = vpop.f32.mrf.mxu0
  %v3591 = vadd.f32 0.0, %v3590
  %v3592 = vpop.f32.mrf.mxu0
  %3593 = vmatprep.mubr.f32.mxu0 0.0
  %3594 = vmatmul.mubr.f32.gmra.mxu0 %v3452
  %v3595 = vpop.f32.mrf.mxu0
  %v3596 = vadd.f32 0.0, %v3595
  %v3597 = vpop.f32.mrf.mxu0
  %3598 = vdwg.mxu0
  %v3599 = vadd.f32 %v3369, %v3521
  %v3600 = vadd.f32 %v3370, %v3526
  %v3601 = vadd.f32 %v3371, %v3531
  %v3602 = vadd.f32 %v3372, %v3536
  %v3603 = vadd.f32 %v3373, %v3541
  %v3604 = vadd.f32 %v3374, %v3546
  %v3605 = vadd.f32 %v3375, %v3551
  %v3606 = vadd.f32 %v3376, %v3556
  %v3607 = vadd.f32 %v3377, %v3561
  %v3608 = vadd.f32 %v3378, %v3566
  %v3609 = vadd.f32 %v3379, %v3571
  %v3610 = vadd.f32 %v3380, %v3576
  %v3611 = vadd.f32 %v3381, %v3581
  %v3612 = vadd.f32 %v3382, %v3586
  %v3613 = vadd.f32 %v3383, %v3591
  %v3614 = vadd.f32 %v3384, %v3596
  %v3615 = vld [vmem:[%s1490] sm:$0xff]
  %v3616 = vld [vmem:[%s1490 + $0x10] sm:$0xff]
  %v3617 = vld [vmem:[%s1490 + $0x20] sm:$0xff]
  %v3618 = vld [vmem:[%s1490 + $0x30] sm:$0xff]
  %v3619 = vld [vmem:[%s1490 + $0x40] sm:$0xff]
  %v3620 = vld [vmem:[%s1490 + $0x50] sm:$0xff]
  %v3621 = vld [vmem:[%s1490 + $0x60] sm:$0xff]
  %v3622 = vld [vmem:[%s1490 + $0x70] sm:$0xff]
  %v3623 = vld [vmem:[%s1490 + $0xa0] sm:$0xff]
  %v3624 = vld [vmem:[%s1490 + $0xb0] sm:$0xff]
  %v3625 = vld [vmem:[%s1490 + $0xc0] sm:$0xff]
  %v3626 = vld [vmem:[%s1490 + $0xd0] sm:$0xff]
  %v3627 = vld [vmem:[%s1490 + $0xe0] sm:$0xff]
  %v3628 = vld [vmem:[%s1490 + $0xf0] sm:$0xff]
  %v3629 = vld [vmem:[%s1490 + $0x100] sm:$0xff]
  %v3630 = vld [vmem:[%s1490 + $0x110] sm:$0xff]
  %s3631 = scalar_lea.vmem %s3, 192
  %v3632 = vld [vmem:[%s3631] sm:$0xff]
  %v3633 = vld [vmem:[%s3631 + $0x8] sm:$0xff]
  %v3634 = vld [vmem:[%s3631 + $0x10] sm:$0xff]
  %v3635 = vld [vmem:[%s3631 + $0x18] sm:$0xff]
  %v3637 = vsel %vm68, %v3615, 0
  %v3640 = vsel %vm68, %v3616, 0
  %v3643 = vsel %vm68, %v3617, 0
  %v3646 = vsel %vm68, %v3618, 0
  %v3649 = vsel %vm68, %v3619, 0
  %v3652 = vsel %vm68, %v3620, 0
  %v3655 = vsel %vm68, %v3621, 0
  %v3658 = vsel %vm68, %v3622, 0
  %v3661 = vsel %vm68, %v3623, 0
  %v3664 = vsel %vm68, %v3624, 0
  %v3667 = vsel %vm68, %v3625, 0
  %v3670 = vsel %vm68, %v3626, 0
  %v3673 = vsel %vm68, %v3627, 0
  %v3676 = vsel %vm68, %v3628, 0
  %v3679 = vsel %vm68, %v3629, 0
  %v3682 = vsel %vm68, %v3630, 0
  %3684 = vmatprep.subr.mxu0 0.0
  %3685 = vmatpush1.msra.mxu0 0.0
  %3686 = vmatprep.subr.mxu0 0.0
  %3687 = vmatpush1.msra.mxu0 0.0
  %3688 = vmatprep.subr.mxu0 0.0
  %3689 = vmatpush1.msra.mxu0 0.0
  %3690 = vmatprep.subr.mxu0 0.0
  %3691 = vmatpush1.msra.mxu0 0.0
  %3692 = vmatprep.subr.mxu0 0.0
  %3693 = vmatpush1.msra.mxu0 0.0
  %3694 = vmatprep.subr.mxu0 0.0
  %3695 = vmatpush1.msra.mxu0 0.0
  %3696 = vmatprep.subr.mxu0 0.0
  %3697 = vmatpush1.msra.mxu0 0.0
  %3698 = vmatprep.subr.mxu0 0.0
  %3699 = vmatpush1.msra.mxu0 0.0
  %3700 = vmatprep.subr.mxu0 0.0
  %3701 = vmatpush1.msra.mxu0 0.0
  %3702 = vmatprep.subr.mxu0 0.0
  %3703 = vmatpush1.msra.mxu0 0.0
  %3704 = vmatprep.subr.mxu0 0.0
  %3705 = vmatpush1.msra.mxu0 0.0
  %3706 = vmatprep.subr.mxu0 0.0
  %3707 = vmatpush1.msra.mxu0 0.0
  %3708 = vmatprep.subr.mxu0 0.0
  %3709 = vmatpush1.msra.mxu0 %v3635
  %3710 = vmatprep.subr.mxu0 0.0
  %3711 = vmatpush1.msra.mxu0 %v3634
  %3712 = vmatprep.subr.mxu0 0.0
  %3713 = vmatpush1.msra.mxu0 %v3633
  %3714 = vmatprep.subr.mxu0 0.0
  %3715 = vmatpush1.msra.mxu0 %v3632
  %3716 = vmatprep.subr.mxu0 0.0
  %3717 = vmatpush2.msra.mxu0 0.0
  %3718 = vmatprep.subr.mxu0 0.0
  %3719 = vmatpush2.msra.mxu0 0.0
  %3720 = vmatprep.subr.mxu0 0.0
  %3721 = vmatpush2.msra.mxu0 0.0
  %3722 = vmatprep.subr.mxu0 0.0
  %3723 = vmatpush2.msra.mxu0 0.0
  %3724 = vmatprep.subr.mxu0 0.0
  %3725 = vmatpush2.msra.mxu0 0.0
  %3726 = vmatprep.subr.mxu0 0.0
  %3727 = vmatpush2.msra.mxu0 0.0
  %3728 = vmatprep.subr.mxu0 0.0
  %3729 = vmatpush2.msra.mxu0 0.0
  %3730 = vmatprep.subr.mxu0 0.0
  %3731 = vmatpush2.msra.mxu0 0.0
  %3732 = vmatprep.subr.mxu0 0.0
  %3733 = vmatpush2.msra.mxu0 0.0
  %3734 = vmatprep.subr.mxu0 0.0
  %3735 = vmatpush2.msra.mxu0 0.0
  %3736 = vmatprep.subr.mxu0 0.0
  %3737 = vmatpush2.msra.mxu0 0.0
  %3738 = vmatprep.subr.mxu0 0.0
  %3739 = vmatpush2.msra.mxu0 0.0
  %3740 = vmatprep.subr.mxu0 0.0
  %3741 = vmatpush2.msra.mxu0 0.0
  %3742 = vmatprep.subr.mxu0 0.0
  %3743 = vmatpush2.msra.mxu0 0.0
  %3744 = vmatprep.subr.mxu0 0.0
  %3745 = vmatpush2.msra.mxu0 0.0
  %3746 = vmatprep.subr.mxu0 0.0
  %3747 = vmatpush2.msra.mxu0 0.0
  %3748 = vmatprep.mubr.f32.mxu0 0.0
  %3749 = vmatmul.mubr.f32.gmra.mxu0 %v3637
  %v3750 = vpop.f32.mrf.mxu0
  %v3751 = vadd.f32 0.0, %v3750
  %v3752 = vpop.f32.mrf.mxu0
  %3753 = vmatprep.mubr.f32.mxu0 0.0
  %3754 = vmatmul.mubr.f32.gmra.mxu0 %v3640
  %v3755 = vpop.f32.mrf.mxu0
  %v3756 = vadd.f32 0.0, %v3755
  %v3757 = vpop.f32.mrf.mxu0
  %3758 = vmatprep.mubr.f32.mxu0 0.0
  %3759 = vmatmul.mubr.f32.gmra.mxu0 %v3643
  %v3760 = vpop.f32.mrf.mxu0
  %v3761 = vadd.f32 0.0, %v3760
  %v3762 = vpop.f32.mrf.mxu0
  %3763 = vmatprep.mubr.f32.mxu0 0.0
  %3764 = vmatmul.mubr.f32.gmra.mxu0 %v3646
  %v3765 = vpop.f32.mrf.mxu0
  %v3766 = vadd.f32 0.0, %v3765
  %v3767 = vpop.f32.mrf.mxu0
  %3768 = vmatprep.mubr.f32.mxu0 0.0
  %3769 = vmatmul.mubr.f32.gmra.mxu0 %v3649
  %v3770 = vpop.f32.mrf.mxu0
  %v3771 = vadd.f32 0.0, %v3770
  %v3772 = vpop.f32.mrf.mxu0
  %3773 = vmatprep.mubr.f32.mxu0 0.0
  %3774 = vmatmul.mubr.f32.gmra.mxu0 %v3652
  %v3775 = vpop.f32.mrf.mxu0
  %v3776 = vadd.f32 0.0, %v3775
  %v3777 = vpop.f32.mrf.mxu0
  %3778 = vmatprep.mubr.f32.mxu0 0.0
  %3779 = vmatmul.mubr.f32.gmra.mxu0 %v3655
  %v3780 = vpop.f32.mrf.mxu0
  %v3781 = vadd.f32 0.0, %v3780
  %v3782 = vpop.f32.mrf.mxu0
  %3783 = vmatprep.mubr.f32.mxu0 0.0
  %3784 = vmatmul.mubr.f32.gmra.mxu0 %v3658
  %v3785 = vpop.f32.mrf.mxu0
  %v3786 = vadd.f32 0.0, %v3785
  %v3787 = vpop.f32.mrf.mxu0
  %3788 = vmatprep.mubr.f32.mxu0 0.0
  %3789 = vmatmul.mubr.f32.gmra.mxu0 %v3661
  %v3790 = vpop.f32.mrf.mxu0
  %v3791 = vadd.f32 0.0, %v3790
  %v3792 = vpop.f32.mrf.mxu0
  %3793 = vmatprep.mubr.f32.mxu0 0.0
  %3794 = vmatmul.mubr.f32.gmra.mxu0 %v3664
  %v3795 = vpop.f32.mrf.mxu0
  %v3796 = vadd.f32 0.0, %v3795
  %v3797 = vpop.f32.mrf.mxu0
  %3798 = vmatprep.mubr.f32.mxu0 0.0
  %3799 = vmatmul.mubr.f32.gmra.mxu0 %v3667
  %v3800 = vpop.f32.mrf.mxu0
  %v3801 = vadd.f32 0.0, %v3800
  %v3802 = vpop.f32.mrf.mxu0
  %3803 = vmatprep.mubr.f32.mxu0 0.0
  %3804 = vmatmul.mubr.f32.gmra.mxu0 %v3670
  %v3805 = vpop.f32.mrf.mxu0
  %v3806 = vadd.f32 0.0, %v3805
  %v3807 = vpop.f32.mrf.mxu0
  %3808 = vmatprep.mubr.f32.mxu0 0.0
  %3809 = vmatmul.mubr.f32.gmra.mxu0 %v3673
  %v3810 = vpop.f32.mrf.mxu0
  %v3811 = vadd.f32 0.0, %v3810
  %v3812 = vpop.f32.mrf.mxu0
  %3813 = vmatprep.mubr.f32.mxu0 0.0
  %3814 = vmatmul.mubr.f32.gmra.mxu0 %v3676
  %v3815 = vpop.f32.mrf.mxu0
  %v3816 = vadd.f32 0.0, %v3815
  %v3817 = vpop.f32.mrf.mxu0
  %3818 = vmatprep.mubr.f32.mxu0 0.0
  %3819 = vmatmul.mubr.f32.gmra.mxu0 %v3679
  %v3820 = vpop.f32.mrf.mxu0
  %v3821 = vadd.f32 0.0, %v3820
  %v3822 = vpop.f32.mrf.mxu0
  %3823 = vmatprep.mubr.f32.mxu0 0.0
  %3824 = vmatmul.mubr.f32.gmra.mxu0 %v3682
  %v3825 = vpop.f32.mrf.mxu0
  %v3826 = vadd.f32 0.0, %v3825
  %v3827 = vpop.f32.mrf.mxu0
  %3828 = vdwg.mxu0
  %v3829 = vadd.f32 %v3599, %v3751
  %v3830 = vadd.f32 %v3600, %v3756
  %v3831 = vadd.f32 %v3601, %v3761
  %v3832 = vadd.f32 %v3602, %v3766
  %v3833 = vadd.f32 %v3603, %v3771
  %v3834 = vadd.f32 %v3604, %v3776
  %v3835 = vadd.f32 %v3605, %v3781
  %v3836 = vadd.f32 %v3606, %v3786
  %v3837 = vadd.f32 %v3607, %v3791
  %v3838 = vadd.f32 %v3608, %v3796
  %v3839 = vadd.f32 %v3609, %v3801
  %v3840 = vadd.f32 %v3610, %v3806
  %v3841 = vadd.f32 %v3611, %v3811
  %v3842 = vadd.f32 %v3612, %v3816
  %v3843 = vadd.f32 %v3613, %v3821
  %v3844 = vadd.f32 %v3614, %v3826
  %v3845 = vld [vmem:[%s1490 + $0x1] sm:$0xff]
  %v3846 = vld [vmem:[%s1490 + $0x11] sm:$0xff]
  %v3847 = vld [vmem:[%s1490 + $0x21] sm:$0xff]
  %v3848 = vld [vmem:[%s1490 + $0x31] sm:$0xff]
  %v3849 = vld [vmem:[%s1490 + $0x41] sm:$0xff]
  %v3850 = vld [vmem:[%s1490 + $0x51] sm:$0xff]
  %v3851 = vld [vmem:[%s1490 + $0x61] sm:$0xff]
  %v3852 = vld [vmem:[%s1490 + $0x71] sm:$0xff]
  %v3853 = vld [vmem:[%s1490 + $0xa1] sm:$0xff]
  %v3854 = vld [vmem:[%s1490 + $0xb1] sm:$0xff]
  %v3855 = vld [vmem:[%s1490 + $0xc1] sm:$0xff]
  %v3856 = vld [vmem:[%s1490 + $0xd1] sm:$0xff]
  %v3857 = vld [vmem:[%s1490 + $0xe1] sm:$0xff]
  %v3858 = vld [vmem:[%s1490 + $0xf1] sm:$0xff]
  %v3859 = vld [vmem:[%s1490 + $0x101] sm:$0xff]
  %v3860 = vld [vmem:[%s1490 + $0x111] sm:$0xff]
  %s3861 = scalar_lea.vmem %s3, 224
  %v3862 = vld [vmem:[%s3861] sm:$0xff]
  %v3863 = vld [vmem:[%s3861 + $0x8] sm:$0xff]
  %v3864 = vld [vmem:[%s3861 + $0x10] sm:$0xff]
  %v3865 = vld [vmem:[%s3861 + $0x18] sm:$0xff]
  %v3867 = vsel %vm68, %v3845, 0
  %v3870 = vsel %vm68, %v3846, 0
  %v3873 = vsel %vm68, %v3847, 0
  %v3876 = vsel %vm68, %v3848, 0
  %v3879 = vsel %vm68, %v3849, 0
  %v3882 = vsel %vm68, %v3850, 0
  %v3885 = vsel %vm68, %v3851, 0
  %v3888 = vsel %vm68, %v3852, 0
  %v3891 = vsel %vm68, %v3853, 0
  %v3894 = vsel %vm68, %v3854, 0
  %v3897 = vsel %vm68, %v3855, 0
  %v3900 = vsel %vm68, %v3856, 0
  %v3903 = vsel %vm68, %v3857, 0
  %v3906 = vsel %vm68, %v3858, 0
  %v3909 = vsel %vm68, %v3859, 0
  %v3912 = vsel %vm68, %v3860, 0
  %3914 = vmatprep.subr.mxu0 0.0
  %3915 = vmatpush1.msra.mxu0 0.0
  %3916 = vmatprep.subr.mxu0 0.0
  %3917 = vmatpush1.msra.mxu0 0.0
  %3918 = vmatprep.subr.mxu0 0.0
  %3919 = vmatpush1.msra.mxu0 0.0
  %3920 = vmatprep.subr.mxu0 0.0
  %3921 = vmatpush1.msra.mxu0 0.0
  %3922 = vmatprep.subr.mxu0 0.0
  %3923 = vmatpush1.msra.mxu0 0.0
  %3924 = vmatprep.subr.mxu0 0.0
  %3925 = vmatpush1.msra.mxu0 0.0
  %3926 = vmatprep.subr.mxu0 0.0
  %3927 = vmatpush1.msra.mxu0 0.0
  %3928 = vmatprep.subr.mxu0 0.0
  %3929 = vmatpush1.msra.mxu0 0.0
  %3930 = vmatprep.subr.mxu0 0.0
  %3931 = vmatpush1.msra.mxu0 0.0
  %3932 = vmatprep.subr.mxu0 0.0
  %3933 = vmatpush1.msra.mxu0 0.0
  %3934 = vmatprep.subr.mxu0 0.0
  %3935 = vmatpush1.msra.mxu0 0.0
  %3936 = vmatprep.subr.mxu0 0.0
  %3937 = vmatpush1.msra.mxu0 0.0
  %3938 = vmatprep.subr.mxu0 0.0
  %3939 = vmatpush1.msra.mxu0 %v3865
  %3940 = vmatprep.subr.mxu0 0.0
  %3941 = vmatpush1.msra.mxu0 %v3864
  %3942 = vmatprep.subr.mxu0 0.0
  %3943 = vmatpush1.msra.mxu0 %v3863
  %3944 = vmatprep.subr.mxu0 0.0
  %3945 = vmatpush1.msra.mxu0 %v3862
  %3946 = vmatprep.subr.mxu0 0.0
  %3947 = vmatpush2.msra.mxu0 0.0
  %3948 = vmatprep.subr.mxu0 0.0
  %3949 = vmatpush2.msra.mxu0 0.0
  %3950 = vmatprep.subr.mxu0 0.0
  %3951 = vmatpush2.msra.mxu0 0.0
  %3952 = vmatprep.subr.mxu0 0.0
  %3953 = vmatpush2.msra.mxu0 0.0
  %3954 = vmatprep.subr.mxu0 0.0
  %3955 = vmatpush2.msra.mxu0 0.0
  %3956 = vmatprep.subr.mxu0 0.0
  %3957 = vmatpush2.msra.mxu0 0.0
  %3958 = vmatprep.subr.mxu0 0.0
  %3959 = vmatpush2.msra.mxu0 0.0
  %3960 = vmatprep.subr.mxu0 0.0
  %3961 = vmatpush2.msra.mxu0 0.0
  %3962 = vmatprep.subr.mxu0 0.0
  %3963 = vmatpush2.msra.mxu0 0.0
  %3964 = vmatprep.subr.mxu0 0.0
  %3965 = vmatpush2.msra.mxu0 0.0
  %3966 = vmatprep.subr.mxu0 0.0
  %3967 = vmatpush2.msra.mxu0 0.0
  %3968 = vmatprep.subr.mxu0 0.0
  %3969 = vmatpush2.msra.mxu0 0.0
  %3970 = vmatprep.subr.mxu0 0.0
  %3971 = vmatpush2.msra.mxu0 0.0
  %3972 = vmatprep.subr.mxu0 0.0
  %3973 = vmatpush2.msra.mxu0 0.0
  %3974 = vmatprep.subr.mxu0 0.0
  %3975 = vmatpush2.msra.mxu0 0.0
  %3976 = vmatprep.subr.mxu0 0.0
  %3977 = vmatpush2.msra.mxu0 0.0
  %3978 = vmatprep.mubr.f32.mxu0 0.0
  %3979 = vmatmul.mubr.f32.gmra.mxu0 %v3867
  %v3980 = vpop.f32.mrf.mxu0
  %v3981 = vadd.f32 0.0, %v3980
  %v3982 = vpop.f32.mrf.mxu0
  %3983 = vmatprep.mubr.f32.mxu0 0.0
  %3984 = vmatmul.mubr.f32.gmra.mxu0 %v3870
  %v3985 = vpop.f32.mrf.mxu0
  %v3986 = vadd.f32 0.0, %v3985
  %v3987 = vpop.f32.mrf.mxu0
  %3988 = vmatprep.mubr.f32.mxu0 0.0
  %3989 = vmatmul.mubr.f32.gmra.mxu0 %v3873
  %v3990 = vpop.f32.mrf.mxu0
  %v3991 = vadd.f32 0.0, %v3990
  %v3992 = vpop.f32.mrf.mxu0
  %3993 = vmatprep.mubr.f32.mxu0 0.0
  %3994 = vmatmul.mubr.f32.gmra.mxu0 %v3876
  %v3995 = vpop.f32.mrf.mxu0
  %v3996 = vadd.f32 0.0, %v3995
  %v3997 = vpop.f32.mrf.mxu0
  %3998 = vmatprep.mubr.f32.mxu0 0.0
  %3999 = vmatmul.mubr.f32.gmra.mxu0 %v3879
  %v4000 = vpop.f32.mrf.mxu0
  %v4001 = vadd.f32 0.0, %v4000
  %v4002 = vpop.f32.mrf.mxu0
  %4003 = vmatprep.mubr.f32.mxu0 0.0
  %4004 = vmatmul.mubr.f32.gmra.mxu0 %v3882
  %v4005 = vpop.f32.mrf.mxu0
  %v4006 = vadd.f32 0.0, %v4005
  %v4007 = vpop.f32.mrf.mxu0
  %4008 = vmatprep.mubr.f32.mxu0 0.0
  %4009 = vmatmul.mubr.f32.gmra.mxu0 %v3885
  %v4010 = vpop.f32.mrf.mxu0
  %v4011 = vadd.f32 0.0, %v4010
  %v4012 = vpop.f32.mrf.mxu0
  %4013 = vmatprep.mubr.f32.mxu0 0.0
  %4014 = vmatmul.mubr.f32.gmra.mxu0 %v3888
  %v4015 = vpop.f32.mrf.mxu0
  %v4016 = vadd.f32 0.0, %v4015
  %v4017 = vpop.f32.mrf.mxu0
  %4018 = vmatprep.mubr.f32.mxu0 0.0
  %4019 = vmatmul.mubr.f32.gmra.mxu0 %v3891
  %v4020 = vpop.f32.mrf.mxu0
  %v4021 = vadd.f32 0.0, %v4020
  %v4022 = vpop.f32.mrf.mxu0
  %4023 = vmatprep.mubr.f32.mxu0 0.0
  %4024 = vmatmul.mubr.f32.gmra.mxu0 %v3894
  %v4025 = vpop.f32.mrf.mxu0
  %v4026 = vadd.f32 0.0, %v4025
  %v4027 = vpop.f32.mrf.mxu0
  %4028 = vmatprep.mubr.f32.mxu0 0.0
  %4029 = vmatmul.mubr.f32.gmra.mxu0 %v3897
  %v4030 = vpop.f32.mrf.mxu0
  %v4031 = vadd.f32 0.0, %v4030
  %v4032 = vpop.f32.mrf.mxu0
  %4033 = vmatprep.mubr.f32.mxu0 0.0
  %4034 = vmatmul.mubr.f32.gmra.mxu0 %v3900
  %v4035 = vpop.f32.mrf.mxu0
  %v4036 = vadd.f32 0.0, %v4035
  %v4037 = vpop.f32.mrf.mxu0
  %4038 = vmatprep.mubr.f32.mxu0 0.0
  %4039 = vmatmul.mubr.f32.gmra.mxu0 %v3903
  %v4040 = vpop.f32.mrf.mxu0
  %v4041 = vadd.f32 0.0, %v4040
  %v4042 = vpop.f32.mrf.mxu0
  %4043 = vmatprep.mubr.f32.mxu0 0.0
  %4044 = vmatmul.mubr.f32.gmra.mxu0 %v3906
  %v4045 = vpop.f32.mrf.mxu0
  %v4046 = vadd.f32 0.0, %v4045
  %v4047 = vpop.f32.mrf.mxu0
  %4048 = vmatprep.mubr.f32.mxu0 0.0
  %4049 = vmatmul.mubr.f32.gmra.mxu0 %v3909
  %v4050 = vpop.f32.mrf.mxu0
  %v4051 = vadd.f32 0.0, %v4050
  %v4052 = vpop.f32.mrf.mxu0
  %4053 = vmatprep.mubr.f32.mxu0 0.0
  %4054 = vmatmul.mubr.f32.gmra.mxu0 %v3912
  %v4055 = vpop.f32.mrf.mxu0
  %v4056 = vadd.f32 0.0, %v4055
  %v4057 = vpop.f32.mrf.mxu0
  %4058 = vdwg.mxu0
  %v4059 = vadd.f32 %v3829, %v3981
  %v4060 = vadd.f32 %v3830, %v3986
  %v4061 = vadd.f32 %v3831, %v3991
  %v4062 = vadd.f32 %v3832, %v3996
  %v4063 = vadd.f32 %v3833, %v4001
  %v4064 = vadd.f32 %v3834, %v4006
  %v4065 = vadd.f32 %v3835, %v4011
  %v4066 = vadd.f32 %v3836, %v4016
  %v4067 = vadd.f32 %v3837, %v4021
  %v4068 = vadd.f32 %v3838, %v4026
  %v4069 = vadd.f32 %v3839, %v4031
  %v4070 = vadd.f32 %v3840, %v4036
  %v4071 = vadd.f32 %v3841, %v4041
  %v4072 = vadd.f32 %v3842, %v4046
  %v4073 = vadd.f32 %v3843, %v4051
  %v4074 = vadd.f32 %v3844, %v4056
  %v4075 = vld [vmem:[%s1490 + $0x2] sm:$0xff]
  %v4076 = vld [vmem:[%s1490 + $0x12] sm:$0xff]
  %v4077 = vld [vmem:[%s1490 + $0x22] sm:$0xff]
  %v4078 = vld [vmem:[%s1490 + $0x32] sm:$0xff]
  %v4079 = vld [vmem:[%s1490 + $0x42] sm:$0xff]
  %v4080 = vld [vmem:[%s1490 + $0x52] sm:$0xff]
  %v4081 = vld [vmem:[%s1490 + $0x62] sm:$0xff]
  %v4082 = vld [vmem:[%s1490 + $0x72] sm:$0xff]
  %v4083 = vld [vmem:[%s1490 + $0xa2] sm:$0xff]
  %v4084 = vld [vmem:[%s1490 + $0xb2] sm:$0xff]
  %v4085 = vld [vmem:[%s1490 + $0xc2] sm:$0xff]
  %v4086 = vld [vmem:[%s1490 + $0xd2] sm:$0xff]
  %v4087 = vld [vmem:[%s1490 + $0xe2] sm:$0xff]
  %v4088 = vld [vmem:[%s1490 + $0xf2] sm:$0xff]
  %v4089 = vld [vmem:[%s1490 + $0x102] sm:$0xff]
  %v4090 = vld [vmem:[%s1490 + $0x112] sm:$0xff]
  %s4091 = scalar_lea.vmem %s3, 256
  %v4092 = vld [vmem:[%s4091] sm:$0xff]
  %v4093 = vld [vmem:[%s4091 + $0x8] sm:$0xff]
  %v4094 = vld [vmem:[%s4091 + $0x10] sm:$0xff]
  %v4095 = vld [vmem:[%s4091 + $0x18] sm:$0xff]
  %v4097 = vsel %vm68, %v4075, 0
  %v4100 = vsel %vm68, %v4076, 0
  %v4103 = vsel %vm68, %v4077, 0
  %v4106 = vsel %vm68, %v4078, 0
  %v4109 = vsel %vm68, %v4079, 0
  %v4112 = vsel %vm68, %v4080, 0
  %v4115 = vsel %vm68, %v4081, 0
  %v4118 = vsel %vm68, %v4082, 0
  %v4121 = vsel %vm68, %v4083, 0
  %v4124 = vsel %vm68, %v4084, 0
  %v4127 = vsel %vm68, %v4085, 0
  %v4130 = vsel %vm68, %v4086, 0
  %v4133 = vsel %vm68, %v4087, 0
  %v4136 = vsel %vm68, %v4088, 0
  %v4139 = vsel %vm68, %v4089, 0
  %v4142 = vsel %vm68, %v4090, 0
  %4144 = vmatprep.subr.mxu0 0.0
  %4145 = vmatpush1.msra.mxu0 0.0
  %4146 = vmatprep.subr.mxu0 0.0
  %4147 = vmatpush1.msra.mxu0 0.0
  %4148 = vmatprep.subr.mxu0 0.0
  %4149 = vmatpush1.msra.mxu0 0.0
  %4150 = vmatprep.subr.mxu0 0.0
  %4151 = vmatpush1.msra.mxu0 0.0
  %4152 = vmatprep.subr.mxu0 0.0
  %4153 = vmatpush1.msra.mxu0 0.0
  %4154 = vmatprep.subr.mxu0 0.0
  %4155 = vmatpush1.msra.mxu0 0.0
  %4156 = vmatprep.subr.mxu0 0.0
  %4157 = vmatpush1.msra.mxu0 0.0
  %4158 = vmatprep.subr.mxu0 0.0
  %4159 = vmatpush1.msra.mxu0 0.0
  %4160 = vmatprep.subr.mxu0 0.0
  %4161 = vmatpush1.msra.mxu0 0.0
  %4162 = vmatprep.subr.mxu0 0.0
  %4163 = vmatpush1.msra.mxu0 0.0
  %4164 = vmatprep.subr.mxu0 0.0
  %4165 = vmatpush1.msra.mxu0 0.0
  %4166 = vmatprep.subr.mxu0 0.0
  %4167 = vmatpush1.msra.mxu0 0.0
  %4168 = vmatprep.subr.mxu0 0.0
  %4169 = vmatpush1.msra.mxu0 %v4095
  %4170 = vmatprep.subr.mxu0 0.0
  %4171 = vmatpush1.msra.mxu0 %v4094
  %4172 = vmatprep.subr.mxu0 0.0
  %4173 = vmatpush1.msra.mxu0 %v4093
  %4174 = vmatprep.subr.mxu0 0.0
  %4175 = vmatpush1.msra.mxu0 %v4092
  %4176 = vmatprep.subr.mxu0 0.0
  %4177 = vmatpush2.msra.mxu0 0.0
  %4178 = vmatprep.subr.mxu0 0.0
  %4179 = vmatpush2.msra.mxu0 0.0
  %4180 = vmatprep.subr.mxu0 0.0
  %4181 = vmatpush2.msra.mxu0 0.0
  %4182 = vmatprep.subr.mxu0 0.0
  %4183 = vmatpush2.msra.mxu0 0.0
  %4184 = vmatprep.subr.mxu0 0.0
  %4185 = vmatpush2.msra.mxu0 0.0
  %4186 = vmatprep.subr.mxu0 0.0
  %4187 = vmatpush2.msra.mxu0 0.0
  %4188 = vmatprep.subr.mxu0 0.0
  %4189 = vmatpush2.msra.mxu0 0.0
  %4190 = vmatprep.subr.mxu0 0.0
  %4191 = vmatpush2.msra.mxu0 0.0
  %4192 = vmatprep.subr.mxu0 0.0
  %4193 = vmatpush2.msra.mxu0 0.0
  %4194 = vmatprep.subr.mxu0 0.0
  %4195 = vmatpush2.msra.mxu0 0.0
  %4196 = vmatprep.subr.mxu0 0.0
  %4197 = vmatpush2.msra.mxu0 0.0
  %4198 = vmatprep.subr.mxu0 0.0
  %4199 = vmatpush2.msra.mxu0 0.0
  %4200 = vmatprep.subr.mxu0 0.0
  %4201 = vmatpush2.msra.mxu0 0.0
  %4202 = vmatprep.subr.mxu0 0.0
  %4203 = vmatpush2.msra.mxu0 0.0
  %4204 = vmatprep.subr.mxu0 0.0
  %4205 = vmatpush2.msra.mxu0 0.0
  %4206 = vmatprep.subr.mxu0 0.0
  %4207 = vmatpush2.msra.mxu0 0.0
  %4208 = vmatprep.mubr.f32.mxu0 0.0
  %4209 = vmatmul.mubr.f32.gmra.mxu0 %v4097
  %v4210 = vpop.f32.mrf.mxu0
  %v4211 = vadd.f32 0.0, %v4210
  %v4212 = vpop.f32.mrf.mxu0
  %4213 = vmatprep.mubr.f32.mxu0 0.0
  %4214 = vmatmul.mubr.f32.gmra.mxu0 %v4100
  %v4215 = vpop.f32.mrf.mxu0
  %v4216 = vadd.f32 0.0, %v4215
  %v4217 = vpop.f32.mrf.mxu0
  %4218 = vmatprep.mubr.f32.mxu0 0.0
  %4219 = vmatmul.mubr.f32.gmra.mxu0 %v4103
  %v4220 = vpop.f32.mrf.mxu0
  %v4221 = vadd.f32 0.0, %v4220
  %v4222 = vpop.f32.mrf.mxu0
  %4223 = vmatprep.mubr.f32.mxu0 0.0
  %4224 = vmatmul.mubr.f32.gmra.mxu0 %v4106
  %v4225 = vpop.f32.mrf.mxu0
  %v4226 = vadd.f32 0.0, %v4225
  %v4227 = vpop.f32.mrf.mxu0
  %4228 = vmatprep.mubr.f32.mxu0 0.0
  %4229 = vmatmul.mubr.f32.gmra.mxu0 %v4109
  %v4230 = vpop.f32.mrf.mxu0
  %v4231 = vadd.f32 0.0, %v4230
  %v4232 = vpop.f32.mrf.mxu0
  %4233 = vmatprep.mubr.f32.mxu0 0.0
  %4234 = vmatmul.mubr.f32.gmra.mxu0 %v4112
  %v4235 = vpop.f32.mrf.mxu0
  %v4236 = vadd.f32 0.0, %v4235
  %v4237 = vpop.f32.mrf.mxu0
  %4238 = vmatprep.mubr.f32.mxu0 0.0
  %4239 = vmatmul.mubr.f32.gmra.mxu0 %v4115
  %v4240 = vpop.f32.mrf.mxu0
  %v4241 = vadd.f32 0.0, %v4240
  %v4242 = vpop.f32.mrf.mxu0
  %4243 = vmatprep.mubr.f32.mxu0 0.0
  %4244 = vmatmul.mubr.f32.gmra.mxu0 %v4118
  %v4245 = vpop.f32.mrf.mxu0
  %v4246 = vadd.f32 0.0, %v4245
  %v4247 = vpop.f32.mrf.mxu0
  %4248 = vmatprep.mubr.f32.mxu0 0.0
  %4249 = vmatmul.mubr.f32.gmra.mxu0 %v4121
  %v4250 = vpop.f32.mrf.mxu0
  %v4251 = vadd.f32 0.0, %v4250
  %v4252 = vpop.f32.mrf.mxu0
  %4253 = vmatprep.mubr.f32.mxu0 0.0
  %4254 = vmatmul.mubr.f32.gmra.mxu0 %v4124
  %v4255 = vpop.f32.mrf.mxu0
  %v4256 = vadd.f32 0.0, %v4255
  %v4257 = vpop.f32.mrf.mxu0
  %4258 = vmatprep.mubr.f32.mxu0 0.0
  %4259 = vmatmul.mubr.f32.gmra.mxu0 %v4127
  %v4260 = vpop.f32.mrf.mxu0
  %v4261 = vadd.f32 0.0, %v4260
  %v4262 = vpop.f32.mrf.mxu0
  %4263 = vmatprep.mubr.f32.mxu0 0.0
  %4264 = vmatmul.mubr.f32.gmra.mxu0 %v4130
  %v4265 = vpop.f32.mrf.mxu0
  %v4266 = vadd.f32 0.0, %v4265
  %v4267 = vpop.f32.mrf.mxu0
  %4268 = vmatprep.mubr.f32.mxu0 0.0
  %4269 = vmatmul.mubr.f32.gmra.mxu0 %v4133
  %v4270 = vpop.f32.mrf.mxu0
  %v4271 = vadd.f32 0.0, %v4270
  %v4272 = vpop.f32.mrf.mxu0
  %4273 = vmatprep.mubr.f32.mxu0 0.0
  %4274 = vmatmul.mubr.f32.gmra.mxu0 %v4136
  %v4275 = vpop.f32.mrf.mxu0
  %v4276 = vadd.f32 0.0, %v4275
  %v4277 = vpop.f32.mrf.mxu0
  %4278 = vmatprep.mubr.f32.mxu0 0.0
  %4279 = vmatmul.mubr.f32.gmra.mxu0 %v4139
  %v4280 = vpop.f32.mrf.mxu0
  %v4281 = vadd.f32 0.0, %v4280
  %v4282 = vpop.f32.mrf.mxu0
  %4283 = vmatprep.mubr.f32.mxu0 0.0
  %4284 = vmatmul.mubr.f32.gmra.mxu0 %v4142
  %v4285 = vpop.f32.mrf.mxu0
  %v4286 = vadd.f32 0.0, %v4285
  %v4287 = vpop.f32.mrf.mxu0
  %4288 = vdwg.mxu0
  %v4289 = vadd.f32 %v4059, %v4211
  %v4290 = vadd.f32 %v4060, %v4216
  %v4291 = vadd.f32 %v4061, %v4221
  %v4292 = vadd.f32 %v4062, %v4226
  %v4293 = vadd.f32 %v4063, %v4231
  %v4294 = vadd.f32 %v4064, %v4236
  %v4295 = vadd.f32 %v4065, %v4241
  %v4296 = vadd.f32 %v4066, %v4246
  %v4297 = vadd.f32 %v4067, %v4251
  %v4298 = vadd.f32 %v4068, %v4256
  %v4299 = vadd.f32 %v4069, %v4261
  %v4300 = vadd.f32 %v4070, %v4266
  %v4301 = vadd.f32 %v4071, %v4271
  %v4302 = vadd.f32 %v4072, %v4276
  %v4303 = vadd.f32 %v4073, %v4281
  %v4304 = vadd.f32 %v4074, %v4286
  %v4305 = vld [vmem:[%s4] sm:$0x1]
  %v4307 = vlaneseq
  %v4308 = vshrl.u32 %v4307, 7
  %v4309 = vsub.s32 0, %v4308
  %v4310 = vrot.slane %v4305, %v4309
  %v4312 = vadd.f32 %v4289, %v4310
  %v4313 = vadd.f32 %v4290, %v4310
  %v4314 = vadd.f32 %v4291, %v4310
  %v4315 = vadd.f32 %v4292, %v4310
  %v4316 = vadd.f32 %v4293, %v4310
  %v4317 = vadd.f32 %v4294, %v4310
  %v4318 = vadd.f32 %v4295, %v4310
  %v4319 = vadd.f32 %v4296, %v4310
  %v4320 = vadd.f32 %v4297, %v4310
  %v4321 = vadd.f32 %v4298, %v4310
  %v4322 = vadd.f32 %v4299, %v4310
  %v4323 = vadd.f32 %v4300, %v4310
  %v4324 = vadd.f32 %v4301, %v4310
  %v4325 = vadd.f32 %v4302, %v4310
  %v4326 = vadd.f32 %v4303, %v4310
  %v4327 = vadd.f32 %v4304, %v4310
  %v4328 = vsel %vm68, %v4312, 0.0
  %v4329 = vsel %vm68, %v4313, 0.0
  %v4330 = vadd.f32 %v4328, %v4329
  %v4331 = vsel %vm68, %v4314, 0.0
  %v4332 = vadd.f32 %v4330, %v4331
  %v4333 = vsel %vm68, %v4315, 0.0
  %v4334 = vadd.f32 %v4332, %v4333
  %v4335 = vsel %vm68, %v4316, 0.0
  %v4336 = vadd.f32 %v4334, %v4335
  %v4337 = vsel %vm68, %v4317, 0.0
  %v4338 = vadd.f32 %v4336, %v4337
  %v4339 = vsel %vm68, %v4318, 0.0
  %v4340 = vadd.f32 %v4338, %v4339
  %v4341 = vsel %vm68, %v4319, 0.0
  %v4342 = vadd.f32 %v4340, %v4341
  %v4343 = vsel %vm68, %v4320, 0.0
  %v4344 = vadd.f32 %v4342, %v4343
  %v4345 = vsel %vm68, %v4321, 0.0
  %v4346 = vadd.f32 %v4344, %v4345
  %v4347 = vsel %vm68, %v4322, 0.0
  %v4348 = vadd.f32 %v4346, %v4347
  %v4349 = vsel %vm68, %v4323, 0.0
  %v4350 = vadd.f32 %v4348, %v4349
  %v4351 = vsel %vm68, %v4324, 0.0
  %v4352 = vadd.f32 %v4350, %v4351
  %v4353 = vsel %vm68, %v4325, 0.0
  %v4354 = vadd.f32 %v4352, %v4353
  %v4355 = vsel %vm68, %v4326, 0.0
  %v4356 = vadd.f32 %v4354, %v4355
  %v4357 = vsel %vm68, %v4327, 0.0
  %v4358 = vadd.f32 %v4356, %v4357
  %v4359 = vrot.slane %v4358, 4
  %v4360 = vadd.f32 %v4358, %v4359
  %v4361 = vrot.slane %v4360, 2
  %v4362 = vadd.f32 %v4360, %v4361
  %v4363 = vrot.slane %v4362, 1
  %v4364 = vadd.f32 %v4362, %v4363
  %v4365 = vrcp.pop 128.0
  %v4366 = vmul.f32 %v4364, %v4365
  %v4367 = vsub.f32 %v4312, %v4366
  %v4368 = vsub.f32 %v4313, %v4366
  %v4369 = vsub.f32 %v4314, %v4366
  %v4370 = vsub.f32 %v4315, %v4366
  %v4371 = vsub.f32 %v4316, %v4366
  %v4372 = vsub.f32 %v4317, %v4366
  %v4373 = vsub.f32 %v4318, %v4366
  %v4374 = vsub.f32 %v4319, %v4366
  %v4375 = vsub.f32 %v4320, %v4366
  %v4376 = vsub.f32 %v4321, %v4366
  %v4377 = vsub.f32 %v4322, %v4366
  %v4378 = vsub.f32 %v4323, %v4366
  %v4379 = vsub.f32 %v4324, %v4366
  %v4380 = vsub.f32 %v4325, %v4366
  %v4381 = vsub.f32 %v4326, %v4366
  %v4382 = vsub.f32 %v4327, %v4366
  %v4383 = vmul.f32 %v4367, %v4367
  %v4384 = vmul.f32 %v4368, %v4368
  %v4385 = vmul.f32 %v4369, %v4369
  %v4386 = vmul.f32 %v4370, %v4370
  %v4387 = vmul.f32 %v4371, %v4371
  %v4388 = vmul.f32 %v4372, %v4372
  %v4389 = vmul.f32 %v4373, %v4373
  %v4390 = vmul.f32 %v4374, %v4374
  %v4391 = vmul.f32 %v4375, %v4375
  %v4392 = vmul.f32 %v4376, %v4376
  %v4393 = vmul.f32 %v4377, %v4377
  %v4394 = vmul.f32 %v4378, %v4378
  %v4395 = vmul.f32 %v4379, %v4379
  %v4396 = vmul.f32 %v4380, %v4380
  %v4397 = vmul.f32 %v4381, %v4381
  %v4398 = vmul.f32 %v4382, %v4382
  %v4399 = vsel %vm68, %v4383, 0.0
  %v4400 = vsel %vm68, %v4384, 0.0
  %v4401 = vadd.f32 %v4399, %v4400
  %v4402 = vsel %vm68, %v4385, 0.0
  %v4403 = vadd.f32 %v4401, %v4402
  %v4404 = vsel %vm68, %v4386, 0.0
  %v4405 = vadd.f32 %v4403, %v4404
  %v4406 = vsel %vm68, %v4387, 0.0
  %v4407 = vadd.f32 %v4405, %v4406
  %v4408 = vsel %vm68, %v4388, 0.0
  %v4409 = vadd.f32 %v4407, %v4408
  %v4410 = vsel %vm68, %v4389, 0.0
  %v4411 = vadd.f32 %v4409, %v4410
  %v4412 = vsel %vm68, %v4390, 0.0
  %v4413 = vadd.f32 %v4411, %v4412
  %v4414 = vsel %vm68, %v4391, 0.0
  %v4415 = vadd.f32 %v4413, %v4414
  %v4416 = vsel %vm68, %v4392, 0.0
  %v4417 = vadd.f32 %v4415, %v4416
  %v4418 = vsel %vm68, %v4393, 0.0
  %v4419 = vadd.f32 %v4417, %v4418
  %v4420 = vsel %vm68, %v4394, 0.0
  %v4421 = vadd.f32 %v4419, %v4420
  %v4422 = vsel %vm68, %v4395, 0.0
  %v4423 = vadd.f32 %v4421, %v4422
  %v4424 = vsel %vm68, %v4396, 0.0
  %v4425 = vadd.f32 %v4423, %v4424
  %v4426 = vsel %vm68, %v4397, 0.0
  %v4427 = vadd.f32 %v4425, %v4426
  %v4428 = vsel %vm68, %v4398, 0.0
  %v4429 = vadd.f32 %v4427, %v4428
  %v4430 = vrot.slane %v4429, 4
  %v4431 = vadd.f32 %v4429, %v4430
  %v4432 = vrot.slane %v4431, 2
  %v4433 = vadd.f32 %v4431, %v4432
  %v4434 = vrot.slane %v4433, 1
  %v4435 = vadd.f32 %v4433, %v4434
  %v4436 = vmul.f32 %v4435, %v4365
  %v4437 = vadd.f32 %v4436, 1e-05
  %v4438 = vrsqrt.pop %v4437
  %v4439 = vmul.f32 %v4367, %v4438
  %v4440 = vmul.f32 %v4368, %v4438
  %v4441 = vmul.f32 %v4369, %v4438
  %v4442 = vmul.f32 %v4370, %v4438
  %v4443 = vmul.f32 %v4371, %v4438
  %v4444 = vmul.f32 %v4372, %v4438
  %v4445 = vmul.f32 %v4373, %v4438
  %v4446 = vmul.f32 %v4374, %v4438
  %v4447 = vmul.f32 %v4375, %v4438
  %v4448 = vmul.f32 %v4376, %v4438
  %v4449 = vmul.f32 %v4377, %v4438
  %v4450 = vmul.f32 %v4378, %v4438
  %v4451 = vmul.f32 %v4379, %v4438
  %v4452 = vmul.f32 %v4380, %v4438
  %v4453 = vmul.f32 %v4381, %v4438
  %v4454 = vmul.f32 %v4382, %v4438
  %v4455 = vld [vmem:[%s5] sm:$0x1]
  %v4457 = vlaneseq
  %v4458 = vshrl.u32 %v4457, 7
  %v4459 = vsub.s32 0, %v4458
  %v4460 = vrot.slane %v4455, %v4459
  %v4462 = vmul.f32 %v4439, %v4460
  %v4463 = vmul.f32 %v4440, %v4460
  %v4464 = vmul.f32 %v4441, %v4460
  %v4465 = vmul.f32 %v4442, %v4460
  %v4466 = vmul.f32 %v4443, %v4460
  %v4467 = vmul.f32 %v4444, %v4460
  %v4468 = vmul.f32 %v4445, %v4460
  %v4469 = vmul.f32 %v4446, %v4460
  %v4470 = vmul.f32 %v4447, %v4460
  %v4471 = vmul.f32 %v4448, %v4460
  %v4472 = vmul.f32 %v4449, %v4460
  %v4473 = vmul.f32 %v4450, %v4460
  %v4474 = vmul.f32 %v4451, %v4460
  %v4475 = vmul.f32 %v4452, %v4460
  %v4476 = vmul.f32 %v4453, %v4460
  %v4477 = vmul.f32 %v4454, %v4460
  %v4478 = vld [vmem:[%s6] sm:$0x1]
  %v4480 = vlaneseq
  %v4481 = vshrl.u32 %v4480, 7
  %v4482 = vsub.s32 0, %v4481
  %v4483 = vrot.slane %v4478, %v4482
  %v4485 = vadd.f32 %v4462, %v4483
  %v4486 = vadd.f32 %v4463, %v4483
  %v4487 = vadd.f32 %v4464, %v4483
  %v4488 = vadd.f32 %v4465, %v4483
  %v4489 = vadd.f32 %v4466, %v4483
  %v4490 = vadd.f32 %v4467, %v4483
  %v4491 = vadd.f32 %v4468, %v4483
  %v4492 = vadd.f32 %v4469, %v4483
  %v4493 = vadd.f32 %v4470, %v4483
  %v4494 = vadd.f32 %v4471, %v4483
  %v4495 = vadd.f32 %v4472, %v4483
  %v4496 = vadd.f32 %v4473, %v4483
  %v4497 = vadd.f32 %v4474, %v4483
  %v4498 = vadd.f32 %v4475, %v4483
  %v4499 = vadd.f32 %v4476, %v4483
  %v4500 = vadd.f32 %v4477, %v4483
  %vm4501 = vcmp.gt.f32.partialorder %v4485, 0.0
  %vm4502 = vcmp.gt.f32.partialorder %v4486, 0.0
  %vm4503 = vcmp.gt.f32.partialorder %v4487, 0.0
  %vm4504 = vcmp.gt.f32.partialorder %v4488, 0.0
  %vm4505 = vcmp.gt.f32.partialorder %v4489, 0.0
  %vm4506 = vcmp.gt.f32.partialorder %v4490, 0.0
  %vm4507 = vcmp.gt.f32.partialorder %v4491, 0.0
  %vm4508 = vcmp.gt.f32.partialorder %v4492, 0.0
  %vm4509 = vcmp.gt.f32.partialorder %v4493, 0.0
  %vm4510 = vcmp.gt.f32.partialorder %v4494, 0.0
  %vm4511 = vcmp.gt.f32.partialorder %v4495, 0.0
  %vm4512 = vcmp.gt.f32.partialorder %v4496, 0.0
  %vm4513 = vcmp.gt.f32.partialorder %v4497, 0.0
  %vm4514 = vcmp.gt.f32.partialorder %v4498, 0.0
  %vm4515 = vcmp.gt.f32.partialorder %v4499, 0.0
  %vm4516 = vcmp.gt.f32.partialorder %v4500, 0.0
  %v4517 = vmul.f32 %v4485, 0.01
  %v4518 = vmul.f32 %v4486, 0.01
  %v4519 = vmul.f32 %v4487, 0.01
  %v4520 = vmul.f32 %v4488, 0.01
  %v4521 = vmul.f32 %v4489, 0.01
  %v4522 = vmul.f32 %v4490, 0.01
  %v4523 = vmul.f32 %v4491, 0.01
  %v4524 = vmul.f32 %v4492, 0.01
  %v4525 = vmul.f32 %v4493, 0.01
  %v4526 = vmul.f32 %v4494, 0.01
  %v4527 = vmul.f32 %v4495, 0.01
  %v4528 = vmul.f32 %v4496, 0.01
  %v4529 = vmul.f32 %v4497, 0.01
  %v4530 = vmul.f32 %v4498, 0.01
  %v4531 = vmul.f32 %v4499, 0.01
  %v4532 = vmul.f32 %v4500, 0.01
  %v4533 = vsel %vm4501, %v4485, %v4517
  %v4534 = vsel %vm4502, %v4486, %v4518
  %v4535 = vsel %vm4503, %v4487, %v4519
  %v4536 = vsel %vm4504, %v4488, %v4520
  %v4537 = vsel %vm4505, %v4489, %v4521
  %v4538 = vsel %vm4506, %v4490, %v4522
  %v4539 = vsel %vm4507, %v4491, %v4523
  %v4540 = vsel %vm4508, %v4492, %v4524
  %v4541 = vsel %vm4509, %v4493, %v4525
  %v4542 = vsel %vm4510, %v4494, %v4526
  %v4543 = vsel %vm4511, %v4495, %v4527
  %v4544 = vsel %vm4512, %v4496, %v4528
  %v4545 = vsel %vm4513, %v4497, %v4529
  %v4546 = vsel %vm4514, %v4498, %v4530
  %v4547 = vsel %vm4515, %v4499, %v4531
  %v4548 = vsel %vm4516, %v4500, %v4532
  %4549 = vst.msk [vmem:[%s126 + $0x1] sm:$0xff] %vm68, %v4533
  %4550 = vst.msk [vmem:[%s126 + $0x11] sm:$0xff] %vm68, %v4534
  %4551 = vst.msk [vmem:[%s126 + $0x21] sm:$0xff] %vm68, %v4535
  %4552 = vst.msk [vmem:[%s126 + $0x31] sm:$0xff] %vm68, %v4536
  %4553 = vst.msk [vmem:[%s126 + $0x41] sm:$0xff] %vm68, %v4537
  %4554 = vst.msk [vmem:[%s126 + $0x51] sm:$0xff] %vm68, %v4538
  %4555 = vst.msk [vmem:[%s126 + $0x61] sm:$0xff] %vm68, %v4539
  %4556 = vst.msk [vmem:[%s126 + $0x71] sm:$0xff] %vm68, %v4540
  %4557 = vst.msk [vmem:[%s126 + $0xa1] sm:$0xff] %vm68, %v4541
  %4558 = vst.msk [vmem:[%s126 + $0xb1] sm:$0xff] %vm68, %v4542
  %4559 = vst.msk [vmem:[%s126 + $0xc1] sm:$0xff] %vm68, %v4543
  %4560 = vst.msk [vmem:[%s126 + $0xd1] sm:$0xff] %vm68, %v4544
  %4561 = vst.msk [vmem:[%s126 + $0xe1] sm:$0xff] %vm68, %v4545
  %4562 = vst.msk [vmem:[%s126 + $0xf1] sm:$0xff] %vm68, %v4546
  %4563 = vst.msk [vmem:[%s126 + $0x101] sm:$0xff] %vm68, %v4547
  %4564 = vst.msk [vmem:[%s126 + $0x111] sm:$0xff] %vm68, %v4548
  %v4565 = vld [vmem:[#allocation2] sm:$0xff]
  %v4566 = vld [vmem:[#allocation2 + $0x10] sm:$0xff]
  %v4567 = vld [vmem:[#allocation2 + $0x20] sm:$0xff]
  %v4568 = vld [vmem:[#allocation2 + $0x30] sm:$0xff]
  %v4569 = vld [vmem:[#allocation2 + $0x40] sm:$0xff]
  %v4570 = vld [vmem:[#allocation2 + $0x50] sm:$0xff]
  %v4571 = vld [vmem:[#allocation2 + $0x60] sm:$0xff]
  %v4572 = vld [vmem:[#allocation2 + $0x70] sm:$0xff]
  %v4573 = vld [vmem:[#allocation2 + $0xa0] sm:$0xff]
  %v4574 = vld [vmem:[#allocation2 + $0xb0] sm:$0xff]
  %v4575 = vld [vmem:[#allocation2 + $0xc0] sm:$0xff]
  %v4576 = vld [vmem:[#allocation2 + $0xd0] sm:$0xff]
  %v4577 = vld [vmem:[#allocation2 + $0xe0] sm:$0xff]
  %v4578 = vld [vmem:[#allocation2 + $0xf0] sm:$0xff]
  %v4579 = vld [vmem:[#allocation2 + $0x100] sm:$0xff]
  %v4580 = vld [vmem:[#allocation2 + $0x110] sm:$0xff]
  %v4581 = vld [vmem:[%s7] sm:$0xff]
  %v4582 = vld [vmem:[%s7 + $0x8] sm:$0xff]
  %v4583 = vld [vmem:[%s7 + $0x10] sm:$0xff]
  %v4584 = vld [vmem:[%s7 + $0x18] sm:$0xff]
  %v4585 = vld [vmem:[#allocation2 + $0x1] sm:$0xff]
  %v4586 = vld [vmem:[#allocation2 + $0x11] sm:$0xff]
  %v4587 = vld [vmem:[#allocation2 + $0x21] sm:$0xff]
  %v4588 = vld [vmem:[#allocation2 + $0x31] sm:$0xff]
  %v4589 = vld [vmem:[#allocation2 + $0x41] sm:$0xff]
  %v4590 = vld [vmem:[#allocation2 + $0x51] sm:$0xff]
  %v4591 = vld [vmem:[#allocation2 + $0x61] sm:$0xff]
  %v4592 = vld [vmem:[#allocation2 + $0x71] sm:$0xff]
  %v4593 = vld [vmem:[#allocation2 + $0xa1] sm:$0xff]
  %v4594 = vld [vmem:[#allocation2 + $0xb1] sm:$0xff]
  %v4595 = vld [vmem:[#allocation2 + $0xc1] sm:$0xff]
  %v4596 = vld [vmem:[#allocation2 + $0xd1] sm:$0xff]
  %v4597 = vld [vmem:[#allocation2 + $0xe1] sm:$0xff]
  %v4598 = vld [vmem:[#allocation2 + $0xf1] sm:$0xff]
  %v4599 = vld [vmem:[#allocation2 + $0x101] sm:$0xff]
  %v4600 = vld [vmem:[#allocation2 + $0x111] sm:$0xff]
  %s4601 = scalar_lea.vmem %s7, 32
  %v4602 = vld [vmem:[%s4601] sm:$0xff]
  %v4603 = vld [vmem:[%s4601 + $0x8] sm:$0xff]
  %v4604 = vld [vmem:[%s4601 + $0x10] sm:$0xff]
  %v4605 = vld [vmem:[%s4601 + $0x18] sm:$0xff]
  %v4607 = vsel %vm68, %v4585, 0
  %v4610 = vsel %vm68, %v4586, 0
  %v4613 = vsel %vm68, %v4587, 0
  %v4616 = vsel %vm68, %v4588, 0
  %v4619 = vsel %vm68, %v4589, 0
  %v4622 = vsel %vm68, %v4590, 0
  %v4625 = vsel %vm68, %v4591, 0
  %v4628 = vsel %vm68, %v4592, 0
  %v4631 = vsel %vm68, %v4593, 0
  %v4634 = vsel %vm68, %v4594, 0
  %v4637 = vsel %vm68, %v4595, 0
  %v4640 = vsel %vm68, %v4596, 0
  %v4643 = vsel %vm68, %v4597, 0
  %v4646 = vsel %vm68, %v4598, 0
  %v4649 = vsel %vm68, %v4599, 0
  %v4652 = vsel %vm68, %v4600, 0
  %4654 = vmatprep.subr.mxu0 0.0
  %4655 = vmatpush1.msra.mxu0 0.0
  %4656 = vmatprep.subr.mxu0 0.0
  %4657 = vmatpush1.msra.mxu0 0.0
  %4658 = vmatprep.subr.mxu0 0.0
  %4659 = vmatpush1.msra.mxu0 0.0
  %4660 = vmatprep.subr.mxu0 0.0
  %4661 = vmatpush1.msra.mxu0 0.0
  %4662 = vmatprep.subr.mxu0 0.0
  %4663 = vmatpush1.msra.mxu0 0.0
  %4664 = vmatprep.subr.mxu0 0.0
  %4665 = vmatpush1.msra.mxu0 0.0
  %4666 = vmatprep.subr.mxu0 0.0
  %4667 = vmatpush1.msra.mxu0 0.0
  %4668 = vmatprep.subr.mxu0 0.0
  %4669 = vmatpush1.msra.mxu0 0.0
  %4670 = vmatprep.subr.mxu0 0.0
  %4671 = vmatpush1.msra.mxu0 0.0
  %4672 = vmatprep.subr.mxu0 0.0
  %4673 = vmatpush1.msra.mxu0 0.0
  %4674 = vmatprep.subr.mxu0 0.0
  %4675 = vmatpush1.msra.mxu0 0.0
  %4676 = vmatprep.subr.mxu0 0.0
  %4677 = vmatpush1.msra.mxu0 0.0
  %4678 = vmatprep.subr.mxu0 0.0
  %4679 = vmatpush1.msra.mxu0 %v4605
  %4680 = vmatprep.subr.mxu0 0.0
  %4681 = vmatpush1.msra.mxu0 %v4604
  %4682 = vmatprep.subr.mxu0 0.0
  %4683 = vmatpush1.msra.mxu0 %v4603
  %4684 = vmatprep.subr.mxu0 0.0
  %4685 = vmatpush1.msra.mxu0 %v4602
  %4686 = vmatprep.subr.mxu0 0.0
  %4687 = vmatpush2.msra.mxu0 0.0
  %4688 = vmatprep.subr.mxu0 0.0
  %4689 = vmatpush2.msra.mxu0 0.0
  %4690 = vmatprep.subr.mxu0 0.0
  %4691 = vmatpush2.msra.mxu0 0.0
  %4692 = vmatprep.subr.mxu0 0.0
  %4693 = vmatpush2.msra.mxu0 0.0
  %4694 = vmatprep.subr.mxu0 0.0
  %4695 = vmatpush2.msra.mxu0 0.0
  %4696 = vmatprep.subr.mxu0 0.0
  %4697 = vmatpush2.msra.mxu0 0.0
  %4698 = vmatprep.subr.mxu0 0.0
  %4699 = vmatpush2.msra.mxu0 0.0
  %4700 = vmatprep.subr.mxu0 0.0
  %4701 = vmatpush2.msra.mxu0 0.0
  %4702 = vmatprep.subr.mxu0 0.0
  %4703 = vmatpush2.msra.mxu0 0.0
  %4704 = vmatprep.subr.mxu0 0.0
  %4705 = vmatpush2.msra.mxu0 0.0
  %4706 = vmatprep.subr.mxu0 0.0
  %4707 = vmatpush2.msra.mxu0 0.0
  %4708 = vmatprep.subr.mxu0 0.0
  %4709 = vmatpush2.msra.mxu0 0.0
  %4710 = vmatprep.subr.mxu0 0.0
  %4711 = vmatpush2.msra.mxu0 0.0
  %4712 = vmatprep.subr.mxu0 0.0
  %4713 = vmatpush2.msra.mxu0 0.0
  %4714 = vmatprep.subr.mxu0 0.0
  %4715 = vmatpush2.msra.mxu0 0.0
  %4716 = vmatprep.subr.mxu0 0.0
  %4717 = vmatpush2.msra.mxu0 0.0
  %4718 = vmatprep.mubr.f32.mxu0 0.0
  %4719 = vmatmul.mubr.f32.gmra.mxu0 %v4607
  %v4720 = vpop.f32.mrf.mxu0
  %v4721 = vadd.f32 0.0, %v4720
  %v4722 = vpop.f32.mrf.mxu0
  %4723 = vmatprep.mubr.f32.mxu0 0.0
  %4724 = vmatmul.mubr.f32.gmra.mxu0 %v4610
  %v4725 = vpop.f32.mrf.mxu0
  %v4726 = vadd.f32 0.0, %v4725
  %v4727 = vpop.f32.mrf.mxu0
  %4728 = vmatprep.mubr.f32.mxu0 0.0
  %4729 = vmatmul.mubr.f32.gmra.mxu0 %v4613
  %v4730 = vpop.f32.mrf.mxu0
  %v4731 = vadd.f32 0.0, %v4730
  %v4732 = vpop.f32.mrf.mxu0
  %4733 = vmatprep.mubr.f32.mxu0 0.0
  %4734 = vmatmul.mubr.f32.gmra.mxu0 %v4616
  %v4735 = vpop.f32.mrf.mxu0
  %v4736 = vadd.f32 0.0, %v4735
  %v4737 = vpop.f32.mrf.mxu0
  %4738 = vmatprep.mubr.f32.mxu0 0.0
  %4739 = vmatmul.mubr.f32.gmra.mxu0 %v4619
  %v4740 = vpop.f32.mrf.mxu0
  %v4741 = vadd.f32 0.0, %v4740
  %v4742 = vpop.f32.mrf.mxu0
  %4743 = vmatprep.mubr.f32.mxu0 0.0
  %4744 = vmatmul.mubr.f32.gmra.mxu0 %v4622
  %v4745 = vpop.f32.mrf.mxu0
  %v4746 = vadd.f32 0.0, %v4745
  %v4747 = vpop.f32.mrf.mxu0
  %4748 = vmatprep.mubr.f32.mxu0 0.0
  %4749 = vmatmul.mubr.f32.gmra.mxu0 %v4625
  %v4750 = vpop.f32.mrf.mxu0
  %v4751 = vadd.f32 0.0, %v4750
  %v4752 = vpop.f32.mrf.mxu0
  %4753 = vmatprep.mubr.f32.mxu0 0.0
  %4754 = vmatmul.mubr.f32.gmra.mxu0 %v4628
  %v4755 = vpop.f32.mrf.mxu0
  %v4756 = vadd.f32 0.0, %v4755
  %v4757 = vpop.f32.mrf.mxu0
  %4758 = vmatprep.mubr.f32.mxu0 0.0
  %4759 = vmatmul.mubr.f32.gmra.mxu0 %v4631
  %v4760 = vpop.f32.mrf.mxu0
  %v4761 = vadd.f32 0.0, %v4760
  %v4762 = vpop.f32.mrf.mxu0
  %4763 = vmatprep.mubr.f32.mxu0 0.0
  %4764 = vmatmul.mubr.f32.gmra.mxu0 %v4634
  %v4765 = vpop.f32.mrf.mxu0
  %v4766 = vadd.f32 0.0, %v4765
  %v4767 = vpop.f32.mrf.mxu0
  %4768 = vmatprep.mubr.f32.mxu0 0.0
  %4769 = vmatmul.mubr.f32.gmra.mxu0 %v4637
  %v4770 = vpop.f32.mrf.mxu0
  %v4771 = vadd.f32 0.0, %v4770
  %v4772 = vpop.f32.mrf.mxu0
  %4773 = vmatprep.mubr.f32.mxu0 0.0
  %4774 = vmatmul.mubr.f32.gmra.mxu0 %v4640
  %v4775 = vpop.f32.mrf.mxu0
  %v4776 = vadd.f32 0.0, %v4775
  %v4777 = vpop.f32.mrf.mxu0
  %4778 = vmatprep.mubr.f32.mxu0 0.0
  %4779 = vmatmul.mubr.f32.gmra.mxu0 %v4643
  %v4780 = vpop.f32.mrf.mxu0
  %v4781 = vadd.f32 0.0, %v4780
  %v4782 = vpop.f32.mrf.mxu0
  %4783 = vmatprep.mubr.f32.mxu0 0.0
  %4784 = vmatmul.mubr.f32.gmra.mxu0 %v4646
  %v4785 = vpop.f32.mrf.mxu0
  %v4786 = vadd.f32 0.0, %v4785
  %v4787 = vpop.f32.mrf.mxu0
  %4788 = vmatprep.mubr.f32.mxu0 0.0
  %4789 = vmatmul.mubr.f32.gmra.mxu0 %v4649
  %v4790 = vpop.f32.mrf.mxu0
  %v4791 = vadd.f32 0.0, %v4790
  %v4792 = vpop.f32.mrf.mxu0
  %4793 = vmatprep.mubr.f32.mxu0 0.0
  %4794 = vmatmul.mubr.f32.gmra.mxu0 %v4652
  %v4795 = vpop.f32.mrf.mxu0
  %v4796 = vadd.f32 0.0, %v4795
  %v4797 = vpop.f32.mrf.mxu0
  %4798 = vdwg.mxu0
  %v4800 = vsel %vm68, %v4565, 0
  %v4803 = vsel %vm68, %v4566, 0
  %v4806 = vsel %vm68, %v4567, 0
  %v4809 = vsel %vm68, %v4568, 0
  %v4812 = vsel %vm68, %v4569, 0
  %v4815 = vsel %vm68, %v4570, 0
  %v4818 = vsel %vm68, %v4571, 0
  %v4821 = vsel %vm68, %v4572, 0
  %v4824 = vsel %vm68, %v4573, 0
  %v4827 = vsel %vm68, %v4574, 0
  %v4830 = vsel %vm68, %v4575, 0
  %v4833 = vsel %vm68, %v4576, 0
  %v4836 = vsel %vm68, %v4577, 0
  %v4839 = vsel %vm68, %v4578, 0
  %v4842 = vsel %vm68, %v4579, 0
  %v4845 = vsel %vm68, %v4580, 0
  %4847 = vmatprep.subr.mxu0 0.0
  %4848 = vmatpush1.msra.mxu0 0.0
  %4849 = vmatprep.subr.mxu0 0.0
  %4850 = vmatpush1.msra.mxu0 0.0
  %4851 = vmatprep.subr.mxu0 0.0
  %4852 = vmatpush1.msra.mxu0 0.0
  %4853 = vmatprep.subr.mxu0 0.0
  %4854 = vmatpush1.msra.mxu0 0.0
  %4855 = vmatprep.subr.mxu0 0.0
  %4856 = vmatpush1.msra.mxu0 0.0
  %4857 = vmatprep.subr.mxu0 0.0
  %4858 = vmatpush1.msra.mxu0 0.0
  %4859 = vmatprep.subr.mxu0 0.0
  %4860 = vmatpush1.msra.mxu0 0.0
  %4861 = vmatprep.subr.mxu0 0.0
  %4862 = vmatpush1.msra.mxu0 0.0
  %4863 = vmatprep.subr.mxu0 0.0
  %4864 = vmatpush1.msra.mxu0 0.0
  %4865 = vmatprep.subr.mxu0 0.0
  %4866 = vmatpush1.msra.mxu0 0.0
  %4867 = vmatprep.subr.mxu0 0.0
  %4868 = vmatpush1.msra.mxu0 0.0
  %4869 = vmatprep.subr.mxu0 0.0
  %4870 = vmatpush1.msra.mxu0 0.0
  %4871 = vmatprep.subr.mxu0 0.0
  %4872 = vmatpush1.msra.mxu0 %v4584
  %4873 = vmatprep.subr.mxu0 0.0
  %4874 = vmatpush1.msra.mxu0 %v4583
  %4875 = vmatprep.subr.mxu0 0.0
  %4876 = vmatpush1.msra.mxu0 %v4582
  %4877 = vmatprep.subr.mxu0 0.0
  %4878 = vmatpush1.msra.mxu0 %v4581
  %4879 = vmatprep.subr.mxu0 0.0
  %4880 = vmatpush2.msra.mxu0 0.0
  %4881 = vmatprep.subr.mxu0 0.0
  %4882 = vmatpush2.msra.mxu0 0.0
  %4883 = vmatprep.subr.mxu0 0.0
  %4884 = vmatpush2.msra.mxu0 0.0
  %4885 = vmatprep.subr.mxu0 0.0
  %4886 = vmatpush2.msra.mxu0 0.0
  %4887 = vmatprep.subr.mxu0 0.0
  %4888 = vmatpush2.msra.mxu0 0.0
  %4889 = vmatprep.subr.mxu0 0.0
  %4890 = vmatpush2.msra.mxu0 0.0
  %4891 = vmatprep.subr.mxu0 0.0
  %4892 = vmatpush2.msra.mxu0 0.0
  %4893 = vmatprep.subr.mxu0 0.0
  %4894 = vmatpush2.msra.mxu0 0.0
  %4895 = vmatprep.subr.mxu0 0.0
  %4896 = vmatpush2.msra.mxu0 0.0
  %4897 = vmatprep.subr.mxu0 0.0
  %4898 = vmatpush2.msra.mxu0 0.0
  %4899 = vmatprep.subr.mxu0 0.0
  %4900 = vmatpush2.msra.mxu0 0.0
  %4901 = vmatprep.subr.mxu0 0.0
  %4902 = vmatpush2.msra.mxu0 0.0
  %4903 = vmatprep.subr.mxu0 0.0
  %4904 = vmatpush2.msra.mxu0 0.0
  %4905 = vmatprep.subr.mxu0 0.0
  %4906 = vmatpush2.msra.mxu0 0.0
  %4907 = vmatprep.subr.mxu0 0.0
  %4908 = vmatpush2.msra.mxu0 0.0
  %4909 = vmatprep.subr.mxu0 0.0
  %4910 = vmatpush2.msra.mxu0 0.0
  %4911 = vmatprep.mubr.f32.mxu0 0.0
  %4912 = vmatmul.mubr.f32.gmra.mxu0 %v4800
  %v4913 = vpop.f32.mrf.mxu0
  %v4914 = vadd.f32 %v4721, %v4913
  %v4915 = vpop.f32.mrf.mxu0
  %4916 = vmatprep.mubr.f32.mxu0 0.0
  %4917 = vmatmul.mubr.f32.gmra.mxu0 %v4803
  %v4918 = vpop.f32.mrf.mxu0
  %v4919 = vadd.f32 %v4726, %v4918
  %v4920 = vpop.f32.mrf.mxu0
  %4921 = vmatprep.mubr.f32.mxu0 0.0
  %4922 = vmatmul.mubr.f32.gmra.mxu0 %v4806
  %v4923 = vpop.f32.mrf.mxu0
  %v4924 = vadd.f32 %v4731, %v4923
  %v4925 = vpop.f32.mrf.mxu0
  %4926 = vmatprep.mubr.f32.mxu0 0.0
  %4927 = vmatmul.mubr.f32.gmra.mxu0 %v4809
  %v4928 = vpop.f32.mrf.mxu0
  %v4929 = vadd.f32 %v4736, %v4928
  %v4930 = vpop.f32.mrf.mxu0
  %4931 = vmatprep.mubr.f32.mxu0 0.0
  %4932 = vmatmul.mubr.f32.gmra.mxu0 %v4812
  %v4933 = vpop.f32.mrf.mxu0
  %v4934 = vadd.f32 %v4741, %v4933
  %v4935 = vpop.f32.mrf.mxu0
  %4936 = vmatprep.mubr.f32.mxu0 0.0
  %4937 = vmatmul.mubr.f32.gmra.mxu0 %v4815
  %v4938 = vpop.f32.mrf.mxu0
  %v4939 = vadd.f32 %v4746, %v4938
  %v4940 = vpop.f32.mrf.mxu0
  %4941 = vmatprep.mubr.f32.mxu0 0.0
  %4942 = vmatmul.mubr.f32.gmra.mxu0 %v4818
  %v4943 = vpop.f32.mrf.mxu0
  %v4944 = vadd.f32 %v4751, %v4943
  %v4945 = vpop.f32.mrf.mxu0
  %4946 = vmatprep.mubr.f32.mxu0 0.0
  %4947 = vmatmul.mubr.f32.gmra.mxu0 %v4821
  %v4948 = vpop.f32.mrf.mxu0
  %v4949 = vadd.f32 %v4756, %v4948
  %v4950 = vpop.f32.mrf.mxu0
  %4951 = vmatprep.mubr.f32.mxu0 0.0
  %4952 = vmatmul.mubr.f32.gmra.mxu0 %v4824
  %v4953 = vpop.f32.mrf.mxu0
  %v4954 = vadd.f32 %v4761, %v4953
  %v4955 = vpop.f32.mrf.mxu0
  %4956 = vmatprep.mubr.f32.mxu0 0.0
  %4957 = vmatmul.mubr.f32.gmra.mxu0 %v4827
  %v4958 = vpop.f32.mrf.mxu0
  %v4959 = vadd.f32 %v4766, %v4958
  %v4960 = vpop.f32.mrf.mxu0
  %4961 = vmatprep.mubr.f32.mxu0 0.0
  %4962 = vmatmul.mubr.f32.gmra.mxu0 %v4830
  %v4963 = vpop.f32.mrf.mxu0
  %v4964 = vadd.f32 %v4771, %v4963
  %v4965 = vpop.f32.mrf.mxu0
  %4966 = vmatprep.mubr.f32.mxu0 0.0
  %4967 = vmatmul.mubr.f32.gmra.mxu0 %v4833
  %v4968 = vpop.f32.mrf.mxu0
  %v4969 = vadd.f32 %v4776, %v4968
  %v4970 = vpop.f32.mrf.mxu0
  %4971 = vmatprep.mubr.f32.mxu0 0.0
  %4972 = vmatmul.mubr.f32.gmra.mxu0 %v4836
  %v4973 = vpop.f32.mrf.mxu0
  %v4974 = vadd.f32 %v4781, %v4973
  %v4975 = vpop.f32.mrf.mxu0
  %4976 = vmatprep.mubr.f32.mxu0 0.0
  %4977 = vmatmul.mubr.f32.gmra.mxu0 %v4839
  %v4978 = vpop.f32.mrf.mxu0
  %v4979 = vadd.f32 %v4786, %v4978
  %v4980 = vpop.f32.mrf.mxu0
  %4981 = vmatprep.mubr.f32.mxu0 0.0
  %4982 = vmatmul.mubr.f32.gmra.mxu0 %v4842
  %v4983 = vpop.f32.mrf.mxu0
  %v4984 = vadd.f32 %v4791, %v4983
  %v4985 = vpop.f32.mrf.mxu0
  %4986 = vmatprep.mubr.f32.mxu0 0.0
  %4987 = vmatmul.mubr.f32.gmra.mxu0 %v4845
  %v4988 = vpop.f32.mrf.mxu0
  %v4989 = vadd.f32 %v4796, %v4988
  %v4990 = vpop.f32.mrf.mxu0
  %4991 = vdwg.mxu0
  %v4992 = vld [vmem:[#allocation2 + $0x2] sm:$0xff]
  %v4993 = vld [vmem:[#allocation2 + $0x12] sm:$0xff]
  %v4994 = vld [vmem:[#allocation2 + $0x22] sm:$0xff]
  %v4995 = vld [vmem:[#allocation2 + $0x32] sm:$0xff]
  %v4996 = vld [vmem:[#allocation2 + $0x42] sm:$0xff]
  %v4997 = vld [vmem:[#allocation2 + $0x52] sm:$0xff]
  %v4998 = vld [vmem:[#allocation2 + $0x62] sm:$0xff]
  %v4999 = vld [vmem:[#allocation2 + $0x72] sm:$0xff]
  %v5000 = vld [vmem:[#allocation2 + $0xa2] sm:$0xff]
  %v5001 = vld [vmem:[#allocation2 + $0xb2] sm:$0xff]
  %v5002 = vld [vmem:[#allocation2 + $0xc2] sm:$0xff]
  %v5003 = vld [vmem:[#allocation2 + $0xd2] sm:$0xff]
  %v5004 = vld [vmem:[#allocation2 + $0xe2] sm:$0xff]
  %v5005 = vld [vmem:[#allocation2 + $0xf2] sm:$0xff]
  %v5006 = vld [vmem:[#allocation2 + $0x102] sm:$0xff]
  %v5007 = vld [vmem:[#allocation2 + $0x112] sm:$0xff]
  %s5008 = scalar_lea.vmem %s7, 64
  %v5009 = vld [vmem:[%s5008] sm:$0xff]
  %v5010 = vld [vmem:[%s5008 + $0x8] sm:$0xff]
  %v5011 = vld [vmem:[%s5008 + $0x10] sm:$0xff]
  %v5012 = vld [vmem:[%s5008 + $0x18] sm:$0xff]
  %v5014 = vsel %vm68, %v4992, 0
  %v5017 = vsel %vm68, %v4993, 0
  %v5020 = vsel %vm68, %v4994, 0
  %v5023 = vsel %vm68, %v4995, 0
  %v5026 = vsel %vm68, %v4996, 0
  %v5029 = vsel %vm68, %v4997, 0
  %v5032 = vsel %vm68, %v4998, 0
  %v5035 = vsel %vm68, %v4999, 0
  %v5038 = vsel %vm68, %v5000, 0
  %v5041 = vsel %vm68, %v5001, 0
  %v5044 = vsel %vm68, %v5002, 0
  %v5047 = vsel %vm68, %v5003, 0
  %v5050 = vsel %vm68, %v5004, 0
  %v5053 = vsel %vm68, %v5005, 0
  %v5056 = vsel %vm68, %v5006, 0
  %v5059 = vsel %vm68, %v5007, 0
  %5061 = vmatprep.subr.mxu0 0.0
  %5062 = vmatpush1.msra.mxu0 0.0
  %5063 = vmatprep.subr.mxu0 0.0
  %5064 = vmatpush1.msra.mxu0 0.0
  %5065 = vmatprep.subr.mxu0 0.0
  %5066 = vmatpush1.msra.mxu0 0.0
  %5067 = vmatprep.subr.mxu0 0.0
  %5068 = vmatpush1.msra.mxu0 0.0
  %5069 = vmatprep.subr.mxu0 0.0
  %5070 = vmatpush1.msra.mxu0 0.0
  %5071 = vmatprep.subr.mxu0 0.0
  %5072 = vmatpush1.msra.mxu0 0.0
  %5073 = vmatprep.subr.mxu0 0.0
  %5074 = vmatpush1.msra.mxu0 0.0
  %5075 = vmatprep.subr.mxu0 0.0
  %5076 = vmatpush1.msra.mxu0 0.0
  %5077 = vmatprep.subr.mxu0 0.0
  %5078 = vmatpush1.msra.mxu0 0.0
  %5079 = vmatprep.subr.mxu0 0.0
  %5080 = vmatpush1.msra.mxu0 0.0
  %5081 = vmatprep.subr.mxu0 0.0
  %5082 = vmatpush1.msra.mxu0 0.0
  %5083 = vmatprep.subr.mxu0 0.0
  %5084 = vmatpush1.msra.mxu0 0.0
  %5085 = vmatprep.subr.mxu0 0.0
  %5086 = vmatpush1.msra.mxu0 %v5012
  %5087 = vmatprep.subr.mxu0 0.0
  %5088 = vmatpush1.msra.mxu0 %v5011
  %5089 = vmatprep.subr.mxu0 0.0
  %5090 = vmatpush1.msra.mxu0 %v5010
  %5091 = vmatprep.subr.mxu0 0.0
  %5092 = vmatpush1.msra.mxu0 %v5009
  %5093 = vmatprep.subr.mxu0 0.0
  %5094 = vmatpush2.msra.mxu0 0.0
  %5095 = vmatprep.subr.mxu0 0.0
  %5096 = vmatpush2.msra.mxu0 0.0
  %5097 = vmatprep.subr.mxu0 0.0
  %5098 = vmatpush2.msra.mxu0 0.0
  %5099 = vmatprep.subr.mxu0 0.0
  %5100 = vmatpush2.msra.mxu0 0.0
  %5101 = vmatprep.subr.mxu0 0.0
  %5102 = vmatpush2.msra.mxu0 0.0
  %5103 = vmatprep.subr.mxu0 0.0
  %5104 = vmatpush2.msra.mxu0 0.0
  %5105 = vmatprep.subr.mxu0 0.0
  %5106 = vmatpush2.msra.mxu0 0.0
  %5107 = vmatprep.subr.mxu0 0.0
  %5108 = vmatpush2.msra.mxu0 0.0
  %5109 = vmatprep.subr.mxu0 0.0
  %5110 = vmatpush2.msra.mxu0 0.0
  %5111 = vmatprep.subr.mxu0 0.0
  %5112 = vmatpush2.msra.mxu0 0.0
  %5113 = vmatprep.subr.mxu0 0.0
  %5114 = vmatpush2.msra.mxu0 0.0
  %5115 = vmatprep.subr.mxu0 0.0
  %5116 = vmatpush2.msra.mxu0 0.0
  %5117 = vmatprep.subr.mxu0 0.0
  %5118 = vmatpush2.msra.mxu0 0.0
  %5119 = vmatprep.subr.mxu0 0.0
  %5120 = vmatpush2.msra.mxu0 0.0
  %5121 = vmatprep.subr.mxu0 0.0
  %5122 = vmatpush2.msra.mxu0 0.0
  %5123 = vmatprep.subr.mxu0 0.0
  %5124 = vmatpush2.msra.mxu0 0.0
  %5125 = vmatprep.mubr.f32.mxu0 0.0
  %5126 = vmatmul.mubr.f32.gmra.mxu0 %v5014
  %v5127 = vpop.f32.mrf.mxu0
  %v5128 = vadd.f32 0.0, %v5127
  %v5129 = vpop.f32.mrf.mxu0
  %5130 = vmatprep.mubr.f32.mxu0 0.0
  %5131 = vmatmul.mubr.f32.gmra.mxu0 %v5017
  %v5132 = vpop.f32.mrf.mxu0
  %v5133 = vadd.f32 0.0, %v5132
  %v5134 = vpop.f32.mrf.mxu0
  %5135 = vmatprep.mubr.f32.mxu0 0.0
  %5136 = vmatmul.mubr.f32.gmra.mxu0 %v5020
  %v5137 = vpop.f32.mrf.mxu0
  %v5138 = vadd.f32 0.0, %v5137
  %v5139 = vpop.f32.mrf.mxu0
  %5140 = vmatprep.mubr.f32.mxu0 0.0
  %5141 = vmatmul.mubr.f32.gmra.mxu0 %v5023
  %v5142 = vpop.f32.mrf.mxu0
  %v5143 = vadd.f32 0.0, %v5142
  %v5144 = vpop.f32.mrf.mxu0
  %5145 = vmatprep.mubr.f32.mxu0 0.0
  %5146 = vmatmul.mubr.f32.gmra.mxu0 %v5026
  %v5147 = vpop.f32.mrf.mxu0
  %v5148 = vadd.f32 0.0, %v5147
  %v5149 = vpop.f32.mrf.mxu0
  %5150 = vmatprep.mubr.f32.mxu0 0.0
  %5151 = vmatmul.mubr.f32.gmra.mxu0 %v5029
  %v5152 = vpop.f32.mrf.mxu0
  %v5153 = vadd.f32 0.0, %v5152
  %v5154 = vpop.f32.mrf.mxu0
  %5155 = vmatprep.mubr.f32.mxu0 0.0
  %5156 = vmatmul.mubr.f32.gmra.mxu0 %v5032
  %v5157 = vpop.f32.mrf.mxu0
  %v5158 = vadd.f32 0.0, %v5157
  %v5159 = vpop.f32.mrf.mxu0
  %5160 = vmatprep.mubr.f32.mxu0 0.0
  %5161 = vmatmul.mubr.f32.gmra.mxu0 %v5035
  %v5162 = vpop.f32.mrf.mxu0
  %v5163 = vadd.f32 0.0, %v5162
  %v5164 = vpop.f32.mrf.mxu0
  %5165 = vmatprep.mubr.f32.mxu0 0.0
  %5166 = vmatmul.mubr.f32.gmra.mxu0 %v5038
  %v5167 = vpop.f32.mrf.mxu0
  %v5168 = vadd.f32 0.0, %v5167
  %v5169 = vpop.f32.mrf.mxu0
  %5170 = vmatprep.mubr.f32.mxu0 0.0
  %5171 = vmatmul.mubr.f32.gmra.mxu0 %v5041
  %v5172 = vpop.f32.mrf.mxu0
  %v5173 = vadd.f32 0.0, %v5172
  %v5174 = vpop.f32.mrf.mxu0
  %5175 = vmatprep.mubr.f32.mxu0 0.0
  %5176 = vmatmul.mubr.f32.gmra.mxu0 %v5044
  %v5177 = vpop.f32.mrf.mxu0
  %v5178 = vadd.f32 0.0, %v5177
  %v5179 = vpop.f32.mrf.mxu0
  %5180 = vmatprep.mubr.f32.mxu0 0.0
  %5181 = vmatmul.mubr.f32.gmra.mxu0 %v5047
  %v5182 = vpop.f32.mrf.mxu0
  %v5183 = vadd.f32 0.0, %v5182
  %v5184 = vpop.f32.mrf.mxu0
  %5185 = vmatprep.mubr.f32.mxu0 0.0
  %5186 = vmatmul.mubr.f32.gmra.mxu0 %v5050
  %v5187 = vpop.f32.mrf.mxu0
  %v5188 = vadd.f32 0.0, %v5187
  %v5189 = vpop.f32.mrf.mxu0
  %5190 = vmatprep.mubr.f32.mxu0 0.0
  %5191 = vmatmul.mubr.f32.gmra.mxu0 %v5053
  %v5192 = vpop.f32.mrf.mxu0
  %v5193 = vadd.f32 0.0, %v5192
  %v5194 = vpop.f32.mrf.mxu0
  %5195 = vmatprep.mubr.f32.mxu0 0.0
  %5196 = vmatmul.mubr.f32.gmra.mxu0 %v5056
  %v5197 = vpop.f32.mrf.mxu0
  %v5198 = vadd.f32 0.0, %v5197
  %v5199 = vpop.f32.mrf.mxu0
  %5200 = vmatprep.mubr.f32.mxu0 0.0
  %5201 = vmatmul.mubr.f32.gmra.mxu0 %v5059
  %v5202 = vpop.f32.mrf.mxu0
  %v5203 = vadd.f32 0.0, %v5202
  %v5204 = vpop.f32.mrf.mxu0
  %5205 = vdwg.mxu0
  %v5206 = vadd.f32 %v4914, %v5128
  %v5207 = vadd.f32 %v4919, %v5133
  %v5208 = vadd.f32 %v4924, %v5138
  %v5209 = vadd.f32 %v4929, %v5143
  %v5210 = vadd.f32 %v4934, %v5148
  %v5211 = vadd.f32 %v4939, %v5153
  %v5212 = vadd.f32 %v4944, %v5158
  %v5213 = vadd.f32 %v4949, %v5163
  %v5214 = vadd.f32 %v4954, %v5168
  %v5215 = vadd.f32 %v4959, %v5173
  %v5216 = vadd.f32 %v4964, %v5178
  %v5217 = vadd.f32 %v4969, %v5183
  %v5218 = vadd.f32 %v4974, %v5188
  %v5219 = vadd.f32 %v4979, %v5193
  %v5220 = vadd.f32 %v4984, %v5198
  %v5221 = vadd.f32 %v4989, %v5203
  %v5222 = vld [vmem:[%s126] sm:$0xff]
  %v5223 = vld [vmem:[%s126 + $0x10] sm:$0xff]
  %v5224 = vld [vmem:[%s126 + $0x20] sm:$0xff]
  %v5225 = vld [vmem:[%s126 + $0x30] sm:$0xff]
  %v5226 = vld [vmem:[%s126 + $0x40] sm:$0xff]
  %v5227 = vld [vmem:[%s126 + $0x50] sm:$0xff]
  %v5228 = vld [vmem:[%s126 + $0x60] sm:$0xff]
  %v5229 = vld [vmem:[%s126 + $0x70] sm:$0xff]
  %v5230 = vld [vmem:[%s126 + $0xa0] sm:$0xff]
  %v5231 = vld [vmem:[%s126 + $0xb0] sm:$0xff]
  %v5232 = vld [vmem:[%s126 + $0xc0] sm:$0xff]
  %v5233 = vld [vmem:[%s126 + $0xd0] sm:$0xff]
  %v5234 = vld [vmem:[%s126 + $0xe0] sm:$0xff]
  %v5235 = vld [vmem:[%s126 + $0xf0] sm:$0xff]
  %v5236 = vld [vmem:[%s126 + $0x100] sm:$0xff]
  %v5237 = vld [vmem:[%s126 + $0x110] sm:$0xff]
  %s5238 = scalar_lea.vmem %s7, 96
  %v5239 = vld [vmem:[%s5238] sm:$0xff]
  %v5240 = vld [vmem:[%s5238 + $0x8] sm:$0xff]
  %v5241 = vld [vmem:[%s5238 + $0x10] sm:$0xff]
  %v5242 = vld [vmem:[%s5238 + $0x18] sm:$0xff]
  %v5244 = vsel %vm68, %v5222, 0
  %v5247 = vsel %vm68, %v5223, 0
  %v5250 = vsel %vm68, %v5224, 0
  %v5253 = vsel %vm68, %v5225, 0
  %v5256 = vsel %vm68, %v5226, 0
  %v5259 = vsel %vm68, %v5227, 0
  %v5262 = vsel %vm68, %v5228, 0
  %v5265 = vsel %vm68, %v5229, 0
  %v5268 = vsel %vm68, %v5230, 0
  %v5271 = vsel %vm68, %v5231, 0
  %v5274 = vsel %vm68, %v5232, 0
  %v5277 = vsel %vm68, %v5233, 0
  %v5280 = vsel %vm68, %v5234, 0
  %v5283 = vsel %vm68, %v5235, 0
  %v5286 = vsel %vm68, %v5236, 0
  %v5289 = vsel %vm68, %v5237, 0
  %5291 = vmatprep.subr.mxu0 0.0
  %5292 = vmatpush1.msra.mxu0 0.0
  %5293 = vmatprep.subr.mxu0 0.0
  %5294 = vmatpush1.msra.mxu0 0.0
  %5295 = vmatprep.subr.mxu0 0.0
  %5296 = vmatpush1.msra.mxu0 0.0
  %5297 = vmatprep.subr.mxu0 0.0
  %5298 = vmatpush1.msra.mxu0 0.0
  %5299 = vmatprep.subr.mxu0 0.0
  %5300 = vmatpush1.msra.mxu0 0.0
  %5301 = vmatprep.subr.mxu0 0.0
  %5302 = vmatpush1.msra.mxu0 0.0
  %5303 = vmatprep.subr.mxu0 0.0
  %5304 = vmatpush1.msra.mxu0 0.0
  %5305 = vmatprep.subr.mxu0 0.0
  %5306 = vmatpush1.msra.mxu0 0.0
  %5307 = vmatprep.subr.mxu0 0.0
  %5308 = vmatpush1.msra.mxu0 0.0
  %5309 = vmatprep.subr.mxu0 0.0
  %5310 = vmatpush1.msra.mxu0 0.0
  %5311 = vmatprep.subr.mxu0 0.0
  %5312 = vmatpush1.msra.mxu0 0.0
  %5313 = vmatprep.subr.mxu0 0.0
  %5314 = vmatpush1.msra.mxu0 0.0
  %5315 = vmatprep.subr.mxu0 0.0
  %5316 = vmatpush1.msra.mxu0 %v5242
  %5317 = vmatprep.subr.mxu0 0.0
  %5318 = vmatpush1.msra.mxu0 %v5241
  %5319 = vmatprep.subr.mxu0 0.0
  %5320 = vmatpush1.msra.mxu0 %v5240
  %5321 = vmatprep.subr.mxu0 0.0
  %5322 = vmatpush1.msra.mxu0 %v5239
  %5323 = vmatprep.subr.mxu0 0.0
  %5324 = vmatpush2.msra.mxu0 0.0
  %5325 = vmatprep.subr.mxu0 0.0
  %5326 = vmatpush2.msra.mxu0 0.0
  %5327 = vmatprep.subr.mxu0 0.0
  %5328 = vmatpush2.msra.mxu0 0.0
  %5329 = vmatprep.subr.mxu0 0.0
  %5330 = vmatpush2.msra.mxu0 0.0
  %5331 = vmatprep.subr.mxu0 0.0
  %5332 = vmatpush2.msra.mxu0 0.0
  %5333 = vmatprep.subr.mxu0 0.0
  %5334 = vmatpush2.msra.mxu0 0.0
  %5335 = vmatprep.subr.mxu0 0.0
  %5336 = vmatpush2.msra.mxu0 0.0
  %5337 = vmatprep.subr.mxu0 0.0
  %5338 = vmatpush2.msra.mxu0 0.0
  %5339 = vmatprep.subr.mxu0 0.0
  %5340 = vmatpush2.msra.mxu0 0.0
  %5341 = vmatprep.subr.mxu0 0.0
  %5342 = vmatpush2.msra.mxu0 0.0
  %5343 = vmatprep.subr.mxu0 0.0
  %5344 = vmatpush2.msra.mxu0 0.0
  %5345 = vmatprep.subr.mxu0 0.0
  %5346 = vmatpush2.msra.mxu0 0.0
  %5347 = vmatprep.subr.mxu0 0.0
  %5348 = vmatpush2.msra.mxu0 0.0
  %5349 = vmatprep.subr.mxu0 0.0
  %5350 = vmatpush2.msra.mxu0 0.0
  %5351 = vmatprep.subr.mxu0 0.0
  %5352 = vmatpush2.msra.mxu0 0.0
  %5353 = vmatprep.subr.mxu0 0.0
  %5354 = vmatpush2.msra.mxu0 0.0
  %5355 = vmatprep.mubr.f32.mxu0 0.0
  %5356 = vmatmul.mubr.f32.gmra.mxu0 %v5244
  %v5357 = vpop.f32.mrf.mxu0
  %v5358 = vadd.f32 0.0, %v5357
  %v5359 = vpop.f32.mrf.mxu0
  %5360 = vmatprep.mubr.f32.mxu0 0.0
  %5361 = vmatmul.mubr.f32.gmra.mxu0 %v5247
  %v5362 = vpop.f32.mrf.mxu0
  %v5363 = vadd.f32 0.0, %v5362
  %v5364 = vpop.f32.mrf.mxu0
  %5365 = vmatprep.mubr.f32.mxu0 0.0
  %5366 = vmatmul.mubr.f32.gmra.mxu0 %v5250
  %v5367 = vpop.f32.mrf.mxu0
  %v5368 = vadd.f32 0.0, %v5367
  %v5369 = vpop.f32.mrf.mxu0
  %5370 = vmatprep.mubr.f32.mxu0 0.0
  %5371 = vmatmul.mubr.f32.gmra.mxu0 %v5253
  %v5372 = vpop.f32.mrf.mxu0
  %v5373 = vadd.f32 0.0, %v5372
  %v5374 = vpop.f32.mrf.mxu0
  %5375 = vmatprep.mubr.f32.mxu0 0.0
  %5376 = vmatmul.mubr.f32.gmra.mxu0 %v5256
  %v5377 = vpop.f32.mrf.mxu0
  %v5378 = vadd.f32 0.0, %v5377
  %v5379 = vpop.f32.mrf.mxu0
  %5380 = vmatprep.mubr.f32.mxu0 0.0
  %5381 = vmatmul.mubr.f32.gmra.mxu0 %v5259
  %v5382 = vpop.f32.mrf.mxu0
  %v5383 = vadd.f32 0.0, %v5382
  %v5384 = vpop.f32.mrf.mxu0
  %5385 = vmatprep.mubr.f32.mxu0 0.0
  %5386 = vmatmul.mubr.f32.gmra.mxu0 %v5262
  %v5387 = vpop.f32.mrf.mxu0
  %v5388 = vadd.f32 0.0, %v5387
  %v5389 = vpop.f32.mrf.mxu0
  %5390 = vmatprep.mubr.f32.mxu0 0.0
  %5391 = vmatmul.mubr.f32.gmra.mxu0 %v5265
  %v5392 = vpop.f32.mrf.mxu0
  %v5393 = vadd.f32 0.0, %v5392
  %v5394 = vpop.f32.mrf.mxu0
  %5395 = vmatprep.mubr.f32.mxu0 0.0
  %5396 = vmatmul.mubr.f32.gmra.mxu0 %v5268
  %v5397 = vpop.f32.mrf.mxu0
  %v5398 = vadd.f32 0.0, %v5397
  %v5399 = vpop.f32.mrf.mxu0
  %5400 = vmatprep.mubr.f32.mxu0 0.0
  %5401 = vmatmul.mubr.f32.gmra.mxu0 %v5271
  %v5402 = vpop.f32.mrf.mxu0
  %v5403 = vadd.f32 0.0, %v5402
  %v5404 = vpop.f32.mrf.mxu0
  %5405 = vmatprep.mubr.f32.mxu0 0.0
  %5406 = vmatmul.mubr.f32.gmra.mxu0 %v5274
  %v5407 = vpop.f32.mrf.mxu0
  %v5408 = vadd.f32 0.0, %v5407
  %v5409 = vpop.f32.mrf.mxu0
  %5410 = vmatprep.mubr.f32.mxu0 0.0
  %5411 = vmatmul.mubr.f32.gmra.mxu0 %v5277
  %v5412 = vpop.f32.mrf.mxu0
  %v5413 = vadd.f32 0.0, %v5412
  %v5414 = vpop.f32.mrf.mxu0
  %5415 = vmatprep.mubr.f32.mxu0 0.0
  %5416 = vmatmul.mubr.f32.gmra.mxu0 %v5280
  %v5417 = vpop.f32.mrf.mxu0
  %v5418 = vadd.f32 0.0, %v5417
  %v5419 = vpop.f32.mrf.mxu0
  %5420 = vmatprep.mubr.f32.mxu0 0.0
  %5421 = vmatmul.mubr.f32.gmra.mxu0 %v5283
  %v5422 = vpop.f32.mrf.mxu0
  %v5423 = vadd.f32 0.0, %v5422
  %v5424 = vpop.f32.mrf.mxu0
  %5425 = vmatprep.mubr.f32.mxu0 0.0
  %5426 = vmatmul.mubr.f32.gmra.mxu0 %v5286
  %v5427 = vpop.f32.mrf.mxu0
  %v5428 = vadd.f32 0.0, %v5427
  %v5429 = vpop.f32.mrf.mxu0
  %5430 = vmatprep.mubr.f32.mxu0 0.0
  %5431 = vmatmul.mubr.f32.gmra.mxu0 %v5289
  %v5432 = vpop.f32.mrf.mxu0
  %v5433 = vadd.f32 0.0, %v5432
  %v5434 = vpop.f32.mrf.mxu0
  %5435 = vdwg.mxu0
  %v5436 = vadd.f32 %v5206, %v5358
  %v5437 = vadd.f32 %v5207, %v5363
  %v5438 = vadd.f32 %v5208, %v5368
  %v5439 = vadd.f32 %v5209, %v5373
  %v5440 = vadd.f32 %v5210, %v5378
  %v5441 = vadd.f32 %v5211, %v5383
  %v5442 = vadd.f32 %v5212, %v5388
  %v5443 = vadd.f32 %v5213, %v5393
  %v5444 = vadd.f32 %v5214, %v5398
  %v5445 = vadd.f32 %v5215, %v5403
  %v5446 = vadd.f32 %v5216, %v5408
  %v5447 = vadd.f32 %v5217, %v5413
  %v5448 = vadd.f32 %v5218, %v5418
  %v5449 = vadd.f32 %v5219, %v5423
  %v5450 = vadd.f32 %v5220, %v5428
  %v5451 = vadd.f32 %v5221, %v5433
  %v5452 = vld [vmem:[%s126 + $0x1] sm:$0xff]
  %v5453 = vld [vmem:[%s126 + $0x11] sm:$0xff]
  %v5454 = vld [vmem:[%s126 + $0x21] sm:$0xff]
  %v5455 = vld [vmem:[%s126 + $0x31] sm:$0xff]
  %v5456 = vld [vmem:[%s126 + $0x41] sm:$0xff]
  %v5457 = vld [vmem:[%s126 + $0x51] sm:$0xff]
  %v5458 = vld [vmem:[%s126 + $0x61] sm:$0xff]
  %v5459 = vld [vmem:[%s126 + $0x71] sm:$0xff]
  %v5460 = vld [vmem:[%s126 + $0xa1] sm:$0xff]
  %v5461 = vld [vmem:[%s126 + $0xb1] sm:$0xff]
  %v5462 = vld [vmem:[%s126 + $0xc1] sm:$0xff]
  %v5463 = vld [vmem:[%s126 + $0xd1] sm:$0xff]
  %v5464 = vld [vmem:[%s126 + $0xe1] sm:$0xff]
  %v5465 = vld [vmem:[%s126 + $0xf1] sm:$0xff]
  %v5466 = vld [vmem:[%s126 + $0x101] sm:$0xff]
  %v5467 = vld [vmem:[%s126 + $0x111] sm:$0xff]
  %s5468 = scalar_lea.vmem %s7, 128
  %v5469 = vld [vmem:[%s5468] sm:$0xff]
  %v5470 = vld [vmem:[%s5468 + $0x8] sm:$0xff]
  %v5471 = vld [vmem:[%s5468 + $0x10] sm:$0xff]
  %v5472 = vld [vmem:[%s5468 + $0x18] sm:$0xff]
  %v5474 = vsel %vm68, %v5452, 0
  %v5477 = vsel %vm68, %v5453, 0
  %v5480 = vsel %vm68, %v5454, 0
  %v5483 = vsel %vm68, %v5455, 0
  %v5486 = vsel %vm68, %v5456, 0
  %v5489 = vsel %vm68, %v5457, 0
  %v5492 = vsel %vm68, %v5458, 0
  %v5495 = vsel %vm68, %v5459, 0
  %v5498 = vsel %vm68, %v5460, 0
  %v5501 = vsel %vm68, %v5461, 0
  %v5504 = vsel %vm68, %v5462, 0
  %v5507 = vsel %vm68, %v5463, 0
  %v5510 = vsel %vm68, %v5464, 0
  %v5513 = vsel %vm68, %v5465, 0
  %v5516 = vsel %vm68, %v5466, 0
  %v5519 = vsel %vm68, %v5467, 0
  %5521 = vmatprep.subr.mxu0 0.0
  %5522 = vmatpush1.msra.mxu0 0.0
  %5523 = vmatprep.subr.mxu0 0.0
  %5524 = vmatpush1.msra.mxu0 0.0
  %5525 = vmatprep.subr.mxu0 0.0
  %5526 = vmatpush1.msra.mxu0 0.0
  %5527 = vmatprep.subr.mxu0 0.0
  %5528 = vmatpush1.msra.mxu0 0.0
  %5529 = vmatprep.subr.mxu0 0.0
  %5530 = vmatpush1.msra.mxu0 0.0
  %5531 = vmatprep.subr.mxu0 0.0
  %5532 = vmatpush1.msra.mxu0 0.0
  %5533 = vmatprep.subr.mxu0 0.0
  %5534 = vmatpush1.msra.mxu0 0.0
  %5535 = vmatprep.subr.mxu0 0.0
  %5536 = vmatpush1.msra.mxu0 0.0
  %5537 = vmatprep.subr.mxu0 0.0
  %5538 = vmatpush1.msra.mxu0 0.0
  %5539 = vmatprep.subr.mxu0 0.0
  %5540 = vmatpush1.msra.mxu0 0.0
  %5541 = vmatprep.subr.mxu0 0.0
  %5542 = vmatpush1.msra.mxu0 0.0
  %5543 = vmatprep.subr.mxu0 0.0
  %5544 = vmatpush1.msra.mxu0 0.0
  %5545 = vmatprep.subr.mxu0 0.0
  %5546 = vmatpush1.msra.mxu0 %v5472
  %5547 = vmatprep.subr.mxu0 0.0
  %5548 = vmatpush1.msra.mxu0 %v5471
  %5549 = vmatprep.subr.mxu0 0.0
  %5550 = vmatpush1.msra.mxu0 %v5470
  %5551 = vmatprep.subr.mxu0 0.0
  %5552 = vmatpush1.msra.mxu0 %v5469
  %5553 = vmatprep.subr.mxu0 0.0
  %5554 = vmatpush2.msra.mxu0 0.0
  %5555 = vmatprep.subr.mxu0 0.0
  %5556 = vmatpush2.msra.mxu0 0.0
  %5557 = vmatprep.subr.mxu0 0.0
  %5558 = vmatpush2.msra.mxu0 0.0
  %5559 = vmatprep.subr.mxu0 0.0
  %5560 = vmatpush2.msra.mxu0 0.0
  %5561 = vmatprep.subr.mxu0 0.0
  %5562 = vmatpush2.msra.mxu0 0.0
  %5563 = vmatprep.subr.mxu0 0.0
  %5564 = vmatpush2.msra.mxu0 0.0
  %5565 = vmatprep.subr.mxu0 0.0
  %5566 = vmatpush2.msra.mxu0 0.0
  %5567 = vmatprep.subr.mxu0 0.0
  %5568 = vmatpush2.msra.mxu0 0.0
  %5569 = vmatprep.subr.mxu0 0.0
  %5570 = vmatpush2.msra.mxu0 0.0
  %5571 = vmatprep.subr.mxu0 0.0
  %5572 = vmatpush2.msra.mxu0 0.0
  %5573 = vmatprep.subr.mxu0 0.0
  %5574 = vmatpush2.msra.mxu0 0.0
  %5575 = vmatprep.subr.mxu0 0.0
  %5576 = vmatpush2.msra.mxu0 0.0
  %5577 = vmatprep.subr.mxu0 0.0
  %5578 = vmatpush2.msra.mxu0 0.0
  %5579 = vmatprep.subr.mxu0 0.0
  %5580 = vmatpush2.msra.mxu0 0.0
  %5581 = vmatprep.subr.mxu0 0.0
  %5582 = vmatpush2.msra.mxu0 0.0
  %5583 = vmatprep.subr.mxu0 0.0
  %5584 = vmatpush2.msra.mxu0 0.0
  %5585 = vmatprep.mubr.f32.mxu0 0.0
  %5586 = vmatmul.mubr.f32.gmra.mxu0 %v5474
  %v5587 = vpop.f32.mrf.mxu0
  %v5588 = vadd.f32 0.0, %v5587
  %v5589 = vpop.f32.mrf.mxu0
  %5590 = vmatprep.mubr.f32.mxu0 0.0
  %5591 = vmatmul.mubr.f32.gmra.mxu0 %v5477
  %v5592 = vpop.f32.mrf.mxu0
  %v5593 = vadd.f32 0.0, %v5592
  %v5594 = vpop.f32.mrf.mxu0
  %5595 = vmatprep.mubr.f32.mxu0 0.0
  %5596 = vmatmul.mubr.f32.gmra.mxu0 %v5480
  %v5597 = vpop.f32.mrf.mxu0
  %v5598 = vadd.f32 0.0, %v5597
  %v5599 = vpop.f32.mrf.mxu0
  %5600 = vmatprep.mubr.f32.mxu0 0.0
  %5601 = vmatmul.mubr.f32.gmra.mxu0 %v5483
  %v5602 = vpop.f32.mrf.mxu0
  %v5603 = vadd.f32 0.0, %v5602
  %v5604 = vpop.f32.mrf.mxu0
  %5605 = vmatprep.mubr.f32.mxu0 0.0
  %5606 = vmatmul.mubr.f32.gmra.mxu0 %v5486
  %v5607 = vpop.f32.mrf.mxu0
  %v5608 = vadd.f32 0.0, %v5607
  %v5609 = vpop.f32.mrf.mxu0
  %5610 = vmatprep.mubr.f32.mxu0 0.0
  %5611 = vmatmul.mubr.f32.gmra.mxu0 %v5489
  %v5612 = vpop.f32.mrf.mxu0
  %v5613 = vadd.f32 0.0, %v5612
  %v5614 = vpop.f32.mrf.mxu0
  %5615 = vmatprep.mubr.f32.mxu0 0.0
  %5616 = vmatmul.mubr.f32.gmra.mxu0 %v5492
  %v5617 = vpop.f32.mrf.mxu0
  %v5618 = vadd.f32 0.0, %v5617
  %v5619 = vpop.f32.mrf.mxu0
  %5620 = vmatprep.mubr.f32.mxu0 0.0
  %5621 = vmatmul.mubr.f32.gmra.mxu0 %v5495
  %v5622 = vpop.f32.mrf.mxu0
  %v5623 = vadd.f32 0.0, %v5622
  %v5624 = vpop.f32.mrf.mxu0
  %5625 = vmatprep.mubr.f32.mxu0 0.0
  %5626 = vmatmul.mubr.f32.gmra.mxu0 %v5498
  %v5627 = vpop.f32.mrf.mxu0
  %v5628 = vadd.f32 0.0, %v5627
  %v5629 = vpop.f32.mrf.mxu0
  %5630 = vmatprep.mubr.f32.mxu0 0.0
  %5631 = vmatmul.mubr.f32.gmra.mxu0 %v5501
  %v5632 = vpop.f32.mrf.mxu0
  %v5633 = vadd.f32 0.0, %v5632
  %v5634 = vpop.f32.mrf.mxu0
  %5635 = vmatprep.mubr.f32.mxu0 0.0
  %5636 = vmatmul.mubr.f32.gmra.mxu0 %v5504
  %v5637 = vpop.f32.mrf.mxu0
  %v5638 = vadd.f32 0.0, %v5637
  %v5639 = vpop.f32.mrf.mxu0
  %5640 = vmatprep.mubr.f32.mxu0 0.0
  %5641 = vmatmul.mubr.f32.gmra.mxu0 %v5507
  %v5642 = vpop.f32.mrf.mxu0
  %v5643 = vadd.f32 0.0, %v5642
  %v5644 = vpop.f32.mrf.mxu0
  %5645 = vmatprep.mubr.f32.mxu0 0.0
  %5646 = vmatmul.mubr.f32.gmra.mxu0 %v5510
  %v5647 = vpop.f32.mrf.mxu0
  %v5648 = vadd.f32 0.0, %v5647
  %v5649 = vpop.f32.mrf.mxu0
  %5650 = vmatprep.mubr.f32.mxu0 0.0
  %5651 = vmatmul.mubr.f32.gmra.mxu0 %v5513
  %v5652 = vpop.f32.mrf.mxu0
  %v5653 = vadd.f32 0.0, %v5652
  %v5654 = vpop.f32.mrf.mxu0
  %5655 = vmatprep.mubr.f32.mxu0 0.0
  %5656 = vmatmul.mubr.f32.gmra.mxu0 %v5516
  %v5657 = vpop.f32.mrf.mxu0
  %v5658 = vadd.f32 0.0, %v5657
  %v5659 = vpop.f32.mrf.mxu0
  %5660 = vmatprep.mubr.f32.mxu0 0.0
  %5661 = vmatmul.mubr.f32.gmra.mxu0 %v5519
  %v5662 = vpop.f32.mrf.mxu0
  %v5663 = vadd.f32 0.0, %v5662
  %v5664 = vpop.f32.mrf.mxu0
  %5665 = vdwg.mxu0
  %v5666 = vadd.f32 %v5436, %v5588
  %v5667 = vadd.f32 %v5437, %v5593
  %v5668 = vadd.f32 %v5438, %v5598
  %v5669 = vadd.f32 %v5439, %v5603
  %v5670 = vadd.f32 %v5440, %v5608
  %v5671 = vadd.f32 %v5441, %v5613
  %v5672 = vadd.f32 %v5442, %v5618
  %v5673 = vadd.f32 %v5443, %v5623
  %v5674 = vadd.f32 %v5444, %v5628
  %v5675 = vadd.f32 %v5445, %v5633
  %v5676 = vadd.f32 %v5446, %v5638
  %v5677 = vadd.f32 %v5447, %v5643
  %v5678 = vadd.f32 %v5448, %v5648
  %v5679 = vadd.f32 %v5449, %v5653
  %v5680 = vadd.f32 %v5450, %v5658
  %v5681 = vadd.f32 %v5451, %v5663
  %v5682 = vld [vmem:[%s126 + $0x2] sm:$0xff]
  %v5683 = vld [vmem:[%s126 + $0x12] sm:$0xff]
  %v5684 = vld [vmem:[%s126 + $0x22] sm:$0xff]
  %v5685 = vld [vmem:[%s126 + $0x32] sm:$0xff]
  %v5686 = vld [vmem:[%s126 + $0x42] sm:$0xff]
  %v5687 = vld [vmem:[%s126 + $0x52] sm:$0xff]
  %v5688 = vld [vmem:[%s126 + $0x62] sm:$0xff]
  %v5689 = vld [vmem:[%s126 + $0x72] sm:$0xff]
  %v5690 = vld [vmem:[%s126 + $0xa2] sm:$0xff]
  %v5691 = vld [vmem:[%s126 + $0xb2] sm:$0xff]
  %v5692 = vld [vmem:[%s126 + $0xc2] sm:$0xff]
  %v5693 = vld [vmem:[%s126 + $0xd2] sm:$0xff]
  %v5694 = vld [vmem:[%s126 + $0xe2] sm:$0xff]
  %v5695 = vld [vmem:[%s126 + $0xf2] sm:$0xff]
  %v5696 = vld [vmem:[%s126 + $0x102] sm:$0xff]
  %v5697 = vld [vmem:[%s126 + $0x112] sm:$0xff]
  %s5698 = scalar_lea.vmem %s7, 160
  %v5699 = vld [vmem:[%s5698] sm:$0xff]
  %v5700 = vld [vmem:[%s5698 + $0x8] sm:$0xff]
  %v5701 = vld [vmem:[%s5698 + $0x10] sm:$0xff]
  %v5702 = vld [vmem:[%s5698 + $0x18] sm:$0xff]
  %v5704 = vsel %vm68, %v5682, 0
  %v5707 = vsel %vm68, %v5683, 0
  %v5710 = vsel %vm68, %v5684, 0
  %v5713 = vsel %vm68, %v5685, 0
  %v5716 = vsel %vm68, %v5686, 0
  %v5719 = vsel %vm68, %v5687, 0
  %v5722 = vsel %vm68, %v5688, 0
  %v5725 = vsel %vm68, %v5689, 0
  %v5728 = vsel %vm68, %v5690, 0
  %v5731 = vsel %vm68, %v5691, 0
  %v5734 = vsel %vm68, %v5692, 0
  %v5737 = vsel %vm68, %v5693, 0
  %v5740 = vsel %vm68, %v5694, 0
  %v5743 = vsel %vm68, %v5695, 0
  %v5746 = vsel %vm68, %v5696, 0
  %v5749 = vsel %vm68, %v5697, 0
  %5751 = vmatprep.subr.mxu0 0.0
  %5752 = vmatpush1.msra.mxu0 0.0
  %5753 = vmatprep.subr.mxu0 0.0
  %5754 = vmatpush1.msra.mxu0 0.0
  %5755 = vmatprep.subr.mxu0 0.0
  %5756 = vmatpush1.msra.mxu0 0.0
  %5757 = vmatprep.subr.mxu0 0.0
  %5758 = vmatpush1.msra.mxu0 0.0
  %5759 = vmatprep.subr.mxu0 0.0
  %5760 = vmatpush1.msra.mxu0 0.0
  %5761 = vmatprep.subr.mxu0 0.0
  %5762 = vmatpush1.msra.mxu0 0.0
  %5763 = vmatprep.subr.mxu0 0.0
  %5764 = vmatpush1.msra.mxu0 0.0
  %5765 = vmatprep.subr.mxu0 0.0
  %5766 = vmatpush1.msra.mxu0 0.0
  %5767 = vmatprep.subr.mxu0 0.0
  %5768 = vmatpush1.msra.mxu0 0.0
  %5769 = vmatprep.subr.mxu0 0.0
  %5770 = vmatpush1.msra.mxu0 0.0
  %5771 = vmatprep.subr.mxu0 0.0
  %5772 = vmatpush1.msra.mxu0 0.0
  %5773 = vmatprep.subr.mxu0 0.0
  %5774 = vmatpush1.msra.mxu0 0.0
  %5775 = vmatprep.subr.mxu0 0.0
  %5776 = vmatpush1.msra.mxu0 %v5702
  %5777 = vmatprep.subr.mxu0 0.0
  %5778 = vmatpush1.msra.mxu0 %v5701
  %5779 = vmatprep.subr.mxu0 0.0
  %5780 = vmatpush1.msra.mxu0 %v5700
  %5781 = vmatprep.subr.mxu0 0.0
  %5782 = vmatpush1.msra.mxu0 %v5699
  %5783 = vmatprep.subr.mxu0 0.0
  %5784 = vmatpush2.msra.mxu0 0.0
  %5785 = vmatprep.subr.mxu0 0.0
  %5786 = vmatpush2.msra.mxu0 0.0
  %5787 = vmatprep.subr.mxu0 0.0
  %5788 = vmatpush2.msra.mxu0 0.0
  %5789 = vmatprep.subr.mxu0 0.0
  %5790 = vmatpush2.msra.mxu0 0.0
  %5791 = vmatprep.subr.mxu0 0.0
  %5792 = vmatpush2.msra.mxu0 0.0
  %5793 = vmatprep.subr.mxu0 0.0
  %5794 = vmatpush2.msra.mxu0 0.0
  %5795 = vmatprep.subr.mxu0 0.0
  %5796 = vmatpush2.msra.mxu0 0.0
  %5797 = vmatprep.subr.mxu0 0.0
  %5798 = vmatpush2.msra.mxu0 0.0
  %5799 = vmatprep.subr.mxu0 0.0
  %5800 = vmatpush2.msra.mxu0 0.0
  %5801 = vmatprep.subr.mxu0 0.0
  %5802 = vmatpush2.msra.mxu0 0.0
  %5803 = vmatprep.subr.mxu0 0.0
  %5804 = vmatpush2.msra.mxu0 0.0
  %5805 = vmatprep.subr.mxu0 0.0
  %5806 = vmatpush2.msra.mxu0 0.0
  %5807 = vmatprep.subr.mxu0 0.0
  %5808 = vmatpush2.msra.mxu0 0.0
  %5809 = vmatprep.subr.mxu0 0.0
  %5810 = vmatpush2.msra.mxu0 0.0
  %5811 = vmatprep.subr.mxu0 0.0
  %5812 = vmatpush2.msra.mxu0 0.0
  %5813 = vmatprep.subr.mxu0 0.0
  %5814 = vmatpush2.msra.mxu0 0.0
  %5815 = vmatprep.mubr.f32.mxu0 0.0
  %5816 = vmatmul.mubr.f32.gmra.mxu0 %v5704
  %v5817 = vpop.f32.mrf.mxu0
  %v5818 = vadd.f32 0.0, %v5817
  %v5819 = vpop.f32.mrf.mxu0
  %5820 = vmatprep.mubr.f32.mxu0 0.0
  %5821 = vmatmul.mubr.f32.gmra.mxu0 %v5707
  %v5822 = vpop.f32.mrf.mxu0
  %v5823 = vadd.f32 0.0, %v5822
  %v5824 = vpop.f32.mrf.mxu0
  %5825 = vmatprep.mubr.f32.mxu0 0.0
  %5826 = vmatmul.mubr.f32.gmra.mxu0 %v5710
  %v5827 = vpop.f32.mrf.mxu0
  %v5828 = vadd.f32 0.0, %v5827
  %v5829 = vpop.f32.mrf.mxu0
  %5830 = vmatprep.mubr.f32.mxu0 0.0
  %5831 = vmatmul.mubr.f32.gmra.mxu0 %v5713
  %v5832 = vpop.f32.mrf.mxu0
  %v5833 = vadd.f32 0.0, %v5832
  %v5834 = vpop.f32.mrf.mxu0
  %5835 = vmatprep.mubr.f32.mxu0 0.0
  %5836 = vmatmul.mubr.f32.gmra.mxu0 %v5716
  %v5837 = vpop.f32.mrf.mxu0
  %v5838 = vadd.f32 0.0, %v5837
  %v5839 = vpop.f32.mrf.mxu0
  %5840 = vmatprep.mubr.f32.mxu0 0.0
  %5841 = vmatmul.mubr.f32.gmra.mxu0 %v5719
  %v5842 = vpop.f32.mrf.mxu0
  %v5843 = vadd.f32 0.0, %v5842
  %v5844 = vpop.f32.mrf.mxu0
  %5845 = vmatprep.mubr.f32.mxu0 0.0
  %5846 = vmatmul.mubr.f32.gmra.mxu0 %v5722
  %v5847 = vpop.f32.mrf.mxu0
  %v5848 = vadd.f32 0.0, %v5847
  %v5849 = vpop.f32.mrf.mxu0
  %5850 = vmatprep.mubr.f32.mxu0 0.0
  %5851 = vmatmul.mubr.f32.gmra.mxu0 %v5725
  %v5852 = vpop.f32.mrf.mxu0
  %v5853 = vadd.f32 0.0, %v5852
  %v5854 = vpop.f32.mrf.mxu0
  %5855 = vmatprep.mubr.f32.mxu0 0.0
  %5856 = vmatmul.mubr.f32.gmra.mxu0 %v5728
  %v5857 = vpop.f32.mrf.mxu0
  %v5858 = vadd.f32 0.0, %v5857
  %v5859 = vpop.f32.mrf.mxu0
  %5860 = vmatprep.mubr.f32.mxu0 0.0
  %5861 = vmatmul.mubr.f32.gmra.mxu0 %v5731
  %v5862 = vpop.f32.mrf.mxu0
  %v5863 = vadd.f32 0.0, %v5862
  %v5864 = vpop.f32.mrf.mxu0
  %5865 = vmatprep.mubr.f32.mxu0 0.0
  %5866 = vmatmul.mubr.f32.gmra.mxu0 %v5734
  %v5867 = vpop.f32.mrf.mxu0
  %v5868 = vadd.f32 0.0, %v5867
  %v5869 = vpop.f32.mrf.mxu0
  %5870 = vmatprep.mubr.f32.mxu0 0.0
  %5871 = vmatmul.mubr.f32.gmra.mxu0 %v5737
  %v5872 = vpop.f32.mrf.mxu0
  %v5873 = vadd.f32 0.0, %v5872
  %v5874 = vpop.f32.mrf.mxu0
  %5875 = vmatprep.mubr.f32.mxu0 0.0
  %5876 = vmatmul.mubr.f32.gmra.mxu0 %v5740
  %v5877 = vpop.f32.mrf.mxu0
  %v5878 = vadd.f32 0.0, %v5877
  %v5879 = vpop.f32.mrf.mxu0
  %5880 = vmatprep.mubr.f32.mxu0 0.0
  %5881 = vmatmul.mubr.f32.gmra.mxu0 %v5743
  %v5882 = vpop.f32.mrf.mxu0
  %v5883 = vadd.f32 0.0, %v5882
  %v5884 = vpop.f32.mrf.mxu0
  %5885 = vmatprep.mubr.f32.mxu0 0.0
  %5886 = vmatmul.mubr.f32.gmra.mxu0 %v5746
  %v5887 = vpop.f32.mrf.mxu0
  %v5888 = vadd.f32 0.0, %v5887
  %v5889 = vpop.f32.mrf.mxu0
  %5890 = vmatprep.mubr.f32.mxu0 0.0
  %5891 = vmatmul.mubr.f32.gmra.mxu0 %v5749
  %v5892 = vpop.f32.mrf.mxu0
  %v5893 = vadd.f32 0.0, %v5892
  %v5894 = vpop.f32.mrf.mxu0
  %5895 = vdwg.mxu0
  %v5896 = vadd.f32 %v5666, %v5818
  %v5897 = vadd.f32 %v5667, %v5823
  %v5898 = vadd.f32 %v5668, %v5828
  %v5899 = vadd.f32 %v5669, %v5833
  %v5900 = vadd.f32 %v5670, %v5838
  %v5901 = vadd.f32 %v5671, %v5843
  %v5902 = vadd.f32 %v5672, %v5848
  %v5903 = vadd.f32 %v5673, %v5853
  %v5904 = vadd.f32 %v5674, %v5858
  %v5905 = vadd.f32 %v5675, %v5863
  %v5906 = vadd.f32 %v5676, %v5868
  %v5907 = vadd.f32 %v5677, %v5873
  %v5908 = vadd.f32 %v5678, %v5878
  %v5909 = vadd.f32 %v5679, %v5883
  %v5910 = vadd.f32 %v5680, %v5888
  %v5911 = vadd.f32 %v5681, %v5893
  %v5912 = vld [vmem:[%s1490] sm:$0xff]
  %v5913 = vld [vmem:[%s1490 + $0x10] sm:$0xff]
  %v5914 = vld [vmem:[%s1490 + $0x20] sm:$0xff]
  %v5915 = vld [vmem:[%s1490 + $0x30] sm:$0xff]
  %v5916 = vld [vmem:[%s1490 + $0x40] sm:$0xff]
  %v5917 = vld [vmem:[%s1490 + $0x50] sm:$0xff]
  %v5918 = vld [vmem:[%s1490 + $0x60] sm:$0xff]
  %v5919 = vld [vmem:[%s1490 + $0x70] sm:$0xff]
  %v5920 = vld [vmem:[%s1490 + $0xa0] sm:$0xff]
  %v5921 = vld [vmem:[%s1490 + $0xb0] sm:$0xff]
  %v5922 = vld [vmem:[%s1490 + $0xc0] sm:$0xff]
  %v5923 = vld [vmem:[%s1490 + $0xd0] sm:$0xff]
  %v5924 = vld [vmem:[%s1490 + $0xe0] sm:$0xff]
  %v5925 = vld [vmem:[%s1490 + $0xf0] sm:$0xff]
  %v5926 = vld [vmem:[%s1490 + $0x100] sm:$0xff]
  %v5927 = vld [vmem:[%s1490 + $0x110] sm:$0xff]
  %s5928 = scalar_lea.vmem %s7, 192
  %v5929 = vld [vmem:[%s5928] sm:$0xff]
  %v5930 = vld [vmem:[%s5928 + $0x8] sm:$0xff]
  %v5931 = vld [vmem:[%s5928 + $0x10] sm:$0xff]
  %v5932 = vld [vmem:[%s5928 + $0x18] sm:$0xff]
  %v5934 = vsel %vm68, %v5912, 0
  %v5937 = vsel %vm68, %v5913, 0
  %v5940 = vsel %vm68, %v5914, 0
  %v5943 = vsel %vm68, %v5915, 0
  %v5946 = vsel %vm68, %v5916, 0
  %v5949 = vsel %vm68, %v5917, 0
  %v5952 = vsel %vm68, %v5918, 0
  %v5955 = vsel %vm68, %v5919, 0
  %v5958 = vsel %vm68, %v5920, 0
  %v5961 = vsel %vm68, %v5921, 0
  %v5964 = vsel %vm68, %v5922, 0
  %v5967 = vsel %vm68, %v5923, 0
  %v5970 = vsel %vm68, %v5924, 0
  %v5973 = vsel %vm68, %v5925, 0
  %v5976 = vsel %vm68, %v5926, 0
  %v5979 = vsel %vm68, %v5927, 0
  %5981 = vmatprep.subr.mxu0 0.0
  %5982 = vmatpush1.msra.mxu0 0.0
  %5983 = vmatprep.subr.mxu0 0.0
  %5984 = vmatpush1.msra.mxu0 0.0
  %5985 = vmatprep.subr.mxu0 0.0
  %5986 = vmatpush1.msra.mxu0 0.0
  %5987 = vmatprep.subr.mxu0 0.0
  %5988 = vmatpush1.msra.mxu0 0.0
  %5989 = vmatprep.subr.mxu0 0.0
  %5990 = vmatpush1.msra.mxu0 0.0
  %5991 = vmatprep.subr.mxu0 0.0
  %5992 = vmatpush1.msra.mxu0 0.0
  %5993 = vmatprep.subr.mxu0 0.0
  %5994 = vmatpush1.msra.mxu0 0.0
  %5995 = vmatprep.subr.mxu0 0.0
  %5996 = vmatpush1.msra.mxu0 0.0
  %5997 = vmatprep.subr.mxu0 0.0
  %5998 = vmatpush1.msra.mxu0 0.0
  %5999 = vmatprep.subr.mxu0 0.0
  %6000 = vmatpush1.msra.mxu0 0.0
  %6001 = vmatprep.subr.mxu0 0.0
  %6002 = vmatpush1.msra.mxu0 0.0
  %6003 = vmatprep.subr.mxu0 0.0
  %6004 = vmatpush1.msra.mxu0 0.0
  %6005 = vmatprep.subr.mxu0 0.0
  %6006 = vmatpush1.msra.mxu0 %v5932
  %6007 = vmatprep.subr.mxu0 0.0
  %6008 = vmatpush1.msra.mxu0 %v5931
  %6009 = vmatprep.subr.mxu0 0.0
  %6010 = vmatpush1.msra.mxu0 %v5930
  %6011 = vmatprep.subr.mxu0 0.0
  %6012 = vmatpush1.msra.mxu0 %v5929
  %6013 = vmatprep.subr.mxu0 0.0
  %6014 = vmatpush2.msra.mxu0 0.0
  %6015 = vmatprep.subr.mxu0 0.0
  %6016 = vmatpush2.msra.mxu0 0.0
  %6017 = vmatprep.subr.mxu0 0.0
  %6018 = vmatpush2.msra.mxu0 0.0
  %6019 = vmatprep.subr.mxu0 0.0
  %6020 = vmatpush2.msra.mxu0 0.0
  %6021 = vmatprep.subr.mxu0 0.0
  %6022 = vmatpush2.msra.mxu0 0.0
  %6023 = vmatprep.subr.mxu0 0.0
  %6024 = vmatpush2.msra.mxu0 0.0
  %6025 = vmatprep.subr.mxu0 0.0
  %6026 = vmatpush2.msra.mxu0 0.0
  %6027 = vmatprep.subr.mxu0 0.0
  %6028 = vmatpush2.msra.mxu0 0.0
  %6029 = vmatprep.subr.mxu0 0.0
  %6030 = vmatpush2.msra.mxu0 0.0
  %6031 = vmatprep.subr.mxu0 0.0
  %6032 = vmatpush2.msra.mxu0 0.0
  %6033 = vmatprep.subr.mxu0 0.0
  %6034 = vmatpush2.msra.mxu0 0.0
  %6035 = vmatprep.subr.mxu0 0.0
  %6036 = vmatpush2.msra.mxu0 0.0
  %6037 = vmatprep.subr.mxu0 0.0
  %6038 = vmatpush2.msra.mxu0 0.0
  %6039 = vmatprep.subr.mxu0 0.0
  %6040 = vmatpush2.msra.mxu0 0.0
  %6041 = vmatprep.subr.mxu0 0.0
  %6042 = vmatpush2.msra.mxu0 0.0
  %6043 = vmatprep.subr.mxu0 0.0
  %6044 = vmatpush2.msra.mxu0 0.0
  %6045 = vmatprep.mubr.f32.mxu0 0.0
  %6046 = vmatmul.mubr.f32.gmra.mxu0 %v5934
  %v6047 = vpop.f32.mrf.mxu0
  %v6048 = vadd.f32 0.0, %v6047
  %v6049 = vpop.f32.mrf.mxu0
  %6050 = vmatprep.mubr.f32.mxu0 0.0
  %6051 = vmatmul.mubr.f32.gmra.mxu0 %v5937
  %v6052 = vpop.f32.mrf.mxu0
  %v6053 = vadd.f32 0.0, %v6052
  %v6054 = vpop.f32.mrf.mxu0
  %6055 = vmatprep.mubr.f32.mxu0 0.0
  %6056 = vmatmul.mubr.f32.gmra.mxu0 %v5940
  %v6057 = vpop.f32.mrf.mxu0
  %v6058 = vadd.f32 0.0, %v6057
  %v6059 = vpop.f32.mrf.mxu0
  %6060 = vmatprep.mubr.f32.mxu0 0.0
  %6061 = vmatmul.mubr.f32.gmra.mxu0 %v5943
  %v6062 = vpop.f32.mrf.mxu0
  %v6063 = vadd.f32 0.0, %v6062
  %v6064 = vpop.f32.mrf.mxu0
  %6065 = vmatprep.mubr.f32.mxu0 0.0
  %6066 = vmatmul.mubr.f32.gmra.mxu0 %v5946
  %v6067 = vpop.f32.mrf.mxu0
  %v6068 = vadd.f32 0.0, %v6067
  %v6069 = vpop.f32.mrf.mxu0
  %6070 = vmatprep.mubr.f32.mxu0 0.0
  %6071 = vmatmul.mubr.f32.gmra.mxu0 %v5949
  %v6072 = vpop.f32.mrf.mxu0
  %v6073 = vadd.f32 0.0, %v6072
  %v6074 = vpop.f32.mrf.mxu0
  %6075 = vmatprep.mubr.f32.mxu0 0.0
  %6076 = vmatmul.mubr.f32.gmra.mxu0 %v5952
  %v6077 = vpop.f32.mrf.mxu0
  %v6078 = vadd.f32 0.0, %v6077
  %v6079 = vpop.f32.mrf.mxu0
  %6080 = vmatprep.mubr.f32.mxu0 0.0
  %6081 = vmatmul.mubr.f32.gmra.mxu0 %v5955
  %v6082 = vpop.f32.mrf.mxu0
  %v6083 = vadd.f32 0.0, %v6082
  %v6084 = vpop.f32.mrf.mxu0
  %6085 = vmatprep.mubr.f32.mxu0 0.0
  %6086 = vmatmul.mubr.f32.gmra.mxu0 %v5958
  %v6087 = vpop.f32.mrf.mxu0
  %v6088 = vadd.f32 0.0, %v6087
  %v6089 = vpop.f32.mrf.mxu0
  %6090 = vmatprep.mubr.f32.mxu0 0.0
  %6091 = vmatmul.mubr.f32.gmra.mxu0 %v5961
  %v6092 = vpop.f32.mrf.mxu0
  %v6093 = vadd.f32 0.0, %v6092
  %v6094 = vpop.f32.mrf.mxu0
  %6095 = vmatprep.mubr.f32.mxu0 0.0
  %6096 = vmatmul.mubr.f32.gmra.mxu0 %v5964
  %v6097 = vpop.f32.mrf.mxu0
  %v6098 = vadd.f32 0.0, %v6097
  %v6099 = vpop.f32.mrf.mxu0
  %6100 = vmatprep.mubr.f32.mxu0 0.0
  %6101 = vmatmul.mubr.f32.gmra.mxu0 %v5967
  %v6102 = vpop.f32.mrf.mxu0
  %v6103 = vadd.f32 0.0, %v6102
  %v6104 = vpop.f32.mrf.mxu0
  %6105 = vmatprep.mubr.f32.mxu0 0.0
  %6106 = vmatmul.mubr.f32.gmra.mxu0 %v5970
  %v6107 = vpop.f32.mrf.mxu0
  %v6108 = vadd.f32 0.0, %v6107
  %v6109 = vpop.f32.mrf.mxu0
  %6110 = vmatprep.mubr.f32.mxu0 0.0
  %6111 = vmatmul.mubr.f32.gmra.mxu0 %v5973
  %v6112 = vpop.f32.mrf.mxu0
  %v6113 = vadd.f32 0.0, %v6112
  %v6114 = vpop.f32.mrf.mxu0
  %6115 = vmatprep.mubr.f32.mxu0 0.0
  %6116 = vmatmul.mubr.f32.gmra.mxu0 %v5976
  %v6117 = vpop.f32.mrf.mxu0
  %v6118 = vadd.f32 0.0, %v6117
  %v6119 = vpop.f32.mrf.mxu0
  %6120 = vmatprep.mubr.f32.mxu0 0.0
  %6121 = vmatmul.mubr.f32.gmra.mxu0 %v5979
  %v6122 = vpop.f32.mrf.mxu0
  %v6123 = vadd.f32 0.0, %v6122
  %v6124 = vpop.f32.mrf.mxu0
  %6125 = vdwg.mxu0
  %v6126 = vadd.f32 %v5896, %v6048
  %v6127 = vadd.f32 %v5897, %v6053
  %v6128 = vadd.f32 %v5898, %v6058
  %v6129 = vadd.f32 %v5899, %v6063
  %v6130 = vadd.f32 %v5900, %v6068
  %v6131 = vadd.f32 %v5901, %v6073
  %v6132 = vadd.f32 %v5902, %v6078
  %v6133 = vadd.f32 %v5903, %v6083
  %v6134 = vadd.f32 %v5904, %v6088
  %v6135 = vadd.f32 %v5905, %v6093
  %v6136 = vadd.f32 %v5906, %v6098
  %v6137 = vadd.f32 %v5907, %v6103
  %v6138 = vadd.f32 %v5908, %v6108
  %v6139 = vadd.f32 %v5909, %v6113
  %v6140 = vadd.f32 %v5910, %v6118
  %v6141 = vadd.f32 %v5911, %v6123
  %v6142 = vld [vmem:[%s1490 + $0x1] sm:$0xff]
  %v6143 = vld [vmem:[%s1490 + $0x11] sm:$0xff]
  %v6144 = vld [vmem:[%s1490 + $0x21] sm:$0xff]
  %v6145 = vld [vmem:[%s1490 + $0x31] sm:$0xff]
  %v6146 = vld [vmem:[%s1490 + $0x41] sm:$0xff]
  %v6147 = vld [vmem:[%s1490 + $0x51] sm:$0xff]
  %v6148 = vld [vmem:[%s1490 + $0x61] sm:$0xff]
  %v6149 = vld [vmem:[%s1490 + $0x71] sm:$0xff]
  %v6150 = vld [vmem:[%s1490 + $0xa1] sm:$0xff]
  %v6151 = vld [vmem:[%s1490 + $0xb1] sm:$0xff]
  %v6152 = vld [vmem:[%s1490 + $0xc1] sm:$0xff]
  %v6153 = vld [vmem:[%s1490 + $0xd1] sm:$0xff]
  %v6154 = vld [vmem:[%s1490 + $0xe1] sm:$0xff]
  %v6155 = vld [vmem:[%s1490 + $0xf1] sm:$0xff]
  %v6156 = vld [vmem:[%s1490 + $0x101] sm:$0xff]
  %v6157 = vld [vmem:[%s1490 + $0x111] sm:$0xff]
  %s6158 = scalar_lea.vmem %s7, 224
  %v6159 = vld [vmem:[%s6158] sm:$0xff]
  %v6160 = vld [vmem:[%s6158 + $0x8] sm:$0xff]
  %v6161 = vld [vmem:[%s6158 + $0x10] sm:$0xff]
  %v6162 = vld [vmem:[%s6158 + $0x18] sm:$0xff]
  %v6164 = vsel %vm68, %v6142, 0
  %v6167 = vsel %vm68, %v6143, 0
  %v6170 = vsel %vm68, %v6144, 0
  %v6173 = vsel %vm68, %v6145, 0
  %v6176 = vsel %vm68, %v6146, 0
  %v6179 = vsel %vm68, %v6147, 0
  %v6182 = vsel %vm68, %v6148, 0
  %v6185 = vsel %vm68, %v6149, 0
  %v6188 = vsel %vm68, %v6150, 0
  %v6191 = vsel %vm68, %v6151, 0
  %v6194 = vsel %vm68, %v6152, 0
  %v6197 = vsel %vm68, %v6153, 0
  %v6200 = vsel %vm68, %v6154, 0
  %v6203 = vsel %vm68, %v6155, 0
  %v6206 = vsel %vm68, %v6156, 0
  %v6209 = vsel %vm68, %v6157, 0
  %6211 = vmatprep.subr.mxu0 0.0
  %6212 = vmatpush1.msra.mxu0 0.0
  %6213 = vmatprep.subr.mxu0 0.0
  %6214 = vmatpush1.msra.mxu0 0.0
  %6215 = vmatprep.subr.mxu0 0.0
  %6216 = vmatpush1.msra.mxu0 0.0
  %6217 = vmatprep.subr.mxu0 0.0
  %6218 = vmatpush1.msra.mxu0 0.0
  %6219 = vmatprep.subr.mxu0 0.0
  %6220 = vmatpush1.msra.mxu0 0.0
  %6221 = vmatprep.subr.mxu0 0.0
  %6222 = vmatpush1.msra.mxu0 0.0
  %6223 = vmatprep.subr.mxu0 0.0
  %6224 = vmatpush1.msra.mxu0 0.0
  %6225 = vmatprep.subr.mxu0 0.0
  %6226 = vmatpush1.msra.mxu0 0.0
  %6227 = vmatprep.subr.mxu0 0.0
  %6228 = vmatpush1.msra.mxu0 0.0
  %6229 = vmatprep.subr.mxu0 0.0
  %6230 = vmatpush1.msra.mxu0 0.0
  %6231 = vmatprep.subr.mxu0 0.0
  %6232 = vmatpush1.msra.mxu0 0.0
  %6233 = vmatprep.subr.mxu0 0.0
  %6234 = vmatpush1.msra.mxu0 0.0
  %6235 = vmatprep.subr.mxu0 0.0
  %6236 = vmatpush1.msra.mxu0 %v6162
  %6237 = vmatprep.subr.mxu0 0.0
  %6238 = vmatpush1.msra.mxu0 %v6161
  %6239 = vmatprep.subr.mxu0 0.0
  %6240 = vmatpush1.msra.mxu0 %v6160
  %6241 = vmatprep.subr.mxu0 0.0
  %6242 = vmatpush1.msra.mxu0 %v6159
  %6243 = vmatprep.subr.mxu0 0.0
  %6244 = vmatpush2.msra.mxu0 0.0
  %6245 = vmatprep.subr.mxu0 0.0
  %6246 = vmatpush2.msra.mxu0 0.0
  %6247 = vmatprep.subr.mxu0 0.0
  %6248 = vmatpush2.msra.mxu0 0.0
  %6249 = vmatprep.subr.mxu0 0.0
  %6250 = vmatpush2.msra.mxu0 0.0
  %6251 = vmatprep.subr.mxu0 0.0
  %6252 = vmatpush2.msra.mxu0 0.0
  %6253 = vmatprep.subr.mxu0 0.0
  %6254 = vmatpush2.msra.mxu0 0.0
  %6255 = vmatprep.subr.mxu0 0.0
  %6256 = vmatpush2.msra.mxu0 0.0
  %6257 = vmatprep.subr.mxu0 0.0
  %6258 = vmatpush2.msra.mxu0 0.0
  %6259 = vmatprep.subr.mxu0 0.0
  %6260 = vmatpush2.msra.mxu0 0.0
  %6261 = vmatprep.subr.mxu0 0.0
  %6262 = vmatpush2.msra.mxu0 0.0
  %6263 = vmatprep.subr.mxu0 0.0
  %6264 = vmatpush2.msra.mxu0 0.0
  %6265 = vmatprep.subr.mxu0 0.0
  %6266 = vmatpush2.msra.mxu0 0.0
  %6267 = vmatprep.subr.mxu0 0.0
  %6268 = vmatpush2.msra.mxu0 0.0
  %6269 = vmatprep.subr.mxu0 0.0
  %6270 = vmatpush2.msra.mxu0 0.0
  %6271 = vmatprep.subr.mxu0 0.0
  %6272 = vmatpush2.msra.mxu0 0.0
  %6273 = vmatprep.subr.mxu0 0.0
  %6274 = vmatpush2.msra.mxu0 0.0
  %6275 = vmatprep.mubr.f32.mxu0 0.0
  %6276 = vmatmul.mubr.f32.gmra.mxu0 %v6164
  %v6277 = vpop.f32.mrf.mxu0
  %v6278 = vadd.f32 0.0, %v6277
  %v6279 = vpop.f32.mrf.mxu0
  %6280 = vmatprep.mubr.f32.mxu0 0.0
  %6281 = vmatmul.mubr.f32.gmra.mxu0 %v6167
  %v6282 = vpop.f32.mrf.mxu0
  %v6283 = vadd.f32 0.0, %v6282
  %v6284 = vpop.f32.mrf.mxu0
  %6285 = vmatprep.mubr.f32.mxu0 0.0
  %6286 = vmatmul.mubr.f32.gmra.mxu0 %v6170
  %v6287 = vpop.f32.mrf.mxu0
  %v6288 = vadd.f32 0.0, %v6287
  %v6289 = vpop.f32.mrf.mxu0
  %6290 = vmatprep.mubr.f32.mxu0 0.0
  %6291 = vmatmul.mubr.f32.gmra.mxu0 %v6173
  %v6292 = vpop.f32.mrf.mxu0
  %v6293 = vadd.f32 0.0, %v6292
  %v6294 = vpop.f32.mrf.mxu0
  %6295 = vmatprep.mubr.f32.mxu0 0.0
  %6296 = vmatmul.mubr.f32.gmra.mxu0 %v6176
  %v6297 = vpop.f32.mrf.mxu0
  %v6298 = vadd.f32 0.0, %v6297
  %v6299 = vpop.f32.mrf.mxu0
  %6300 = vmatprep.mubr.f32.mxu0 0.0
  %6301 = vmatmul.mubr.f32.gmra.mxu0 %v6179
  %v6302 = vpop.f32.mrf.mxu0
  %v6303 = vadd.f32 0.0, %v6302
  %v6304 = vpop.f32.mrf.mxu0
  %6305 = vmatprep.mubr.f32.mxu0 0.0
  %6306 = vmatmul.mubr.f32.gmra.mxu0 %v6182
  %v6307 = vpop.f32.mrf.mxu0
  %v6308 = vadd.f32 0.0, %v6307
  %v6309 = vpop.f32.mrf.mxu0
  %6310 = vmatprep.mubr.f32.mxu0 0.0
  %6311 = vmatmul.mubr.f32.gmra.mxu0 %v6185
  %v6312 = vpop.f32.mrf.mxu0
  %v6313 = vadd.f32 0.0, %v6312
  %v6314 = vpop.f32.mrf.mxu0
  %6315 = vmatprep.mubr.f32.mxu0 0.0
  %6316 = vmatmul.mubr.f32.gmra.mxu0 %v6188
  %v6317 = vpop.f32.mrf.mxu0
  %v6318 = vadd.f32 0.0, %v6317
  %v6319 = vpop.f32.mrf.mxu0
  %6320 = vmatprep.mubr.f32.mxu0 0.0
  %6321 = vmatmul.mubr.f32.gmra.mxu0 %v6191
  %v6322 = vpop.f32.mrf.mxu0
  %v6323 = vadd.f32 0.0, %v6322
  %v6324 = vpop.f32.mrf.mxu0
  %6325 = vmatprep.mubr.f32.mxu0 0.0
  %6326 = vmatmul.mubr.f32.gmra.mxu0 %v6194
  %v6327 = vpop.f32.mrf.mxu0
  %v6328 = vadd.f32 0.0, %v6327
  %v6329 = vpop.f32.mrf.mxu0
  %6330 = vmatprep.mubr.f32.mxu0 0.0
  %6331 = vmatmul.mubr.f32.gmra.mxu0 %v6197
  %v6332 = vpop.f32.mrf.mxu0
  %v6333 = vadd.f32 0.0, %v6332
  %v6334 = vpop.f32.mrf.mxu0
  %6335 = vmatprep.mubr.f32.mxu0 0.0
  %6336 = vmatmul.mubr.f32.gmra.mxu0 %v6200
  %v6337 = vpop.f32.mrf.mxu0
  %v6338 = vadd.f32 0.0, %v6337
  %v6339 = vpop.f32.mrf.mxu0
  %6340 = vmatprep.mubr.f32.mxu0 0.0
  %6341 = vmatmul.mubr.f32.gmra.mxu0 %v6203
  %v6342 = vpop.f32.mrf.mxu0
  %v6343 = vadd.f32 0.0, %v6342
  %v6344 = vpop.f32.mrf.mxu0
  %6345 = vmatprep.mubr.f32.mxu0 0.0
  %6346 = vmatmul.mubr.f32.gmra.mxu0 %v6206
  %v6347 = vpop.f32.mrf.mxu0
  %v6348 = vadd.f32 0.0, %v6347
  %v6349 = vpop.f32.mrf.mxu0
  %6350 = vmatprep.mubr.f32.mxu0 0.0
  %6351 = vmatmul.mubr.f32.gmra.mxu0 %v6209
  %v6352 = vpop.f32.mrf.mxu0
  %v6353 = vadd.f32 0.0, %v6352
  %v6354 = vpop.f32.mrf.mxu0
  %6355 = vdwg.mxu0
  %v6356 = vadd.f32 %v6126, %v6278
  %v6357 = vadd.f32 %v6127, %v6283
  %v6358 = vadd.f32 %v6128, %v6288
  %v6359 = vadd.f32 %v6129, %v6293
  %v6360 = vadd.f32 %v6130, %v6298
  %v6361 = vadd.f32 %v6131, %v6303
  %v6362 = vadd.f32 %v6132, %v6308
  %v6363 = vadd.f32 %v6133, %v6313
  %v6364 = vadd.f32 %v6134, %v6318
  %v6365 = vadd.f32 %v6135, %v6323
  %v6366 = vadd.f32 %v6136, %v6328
  %v6367 = vadd.f32 %v6137, %v6333
  %v6368 = vadd.f32 %v6138, %v6338
  %v6369 = vadd.f32 %v6139, %v6343
  %v6370 = vadd.f32 %v6140, %v6348
  %v6371 = vadd.f32 %v6141, %v6353
  %v6372 = vld [vmem:[%s1490 + $0x2] sm:$0xff]
  %v6373 = vld [vmem:[%s1490 + $0x12] sm:$0xff]
  %v6374 = vld [vmem:[%s1490 + $0x22] sm:$0xff]
  %v6375 = vld [vmem:[%s1490 + $0x32] sm:$0xff]
  %v6376 = vld [vmem:[%s1490 + $0x42] sm:$0xff]
  %v6377 = vld [vmem:[%s1490 + $0x52] sm:$0xff]
  %v6378 = vld [vmem:[%s1490 + $0x62] sm:$0xff]
  %v6379 = vld [vmem:[%s1490 + $0x72] sm:$0xff]
  %v6380 = vld [vmem:[%s1490 + $0xa2] sm:$0xff]
  %v6381 = vld [vmem:[%s1490 + $0xb2] sm:$0xff]
  %v6382 = vld [vmem:[%s1490 + $0xc2] sm:$0xff]
  %v6383 = vld [vmem:[%s1490 + $0xd2] sm:$0xff]
  %v6384 = vld [vmem:[%s1490 + $0xe2] sm:$0xff]
  %v6385 = vld [vmem:[%s1490 + $0xf2] sm:$0xff]
  %v6386 = vld [vmem:[%s1490 + $0x102] sm:$0xff]
  %v6387 = vld [vmem:[%s1490 + $0x112] sm:$0xff]
  %s6388 = scalar_lea.vmem %s7, 256
  %v6389 = vld [vmem:[%s6388] sm:$0xff]
  %v6390 = vld [vmem:[%s6388 + $0x8] sm:$0xff]
  %v6391 = vld [vmem:[%s6388 + $0x10] sm:$0xff]
  %v6392 = vld [vmem:[%s6388 + $0x18] sm:$0xff]
  %v6394 = vsel %vm68, %v6372, 0
  %v6397 = vsel %vm68, %v6373, 0
  %v6400 = vsel %vm68, %v6374, 0
  %v6403 = vsel %vm68, %v6375, 0
  %v6406 = vsel %vm68, %v6376, 0
  %v6409 = vsel %vm68, %v6377, 0
  %v6412 = vsel %vm68, %v6378, 0
  %v6415 = vsel %vm68, %v6379, 0
  %v6418 = vsel %vm68, %v6380, 0
  %v6421 = vsel %vm68, %v6381, 0
  %v6424 = vsel %vm68, %v6382, 0
  %v6427 = vsel %vm68, %v6383, 0
  %v6430 = vsel %vm68, %v6384, 0
  %v6433 = vsel %vm68, %v6385, 0
  %v6436 = vsel %vm68, %v6386, 0
  %v6439 = vsel %vm68, %v6387, 0
  %6441 = vmatprep.subr.mxu0 0.0
  %6442 = vmatpush1.msra.mxu0 0.0
  %6443 = vmatprep.subr.mxu0 0.0
  %6444 = vmatpush1.msra.mxu0 0.0
  %6445 = vmatprep.subr.mxu0 0.0
  %6446 = vmatpush1.msra.mxu0 0.0
  %6447 = vmatprep.subr.mxu0 0.0
  %6448 = vmatpush1.msra.mxu0 0.0
  %6449 = vmatprep.subr.mxu0 0.0
  %6450 = vmatpush1.msra.mxu0 0.0
  %6451 = vmatprep.subr.mxu0 0.0
  %6452 = vmatpush1.msra.mxu0 0.0
  %6453 = vmatprep.subr.mxu0 0.0
  %6454 = vmatpush1.msra.mxu0 0.0
  %6455 = vmatprep.subr.mxu0 0.0
  %6456 = vmatpush1.msra.mxu0 0.0
  %6457 = vmatprep.subr.mxu0 0.0
  %6458 = vmatpush1.msra.mxu0 0.0
  %6459 = vmatprep.subr.mxu0 0.0
  %6460 = vmatpush1.msra.mxu0 0.0
  %6461 = vmatprep.subr.mxu0 0.0
  %6462 = vmatpush1.msra.mxu0 0.0
  %6463 = vmatprep.subr.mxu0 0.0
  %6464 = vmatpush1.msra.mxu0 0.0
  %6465 = vmatprep.subr.mxu0 0.0
  %6466 = vmatpush1.msra.mxu0 %v6392
  %6467 = vmatprep.subr.mxu0 0.0
  %6468 = vmatpush1.msra.mxu0 %v6391
  %6469 = vmatprep.subr.mxu0 0.0
  %6470 = vmatpush1.msra.mxu0 %v6390
  %6471 = vmatprep.subr.mxu0 0.0
  %6472 = vmatpush1.msra.mxu0 %v6389
  %6473 = vmatprep.subr.mxu0 0.0
  %6474 = vmatpush2.msra.mxu0 0.0
  %6475 = vmatprep.subr.mxu0 0.0
  %6476 = vmatpush2.msra.mxu0 0.0
  %6477 = vmatprep.subr.mxu0 0.0
  %6478 = vmatpush2.msra.mxu0 0.0
  %6479 = vmatprep.subr.mxu0 0.0
  %6480 = vmatpush2.msra.mxu0 0.0
  %6481 = vmatprep.subr.mxu0 0.0
  %6482 = vmatpush2.msra.mxu0 0.0
  %6483 = vmatprep.subr.mxu0 0.0
  %6484 = vmatpush2.msra.mxu0 0.0
  %6485 = vmatprep.subr.mxu0 0.0
  %6486 = vmatpush2.msra.mxu0 0.0
  %6487 = vmatprep.subr.mxu0 0.0
  %6488 = vmatpush2.msra.mxu0 0.0
  %6489 = vmatprep.subr.mxu0 0.0
  %6490 = vmatpush2.msra.mxu0 0.0
  %6491 = vmatprep.subr.mxu0 0.0
  %6492 = vmatpush2.msra.mxu0 0.0
  %6493 = vmatprep.subr.mxu0 0.0
  %6494 = vmatpush2.msra.mxu0 0.0
  %6495 = vmatprep.subr.mxu0 0.0
  %6496 = vmatpush2.msra.mxu0 0.0
  %6497 = vmatprep.subr.mxu0 0.0
  %6498 = vmatpush2.msra.mxu0 0.0
  %6499 = vmatprep.subr.mxu0 0.0
  %6500 = vmatpush2.msra.mxu0 0.0
  %6501 = vmatprep.subr.mxu0 0.0
  %6502 = vmatpush2.msra.mxu0 0.0
  %6503 = vmatprep.subr.mxu0 0.0
  %6504 = vmatpush2.msra.mxu0 0.0
  %6505 = vmatprep.mubr.f32.mxu0 0.0
  %6506 = vmatmul.mubr.f32.gmra.mxu0 %v6394
  %v6507 = vpop.f32.mrf.mxu0
  %v6508 = vadd.f32 0.0, %v6507
  %v6509 = vpop.f32.mrf.mxu0
  %6510 = vmatprep.mubr.f32.mxu0 0.0
  %6511 = vmatmul.mubr.f32.gmra.mxu0 %v6397
  %v6512 = vpop.f32.mrf.mxu0
  %v6513 = vadd.f32 0.0, %v6512
  %v6514 = vpop.f32.mrf.mxu0
  %6515 = vmatprep.mubr.f32.mxu0 0.0
  %6516 = vmatmul.mubr.f32.gmra.mxu0 %v6400
  %v6517 = vpop.f32.mrf.mxu0
  %v6518 = vadd.f32 0.0, %v6517
  %v6519 = vpop.f32.mrf.mxu0
  %6520 = vmatprep.mubr.f32.mxu0 0.0
  %6521 = vmatmul.mubr.f32.gmra.mxu0 %v6403
  %v6522 = vpop.f32.mrf.mxu0
  %v6523 = vadd.f32 0.0, %v6522
  %v6524 = vpop.f32.mrf.mxu0
  %6525 = vmatprep.mubr.f32.mxu0 0.0
  %6526 = vmatmul.mubr.f32.gmra.mxu0 %v6406
  %v6527 = vpop.f32.mrf.mxu0
  %v6528 = vadd.f32 0.0, %v6527
  %v6529 = vpop.f32.mrf.mxu0
  %6530 = vmatprep.mubr.f32.mxu0 0.0
  %6531 = vmatmul.mubr.f32.gmra.mxu0 %v6409
  %v6532 = vpop.f32.mrf.mxu0
  %v6533 = vadd.f32 0.0, %v6532
  %v6534 = vpop.f32.mrf.mxu0
  %6535 = vmatprep.mubr.f32.mxu0 0.0
  %6536 = vmatmul.mubr.f32.gmra.mxu0 %v6412
  %v6537 = vpop.f32.mrf.mxu0
  %v6538 = vadd.f32 0.0, %v6537
  %v6539 = vpop.f32.mrf.mxu0
  %6540 = vmatprep.mubr.f32.mxu0 0.0
  %6541 = vmatmul.mubr.f32.gmra.mxu0 %v6415
  %v6542 = vpop.f32.mrf.mxu0
  %v6543 = vadd.f32 0.0, %v6542
  %v6544 = vpop.f32.mrf.mxu0
  %6545 = vmatprep.mubr.f32.mxu0 0.0
  %6546 = vmatmul.mubr.f32.gmra.mxu0 %v6418
  %v6547 = vpop.f32.mrf.mxu0
  %v6548 = vadd.f32 0.0, %v6547
  %v6549 = vpop.f32.mrf.mxu0
  %6550 = vmatprep.mubr.f32.mxu0 0.0
  %6551 = vmatmul.mubr.f32.gmra.mxu0 %v6421
  %v6552 = vpop.f32.mrf.mxu0
  %v6553 = vadd.f32 0.0, %v6552
  %v6554 = vpop.f32.mrf.mxu0
  %6555 = vmatprep.mubr.f32.mxu0 0.0
  %6556 = vmatmul.mubr.f32.gmra.mxu0 %v6424
  %v6557 = vpop.f32.mrf.mxu0
  %v6558 = vadd.f32 0.0, %v6557
  %v6559 = vpop.f32.mrf.mxu0
  %6560 = vmatprep.mubr.f32.mxu0 0.0
  %6561 = vmatmul.mubr.f32.gmra.mxu0 %v6427
  %v6562 = vpop.f32.mrf.mxu0
  %v6563 = vadd.f32 0.0, %v6562
  %v6564 = vpop.f32.mrf.mxu0
  %6565 = vmatprep.mubr.f32.mxu0 0.0
  %6566 = vmatmul.mubr.f32.gmra.mxu0 %v6430
  %v6567 = vpop.f32.mrf.mxu0
  %v6568 = vadd.f32 0.0, %v6567
  %v6569 = vpop.f32.mrf.mxu0
  %6570 = vmatprep.mubr.f32.mxu0 0.0
  %6571 = vmatmul.mubr.f32.gmra.mxu0 %v6433
  %v6572 = vpop.f32.mrf.mxu0
  %v6573 = vadd.f32 0.0, %v6572
  %v6574 = vpop.f32.mrf.mxu0
  %6575 = vmatprep.mubr.f32.mxu0 0.0
  %6576 = vmatmul.mubr.f32.gmra.mxu0 %v6436
  %v6577 = vpop.f32.mrf.mxu0
  %v6578 = vadd.f32 0.0, %v6577
  %v6579 = vpop.f32.mrf.mxu0
  %6580 = vmatprep.mubr.f32.mxu0 0.0
  %6581 = vmatmul.mubr.f32.gmra.mxu0 %v6439
  %v6582 = vpop.f32.mrf.mxu0
  %v6583 = vadd.f32 0.0, %v6582
  %v6584 = vpop.f32.mrf.mxu0
  %6585 = vdwg.mxu0
  %v6586 = vadd.f32 %v6356, %v6508
  %v6587 = vadd.f32 %v6357, %v6513
  %v6588 = vadd.f32 %v6358, %v6518
  %v6589 = vadd.f32 %v6359, %v6523
  %v6590 = vadd.f32 %v6360, %v6528
  %v6591 = vadd.f32 %v6361, %v6533
  %v6592 = vadd.f32 %v6362, %v6538
  %v6593 = vadd.f32 %v6363, %v6543
  %v6594 = vadd.f32 %v6364, %v6548
  %v6595 = vadd.f32 %v6365, %v6553
  %v6596 = vadd.f32 %v6366, %v6558
  %v6597 = vadd.f32 %v6367, %v6563
  %v6598 = vadd.f32 %v6368, %v6568
  %v6599 = vadd.f32 %v6369, %v6573
  %v6600 = vadd.f32 %v6370, %v6578
  %v6601 = vadd.f32 %v6371, %v6583
  %v6602 = vld [vmem:[%s8] sm:$0x1]
  %v6604 = vlaneseq
  %v6605 = vshrl.u32 %v6604, 7
  %v6606 = vsub.s32 0, %v6605
  %v6607 = vrot.slane %v6602, %v6606
  %v6609 = vadd.f32 %v6586, %v6607
  %v6610 = vadd.f32 %v6587, %v6607
  %v6611 = vadd.f32 %v6588, %v6607
  %v6612 = vadd.f32 %v6589, %v6607
  %v6613 = vadd.f32 %v6590, %v6607
  %v6614 = vadd.f32 %v6591, %v6607
  %v6615 = vadd.f32 %v6592, %v6607
  %v6616 = vadd.f32 %v6593, %v6607
  %v6617 = vadd.f32 %v6594, %v6607
  %v6618 = vadd.f32 %v6595, %v6607
  %v6619 = vadd.f32 %v6596, %v6607
  %v6620 = vadd.f32 %v6597, %v6607
  %v6621 = vadd.f32 %v6598, %v6607
  %v6622 = vadd.f32 %v6599, %v6607
  %v6623 = vadd.f32 %v6600, %v6607
  %v6624 = vadd.f32 %v6601, %v6607
  %v6625 = vsel %vm68, %v6609, 0.0
  %v6626 = vsel %vm68, %v6610, 0.0
  %v6627 = vadd.f32 %v6625, %v6626
  %v6628 = vsel %vm68, %v6611, 0.0
  %v6629 = vadd.f32 %v6627, %v6628
  %v6630 = vsel %vm68, %v6612, 0.0
  %v6631 = vadd.f32 %v6629, %v6630
  %v6632 = vsel %vm68, %v6613, 0.0
  %v6633 = vadd.f32 %v6631, %v6632
  %v6634 = vsel %vm68, %v6614, 0.0
  %v6635 = vadd.f32 %v6633, %v6634
  %v6636 = vsel %vm68, %v6615, 0.0
  %v6637 = vadd.f32 %v6635, %v6636
  %v6638 = vsel %vm68, %v6616, 0.0
  %v6639 = vadd.f32 %v6637, %v6638
  %v6640 = vsel %vm68, %v6617, 0.0
  %v6641 = vadd.f32 %v6639, %v6640
  %v6642 = vsel %vm68, %v6618, 0.0
  %v6643 = vadd.f32 %v6641, %v6642
  %v6644 = vsel %vm68, %v6619, 0.0
  %v6645 = vadd.f32 %v6643, %v6644
  %v6646 = vsel %vm68, %v6620, 0.0
  %v6647 = vadd.f32 %v6645, %v6646
  %v6648 = vsel %vm68, %v6621, 0.0
  %v6649 = vadd.f32 %v6647, %v6648
  %v6650 = vsel %vm68, %v6622, 0.0
  %v6651 = vadd.f32 %v6649, %v6650
  %v6652 = vsel %vm68, %v6623, 0.0
  %v6653 = vadd.f32 %v6651, %v6652
  %v6654 = vsel %vm68, %v6624, 0.0
  %v6655 = vadd.f32 %v6653, %v6654
  %v6656 = vrot.slane %v6655, 4
  %v6657 = vadd.f32 %v6655, %v6656
  %v6658 = vrot.slane %v6657, 2
  %v6659 = vadd.f32 %v6657, %v6658
  %v6660 = vrot.slane %v6659, 1
  %v6661 = vadd.f32 %v6659, %v6660
  %v6662 = vmul.f32 %v6661, %v4365
  %v6663 = vsub.f32 %v6609, %v6662
  %v6664 = vsub.f32 %v6610, %v6662
  %v6665 = vsub.f32 %v6611, %v6662
  %v6666 = vsub.f32 %v6612, %v6662
  %v6667 = vsub.f32 %v6613, %v6662
  %v6668 = vsub.f32 %v6614, %v6662
  %v6669 = vsub.f32 %v6615, %v6662
  %v6670 = vsub.f32 %v6616, %v6662
  %v6671 = vsub.f32 %v6617, %v6662
  %v6672 = vsub.f32 %v6618, %v6662
  %v6673 = vsub.f32 %v6619, %v6662
  %v6674 = vsub.f32 %v6620, %v6662
  %v6675 = vsub.f32 %v6621, %v6662
  %v6676 = vsub.f32 %v6622, %v6662
  %v6677 = vsub.f32 %v6623, %v6662
  %v6678 = vsub.f32 %v6624, %v6662
  %v6679 = vmul.f32 %v6663, %v6663
  %v6680 = vmul.f32 %v6664, %v6664
  %v6681 = vmul.f32 %v6665, %v6665
  %v6682 = vmul.f32 %v6666, %v6666
  %v6683 = vmul.f32 %v6667, %v6667
  %v6684 = vmul.f32 %v6668, %v6668
  %v6685 = vmul.f32 %v6669, %v6669
  %v6686 = vmul.f32 %v6670, %v6670
  %v6687 = vmul.f32 %v6671, %v6671
  %v6688 = vmul.f32 %v6672, %v6672
  %v6689 = vmul.f32 %v6673, %v6673
  %v6690 = vmul.f32 %v6674, %v6674
  %v6691 = vmul.f32 %v6675, %v6675
  %v6692 = vmul.f32 %v6676, %v6676
  %v6693 = vmul.f32 %v6677, %v6677
  %v6694 = vmul.f32 %v6678, %v6678
  %v6695 = vsel %vm68, %v6679, 0.0
  %v6696 = vsel %vm68, %v6680, 0.0
  %v6697 = vadd.f32 %v6695, %v6696
  %v6698 = vsel %vm68, %v6681, 0.0
  %v6699 = vadd.f32 %v6697, %v6698
  %v6700 = vsel %vm68, %v6682, 0.0
  %v6701 = vadd.f32 %v6699, %v6700
  %v6702 = vsel %vm68, %v6683, 0.0
  %v6703 = vadd.f32 %v6701, %v6702
  %v6704 = vsel %vm68, %v6684, 0.0
  %v6705 = vadd.f32 %v6703, %v6704
  %v6706 = vsel %vm68, %v6685, 0.0
  %v6707 = vadd.f32 %v6705, %v6706
  %v6708 = vsel %vm68, %v6686, 0.0
  %v6709 = vadd.f32 %v6707, %v6708
  %v6710 = vsel %vm68, %v6687, 0.0
  %v6711 = vadd.f32 %v6709, %v6710
  %v6712 = vsel %vm68, %v6688, 0.0
  %v6713 = vadd.f32 %v6711, %v6712
  %v6714 = vsel %vm68, %v6689, 0.0
  %v6715 = vadd.f32 %v6713, %v6714
  %v6716 = vsel %vm68, %v6690, 0.0
  %v6717 = vadd.f32 %v6715, %v6716
  %v6718 = vsel %vm68, %v6691, 0.0
  %v6719 = vadd.f32 %v6717, %v6718
  %v6720 = vsel %vm68, %v6692, 0.0
  %v6721 = vadd.f32 %v6719, %v6720
  %v6722 = vsel %vm68, %v6693, 0.0
  %v6723 = vadd.f32 %v6721, %v6722
  %v6724 = vsel %vm68, %v6694, 0.0
  %v6725 = vadd.f32 %v6723, %v6724
  %v6726 = vrot.slane %v6725, 4
  %v6727 = vadd.f32 %v6725, %v6726
  %v6728 = vrot.slane %v6727, 2
  %v6729 = vadd.f32 %v6727, %v6728
  %v6730 = vrot.slane %v6729, 1
  %v6731 = vadd.f32 %v6729, %v6730
  %v6732 = vmul.f32 %v6731, %v4365
  %v6733 = vadd.f32 %v6732, 1e-05
  %v6734 = vrsqrt.pop %v6733
  %v6735 = vmul.f32 %v6663, %v6734
  %v6736 = vmul.f32 %v6664, %v6734
  %v6737 = vmul.f32 %v6665, %v6734
  %v6738 = vmul.f32 %v6666, %v6734
  %v6739 = vmul.f32 %v6667, %v6734
  %v6740 = vmul.f32 %v6668, %v6734
  %v6741 = vmul.f32 %v6669, %v6734
  %v6742 = vmul.f32 %v6670, %v6734
  %v6743 = vmul.f32 %v6671, %v6734
  %v6744 = vmul.f32 %v6672, %v6734
  %v6745 = vmul.f32 %v6673, %v6734
  %v6746 = vmul.f32 %v6674, %v6734
  %v6747 = vmul.f32 %v6675, %v6734
  %v6748 = vmul.f32 %v6676, %v6734
  %v6749 = vmul.f32 %v6677, %v6734
  %v6750 = vmul.f32 %v6678, %v6734
  %v6751 = vld [vmem:[%s9] sm:$0x1]
  %v6753 = vlaneseq
  %v6754 = vshrl.u32 %v6753, 7
  %v6755 = vsub.s32 0, %v6754
  %v6756 = vrot.slane %v6751, %v6755
  %v6758 = vmul.f32 %v6735, %v6756
  %v6759 = vmul.f32 %v6736, %v6756
  %v6760 = vmul.f32 %v6737, %v6756
  %v6761 = vmul.f32 %v6738, %v6756
  %v6762 = vmul.f32 %v6739, %v6756
  %v6763 = vmul.f32 %v6740, %v6756
  %v6764 = vmul.f32 %v6741, %v6756
  %v6765 = vmul.f32 %v6742, %v6756
  %v6766 = vmul.f32 %v6743, %v6756
  %v6767 = vmul.f32 %v6744, %v6756
  %v6768 = vmul.f32 %v6745, %v6756
  %v6769 = vmul.f32 %v6746, %v6756
  %v6770 = vmul.f32 %v6747, %v6756
  %v6771 = vmul.f32 %v6748, %v6756
  %v6772 = vmul.f32 %v6749, %v6756
  %v6773 = vmul.f32 %v6750, %v6756
  %v6774 = vld [vmem:[%s10] sm:$0x1]
  %v6776 = vlaneseq
  %v6777 = vshrl.u32 %v6776, 7
  %v6778 = vsub.s32 0, %v6777
  %v6779 = vrot.slane %v6774, %v6778
  %v6781 = vadd.f32 %v6758, %v6779
  %v6782 = vadd.f32 %v6759, %v6779
  %v6783 = vadd.f32 %v6760, %v6779
  %v6784 = vadd.f32 %v6761, %v6779
  %v6785 = vadd.f32 %v6762, %v6779
  %v6786 = vadd.f32 %v6763, %v6779
  %v6787 = vadd.f32 %v6764, %v6779
  %v6788 = vadd.f32 %v6765, %v6779
  %v6789 = vadd.f32 %v6766, %v6779
  %v6790 = vadd.f32 %v6767, %v6779
  %v6791 = vadd.f32 %v6768, %v6779
  %v6792 = vadd.f32 %v6769, %v6779
  %v6793 = vadd.f32 %v6770, %v6779
  %v6794 = vadd.f32 %v6771, %v6779
  %v6795 = vadd.f32 %v6772, %v6779
  %v6796 = vadd.f32 %v6773, %v6779
  %v6797 = vadd.f32 %v2236, %v6781
  %v6798 = vadd.f32 %v2237, %v6782
  %v6799 = vadd.f32 %v2238, %v6783
  %v6800 = vadd.f32 %v2239, %v6784
  %v6801 = vadd.f32 %v2240, %v6785
  %v6802 = vadd.f32 %v2241, %v6786
  %v6803 = vadd.f32 %v2242, %v6787
  %v6804 = vadd.f32 %v2243, %v6788
  %v6805 = vadd.f32 %v2244, %v6789
  %v6806 = vadd.f32 %v2245, %v6790
  %v6807 = vadd.f32 %v2246, %v6791
  %v6808 = vadd.f32 %v2247, %v6792
  %v6809 = vadd.f32 %v2248, %v6793
  %v6810 = vadd.f32 %v2249, %v6794
  %v6811 = vadd.f32 %v2250, %v6795
  %v6812 = vadd.f32 %v2251, %v6796
  %vm6813 = vcmp.gt.f32.partialorder %v6797, 0.0
  %vm6814 = vcmp.gt.f32.partialorder %v6798, 0.0
  %vm6815 = vcmp.gt.f32.partialorder %v6799, 0.0
  %vm6816 = vcmp.gt.f32.partialorder %v6800, 0.0
  %vm6817 = vcmp.gt.f32.partialorder %v6801, 0.0
  %vm6818 = vcmp.gt.f32.partialorder %v6802, 0.0
  %vm6819 = vcmp.gt.f32.partialorder %v6803, 0.0
  %vm6820 = vcmp.gt.f32.partialorder %v6804, 0.0
  %vm6821 = vcmp.gt.f32.partialorder %v6805, 0.0
  %vm6822 = vcmp.gt.f32.partialorder %v6806, 0.0
  %vm6823 = vcmp.gt.f32.partialorder %v6807, 0.0
  %vm6824 = vcmp.gt.f32.partialorder %v6808, 0.0
  %vm6825 = vcmp.gt.f32.partialorder %v6809, 0.0
  %vm6826 = vcmp.gt.f32.partialorder %v6810, 0.0
  %vm6827 = vcmp.gt.f32.partialorder %v6811, 0.0
  %vm6828 = vcmp.gt.f32.partialorder %v6812, 0.0
  %v6829 = vmul.f32 %v6797, 0.01
  %v6830 = vmul.f32 %v6798, 0.01
  %v6831 = vmul.f32 %v6799, 0.01
  %v6832 = vmul.f32 %v6800, 0.01
  %v6833 = vmul.f32 %v6801, 0.01
  %v6834 = vmul.f32 %v6802, 0.01
  %v6835 = vmul.f32 %v6803, 0.01
  %v6836 = vmul.f32 %v6804, 0.01
  %v6837 = vmul.f32 %v6805, 0.01
  %v6838 = vmul.f32 %v6806, 0.01
  %v6839 = vmul.f32 %v6807, 0.01
  %v6840 = vmul.f32 %v6808, 0.01
  %v6841 = vmul.f32 %v6809, 0.01
  %v6842 = vmul.f32 %v6810, 0.01
  %v6843 = vmul.f32 %v6811, 0.01
  %v6844 = vmul.f32 %v6812, 0.01
  %v6845 = vsel %vm6813, %v6797, %v6829
  %v6846 = vsel %vm6814, %v6798, %v6830
  %v6847 = vsel %vm6815, %v6799, %v6831
  %v6848 = vsel %vm6816, %v6800, %v6832
  %v6849 = vsel %vm6817, %v6801, %v6833
  %v6850 = vsel %vm6818, %v6802, %v6834
  %v6851 = vsel %vm6819, %v6803, %v6835
  %v6852 = vsel %vm6820, %v6804, %v6836
  %v6853 = vsel %vm6821, %v6805, %v6837
  %v6854 = vsel %vm6822, %v6806, %v6838
  %v6855 = vsel %vm6823, %v6807, %v6839
  %v6856 = vsel %vm6824, %v6808, %v6840
  %v6857 = vsel %vm6825, %v6809, %v6841
  %v6858 = vsel %vm6826, %v6810, %v6842
  %v6859 = vsel %vm6827, %v6811, %v6843
  %v6860 = vsel %vm6828, %v6812, %v6844
  %6861 = vst.msk [vmem:[%s126 + $0x1] sm:$0xff] %vm68, %v6845
  %6862 = vst.msk [vmem:[%s126 + $0x11] sm:$0xff] %vm68, %v6846
  %6863 = vst.msk [vmem:[%s126 + $0x21] sm:$0xff] %vm68, %v6847
  %6864 = vst.msk [vmem:[%s126 + $0x31] sm:$0xff] %vm68, %v6848
  %6865 = vst.msk [vmem:[%s126 + $0x41] sm:$0xff] %vm68, %v6849
  %6866 = vst.msk [vmem:[%s126 + $0x51] sm:$0xff] %vm68, %v6850
  %6867 = vst.msk [vmem:[%s126 + $0x61] sm:$0xff] %vm68, %v6851
  %6868 = vst.msk [vmem:[%s126 + $0x71] sm:$0xff] %vm68, %v6852
  %6869 = vst.msk [vmem:[%s126 + $0xa1] sm:$0xff] %vm68, %v6853
  %6870 = vst.msk [vmem:[%s126 + $0xb1] sm:$0xff] %vm68, %v6854
  %6871 = vst.msk [vmem:[%s126 + $0xc1] sm:$0xff] %vm68, %v6855
  %6872 = vst.msk [vmem:[%s126 + $0xd1] sm:$0xff] %vm68, %v6856
  %6873 = vst.msk [vmem:[%s126 + $0xe1] sm:$0xff] %vm68, %v6857
  %6874 = vst.msk [vmem:[%s126 + $0xf1] sm:$0xff] %vm68, %v6858
  %6875 = vst.msk [vmem:[%s126 + $0x101] sm:$0xff] %vm68, %v6859
  %6876 = vst.msk [vmem:[%s126 + $0x111] sm:$0xff] %vm68, %v6860
  %v6877 = vld [vmem:[#allocation2] sm:$0xff]
  %v6878 = vld [vmem:[#allocation2 + $0x10] sm:$0xff]
  %v6879 = vld [vmem:[#allocation2 + $0x20] sm:$0xff]
  %v6880 = vld [vmem:[#allocation2 + $0x30] sm:$0xff]
  %v6881 = vld [vmem:[#allocation2 + $0x40] sm:$0xff]
  %v6882 = vld [vmem:[#allocation2 + $0x50] sm:$0xff]
  %v6883 = vld [vmem:[#allocation2 + $0x60] sm:$0xff]
  %v6884 = vld [vmem:[#allocation2 + $0x70] sm:$0xff]
  %v6885 = vld [vmem:[#allocation2 + $0xa0] sm:$0xff]
  %v6886 = vld [vmem:[#allocation2 + $0xb0] sm:$0xff]
  %v6887 = vld [vmem:[#allocation2 + $0xc0] sm:$0xff]
  %v6888 = vld [vmem:[#allocation2 + $0xd0] sm:$0xff]
  %v6889 = vld [vmem:[#allocation2 + $0xe0] sm:$0xff]
  %v6890 = vld [vmem:[#allocation2 + $0xf0] sm:$0xff]
  %v6891 = vld [vmem:[#allocation2 + $0x100] sm:$0xff]
  %v6892 = vld [vmem:[#allocation2 + $0x110] sm:$0xff]
  %v6893 = vld [vmem:[%s11] sm:$0xff]
  %v6894 = vld [vmem:[%s11 + $0x8] sm:$0xff]
  %v6895 = vld [vmem:[%s11 + $0x10] sm:$0xff]
  %v6896 = vld [vmem:[%s11 + $0x18] sm:$0xff]
  %v6897 = vld [vmem:[#allocation2 + $0x1] sm:$0xff]
  %v6898 = vld [vmem:[#allocation2 + $0x11] sm:$0xff]
  %v6899 = vld [vmem:[#allocation2 + $0x21] sm:$0xff]
  %v6900 = vld [vmem:[#allocation2 + $0x31] sm:$0xff]
  %v6901 = vld [vmem:[#allocation2 + $0x41] sm:$0xff]
  %v6902 = vld [vmem:[#allocation2 + $0x51] sm:$0xff]
  %v6903 = vld [vmem:[#allocation2 + $0x61] sm:$0xff]
  %v6904 = vld [vmem:[#allocation2 + $0x71] sm:$0xff]
  %v6905 = vld [vmem:[#allocation2 + $0xa1] sm:$0xff]
  %v6906 = vld [vmem:[#allocation2 + $0xb1] sm:$0xff]
  %v6907 = vld [vmem:[#allocation2 + $0xc1] sm:$0xff]
  %v6908 = vld [vmem:[#allocation2 + $0xd1] sm:$0xff]
  %v6909 = vld [vmem:[#allocation2 + $0xe1] sm:$0xff]
  %v6910 = vld [vmem:[#allocation2 + $0xf1] sm:$0xff]
  %v6911 = vld [vmem:[#allocation2 + $0x101] sm:$0xff]
  %v6912 = vld [vmem:[#allocation2 + $0x111] sm:$0xff]
  %s6913 = scalar_lea.vmem %s11, 32
  %v6914 = vld [vmem:[%s6913] sm:$0xff]
  %v6915 = vld [vmem:[%s6913 + $0x8] sm:$0xff]
  %v6916 = vld [vmem:[%s6913 + $0x10] sm:$0xff]
  %v6917 = vld [vmem:[%s6913 + $0x18] sm:$0xff]
  %v6919 = vsel %vm68, %v6897, 0
  %v6922 = vsel %vm68, %v6898, 0
  %v6925 = vsel %vm68, %v6899, 0
  %v6928 = vsel %vm68, %v6900, 0
  %v6931 = vsel %vm68, %v6901, 0
  %v6934 = vsel %vm68, %v6902, 0
  %v6937 = vsel %vm68, %v6903, 0
  %v6940 = vsel %vm68, %v6904, 0
  %v6943 = vsel %vm68, %v6905, 0
  %v6946 = vsel %vm68, %v6906, 0
  %v6949 = vsel %vm68, %v6907, 0
  %v6952 = vsel %vm68, %v6908, 0
  %v6955 = vsel %vm68, %v6909, 0
  %v6958 = vsel %vm68, %v6910, 0
  %v6961 = vsel %vm68, %v6911, 0
  %v6964 = vsel %vm68, %v6912, 0
  %6966 = vmatprep.subr.mxu0 0.0
  %6967 = vmatpush1.msra.mxu0 0.0
  %6968 = vmatprep.subr.mxu0 0.0
  %6969 = vmatpush1.msra.mxu0 0.0
  %6970 = vmatprep.subr.mxu0 0.0
  %6971 = vmatpush1.msra.mxu0 0.0
  %6972 = vmatprep.subr.mxu0 0.0
  %6973 = vmatpush1.msra.mxu0 0.0
  %6974 = vmatprep.subr.mxu0 0.0
  %6975 = vmatpush1.msra.mxu0 0.0
  %6976 = vmatprep.subr.mxu0 0.0
  %6977 = vmatpush1.msra.mxu0 0.0
  %6978 = vmatprep.subr.mxu0 0.0
  %6979 = vmatpush1.msra.mxu0 0.0
  %6980 = vmatprep.subr.mxu0 0.0
  %6981 = vmatpush1.msra.mxu0 0.0
  %6982 = vmatprep.subr.mxu0 0.0
  %6983 = vmatpush1.msra.mxu0 0.0
  %6984 = vmatprep.subr.mxu0 0.0
  %6985 = vmatpush1.msra.mxu0 0.0
  %6986 = vmatprep.subr.mxu0 0.0
  %6987 = vmatpush1.msra.mxu0 0.0
  %6988 = vmatprep.subr.mxu0 0.0
  %6989 = vmatpush1.msra.mxu0 0.0
  %6990 = vmatprep.subr.mxu0 0.0
  %6991 = vmatpush1.msra.mxu0 %v6917
  %6992 = vmatprep.subr.mxu0 0.0
  %6993 = vmatpush1.msra.mxu0 %v6916
  %6994 = vmatprep.subr.mxu0 0.0
  %6995 = vmatpush1.msra.mxu0 %v6915
  %6996 = vmatprep.subr.mxu0 0.0
  %6997 = vmatpush1.msra.mxu0 %v6914
  %6998 = vmatprep.subr.mxu0 0.0
  %6999 = vmatpush2.msra.mxu0 0.0
  %7000 = vmatprep.subr.mxu0 0.0
  %7001 = vmatpush2.msra.mxu0 0.0
  %7002 = vmatprep.subr.mxu0 0.0
  %7003 = vmatpush2.msra.mxu0 0.0
  %7004 = vmatprep.subr.mxu0 0.0
  %7005 = vmatpush2.msra.mxu0 0.0
  %7006 = vmatprep.subr.mxu0 0.0
  %7007 = vmatpush2.msra.mxu0 0.0
  %7008 = vmatprep.subr.mxu0 0.0
  %7009 = vmatpush2.msra.mxu0 0.0
  %7010 = vmatprep.subr.mxu0 0.0
  %7011 = vmatpush2.msra.mxu0 0.0
  %7012 = vmatprep.subr.mxu0 0.0
  %7013 = vmatpush2.msra.mxu0 0.0
  %7014 = vmatprep.subr.mxu0 0.0
  %7015 = vmatpush2.msra.mxu0 0.0
  %7016 = vmatprep.subr.mxu0 0.0
  %7017 = vmatpush2.msra.mxu0 0.0
  %7018 = vmatprep.subr.mxu0 0.0
  %7019 = vmatpush2.msra.mxu0 0.0
  %7020 = vmatprep.subr.mxu0 0.0
  %7021 = vmatpush2.msra.mxu0 0.0
  %7022 = vmatprep.subr.mxu0 0.0
  %7023 = vmatpush2.msra.mxu0 0.0
  %7024 = vmatprep.subr.mxu0 0.0
  %7025 = vmatpush2.msra.mxu0 0.0
  %7026 = vmatprep.subr.mxu0 0.0
  %7027 = vmatpush2.msra.mxu0 0.0
  %7028 = vmatprep.subr.mxu0 0.0
  %7029 = vmatpush2.msra.mxu0 0.0
  %7030 = vmatprep.mubr.f32.mxu0 0.0
  %7031 = vmatmul.mubr.f32.gmra.mxu0 %v6919
  %v7032 = vpop.f32.mrf.mxu0
  %v7033 = vadd.f32 0.0, %v7032
  %v7034 = vpop.f32.mrf.mxu0
  %7035 = vmatprep.mubr.f32.mxu0 0.0
  %7036 = vmatmul.mubr.f32.gmra.mxu0 %v6922
  %v7037 = vpop.f32.mrf.mxu0
  %v7038 = vadd.f32 0.0, %v7037
  %v7039 = vpop.f32.mrf.mxu0
  %7040 = vmatprep.mubr.f32.mxu0 0.0
  %7041 = vmatmul.mubr.f32.gmra.mxu0 %v6925
  %v7042 = vpop.f32.mrf.mxu0
  %v7043 = vadd.f32 0.0, %v7042
  %v7044 = vpop.f32.mrf.mxu0
  %7045 = vmatprep.mubr.f32.mxu0 0.0
  %7046 = vmatmul.mubr.f32.gmra.mxu0 %v6928
  %v7047 = vpop.f32.mrf.mxu0
  %v7048 = vadd.f32 0.0, %v7047
  %v7049 = vpop.f32.mrf.mxu0
  %7050 = vmatprep.mubr.f32.mxu0 0.0
  %7051 = vmatmul.mubr.f32.gmra.mxu0 %v6931
  %v7052 = vpop.f32.mrf.mxu0
  %v7053 = vadd.f32 0.0, %v7052
  %v7054 = vpop.f32.mrf.mxu0
  %7055 = vmatprep.mubr.f32.mxu0 0.0
  %7056 = vmatmul.mubr.f32.gmra.mxu0 %v6934
  %v7057 = vpop.f32.mrf.mxu0
  %v7058 = vadd.f32 0.0, %v7057
  %v7059 = vpop.f32.mrf.mxu0
  %7060 = vmatprep.mubr.f32.mxu0 0.0
  %7061 = vmatmul.mubr.f32.gmra.mxu0 %v6937
  %v7062 = vpop.f32.mrf.mxu0
  %v7063 = vadd.f32 0.0, %v7062
  %v7064 = vpop.f32.mrf.mxu0
  %7065 = vmatprep.mubr.f32.mxu0 0.0
  %7066 = vmatmul.mubr.f32.gmra.mxu0 %v6940
  %v7067 = vpop.f32.mrf.mxu0
  %v7068 = vadd.f32 0.0, %v7067
  %v7069 = vpop.f32.mrf.mxu0
  %7070 = vmatprep.mubr.f32.mxu0 0.0
  %7071 = vmatmul.mubr.f32.gmra.mxu0 %v6943
  %v7072 = vpop.f32.mrf.mxu0
  %v7073 = vadd.f32 0.0, %v7072
  %v7074 = vpop.f32.mrf.mxu0
  %7075 = vmatprep.mubr.f32.mxu0 0.0
  %7076 = vmatmul.mubr.f32.gmra.mxu0 %v6946
  %v7077 = vpop.f32.mrf.mxu0
  %v7078 = vadd.f32 0.0, %v7077
  %v7079 = vpop.f32.mrf.mxu0
  %7080 = vmatprep.mubr.f32.mxu0 0.0
  %7081 = vmatmul.mubr.f32.gmra.mxu0 %v6949
  %v7082 = vpop.f32.mrf.mxu0
  %v7083 = vadd.f32 0.0, %v7082
  %v7084 = vpop.f32.mrf.mxu0
  %7085 = vmatprep.mubr.f32.mxu0 0.0
  %7086 = vmatmul.mubr.f32.gmra.mxu0 %v6952
  %v7087 = vpop.f32.mrf.mxu0
  %v7088 = vadd.f32 0.0, %v7087
  %v7089 = vpop.f32.mrf.mxu0
  %7090 = vmatprep.mubr.f32.mxu0 0.0
  %7091 = vmatmul.mubr.f32.gmra.mxu0 %v6955
  %v7092 = vpop.f32.mrf.mxu0
  %v7093 = vadd.f32 0.0, %v7092
  %v7094 = vpop.f32.mrf.mxu0
  %7095 = vmatprep.mubr.f32.mxu0 0.0
  %7096 = vmatmul.mubr.f32.gmra.mxu0 %v6958
  %v7097 = vpop.f32.mrf.mxu0
  %v7098 = vadd.f32 0.0, %v7097
  %v7099 = vpop.f32.mrf.mxu0
  %7100 = vmatprep.mubr.f32.mxu0 0.0
  %7101 = vmatmul.mubr.f32.gmra.mxu0 %v6961
  %v7102 = vpop.f32.mrf.mxu0
  %v7103 = vadd.f32 0.0, %v7102
  %v7104 = vpop.f32.mrf.mxu0
  %7105 = vmatprep.mubr.f32.mxu0 0.0
  %7106 = vmatmul.mubr.f32.gmra.mxu0 %v6964
  %v7107 = vpop.f32.mrf.mxu0
  %v7108 = vadd.f32 0.0, %v7107
  %v7109 = vpop.f32.mrf.mxu0
  %7110 = vdwg.mxu0
  %v7112 = vsel %vm68, %v6877, 0
  %v7115 = vsel %vm68, %v6878, 0
  %v7118 = vsel %vm68, %v6879, 0
  %v7121 = vsel %vm68, %v6880, 0
  %v7124 = vsel %vm68, %v6881, 0
  %v7127 = vsel %vm68, %v6882, 0
  %v7130 = vsel %vm68, %v6883, 0
  %v7133 = vsel %vm68, %v6884, 0
  %v7136 = vsel %vm68, %v6885, 0
  %v7139 = vsel %vm68, %v6886, 0
  %v7142 = vsel %vm68, %v6887, 0
  %v7145 = vsel %vm68, %v6888, 0
  %v7148 = vsel %vm68, %v6889, 0
  %v7151 = vsel %vm68, %v6890, 0
  %v7154 = vsel %vm68, %v6891, 0
  %v7157 = vsel %vm68, %v6892, 0
  %7159 = vmatprep.subr.mxu0 0.0
  %7160 = vmatpush1.msra.mxu0 0.0
  %7161 = vmatprep.subr.mxu0 0.0
  %7162 = vmatpush1.msra.mxu0 0.0
  %7163 = vmatprep.subr.mxu0 0.0
  %7164 = vmatpush1.msra.mxu0 0.0
  %7165 = vmatprep.subr.mxu0 0.0
  %7166 = vmatpush1.msra.mxu0 0.0
  %7167 = vmatprep.subr.mxu0 0.0
  %7168 = vmatpush1.msra.mxu0 0.0
  %7169 = vmatprep.subr.mxu0 0.0
  %7170 = vmatpush1.msra.mxu0 0.0
  %7171 = vmatprep.subr.mxu0 0.0
  %7172 = vmatpush1.msra.mxu0 0.0
  %7173 = vmatprep.subr.mxu0 0.0
  %7174 = vmatpush1.msra.mxu0 0.0
  %7175 = vmatprep.subr.mxu0 0.0
  %7176 = vmatpush1.msra.mxu0 0.0
  %7177 = vmatprep.subr.mxu0 0.0
  %7178 = vmatpush1.msra.mxu0 0.0
  %7179 = vmatprep.subr.mxu0 0.0
  %7180 = vmatpush1.msra.mxu0 0.0
  %7181 = vmatprep.subr.mxu0 0.0
  %7182 = vmatpush1.msra.mxu0 0.0
  %7183 = vmatprep.subr.mxu0 0.0
  %7184 = vmatpush1.msra.mxu0 %v6896
  %7185 = vmatprep.subr.mxu0 0.0
  %7186 = vmatpush1.msra.mxu0 %v6895
  %7187 = vmatprep.subr.mxu0 0.0
  %7188 = vmatpush1.msra.mxu0 %v6894
  %7189 = vmatprep.subr.mxu0 0.0
  %7190 = vmatpush1.msra.mxu0 %v6893
  %7191 = vmatprep.subr.mxu0 0.0
  %7192 = vmatpush2.msra.mxu0 0.0
  %7193 = vmatprep.subr.mxu0 0.0
  %7194 = vmatpush2.msra.mxu0 0.0
  %7195 = vmatprep.subr.mxu0 0.0
  %7196 = vmatpush2.msra.mxu0 0.0
  %7197 = vmatprep.subr.mxu0 0.0
  %7198 = vmatpush2.msra.mxu0 0.0
  %7199 = vmatprep.subr.mxu0 0.0
  %7200 = vmatpush2.msra.mxu0 0.0
  %7201 = vmatprep.subr.mxu0 0.0
  %7202 = vmatpush2.msra.mxu0 0.0
  %7203 = vmatprep.subr.mxu0 0.0
  %7204 = vmatpush2.msra.mxu0 0.0
  %7205 = vmatprep.subr.mxu0 0.0
  %7206 = vmatpush2.msra.mxu0 0.0
  %7207 = vmatprep.subr.mxu0 0.0
  %7208 = vmatpush2.msra.mxu0 0.0
  %7209 = vmatprep.subr.mxu0 0.0
  %7210 = vmatpush2.msra.mxu0 0.0
  %7211 = vmatprep.subr.mxu0 0.0
  %7212 = vmatpush2.msra.mxu0 0.0
  %7213 = vmatprep.subr.mxu0 0.0
  %7214 = vmatpush2.msra.mxu0 0.0
  %7215 = vmatprep.subr.mxu0 0.0
  %7216 = vmatpush2.msra.mxu0 0.0
  %7217 = vmatprep.subr.mxu0 0.0
  %7218 = vmatpush2.msra.mxu0 0.0
  %7219 = vmatprep.subr.mxu0 0.0
  %7220 = vmatpush2.msra.mxu0 0.0
  %7221 = vmatprep.subr.mxu0 0.0
  %7222 = vmatpush2.msra.mxu0 0.0
  %7223 = vmatprep.mubr.f32.mxu0 0.0
  %7224 = vmatmul.mubr.f32.gmra.mxu0 %v7112
  %v7225 = vpop.f32.mrf.mxu0
  %v7226 = vadd.f32 %v7033, %v7225
  %v7227 = vpop.f32.mrf.mxu0
  %7228 = vmatprep.mubr.f32.mxu0 0.0
  %7229 = vmatmul.mubr.f32.gmra.mxu0 %v7115
  %v7230 = vpop.f32.mrf.mxu0
  %v7231 = vadd.f32 %v7038, %v7230
  %v7232 = vpop.f32.mrf.mxu0
  %7233 = vmatprep.mubr.f32.mxu0 0.0
  %7234 = vmatmul.mubr.f32.gmra.mxu0 %v7118
  %v7235 = vpop.f32.mrf.mxu0
  %v7236 = vadd.f32 %v7043, %v7235
  %v7237 = vpop.f32.mrf.mxu0
  %7238 = vmatprep.mubr.f32.mxu0 0.0
  %7239 = vmatmul.mubr.f32.gmra.mxu0 %v7121
  %v7240 = vpop.f32.mrf.mxu0
  %v7241 = vadd.f32 %v7048, %v7240
  %v7242 = vpop.f32.mrf.mxu0
  %7243 = vmatprep.mubr.f32.mxu0 0.0
  %7244 = vmatmul.mubr.f32.gmra.mxu0 %v7124
  %v7245 = vpop.f32.mrf.mxu0
  %v7246 = vadd.f32 %v7053, %v7245
  %v7247 = vpop.f32.mrf.mxu0
  %7248 = vmatprep.mubr.f32.mxu0 0.0
  %7249 = vmatmul.mubr.f32.gmra.mxu0 %v7127
  %v7250 = vpop.f32.mrf.mxu0
  %v7251 = vadd.f32 %v7058, %v7250
  %v7252 = vpop.f32.mrf.mxu0
  %7253 = vmatprep.mubr.f32.mxu0 0.0
  %7254 = vmatmul.mubr.f32.gmra.mxu0 %v7130
  %v7255 = vpop.f32.mrf.mxu0
  %v7256 = vadd.f32 %v7063, %v7255
  %v7257 = vpop.f32.mrf.mxu0
  %7258 = vmatprep.mubr.f32.mxu0 0.0
  %7259 = vmatmul.mubr.f32.gmra.mxu0 %v7133
  %v7260 = vpop.f32.mrf.mxu0
  %v7261 = vadd.f32 %v7068, %v7260
  %v7262 = vpop.f32.mrf.mxu0
  %7263 = vmatprep.mubr.f32.mxu0 0.0
  %7264 = vmatmul.mubr.f32.gmra.mxu0 %v7136
  %v7265 = vpop.f32.mrf.mxu0
  %v7266 = vadd.f32 %v7073, %v7265
  %v7267 = vpop.f32.mrf.mxu0
  %7268 = vmatprep.mubr.f32.mxu0 0.0
  %7269 = vmatmul.mubr.f32.gmra.mxu0 %v7139
  %v7270 = vpop.f32.mrf.mxu0
  %v7271 = vadd.f32 %v7078, %v7270
  %v7272 = vpop.f32.mrf.mxu0
  %7273 = vmatprep.mubr.f32.mxu0 0.0
  %7274 = vmatmul.mubr.f32.gmra.mxu0 %v7142
  %v7275 = vpop.f32.mrf.mxu0
  %v7276 = vadd.f32 %v7083, %v7275
  %v7277 = vpop.f32.mrf.mxu0
  %7278 = vmatprep.mubr.f32.mxu0 0.0
  %7279 = vmatmul.mubr.f32.gmra.mxu0 %v7145
  %v7280 = vpop.f32.mrf.mxu0
  %v7281 = vadd.f32 %v7088, %v7280
  %v7282 = vpop.f32.mrf.mxu0
  %7283 = vmatprep.mubr.f32.mxu0 0.0
  %7284 = vmatmul.mubr.f32.gmra.mxu0 %v7148
  %v7285 = vpop.f32.mrf.mxu0
  %v7286 = vadd.f32 %v7093, %v7285
  %v7287 = vpop.f32.mrf.mxu0
  %7288 = vmatprep.mubr.f32.mxu0 0.0
  %7289 = vmatmul.mubr.f32.gmra.mxu0 %v7151
  %v7290 = vpop.f32.mrf.mxu0
  %v7291 = vadd.f32 %v7098, %v7290
  %v7292 = vpop.f32.mrf.mxu0
  %7293 = vmatprep.mubr.f32.mxu0 0.0
  %7294 = vmatmul.mubr.f32.gmra.mxu0 %v7154
  %v7295 = vpop.f32.mrf.mxu0
  %v7296 = vadd.f32 %v7103, %v7295
  %v7297 = vpop.f32.mrf.mxu0
  %7298 = vmatprep.mubr.f32.mxu0 0.0
  %7299 = vmatmul.mubr.f32.gmra.mxu0 %v7157
  %v7300 = vpop.f32.mrf.mxu0
  %v7301 = vadd.f32 %v7108, %v7300
  %v7302 = vpop.f32.mrf.mxu0
  %7303 = vdwg.mxu0
  %v7304 = vld [vmem:[#allocation2 + $0x2] sm:$0xff]
  %v7305 = vld [vmem:[#allocation2 + $0x12] sm:$0xff]
  %v7306 = vld [vmem:[#allocation2 + $0x22] sm:$0xff]
  %v7307 = vld [vmem:[#allocation2 + $0x32] sm:$0xff]
  %v7308 = vld [vmem:[#allocation2 + $0x42] sm:$0xff]
  %v7309 = vld [vmem:[#allocation2 + $0x52] sm:$0xff]
  %v7310 = vld [vmem:[#allocation2 + $0x62] sm:$0xff]
  %v7311 = vld [vmem:[#allocation2 + $0x72] sm:$0xff]
  %v7312 = vld [vmem:[#allocation2 + $0xa2] sm:$0xff]
  %v7313 = vld [vmem:[#allocation2 + $0xb2] sm:$0xff]
  %v7314 = vld [vmem:[#allocation2 + $0xc2] sm:$0xff]
  %v7315 = vld [vmem:[#allocation2 + $0xd2] sm:$0xff]
  %v7316 = vld [vmem:[#allocation2 + $0xe2] sm:$0xff]
  %v7317 = vld [vmem:[#allocation2 + $0xf2] sm:$0xff]
  %v7318 = vld [vmem:[#allocation2 + $0x102] sm:$0xff]
  %v7319 = vld [vmem:[#allocation2 + $0x112] sm:$0xff]
  %s7320 = scalar_lea.vmem %s11, 64
  %v7321 = vld [vmem:[%s7320] sm:$0xff]
  %v7322 = vld [vmem:[%s7320 + $0x8] sm:$0xff]
  %v7323 = vld [vmem:[%s7320 + $0x10] sm:$0xff]
  %v7324 = vld [vmem:[%s7320 + $0x18] sm:$0xff]
  %v7326 = vsel %vm68, %v7304, 0
  %v7329 = vsel %vm68, %v7305, 0
  %v7332 = vsel %vm68, %v7306, 0
  %v7335 = vsel %vm68, %v7307, 0
  %v7338 = vsel %vm68, %v7308, 0
  %v7341 = vsel %vm68, %v7309, 0
  %v7344 = vsel %vm68, %v7310, 0
  %v7347 = vsel %vm68, %v7311, 0
  %v7350 = vsel %vm68, %v7312, 0
  %v7353 = vsel %vm68, %v7313, 0
  %v7356 = vsel %vm68, %v7314, 0
  %v7359 = vsel %vm68, %v7315, 0
  %v7362 = vsel %vm68, %v7316, 0
  %v7365 = vsel %vm68, %v7317, 0
  %v7368 = vsel %vm68, %v7318, 0
  %v7371 = vsel %vm68, %v7319, 0
  %7373 = vmatprep.subr.mxu0 0.0
  %7374 = vmatpush1.msra.mxu0 0.0
  %7375 = vmatprep.subr.mxu0 0.0
  %7376 = vmatpush1.msra.mxu0 0.0
  %7377 = vmatprep.subr.mxu0 0.0
  %7378 = vmatpush1.msra.mxu0 0.0
  %7379 = vmatprep.subr.mxu0 0.0
  %7380 = vmatpush1.msra.mxu0 0.0
  %7381 = vmatprep.subr.mxu0 0.0
  %7382 = vmatpush1.msra.mxu0 0.0
  %7383 = vmatprep.subr.mxu0 0.0
  %7384 = vmatpush1.msra.mxu0 0.0
  %7385 = vmatprep.subr.mxu0 0.0
  %7386 = vmatpush1.msra.mxu0 0.0
  %7387 = vmatprep.subr.mxu0 0.0
  %7388 = vmatpush1.msra.mxu0 0.0
  %7389 = vmatprep.subr.mxu0 0.0
  %7390 = vmatpush1.msra.mxu0 0.0
  %7391 = vmatprep.subr.mxu0 0.0
  %7392 = vmatpush1.msra.mxu0 0.0
  %7393 = vmatprep.subr.mxu0 0.0
  %7394 = vmatpush1.msra.mxu0 0.0
  %7395 = vmatprep.subr.mxu0 0.0
  %7396 = vmatpush1.msra.mxu0 0.0
  %7397 = vmatprep.subr.mxu0 0.0
  %7398 = vmatpush1.msra.mxu0 %v7324
  %7399 = vmatprep.subr.mxu0 0.0
  %7400 = vmatpush1.msra.mxu0 %v7323
  %7401 = vmatprep.subr.mxu0 0.0
  %7402 = vmatpush1.msra.mxu0 %v7322
  %7403 = vmatprep.subr.mxu0 0.0
  %7404 = vmatpush1.msra.mxu0 %v7321
  %7405 = vmatprep.subr.mxu0 0.0
  %7406 = vmatpush2.msra.mxu0 0.0
  %7407 = vmatprep.subr.mxu0 0.0
  %7408 = vmatpush2.msra.mxu0 0.0
  %7409 = vmatprep.subr.mxu0 0.0
  %7410 = vmatpush2.msra.mxu0 0.0
  %7411 = vmatprep.subr.mxu0 0.0
  %7412 = vmatpush2.msra.mxu0 0.0
  %7413 = vmatprep.subr.mxu0 0.0
  %7414 = vmatpush2.msra.mxu0 0.0
  %7415 = vmatprep.subr.mxu0 0.0
  %7416 = vmatpush2.msra.mxu0 0.0
  %7417 = vmatprep.subr.mxu0 0.0
  %7418 = vmatpush2.msra.mxu0 0.0
  %7419 = vmatprep.subr.mxu0 0.0
  %7420 = vmatpush2.msra.mxu0 0.0
  %7421 = vmatprep.subr.mxu0 0.0
  %7422 = vmatpush2.msra.mxu0 0.0
  %7423 = vmatprep.subr.mxu0 0.0
  %7424 = vmatpush2.msra.mxu0 0.0
  %7425 = vmatprep.subr.mxu0 0.0
  %7426 = vmatpush2.msra.mxu0 0.0
  %7427 = vmatprep.subr.mxu0 0.0
  %7428 = vmatpush2.msra.mxu0 0.0
  %7429 = vmatprep.subr.mxu0 0.0
  %7430 = vmatpush2.msra.mxu0 0.0
  %7431 = vmatprep.subr.mxu0 0.0
  %7432 = vmatpush2.msra.mxu0 0.0
  %7433 = vmatprep.subr.mxu0 0.0
  %7434 = vmatpush2.msra.mxu0 0.0
  %7435 = vmatprep.subr.mxu0 0.0
  %7436 = vmatpush2.msra.mxu0 0.0
  %7437 = vmatprep.mubr.f32.mxu0 0.0
  %7438 = vmatmul.mubr.f32.gmra.mxu0 %v7326
  %v7439 = vpop.f32.mrf.mxu0
  %v7440 = vadd.f32 0.0, %v7439
  %v7441 = vpop.f32.mrf.mxu0
  %7442 = vmatprep.mubr.f32.mxu0 0.0
  %7443 = vmatmul.mubr.f32.gmra.mxu0 %v7329
  %v7444 = vpop.f32.mrf.mxu0
  %v7445 = vadd.f32 0.0, %v7444
  %v7446 = vpop.f32.mrf.mxu0
  %7447 = vmatprep.mubr.f32.mxu0 0.0
  %7448 = vmatmul.mubr.f32.gmra.mxu0 %v7332
  %v7449 = vpop.f32.mrf.mxu0
  %v7450 = vadd.f32 0.0, %v7449
  %v7451 = vpop.f32.mrf.mxu0
  %7452 = vmatprep.mubr.f32.mxu0 0.0
  %7453 = vmatmul.mubr.f32.gmra.mxu0 %v7335
  %v7454 = vpop.f32.mrf.mxu0
  %v7455 = vadd.f32 0.0, %v7454
  %v7456 = vpop.f32.mrf.mxu0
  %7457 = vmatprep.mubr.f32.mxu0 0.0
  %7458 = vmatmul.mubr.f32.gmra.mxu0 %v7338
  %v7459 = vpop.f32.mrf.mxu0
  %v7460 = vadd.f32 0.0, %v7459
  %v7461 = vpop.f32.mrf.mxu0
  %7462 = vmatprep.mubr.f32.mxu0 0.0
  %7463 = vmatmul.mubr.f32.gmra.mxu0 %v7341
  %v7464 = vpop.f32.mrf.mxu0
  %v7465 = vadd.f32 0.0, %v7464
  %v7466 = vpop.f32.mrf.mxu0
  %7467 = vmatprep.mubr.f32.mxu0 0.0
  %7468 = vmatmul.mubr.f32.gmra.mxu0 %v7344
  %v7469 = vpop.f32.mrf.mxu0
  %v7470 = vadd.f32 0.0, %v7469
  %v7471 = vpop.f32.mrf.mxu0
  %7472 = vmatprep.mubr.f32.mxu0 0.0
  %7473 = vmatmul.mubr.f32.gmra.mxu0 %v7347
  %v7474 = vpop.f32.mrf.mxu0
  %v7475 = vadd.f32 0.0, %v7474
  %v7476 = vpop.f32.mrf.mxu0
  %7477 = vmatprep.mubr.f32.mxu0 0.0
  %7478 = vmatmul.mubr.f32.gmra.mxu0 %v7350
  %v7479 = vpop.f32.mrf.mxu0
  %v7480 = vadd.f32 0.0, %v7479
  %v7481 = vpop.f32.mrf.mxu0
  %7482 = vmatprep.mubr.f32.mxu0 0.0
  %7483 = vmatmul.mubr.f32.gmra.mxu0 %v7353
  %v7484 = vpop.f32.mrf.mxu0
  %v7485 = vadd.f32 0.0, %v7484
  %v7486 = vpop.f32.mrf.mxu0
  %7487 = vmatprep.mubr.f32.mxu0 0.0
  %7488 = vmatmul.mubr.f32.gmra.mxu0 %v7356
  %v7489 = vpop.f32.mrf.mxu0
  %v7490 = vadd.f32 0.0, %v7489
  %v7491 = vpop.f32.mrf.mxu0
  %7492 = vmatprep.mubr.f32.mxu0 0.0
  %7493 = vmatmul.mubr.f32.gmra.mxu0 %v7359
  %v7494 = vpop.f32.mrf.mxu0
  %v7495 = vadd.f32 0.0, %v7494
  %v7496 = vpop.f32.mrf.mxu0
  %7497 = vmatprep.mubr.f32.mxu0 0.0
  %7498 = vmatmul.mubr.f32.gmra.mxu0 %v7362
  %v7499 = vpop.f32.mrf.mxu0
  %v7500 = vadd.f32 0.0, %v7499
  %v7501 = vpop.f32.mrf.mxu0
  %7502 = vmatprep.mubr.f32.mxu0 0.0
  %7503 = vmatmul.mubr.f32.gmra.mxu0 %v7365
  %v7504 = vpop.f32.mrf.mxu0
  %v7505 = vadd.f32 0.0, %v7504
  %v7506 = vpop.f32.mrf.mxu0
  %7507 = vmatprep.mubr.f32.mxu0 0.0
  %7508 = vmatmul.mubr.f32.gmra.mxu0 %v7368
  %v7509 = vpop.f32.mrf.mxu0
  %v7510 = vadd.f32 0.0, %v7509
  %v7511 = vpop.f32.mrf.mxu0
  %7512 = vmatprep.mubr.f32.mxu0 0.0
  %7513 = vmatmul.mubr.f32.gmra.mxu0 %v7371
  %v7514 = vpop.f32.mrf.mxu0
  %v7515 = vadd.f32 0.0, %v7514
  %v7516 = vpop.f32.mrf.mxu0
  %7517 = vdwg.mxu0
  %v7518 = vadd.f32 %v7226, %v7440
  %v7519 = vadd.f32 %v7231, %v7445
  %v7520 = vadd.f32 %v7236, %v7450
  %v7521 = vadd.f32 %v7241, %v7455
  %v7522 = vadd.f32 %v7246, %v7460
  %v7523 = vadd.f32 %v7251, %v7465
  %v7524 = vadd.f32 %v7256, %v7470
  %v7525 = vadd.f32 %v7261, %v7475
  %v7526 = vadd.f32 %v7266, %v7480
  %v7527 = vadd.f32 %v7271, %v7485
  %v7528 = vadd.f32 %v7276, %v7490
  %v7529 = vadd.f32 %v7281, %v7495
  %v7530 = vadd.f32 %v7286, %v7500
  %v7531 = vadd.f32 %v7291, %v7505
  %v7532 = vadd.f32 %v7296, %v7510
  %v7533 = vadd.f32 %v7301, %v7515
  %v7534 = vld [vmem:[%s126] sm:$0xff]
  %v7535 = vld [vmem:[%s126 + $0x10] sm:$0xff]
  %v7536 = vld [vmem:[%s126 + $0x20] sm:$0xff]
  %v7537 = vld [vmem:[%s126 + $0x30] sm:$0xff]
  %v7538 = vld [vmem:[%s126 + $0x40] sm:$0xff]
  %v7539 = vld [vmem:[%s126 + $0x50] sm:$0xff]
  %v7540 = vld [vmem:[%s126 + $0x60] sm:$0xff]
  %v7541 = vld [vmem:[%s126 + $0x70] sm:$0xff]
  %v7542 = vld [vmem:[%s126 + $0xa0] sm:$0xff]
  %v7543 = vld [vmem:[%s126 + $0xb0] sm:$0xff]
  %v7544 = vld [vmem:[%s126 + $0xc0] sm:$0xff]
  %v7545 = vld [vmem:[%s126 + $0xd0] sm:$0xff]
  %v7546 = vld [vmem:[%s126 + $0xe0] sm:$0xff]
  %v7547 = vld [vmem:[%s126 + $0xf0] sm:$0xff]
  %v7548 = vld [vmem:[%s126 + $0x100] sm:$0xff]
  %v7549 = vld [vmem:[%s126 + $0x110] sm:$0xff]
  %s7550 = scalar_lea.vmem %s11, 96
  %v7551 = vld [vmem:[%s7550] sm:$0xff]
  %v7552 = vld [vmem:[%s7550 + $0x8] sm:$0xff]
  %v7553 = vld [vmem:[%s7550 + $0x10] sm:$0xff]
  %v7554 = vld [vmem:[%s7550 + $0x18] sm:$0xff]
  %v7556 = vsel %vm68, %v7534, 0
  %v7559 = vsel %vm68, %v7535, 0
  %v7562 = vsel %vm68, %v7536, 0
  %v7565 = vsel %vm68, %v7537, 0
  %v7568 = vsel %vm68, %v7538, 0
  %v7571 = vsel %vm68, %v7539, 0
  %v7574 = vsel %vm68, %v7540, 0
  %v7577 = vsel %vm68, %v7541, 0
  %v7580 = vsel %vm68, %v7542, 0
  %v7583 = vsel %vm68, %v7543, 0
  %v7586 = vsel %vm68, %v7544, 0
  %v7589 = vsel %vm68, %v7545, 0
  %v7592 = vsel %vm68, %v7546, 0
  %v7595 = vsel %vm68, %v7547, 0
  %v7598 = vsel %vm68, %v7548, 0
  %v7601 = vsel %vm68, %v7549, 0
  %7603 = vmatprep.subr.mxu0 0.0
  %7604 = vmatpush1.msra.mxu0 0.0
  %7605 = vmatprep.subr.mxu0 0.0
  %7606 = vmatpush1.msra.mxu0 0.0
  %7607 = vmatprep.subr.mxu0 0.0
  %7608 = vmatpush1.msra.mxu0 0.0
  %7609 = vmatprep.subr.mxu0 0.0
  %7610 = vmatpush1.msra.mxu0 0.0
  %7611 = vmatprep.subr.mxu0 0.0
  %7612 = vmatpush1.msra.mxu0 0.0
  %7613 = vmatprep.subr.mxu0 0.0
  %7614 = vmatpush1.msra.mxu0 0.0
  %7615 = vmatprep.subr.mxu0 0.0
  %7616 = vmatpush1.msra.mxu0 0.0
  %7617 = vmatprep.subr.mxu0 0.0
  %7618 = vmatpush1.msra.mxu0 0.0
  %7619 = vmatprep.subr.mxu0 0.0
  %7620 = vmatpush1.msra.mxu0 0.0
  %7621 = vmatprep.subr.mxu0 0.0
  %7622 = vmatpush1.msra.mxu0 0.0
  %7623 = vmatprep.subr.mxu0 0.0
  %7624 = vmatpush1.msra.mxu0 0.0
  %7625 = vmatprep.subr.mxu0 0.0
  %7626 = vmatpush1.msra.mxu0 0.0
  %7627 = vmatprep.subr.mxu0 0.0
  %7628 = vmatpush1.msra.mxu0 %v7554
  %7629 = vmatprep.subr.mxu0 0.0
  %7630 = vmatpush1.msra.mxu0 %v7553
  %7631 = vmatprep.subr.mxu0 0.0
  %7632 = vmatpush1.msra.mxu0 %v7552
  %7633 = vmatprep.subr.mxu0 0.0
  %7634 = vmatpush1.msra.mxu0 %v7551
  %7635 = vmatprep.subr.mxu0 0.0
  %7636 = vmatpush2.msra.mxu0 0.0
  %7637 = vmatprep.subr.mxu0 0.0
  %7638 = vmatpush2.msra.mxu0 0.0
  %7639 = vmatprep.subr.mxu0 0.0
  %7640 = vmatpush2.msra.mxu0 0.0
  %7641 = vmatprep.subr.mxu0 0.0
  %7642 = vmatpush2.msra.mxu0 0.0
  %7643 = vmatprep.subr.mxu0 0.0
  %7644 = vmatpush2.msra.mxu0 0.0
  %7645 = vmatprep.subr.mxu0 0.0
  %7646 = vmatpush2.msra.mxu0 0.0
  %7647 = vmatprep.subr.mxu0 0.0
  %7648 = vmatpush2.msra.mxu0 0.0
  %7649 = vmatprep.subr.mxu0 0.0
  %7650 = vmatpush2.msra.mxu0 0.0
  %7651 = vmatprep.subr.mxu0 0.0
  %7652 = vmatpush2.msra.mxu0 0.0
  %7653 = vmatprep.subr.mxu0 0.0
  %7654 = vmatpush2.msra.mxu0 0.0
  %7655 = vmatprep.subr.mxu0 0.0
  %7656 = vmatpush2.msra.mxu0 0.0
  %7657 = vmatprep.subr.mxu0 0.0
  %7658 = vmatpush2.msra.mxu0 0.0
  %7659 = vmatprep.subr.mxu0 0.0
  %7660 = vmatpush2.msra.mxu0 0.0
  %7661 = vmatprep.subr.mxu0 0.0
  %7662 = vmatpush2.msra.mxu0 0.0
  %7663 = vmatprep.subr.mxu0 0.0
  %7664 = vmatpush2.msra.mxu0 0.0
  %7665 = vmatprep.subr.mxu0 0.0
  %7666 = vmatpush2.msra.mxu0 0.0
  %7667 = vmatprep.mubr.f32.mxu0 0.0
  %7668 = vmatmul.mubr.f32.gmra.mxu0 %v7556
  %v7669 = vpop.f32.mrf.mxu0
  %v7670 = vadd.f32 0.0, %v7669
  %v7671 = vpop.f32.mrf.mxu0
  %7672 = vmatprep.mubr.f32.mxu0 0.0
  %7673 = vmatmul.mubr.f32.gmra.mxu0 %v7559
  %v7674 = vpop.f32.mrf.mxu0
  %v7675 = vadd.f32 0.0, %v7674
  %v7676 = vpop.f32.mrf.mxu0
  %7677 = vmatprep.mubr.f32.mxu0 0.0
  %7678 = vmatmul.mubr.f32.gmra.mxu0 %v7562
  %v7679 = vpop.f32.mrf.mxu0
  %v7680 = vadd.f32 0.0, %v7679
  %v7681 = vpop.f32.mrf.mxu0
  %7682 = vmatprep.mubr.f32.mxu0 0.0
  %7683 = vmatmul.mubr.f32.gmra.mxu0 %v7565
  %v7684 = vpop.f32.mrf.mxu0
  %v7685 = vadd.f32 0.0, %v7684
  %v7686 = vpop.f32.mrf.mxu0
  %7687 = vmatprep.mubr.f32.mxu0 0.0
  %7688 = vmatmul.mubr.f32.gmra.mxu0 %v7568
  %v7689 = vpop.f32.mrf.mxu0
  %v7690 = vadd.f32 0.0, %v7689
  %v7691 = vpop.f32.mrf.mxu0
  %7692 = vmatprep.mubr.f32.mxu0 0.0
  %7693 = vmatmul.mubr.f32.gmra.mxu0 %v7571
  %v7694 = vpop.f32.mrf.mxu0
  %v7695 = vadd.f32 0.0, %v7694
  %v7696 = vpop.f32.mrf.mxu0
  %7697 = vmatprep.mubr.f32.mxu0 0.0
  %7698 = vmatmul.mubr.f32.gmra.mxu0 %v7574
  %v7699 = vpop.f32.mrf.mxu0
  %v7700 = vadd.f32 0.0, %v7699
  %v7701 = vpop.f32.mrf.mxu0
  %7702 = vmatprep.mubr.f32.mxu0 0.0
  %7703 = vmatmul.mubr.f32.gmra.mxu0 %v7577
  %v7704 = vpop.f32.mrf.mxu0
  %v7705 = vadd.f32 0.0, %v7704
  %v7706 = vpop.f32.mrf.mxu0
  %7707 = vmatprep.mubr.f32.mxu0 0.0
  %7708 = vmatmul.mubr.f32.gmra.mxu0 %v7580
  %v7709 = vpop.f32.mrf.mxu0
  %v7710 = vadd.f32 0.0, %v7709
  %v7711 = vpop.f32.mrf.mxu0
  %7712 = vmatprep.mubr.f32.mxu0 0.0
  %7713 = vmatmul.mubr.f32.gmra.mxu0 %v7583
  %v7714 = vpop.f32.mrf.mxu0
  %v7715 = vadd.f32 0.0, %v7714
  %v7716 = vpop.f32.mrf.mxu0
  %7717 = vmatprep.mubr.f32.mxu0 0.0
  %7718 = vmatmul.mubr.f32.gmra.mxu0 %v7586
  %v7719 = vpop.f32.mrf.mxu0
  %v7720 = vadd.f32 0.0, %v7719
  %v7721 = vpop.f32.mrf.mxu0
  %7722 = vmatprep.mubr.f32.mxu0 0.0
  %7723 = vmatmul.mubr.f32.gmra.mxu0 %v7589
  %v7724 = vpop.f32.mrf.mxu0
  %v7725 = vadd.f32 0.0, %v7724
  %v7726 = vpop.f32.mrf.mxu0
  %7727 = vmatprep.mubr.f32.mxu0 0.0
  %7728 = vmatmul.mubr.f32.gmra.mxu0 %v7592
  %v7729 = vpop.f32.mrf.mxu0
  %v7730 = vadd.f32 0.0, %v7729
  %v7731 = vpop.f32.mrf.mxu0
  %7732 = vmatprep.mubr.f32.mxu0 0.0
  %7733 = vmatmul.mubr.f32.gmra.mxu0 %v7595
  %v7734 = vpop.f32.mrf.mxu0
  %v7735 = vadd.f32 0.0, %v7734
  %v7736 = vpop.f32.mrf.mxu0
  %7737 = vmatprep.mubr.f32.mxu0 0.0
  %7738 = vmatmul.mubr.f32.gmra.mxu0 %v7598
  %v7739 = vpop.f32.mrf.mxu0
  %v7740 = vadd.f32 0.0, %v7739
  %v7741 = vpop.f32.mrf.mxu0
  %7742 = vmatprep.mubr.f32.mxu0 0.0
  %7743 = vmatmul.mubr.f32.gmra.mxu0 %v7601
  %v7744 = vpop.f32.mrf.mxu0
  %v7745 = vadd.f32 0.0, %v7744
  %v7746 = vpop.f32.mrf.mxu0
  %7747 = vdwg.mxu0
  %v7748 = vadd.f32 %v7518, %v7670
  %v7749 = vadd.f32 %v7519, %v7675
  %v7750 = vadd.f32 %v7520, %v7680
  %v7751 = vadd.f32 %v7521, %v7685
  %v7752 = vadd.f32 %v7522, %v7690
  %v7753 = vadd.f32 %v7523, %v7695
  %v7754 = vadd.f32 %v7524, %v7700
  %v7755 = vadd.f32 %v7525, %v7705
  %v7756 = vadd.f32 %v7526, %v7710
  %v7757 = vadd.f32 %v7527, %v7715
  %v7758 = vadd.f32 %v7528, %v7720
  %v7759 = vadd.f32 %v7529, %v7725
  %v7760 = vadd.f32 %v7530, %v7730
  %v7761 = vadd.f32 %v7531, %v7735
  %v7762 = vadd.f32 %v7532, %v7740
  %v7763 = vadd.f32 %v7533, %v7745
  %v7764 = vld [vmem:[%s126 + $0x1] sm:$0xff]
  %v7765 = vld [vmem:[%s126 + $0x11] sm:$0xff]
  %v7766 = vld [vmem:[%s126 + $0x21] sm:$0xff]
  %v7767 = vld [vmem:[%s126 + $0x31] sm:$0xff]
  %v7768 = vld [vmem:[%s126 + $0x41] sm:$0xff]
  %v7769 = vld [vmem:[%s126 + $0x51] sm:$0xff]
  %v7770 = vld [vmem:[%s126 + $0x61] sm:$0xff]
  %v7771 = vld [vmem:[%s126 + $0x71] sm:$0xff]
  %v7772 = vld [vmem:[%s126 + $0xa1] sm:$0xff]
  %v7773 = vld [vmem:[%s126 + $0xb1] sm:$0xff]
  %v7774 = vld [vmem:[%s126 + $0xc1] sm:$0xff]
  %v7775 = vld [vmem:[%s126 + $0xd1] sm:$0xff]
  %v7776 = vld [vmem:[%s126 + $0xe1] sm:$0xff]
  %v7777 = vld [vmem:[%s126 + $0xf1] sm:$0xff]
  %v7778 = vld [vmem:[%s126 + $0x101] sm:$0xff]
  %v7779 = vld [vmem:[%s126 + $0x111] sm:$0xff]
  %s7780 = scalar_lea.vmem %s11, 128
  %v7781 = vld [vmem:[%s7780] sm:$0xff]
  %v7782 = vld [vmem:[%s7780 + $0x8] sm:$0xff]
  %v7783 = vld [vmem:[%s7780 + $0x10] sm:$0xff]
  %v7784 = vld [vmem:[%s7780 + $0x18] sm:$0xff]
  %v7786 = vsel %vm68, %v7764, 0
  %v7789 = vsel %vm68, %v7765, 0
  %v7792 = vsel %vm68, %v7766, 0
  %v7795 = vsel %vm68, %v7767, 0
  %v7798 = vsel %vm68, %v7768, 0
  %v7801 = vsel %vm68, %v7769, 0
  %v7804 = vsel %vm68, %v7770, 0
  %v7807 = vsel %vm68, %v7771, 0
  %v7810 = vsel %vm68, %v7772, 0
  %v7813 = vsel %vm68, %v7773, 0
  %v7816 = vsel %vm68, %v7774, 0
  %v7819 = vsel %vm68, %v7775, 0
  %v7822 = vsel %vm68, %v7776, 0
  %v7825 = vsel %vm68, %v7777, 0
  %v7828 = vsel %vm68, %v7778, 0
  %v7831 = vsel %vm68, %v7779, 0
  %7833 = vmatprep.subr.mxu0 0.0
  %7834 = vmatpush1.msra.mxu0 0.0
  %7835 = vmatprep.subr.mxu0 0.0
  %7836 = vmatpush1.msra.mxu0 0.0
  %7837 = vmatprep.subr.mxu0 0.0
  %7838 = vmatpush1.msra.mxu0 0.0
  %7839 = vmatprep.subr.mxu0 0.0
  %7840 = vmatpush1.msra.mxu0 0.0
  %7841 = vmatprep.subr.mxu0 0.0
  %7842 = vmatpush1.msra.mxu0 0.0
  %7843 = vmatprep.subr.mxu0 0.0
  %7844 = vmatpush1.msra.mxu0 0.0
  %7845 = vmatprep.subr.mxu0 0.0
  %7846 = vmatpush1.msra.mxu0 0.0
  %7847 = vmatprep.subr.mxu0 0.0
  %7848 = vmatpush1.msra.mxu0 0.0
  %7849 = vmatprep.subr.mxu0 0.0
  %7850 = vmatpush1.msra.mxu0 0.0
  %7851 = vmatprep.subr.mxu0 0.0
  %7852 = vmatpush1.msra.mxu0 0.0
  %7853 = vmatprep.subr.mxu0 0.0
  %7854 = vmatpush1.msra.mxu0 0.0
  %7855 = vmatprep.subr.mxu0 0.0
  %7856 = vmatpush1.msra.mxu0 0.0
  %7857 = vmatprep.subr.mxu0 0.0
  %7858 = vmatpush1.msra.mxu0 %v7784
  %7859 = vmatprep.subr.mxu0 0.0
  %7860 = vmatpush1.msra.mxu0 %v7783
  %7861 = vmatprep.subr.mxu0 0.0
  %7862 = vmatpush1.msra.mxu0 %v7782
  %7863 = vmatprep.subr.mxu0 0.0
  %7864 = vmatpush1.msra.mxu0 %v7781
  %7865 = vmatprep.subr.mxu0 0.0
  %7866 = vmatpush2.msra.mxu0 0.0
  %7867 = vmatprep.subr.mxu0 0.0
  %7868 = vmatpush2.msra.mxu0 0.0
  %7869 = vmatprep.subr.mxu0 0.0
  %7870 = vmatpush2.msra.mxu0 0.0
  %7871 = vmatprep.subr.mxu0 0.0
  %7872 = vmatpush2.msra.mxu0 0.0
  %7873 = vmatprep.subr.mxu0 0.0
  %7874 = vmatpush2.msra.mxu0 0.0
  %7875 = vmatprep.subr.mxu0 0.0
  %7876 = vmatpush2.msra.mxu0 0.0
  %7877 = vmatprep.subr.mxu0 0.0
  %7878 = vmatpush2.msra.mxu0 0.0
  %7879 = vmatprep.subr.mxu0 0.0
  %7880 = vmatpush2.msra.mxu0 0.0
  %7881 = vmatprep.subr.mxu0 0.0
  %7882 = vmatpush2.msra.mxu0 0.0
  %7883 = vmatprep.subr.mxu0 0.0
  %7884 = vmatpush2.msra.mxu0 0.0
  %7885 = vmatprep.subr.mxu0 0.0
  %7886 = vmatpush2.msra.mxu0 0.0
  %7887 = vmatprep.subr.mxu0 0.0
  %7888 = vmatpush2.msra.mxu0 0.0
  %7889 = vmatprep.subr.mxu0 0.0
  %7890 = vmatpush2.msra.mxu0 0.0
  %7891 = vmatprep.subr.mxu0 0.0
  %7892 = vmatpush2.msra.mxu0 0.0
  %7893 = vmatprep.subr.mxu0 0.0
  %7894 = vmatpush2.msra.mxu0 0.0
  %7895 = vmatprep.subr.mxu0 0.0
  %7896 = vmatpush2.msra.mxu0 0.0
  %7897 = vmatprep.mubr.f32.mxu0 0.0
  %7898 = vmatmul.mubr.f32.gmra.mxu0 %v7786
  %v7899 = vpop.f32.mrf.mxu0
  %v7900 = vadd.f32 0.0, %v7899
  %v7901 = vpop.f32.mrf.mxu0
  %7902 = vmatprep.mubr.f32.mxu0 0.0
  %7903 = vmatmul.mubr.f32.gmra.mxu0 %v7789
  %v7904 = vpop.f32.mrf.mxu0
  %v7905 = vadd.f32 0.0, %v7904
  %v7906 = vpop.f32.mrf.mxu0
  %7907 = vmatprep.mubr.f32.mxu0 0.0
  %7908 = vmatmul.mubr.f32.gmra.mxu0 %v7792
  %v7909 = vpop.f32.mrf.mxu0
  %v7910 = vadd.f32 0.0, %v7909
  %v7911 = vpop.f32.mrf.mxu0
  %7912 = vmatprep.mubr.f32.mxu0 0.0
  %7913 = vmatmul.mubr.f32.gmra.mxu0 %v7795
  %v7914 = vpop.f32.mrf.mxu0
  %v7915 = vadd.f32 0.0, %v7914
  %v7916 = vpop.f32.mrf.mxu0
  %7917 = vmatprep.mubr.f32.mxu0 0.0
  %7918 = vmatmul.mubr.f32.gmra.mxu0 %v7798
  %v7919 = vpop.f32.mrf.mxu0
  %v7920 = vadd.f32 0.0, %v7919
  %v7921 = vpop.f32.mrf.mxu0
  %7922 = vmatprep.mubr.f32.mxu0 0.0
  %7923 = vmatmul.mubr.f32.gmra.mxu0 %v7801
  %v7924 = vpop.f32.mrf.mxu0
  %v7925 = vadd.f32 0.0, %v7924
  %v7926 = vpop.f32.mrf.mxu0
  %7927 = vmatprep.mubr.f32.mxu0 0.0
  %7928 = vmatmul.mubr.f32.gmra.mxu0 %v7804
  %v7929 = vpop.f32.mrf.mxu0
  %v7930 = vadd.f32 0.0, %v7929
  %v7931 = vpop.f32.mrf.mxu0
  %7932 = vmatprep.mubr.f32.mxu0 0.0
  %7933 = vmatmul.mubr.f32.gmra.mxu0 %v7807
  %v7934 = vpop.f32.mrf.mxu0
  %v7935 = vadd.f32 0.0, %v7934
  %v7936 = vpop.f32.mrf.mxu0
  %7937 = vmatprep.mubr.f32.mxu0 0.0
  %7938 = vmatmul.mubr.f32.gmra.mxu0 %v7810
  %v7939 = vpop.f32.mrf.mxu0
  %v7940 = vadd.f32 0.0, %v7939
  %v7941 = vpop.f32.mrf.mxu0
  %7942 = vmatprep.mubr.f32.mxu0 0.0
  %7943 = vmatmul.mubr.f32.gmra.mxu0 %v7813
  %v7944 = vpop.f32.mrf.mxu0
  %v7945 = vadd.f32 0.0, %v7944
  %v7946 = vpop.f32.mrf.mxu0
  %7947 = vmatprep.mubr.f32.mxu0 0.0
  %7948 = vmatmul.mubr.f32.gmra.mxu0 %v7816
  %v7949 = vpop.f32.mrf.mxu0
  %v7950 = vadd.f32 0.0, %v7949
  %v7951 = vpop.f32.mrf.mxu0
  %7952 = vmatprep.mubr.f32.mxu0 0.0
  %7953 = vmatmul.mubr.f32.gmra.mxu0 %v7819
  %v7954 = vpop.f32.mrf.mxu0
  %v7955 = vadd.f32 0.0, %v7954
  %v7956 = vpop.f32.mrf.mxu0
  %7957 = vmatprep.mubr.f32.mxu0 0.0
  %7958 = vmatmul.mubr.f32.gmra.mxu0 %v7822
  %v7959 = vpop.f32.mrf.mxu0
  %v7960 = vadd.f32 0.0, %v7959
  %v7961 = vpop.f32.mrf.mxu0
  %7962 = vmatprep.mubr.f32.mxu0 0.0
  %7963 = vmatmul.mubr.f32.gmra.mxu0 %v7825
  %v7964 = vpop.f32.mrf.mxu0
  %v7965 = vadd.f32 0.0, %v7964
  %v7966 = vpop.f32.mrf.mxu0
  %7967 = vmatprep.mubr.f32.mxu0 0.0
  %7968 = vmatmul.mubr.f32.gmra.mxu0 %v7828
  %v7969 = vpop.f32.mrf.mxu0
  %v7970 = vadd.f32 0.0, %v7969
  %v7971 = vpop.f32.mrf.mxu0
  %7972 = vmatprep.mubr.f32.mxu0 0.0
  %7973 = vmatmul.mubr.f32.gmra.mxu0 %v7831
  %v7974 = vpop.f32.mrf.mxu0
  %v7975 = vadd.f32 0.0, %v7974
  %v7976 = vpop.f32.mrf.mxu0
  %7977 = vdwg.mxu0
  %v7978 = vadd.f32 %v7748, %v7900
  %v7979 = vadd.f32 %v7749, %v7905
  %v7980 = vadd.f32 %v7750, %v7910
  %v7981 = vadd.f32 %v7751, %v7915
  %v7982 = vadd.f32 %v7752, %v7920
  %v7983 = vadd.f32 %v7753, %v7925
  %v7984 = vadd.f32 %v7754, %v7930
  %v7985 = vadd.f32 %v7755, %v7935
  %v7986 = vadd.f32 %v7756, %v7940
  %v7987 = vadd.f32 %v7757, %v7945
  %v7988 = vadd.f32 %v7758, %v7950
  %v7989 = vadd.f32 %v7759, %v7955
  %v7990 = vadd.f32 %v7760, %v7960
  %v7991 = vadd.f32 %v7761, %v7965
  %v7992 = vadd.f32 %v7762, %v7970
  %v7993 = vadd.f32 %v7763, %v7975
  %v7994 = vld [vmem:[%s126 + $0x2] sm:$0xff]
  %v7995 = vld [vmem:[%s126 + $0x12] sm:$0xff]
  %v7996 = vld [vmem:[%s126 + $0x22] sm:$0xff]
  %v7997 = vld [vmem:[%s126 + $0x32] sm:$0xff]
  %v7998 = vld [vmem:[%s126 + $0x42] sm:$0xff]
  %v7999 = vld [vmem:[%s126 + $0x52] sm:$0xff]
  %v8000 = vld [vmem:[%s126 + $0x62] sm:$0xff]
  %v8001 = vld [vmem:[%s126 + $0x72] sm:$0xff]
  %v8002 = vld [vmem:[%s126 + $0xa2] sm:$0xff]
  %v8003 = vld [vmem:[%s126 + $0xb2] sm:$0xff]
  %v8004 = vld [vmem:[%s126 + $0xc2] sm:$0xff]
  %v8005 = vld [vmem:[%s126 + $0xd2] sm:$0xff]
  %v8006 = vld [vmem:[%s126 + $0xe2] sm:$0xff]
  %v8007 = vld [vmem:[%s126 + $0xf2] sm:$0xff]
  %v8008 = vld [vmem:[%s126 + $0x102] sm:$0xff]
  %v8009 = vld [vmem:[%s126 + $0x112] sm:$0xff]
  %s8010 = scalar_lea.vmem %s11, 160
  %v8011 = vld [vmem:[%s8010] sm:$0xff]
  %v8012 = vld [vmem:[%s8010 + $0x8] sm:$0xff]
  %v8013 = vld [vmem:[%s8010 + $0x10] sm:$0xff]
  %v8014 = vld [vmem:[%s8010 + $0x18] sm:$0xff]
  %v8016 = vsel %vm68, %v7994, 0
  %v8019 = vsel %vm68, %v7995, 0
  %v8022 = vsel %vm68, %v7996, 0
  %v8025 = vsel %vm68, %v7997, 0
  %v8028 = vsel %vm68, %v7998, 0
  %v8031 = vsel %vm68, %v7999, 0
  %v8034 = vsel %vm68, %v8000, 0
  %v8037 = vsel %vm68, %v8001, 0
  %v8040 = vsel %vm68, %v8002, 0
  %v8043 = vsel %vm68, %v8003, 0
  %v8046 = vsel %vm68, %v8004, 0
  %v8049 = vsel %vm68, %v8005, 0
  %v8052 = vsel %vm68, %v8006, 0
  %v8055 = vsel %vm68, %v8007, 0
  %v8058 = vsel %vm68, %v8008, 0
  %v8061 = vsel %vm68, %v8009, 0
  %8063 = vmatprep.subr.mxu0 0.0
  %8064 = vmatpush1.msra.mxu0 0.0
  %8065 = vmatprep.subr.mxu0 0.0
  %8066 = vmatpush1.msra.mxu0 0.0
  %8067 = vmatprep.subr.mxu0 0.0
  %8068 = vmatpush1.msra.mxu0 0.0
  %8069 = vmatprep.subr.mxu0 0.0
  %8070 = vmatpush1.msra.mxu0 0.0
  %8071 = vmatprep.subr.mxu0 0.0
  %8072 = vmatpush1.msra.mxu0 0.0
  %8073 = vmatprep.subr.mxu0 0.0
  %8074 = vmatpush1.msra.mxu0 0.0
  %8075 = vmatprep.subr.mxu0 0.0
  %8076 = vmatpush1.msra.mxu0 0.0
  %8077 = vmatprep.subr.mxu0 0.0
  %8078 = vmatpush1.msra.mxu0 0.0
  %8079 = vmatprep.subr.mxu0 0.0
  %8080 = vmatpush1.msra.mxu0 0.0
  %8081 = vmatprep.subr.mxu0 0.0
  %8082 = vmatpush1.msra.mxu0 0.0
  %8083 = vmatprep.subr.mxu0 0.0
  %8084 = vmatpush1.msra.mxu0 0.0
  %8085 = vmatprep.subr.mxu0 0.0
  %8086 = vmatpush1.msra.mxu0 0.0
  %8087 = vmatprep.subr.mxu0 0.0
  %8088 = vmatpush1.msra.mxu0 %v8014
  %8089 = vmatprep.subr.mxu0 0.0
  %8090 = vmatpush1.msra.mxu0 %v8013
  %8091 = vmatprep.subr.mxu0 0.0
  %8092 = vmatpush1.msra.mxu0 %v8012
  %8093 = vmatprep.subr.mxu0 0.0
  %8094 = vmatpush1.msra.mxu0 %v8011
  %8095 = vmatprep.subr.mxu0 0.0
  %8096 = vmatpush2.msra.mxu0 0.0
  %8097 = vmatprep.subr.mxu0 0.0
  %8098 = vmatpush2.msra.mxu0 0.0
  %8099 = vmatprep.subr.mxu0 0.0
  %8100 = vmatpush2.msra.mxu0 0.0
  %8101 = vmatprep.subr.mxu0 0.0
  %8102 = vmatpush2.msra.mxu0 0.0
  %8103 = vmatprep.subr.mxu0 0.0
  %8104 = vmatpush2.msra.mxu0 0.0
  %8105 = vmatprep.subr.mxu0 0.0
  %8106 = vmatpush2.msra.mxu0 0.0
  %8107 = vmatprep.subr.mxu0 0.0
  %8108 = vmatpush2.msra.mxu0 0.0
  %8109 = vmatprep.subr.mxu0 0.0
  %8110 = vmatpush2.msra.mxu0 0.0
  %8111 = vmatprep.subr.mxu0 0.0
  %8112 = vmatpush2.msra.mxu0 0.0
  %8113 = vmatprep.subr.mxu0 0.0
  %8114 = vmatpush2.msra.mxu0 0.0
  %8115 = vmatprep.subr.mxu0 0.0
  %8116 = vmatpush2.msra.mxu0 0.0
  %8117 = vmatprep.subr.mxu0 0.0
  %8118 = vmatpush2.msra.mxu0 0.0
  %8119 = vmatprep.subr.mxu0 0.0
  %8120 = vmatpush2.msra.mxu0 0.0
  %8121 = vmatprep.subr.mxu0 0.0
  %8122 = vmatpush2.msra.mxu0 0.0
  %8123 = vmatprep.subr.mxu0 0.0
  %8124 = vmatpush2.msra.mxu0 0.0
  %8125 = vmatprep.subr.mxu0 0.0
  %8126 = vmatpush2.msra.mxu0 0.0
  %8127 = vmatprep.mubr.f32.mxu0 0.0
  %8128 = vmatmul.mubr.f32.gmra.mxu0 %v8016
  %v8129 = vpop.f32.mrf.mxu0
  %v8130 = vadd.f32 0.0, %v8129
  %v8131 = vpop.f32.mrf.mxu0
  %8132 = vmatprep.mubr.f32.mxu0 0.0
  %8133 = vmatmul.mubr.f32.gmra.mxu0 %v8019
  %v8134 = vpop.f32.mrf.mxu0
  %v8135 = vadd.f32 0.0, %v8134
  %v8136 = vpop.f32.mrf.mxu0
  %8137 = vmatprep.mubr.f32.mxu0 0.0
  %8138 = vmatmul.mubr.f32.gmra.mxu0 %v8022
  %v8139 = vpop.f32.mrf.mxu0
  %v8140 = vadd.f32 0.0, %v8139
  %v8141 = vpop.f32.mrf.mxu0
  %8142 = vmatprep.mubr.f32.mxu0 0.0
  %8143 = vmatmul.mubr.f32.gmra.mxu0 %v8025
  %v8144 = vpop.f32.mrf.mxu0
  %v8145 = vadd.f32 0.0, %v8144
  %v8146 = vpop.f32.mrf.mxu0
  %8147 = vmatprep.mubr.f32.mxu0 0.0
  %8148 = vmatmul.mubr.f32.gmra.mxu0 %v8028
  %v8149 = vpop.f32.mrf.mxu0
  %v8150 = vadd.f32 0.0, %v8149
  %v8151 = vpop.f32.mrf.mxu0
  %8152 = vmatprep.mubr.f32.mxu0 0.0
  %8153 = vmatmul.mubr.f32.gmra.mxu0 %v8031
  %v8154 = vpop.f32.mrf.mxu0
  %v8155 = vadd.f32 0.0, %v8154
  %v8156 = vpop.f32.mrf.mxu0
  %8157 = vmatprep.mubr.f32.mxu0 0.0
  %8158 = vmatmul.mubr.f32.gmra.mxu0 %v8034
  %v8159 = vpop.f32.mrf.mxu0
  %v8160 = vadd.f32 0.0, %v8159
  %v8161 = vpop.f32.mrf.mxu0
  %8162 = vmatprep.mubr.f32.mxu0 0.0
  %8163 = vmatmul.mubr.f32.gmra.mxu0 %v8037
  %v8164 = vpop.f32.mrf.mxu0
  %v8165 = vadd.f32 0.0, %v8164
  %v8166 = vpop.f32.mrf.mxu0
  %8167 = vmatprep.mubr.f32.mxu0 0.0
  %8168 = vmatmul.mubr.f32.gmra.mxu0 %v8040
  %v8169 = vpop.f32.mrf.mxu0
  %v8170 = vadd.f32 0.0, %v8169
  %v8171 = vpop.f32.mrf.mxu0
  %8172 = vmatprep.mubr.f32.mxu0 0.0
  %8173 = vmatmul.mubr.f32.gmra.mxu0 %v8043
  %v8174 = vpop.f32.mrf.mxu0
  %v8175 = vadd.f32 0.0, %v8174
  %v8176 = vpop.f32.mrf.mxu0
  %8177 = vmatprep.mubr.f32.mxu0 0.0
  %8178 = vmatmul.mubr.f32.gmra.mxu0 %v8046
  %v8179 = vpop.f32.mrf.mxu0
  %v8180 = vadd.f32 0.0, %v8179
  %v8181 = vpop.f32.mrf.mxu0
  %8182 = vmatprep.mubr.f32.mxu0 0.0
  %8183 = vmatmul.mubr.f32.gmra.mxu0 %v8049
  %v8184 = vpop.f32.mrf.mxu0
  %v8185 = vadd.f32 0.0, %v8184
  %v8186 = vpop.f32.mrf.mxu0
  %8187 = vmatprep.mubr.f32.mxu0 0.0
  %8188 = vmatmul.mubr.f32.gmra.mxu0 %v8052
  %v8189 = vpop.f32.mrf.mxu0
  %v8190 = vadd.f32 0.0, %v8189
  %v8191 = vpop.f32.mrf.mxu0
  %8192 = vmatprep.mubr.f32.mxu0 0.0
  %8193 = vmatmul.mubr.f32.gmra.mxu0 %v8055
  %v8194 = vpop.f32.mrf.mxu0
  %v8195 = vadd.f32 0.0, %v8194
  %v8196 = vpop.f32.mrf.mxu0
  %8197 = vmatprep.mubr.f32.mxu0 0.0
  %8198 = vmatmul.mubr.f32.gmra.mxu0 %v8058
  %v8199 = vpop.f32.mrf.mxu0
  %v8200 = vadd.f32 0.0, %v8199
  %v8201 = vpop.f32.mrf.mxu0
  %8202 = vmatprep.mubr.f32.mxu0 0.0
  %8203 = vmatmul.mubr.f32.gmra.mxu0 %v8061
  %v8204 = vpop.f32.mrf.mxu0
  %v8205 = vadd.f32 0.0, %v8204
  %v8206 = vpop.f32.mrf.mxu0
  %8207 = vdwg.mxu0
  %v8208 = vadd.f32 %v7978, %v8130
  %v8209 = vadd.f32 %v7979, %v8135
  %v8210 = vadd.f32 %v7980, %v8140
  %v8211 = vadd.f32 %v7981, %v8145
  %v8212 = vadd.f32 %v7982, %v8150
  %v8213 = vadd.f32 %v7983, %v8155
  %v8214 = vadd.f32 %v7984, %v8160
  %v8215 = vadd.f32 %v7985, %v8165
  %v8216 = vadd.f32 %v7986, %v8170
  %v8217 = vadd.f32 %v7987, %v8175
  %v8218 = vadd.f32 %v7988, %v8180
  %v8219 = vadd.f32 %v7989, %v8185
  %v8220 = vadd.f32 %v7990, %v8190
  %v8221 = vadd.f32 %v7991, %v8195
  %v8222 = vadd.f32 %v7992, %v8200
  %v8223 = vadd.f32 %v7993, %v8205
  %v8224 = vld [vmem:[%s1490] sm:$0xff]
  %v8225 = vld [vmem:[%s1490 + $0x10] sm:$0xff]
  %v8226 = vld [vmem:[%s1490 + $0x20] sm:$0xff]
  %v8227 = vld [vmem:[%s1490 + $0x30] sm:$0xff]
  %v8228 = vld [vmem:[%s1490 + $0x40] sm:$0xff]
  %v8229 = vld [vmem:[%s1490 + $0x50] sm:$0xff]
  %v8230 = vld [vmem:[%s1490 + $0x60] sm:$0xff]
  %v8231 = vld [vmem:[%s1490 + $0x70] sm:$0xff]
  %v8232 = vld [vmem:[%s1490 + $0xa0] sm:$0xff]
  %v8233 = vld [vmem:[%s1490 + $0xb0] sm:$0xff]
  %v8234 = vld [vmem:[%s1490 + $0xc0] sm:$0xff]
  %v8235 = vld [vmem:[%s1490 + $0xd0] sm:$0xff]
  %v8236 = vld [vmem:[%s1490 + $0xe0] sm:$0xff]
  %v8237 = vld [vmem:[%s1490 + $0xf0] sm:$0xff]
  %v8238 = vld [vmem:[%s1490 + $0x100] sm:$0xff]
  %v8239 = vld [vmem:[%s1490 + $0x110] sm:$0xff]
  %s8240 = scalar_lea.vmem %s11, 192
  %v8241 = vld [vmem:[%s8240] sm:$0xff]
  %v8242 = vld [vmem:[%s8240 + $0x8] sm:$0xff]
  %v8243 = vld [vmem:[%s8240 + $0x10] sm:$0xff]
  %v8244 = vld [vmem:[%s8240 + $0x18] sm:$0xff]
  %v8246 = vsel %vm68, %v8224, 0
  %v8249 = vsel %vm68, %v8225, 0
  %v8252 = vsel %vm68, %v8226, 0
  %v8255 = vsel %vm68, %v8227, 0
  %v8258 = vsel %vm68, %v8228, 0
  %v8261 = vsel %vm68, %v8229, 0
  %v8264 = vsel %vm68, %v8230, 0
  %v8267 = vsel %vm68, %v8231, 0
  %v8270 = vsel %vm68, %v8232, 0
  %v8273 = vsel %vm68, %v8233, 0
  %v8276 = vsel %vm68, %v8234, 0
  %v8279 = vsel %vm68, %v8235, 0
  %v8282 = vsel %vm68, %v8236, 0
  %v8285 = vsel %vm68, %v8237, 0
  %v8288 = vsel %vm68, %v8238, 0
  %v8291 = vsel %vm68, %v8239, 0
  %8293 = vmatprep.subr.mxu0 0.0
  %8294 = vmatpush1.msra.mxu0 0.0
  %8295 = vmatprep.subr.mxu0 0.0
  %8296 = vmatpush1.msra.mxu0 0.0
  %8297 = vmatprep.subr.mxu0 0.0
  %8298 = vmatpush1.msra.mxu0 0.0
  %8299 = vmatprep.subr.mxu0 0.0
  %8300 = vmatpush1.msra.mxu0 0.0
  %8301 = vmatprep.subr.mxu0 0.0
  %8302 = vmatpush1.msra.mxu0 0.0
  %8303 = vmatprep.subr.mxu0 0.0
  %8304 = vmatpush1.msra.mxu0 0.0
  %8305 = vmatprep.subr.mxu0 0.0
  %8306 = vmatpush1.msra.mxu0 0.0
  %8307 = vmatprep.subr.mxu0 0.0
  %8308 = vmatpush1.msra.mxu0 0.0
  %8309 = vmatprep.subr.mxu0 0.0
  %8310 = vmatpush1.msra.mxu0 0.0
  %8311 = vmatprep.subr.mxu0 0.0
  %8312 = vmatpush1.msra.mxu0 0.0
  %8313 = vmatprep.subr.mxu0 0.0
  %8314 = vmatpush1.msra.mxu0 0.0
  %8315 = vmatprep.subr.mxu0 0.0
  %8316 = vmatpush1.msra.mxu0 0.0
  %8317 = vmatprep.subr.mxu0 0.0
  %8318 = vmatpush1.msra.mxu0 %v8244
  %8319 = vmatprep.subr.mxu0 0.0
  %8320 = vmatpush1.msra.mxu0 %v8243
  %8321 = vmatprep.subr.mxu0 0.0
  %8322 = vmatpush1.msra.mxu0 %v8242
  %8323 = vmatprep.subr.mxu0 0.0
  %8324 = vmatpush1.msra.mxu0 %v8241
  %8325 = vmatprep.subr.mxu0 0.0
  %8326 = vmatpush2.msra.mxu0 0.0
  %8327 = vmatprep.subr.mxu0 0.0
  %8328 = vmatpush2.msra.mxu0 0.0
  %8329 = vmatprep.subr.mxu0 0.0
  %8330 = vmatpush2.msra.mxu0 0.0
  %8331 = vmatprep.subr.mxu0 0.0
  %8332 = vmatpush2.msra.mxu0 0.0
  %8333 = vmatprep.subr.mxu0 0.0
  %8334 = vmatpush2.msra.mxu0 0.0
  %8335 = vmatprep.subr.mxu0 0.0
  %8336 = vmatpush2.msra.mxu0 0.0
  %8337 = vmatprep.subr.mxu0 0.0
  %8338 = vmatpush2.msra.mxu0 0.0
  %8339 = vmatprep.subr.mxu0 0.0
  %8340 = vmatpush2.msra.mxu0 0.0
  %8341 = vmatprep.subr.mxu0 0.0
  %8342 = vmatpush2.msra.mxu0 0.0
  %8343 = vmatprep.subr.mxu0 0.0
  %8344 = vmatpush2.msra.mxu0 0.0
  %8345 = vmatprep.subr.mxu0 0.0
  %8346 = vmatpush2.msra.mxu0 0.0
  %8347 = vmatprep.subr.mxu0 0.0
  %8348 = vmatpush2.msra.mxu0 0.0
  %8349 = vmatprep.subr.mxu0 0.0
  %8350 = vmatpush2.msra.mxu0 0.0
  %8351 = vmatprep.subr.mxu0 0.0
  %8352 = vmatpush2.msra.mxu0 0.0
  %8353 = vmatprep.subr.mxu0 0.0
  %8354 = vmatpush2.msra.mxu0 0.0
  %8355 = vmatprep.subr.mxu0 0.0
  %8356 = vmatpush2.msra.mxu0 0.0
  %8357 = vmatprep.mubr.f32.mxu0 0.0
  %8358 = vmatmul.mubr.f32.gmra.mxu0 %v8246
  %v8359 = vpop.f32.mrf.mxu0
  %v8360 = vadd.f32 0.0, %v8359
  %v8361 = vpop.f32.mrf.mxu0
  %8362 = vmatprep.mubr.f32.mxu0 0.0
  %8363 = vmatmul.mubr.f32.gmra.mxu0 %v8249
  %v8364 = vpop.f32.mrf.mxu0
  %v8365 = vadd.f32 0.0, %v8364
  %v8366 = vpop.f32.mrf.mxu0
  %8367 = vmatprep.mubr.f32.mxu0 0.0
  %8368 = vmatmul.mubr.f32.gmra.mxu0 %v8252
  %v8369 = vpop.f32.mrf.mxu0
  %v8370 = vadd.f32 0.0, %v8369
  %v8371 = vpop.f32.mrf.mxu0
  %8372 = vmatprep.mubr.f32.mxu0 0.0
  %8373 = vmatmul.mubr.f32.gmra.mxu0 %v8255
  %v8374 = vpop.f32.mrf.mxu0
  %v8375 = vadd.f32 0.0, %v8374
  %v8376 = vpop.f32.mrf.mxu0
  %8377 = vmatprep.mubr.f32.mxu0 0.0
  %8378 = vmatmul.mubr.f32.gmra.mxu0 %v8258
  %v8379 = vpop.f32.mrf.mxu0
  %v8380 = vadd.f32 0.0, %v8379
  %v8381 = vpop.f32.mrf.mxu0
  %8382 = vmatprep.mubr.f32.mxu0 0.0
  %8383 = vmatmul.mubr.f32.gmra.mxu0 %v8261
  %v8384 = vpop.f32.mrf.mxu0
  %v8385 = vadd.f32 0.0, %v8384
  %v8386 = vpop.f32.mrf.mxu0
  %8387 = vmatprep.mubr.f32.mxu0 0.0
  %8388 = vmatmul.mubr.f32.gmra.mxu0 %v8264
  %v8389 = vpop.f32.mrf.mxu0
  %v8390 = vadd.f32 0.0, %v8389
  %v8391 = vpop.f32.mrf.mxu0
  %8392 = vmatprep.mubr.f32.mxu0 0.0
  %8393 = vmatmul.mubr.f32.gmra.mxu0 %v8267
  %v8394 = vpop.f32.mrf.mxu0
  %v8395 = vadd.f32 0.0, %v8394
  %v8396 = vpop.f32.mrf.mxu0
  %8397 = vmatprep.mubr.f32.mxu0 0.0
  %8398 = vmatmul.mubr.f32.gmra.mxu0 %v8270
  %v8399 = vpop.f32.mrf.mxu0
  %v8400 = vadd.f32 0.0, %v8399
  %v8401 = vpop.f32.mrf.mxu0
  %8402 = vmatprep.mubr.f32.mxu0 0.0
  %8403 = vmatmul.mubr.f32.gmra.mxu0 %v8273
  %v8404 = vpop.f32.mrf.mxu0
  %v8405 = vadd.f32 0.0, %v8404
  %v8406 = vpop.f32.mrf.mxu0
  %8407 = vmatprep.mubr.f32.mxu0 0.0
  %8408 = vmatmul.mubr.f32.gmra.mxu0 %v8276
  %v8409 = vpop.f32.mrf.mxu0
  %v8410 = vadd.f32 0.0, %v8409
  %v8411 = vpop.f32.mrf.mxu0
  %8412 = vmatprep.mubr.f32.mxu0 0.0
  %8413 = vmatmul.mubr.f32.gmra.mxu0 %v8279
  %v8414 = vpop.f32.mrf.mxu0
  %v8415 = vadd.f32 0.0, %v8414
  %v8416 = vpop.f32.mrf.mxu0
  %8417 = vmatprep.mubr.f32.mxu0 0.0
  %8418 = vmatmul.mubr.f32.gmra.mxu0 %v8282
  %v8419 = vpop.f32.mrf.mxu0
  %v8420 = vadd.f32 0.0, %v8419
  %v8421 = vpop.f32.mrf.mxu0
  %8422 = vmatprep.mubr.f32.mxu0 0.0
  %8423 = vmatmul.mubr.f32.gmra.mxu0 %v8285
  %v8424 = vpop.f32.mrf.mxu0
  %v8425 = vadd.f32 0.0, %v8424
  %v8426 = vpop.f32.mrf.mxu0
  %8427 = vmatprep.mubr.f32.mxu0 0.0
  %8428 = vmatmul.mubr.f32.gmra.mxu0 %v8288
  %v8429 = vpop.f32.mrf.mxu0
  %v8430 = vadd.f32 0.0, %v8429
  %v8431 = vpop.f32.mrf.mxu0
  %8432 = vmatprep.mubr.f32.mxu0 0.0
  %8433 = vmatmul.mubr.f32.gmra.mxu0 %v8291
  %v8434 = vpop.f32.mrf.mxu0
  %v8435 = vadd.f32 0.0, %v8434
  %v8436 = vpop.f32.mrf.mxu0
  %8437 = vdwg.mxu0
  %v8438 = vadd.f32 %v8208, %v8360
  %v8439 = vadd.f32 %v8209, %v8365
  %v8440 = vadd.f32 %v8210, %v8370
  %v8441 = vadd.f32 %v8211, %v8375
  %v8442 = vadd.f32 %v8212, %v8380
  %v8443 = vadd.f32 %v8213, %v8385
  %v8444 = vadd.f32 %v8214, %v8390
  %v8445 = vadd.f32 %v8215, %v8395
  %v8446 = vadd.f32 %v8216, %v8400
  %v8447 = vadd.f32 %v8217, %v8405
  %v8448 = vadd.f32 %v8218, %v8410
  %v8449 = vadd.f32 %v8219, %v8415
  %v8450 = vadd.f32 %v8220, %v8420
  %v8451 = vadd.f32 %v8221, %v8425
  %v8452 = vadd.f32 %v8222, %v8430
  %v8453 = vadd.f32 %v8223, %v8435
  %v8454 = vld [vmem:[%s1490 + $0x1] sm:$0xff]
  %v8455 = vld [vmem:[%s1490 + $0x11] sm:$0xff]
  %v8456 = vld [vmem:[%s1490 + $0x21] sm:$0xff]
  %v8457 = vld [vmem:[%s1490 + $0x31] sm:$0xff]
  %v8458 = vld [vmem:[%s1490 + $0x41] sm:$0xff]
  %v8459 = vld [vmem:[%s1490 + $0x51] sm:$0xff]
  %v8460 = vld [vmem:[%s1490 + $0x61] sm:$0xff]
  %v8461 = vld [vmem:[%s1490 + $0x71] sm:$0xff]
  %v8462 = vld [vmem:[%s1490 + $0xa1] sm:$0xff]
  %v8463 = vld [vmem:[%s1490 + $0xb1] sm:$0xff]
  %v8464 = vld [vmem:[%s1490 + $0xc1] sm:$0xff]
  %v8465 = vld [vmem:[%s1490 + $0xd1] sm:$0xff]
  %v8466 = vld [vmem:[%s1490 + $0xe1] sm:$0xff]
  %v8467 = vld [vmem:[%s1490 + $0xf1] sm:$0xff]
  %v8468 = vld [vmem:[%s1490 + $0x101] sm:$0xff]
  %v8469 = vld [vmem:[%s1490 + $0x111] sm:$0xff]
  %s8470 = scalar_lea.vmem %s11, 224
  %v8471 = vld [vmem:[%s8470] sm:$0xff]
  %v8472 = vld [vmem:[%s8470 + $0x8] sm:$0xff]
  %v8473 = vld [vmem:[%s8470 + $0x10] sm:$0xff]
  %v8474 = vld [vmem:[%s8470 + $0x18] sm:$0xff]
  %v8476 = vsel %vm68, %v8454, 0
  %v8479 = vsel %vm68, %v8455, 0
  %v8482 = vsel %vm68, %v8456, 0
  %v8485 = vsel %vm68, %v8457, 0
  %v8488 = vsel %vm68, %v8458, 0
  %v8491 = vsel %vm68, %v8459, 0
  %v8494 = vsel %vm68, %v8460, 0
  %v8497 = vsel %vm68, %v8461, 0
  %v8500 = vsel %vm68, %v8462, 0
  %v8503 = vsel %vm68, %v8463, 0
  %v8506 = vsel %vm68, %v8464, 0
  %v8509 = vsel %vm68, %v8465, 0
  %v8512 = vsel %vm68, %v8466, 0
  %v8515 = vsel %vm68, %v8467, 0
  %v8518 = vsel %vm68, %v8468, 0
  %v8521 = vsel %vm68, %v8469, 0
  %8523 = vmatprep.subr.mxu0 0.0
  %8524 = vmatpush1.msra.mxu0 0.0
  %8525 = vmatprep.subr.mxu0 0.0
  %8526 = vmatpush1.msra.mxu0 0.0
  %8527 = vmatprep.subr.mxu0 0.0
  %8528 = vmatpush1.msra.mxu0 0.0
  %8529 = vmatprep.subr.mxu0 0.0
  %8530 = vmatpush1.msra.mxu0 0.0
  %8531 = vmatprep.subr.mxu0 0.0
  %8532 = vmatpush1.msra.mxu0 0.0
  %8533 = vmatprep.subr.mxu0 0.0
  %8534 = vmatpush1.msra.mxu0 0.0
  %8535 = vmatprep.subr.mxu0 0.0
  %8536 = vmatpush1.msra.mxu0 0.0
  %8537 = vmatprep.subr.mxu0 0.0
  %8538 = vmatpush1.msra.mxu0 0.0
  %8539 = vmatprep.subr.mxu0 0.0
  %8540 = vmatpush1.msra.mxu0 0.0
  %8541 = vmatprep.subr.mxu0 0.0
  %8542 = vmatpush1.msra.mxu0 0.0
  %8543 = vmatprep.subr.mxu0 0.0
  %8544 = vmatpush1.msra.mxu0 0.0
  %8545 = vmatprep.subr.mxu0 0.0
  %8546 = vmatpush1.msra.mxu0 0.0
  %8547 = vmatprep.subr.mxu0 0.0
  %8548 = vmatpush1.msra.mxu0 %v8474
  %8549 = vmatprep.subr.mxu0 0.0
  %8550 = vmatpush1.msra.mxu0 %v8473
  %8551 = vmatprep.subr.mxu0 0.0
  %8552 = vmatpush1.msra.mxu0 %v8472
  %8553 = vmatprep.subr.mxu0 0.0
  %8554 = vmatpush1.msra.mxu0 %v8471
  %8555 = vmatprep.subr.mxu0 0.0
  %8556 = vmatpush2.msra.mxu0 0.0
  %8557 = vmatprep.subr.mxu0 0.0
  %8558 = vmatpush2.msra.mxu0 0.0
  %8559 = vmatprep.subr.mxu0 0.0
  %8560 = vmatpush2.msra.mxu0 0.0
  %8561 = vmatprep.subr.mxu0 0.0
  %8562 = vmatpush2.msra.mxu0 0.0
  %8563 = vmatprep.subr.mxu0 0.0
  %8564 = vmatpush2.msra.mxu0 0.0
  %8565 = vmatprep.subr.mxu0 0.0
  %8566 = vmatpush2.msra.mxu0 0.0
  %8567 = vmatprep.subr.mxu0 0.0
  %8568 = vmatpush2.msra.mxu0 0.0
  %8569 = vmatprep.subr.mxu0 0.0
  %8570 = vmatpush2.msra.mxu0 0.0
  %8571 = vmatprep.subr.mxu0 0.0
  %8572 = vmatpush2.msra.mxu0 0.0
  %8573 = vmatprep.subr.mxu0 0.0
  %8574 = vmatpush2.msra.mxu0 0.0
  %8575 = vmatprep.subr.mxu0 0.0
  %8576 = vmatpush2.msra.mxu0 0.0
  %8577 = vmatprep.subr.mxu0 0.0
  %8578 = vmatpush2.msra.mxu0 0.0
  %8579 = vmatprep.subr.mxu0 0.0
  %8580 = vmatpush2.msra.mxu0 0.0
  %8581 = vmatprep.subr.mxu0 0.0
  %8582 = vmatpush2.msra.mxu0 0.0
  %8583 = vmatprep.subr.mxu0 0.0
  %8584 = vmatpush2.msra.mxu0 0.0
  %8585 = vmatprep.subr.mxu0 0.0
  %8586 = vmatpush2.msra.mxu0 0.0
  %8587 = vmatprep.mubr.f32.mxu0 0.0
  %8588 = vmatmul.mubr.f32.gmra.mxu0 %v8476
  %v8589 = vpop.f32.mrf.mxu0
  %v8590 = vadd.f32 0.0, %v8589
  %v8591 = vpop.f32.mrf.mxu0
  %8592 = vmatprep.mubr.f32.mxu0 0.0
  %8593 = vmatmul.mubr.f32.gmra.mxu0 %v8479
  %v8594 = vpop.f32.mrf.mxu0
  %v8595 = vadd.f32 0.0, %v8594
  %v8596 = vpop.f32.mrf.mxu0
  %8597 = vmatprep.mubr.f32.mxu0 0.0
  %8598 = vmatmul.mubr.f32.gmra.mxu0 %v8482
  %v8599 = vpop.f32.mrf.mxu0
  %v8600 = vadd.f32 0.0, %v8599
  %v8601 = vpop.f32.mrf.mxu0
  %8602 = vmatprep.mubr.f32.mxu0 0.0
  %8603 = vmatmul.mubr.f32.gmra.mxu0 %v8485
  %v8604 = vpop.f32.mrf.mxu0
  %v8605 = vadd.f32 0.0, %v8604
  %v8606 = vpop.f32.mrf.mxu0
  %8607 = vmatprep.mubr.f32.mxu0 0.0
  %8608 = vmatmul.mubr.f32.gmra.mxu0 %v8488
  %v8609 = vpop.f32.mrf.mxu0
  %v8610 = vadd.f32 0.0, %v8609
  %v8611 = vpop.f32.mrf.mxu0
  %8612 = vmatprep.mubr.f32.mxu0 0.0
  %8613 = vmatmul.mubr.f32.gmra.mxu0 %v8491
  %v8614 = vpop.f32.mrf.mxu0
  %v8615 = vadd.f32 0.0, %v8614
  %v8616 = vpop.f32.mrf.mxu0
  %8617 = vmatprep.mubr.f32.mxu0 0.0
  %8618 = vmatmul.mubr.f32.gmra.mxu0 %v8494
  %v8619 = vpop.f32.mrf.mxu0
  %v8620 = vadd.f32 0.0, %v8619
  %v8621 = vpop.f32.mrf.mxu0
  %8622 = vmatprep.mubr.f32.mxu0 0.0
  %8623 = vmatmul.mubr.f32.gmra.mxu0 %v8497
  %v8624 = vpop.f32.mrf.mxu0
  %v8625 = vadd.f32 0.0, %v8624
  %v8626 = vpop.f32.mrf.mxu0
  %8627 = vmatprep.mubr.f32.mxu0 0.0
  %8628 = vmatmul.mubr.f32.gmra.mxu0 %v8500
  %v8629 = vpop.f32.mrf.mxu0
  %v8630 = vadd.f32 0.0, %v8629
  %v8631 = vpop.f32.mrf.mxu0
  %8632 = vmatprep.mubr.f32.mxu0 0.0
  %8633 = vmatmul.mubr.f32.gmra.mxu0 %v8503
  %v8634 = vpop.f32.mrf.mxu0
  %v8635 = vadd.f32 0.0, %v8634
  %v8636 = vpop.f32.mrf.mxu0
  %8637 = vmatprep.mubr.f32.mxu0 0.0
  %8638 = vmatmul.mubr.f32.gmra.mxu0 %v8506
  %v8639 = vpop.f32.mrf.mxu0
  %v8640 = vadd.f32 0.0, %v8639
  %v8641 = vpop.f32.mrf.mxu0
  %8642 = vmatprep.mubr.f32.mxu0 0.0
  %8643 = vmatmul.mubr.f32.gmra.mxu0 %v8509
  %v8644 = vpop.f32.mrf.mxu0
  %v8645 = vadd.f32 0.0, %v8644
  %v8646 = vpop.f32.mrf.mxu0
  %8647 = vmatprep.mubr.f32.mxu0 0.0
  %8648 = vmatmul.mubr.f32.gmra.mxu0 %v8512
  %v8649 = vpop.f32.mrf.mxu0
  %v8650 = vadd.f32 0.0, %v8649
  %v8651 = vpop.f32.mrf.mxu0
  %8652 = vmatprep.mubr.f32.mxu0 0.0
  %8653 = vmatmul.mubr.f32.gmra.mxu0 %v8515
  %v8654 = vpop.f32.mrf.mxu0
  %v8655 = vadd.f32 0.0, %v8654
  %v8656 = vpop.f32.mrf.mxu0
  %8657 = vmatprep.mubr.f32.mxu0 0.0
  %8658 = vmatmul.mubr.f32.gmra.mxu0 %v8518
  %v8659 = vpop.f32.mrf.mxu0
  %v8660 = vadd.f32 0.0, %v8659
  %v8661 = vpop.f32.mrf.mxu0
  %8662 = vmatprep.mubr.f32.mxu0 0.0
  %8663 = vmatmul.mubr.f32.gmra.mxu0 %v8521
  %v8664 = vpop.f32.mrf.mxu0
  %v8665 = vadd.f32 0.0, %v8664
  %v8666 = vpop.f32.mrf.mxu0
  %8667 = vdwg.mxu0
  %v8668 = vadd.f32 %v8438, %v8590
  %v8669 = vadd.f32 %v8439, %v8595
  %v8670 = vadd.f32 %v8440, %v8600
  %v8671 = vadd.f32 %v8441, %v8605
  %v8672 = vadd.f32 %v8442, %v8610
  %v8673 = vadd.f32 %v8443, %v8615
  %v8674 = vadd.f32 %v8444, %v8620
  %v8675 = vadd.f32 %v8445, %v8625
  %v8676 = vadd.f32 %v8446, %v8630
  %v8677 = vadd.f32 %v8447, %v8635
  %v8678 = vadd.f32 %v8448, %v8640
  %v8679 = vadd.f32 %v8449, %v8645
  %v8680 = vadd.f32 %v8450, %v8650
  %v8681 = vadd.f32 %v8451, %v8655
  %v8682 = vadd.f32 %v8452, %v8660
  %v8683 = vadd.f32 %v8453, %v8665
  %v8684 = vld [vmem:[%s1490 + $0x2] sm:$0xff]
  %v8685 = vld [vmem:[%s1490 + $0x12] sm:$0xff]
  %v8686 = vld [vmem:[%s1490 + $0x22] sm:$0xff]
  %v8687 = vld [vmem:[%s1490 + $0x32] sm:$0xff]
  %v8688 = vld [vmem:[%s1490 + $0x42] sm:$0xff]
  %v8689 = vld [vmem:[%s1490 + $0x52] sm:$0xff]
  %v8690 = vld [vmem:[%s1490 + $0x62] sm:$0xff]
  %v8691 = vld [vmem:[%s1490 + $0x72] sm:$0xff]
  %v8692 = vld [vmem:[%s1490 + $0xa2] sm:$0xff]
  %v8693 = vld [vmem:[%s1490 + $0xb2] sm:$0xff]
  %v8694 = vld [vmem:[%s1490 + $0xc2] sm:$0xff]
  %v8695 = vld [vmem:[%s1490 + $0xd2] sm:$0xff]
  %v8696 = vld [vmem:[%s1490 + $0xe2] sm:$0xff]
  %v8697 = vld [vmem:[%s1490 + $0xf2] sm:$0xff]
  %v8698 = vld [vmem:[%s1490 + $0x102] sm:$0xff]
  %v8699 = vld [vmem:[%s1490 + $0x112] sm:$0xff]
  %s8700 = scalar_lea.vmem %s11, 256
  %v8701 = vld [vmem:[%s8700] sm:$0xff]
  %v8702 = vld [vmem:[%s8700 + $0x8] sm:$0xff]
  %v8703 = vld [vmem:[%s8700 + $0x10] sm:$0xff]
  %v8704 = vld [vmem:[%s8700 + $0x18] sm:$0xff]
  %v8706 = vsel %vm68, %v8684, 0
  %v8709 = vsel %vm68, %v8685, 0
  %v8712 = vsel %vm68, %v8686, 0
  %v8715 = vsel %vm68, %v8687, 0
  %v8718 = vsel %vm68, %v8688, 0
  %v8721 = vsel %vm68, %v8689, 0
  %v8724 = vsel %vm68, %v8690, 0
  %v8727 = vsel %vm68, %v8691, 0
  %v8730 = vsel %vm68, %v8692, 0
  %v8733 = vsel %vm68, %v8693, 0
  %v8736 = vsel %vm68, %v8694, 0
  %v8739 = vsel %vm68, %v8695, 0
  %v8742 = vsel %vm68, %v8696, 0
  %v8745 = vsel %vm68, %v8697, 0
  %v8748 = vsel %vm68, %v8698, 0
  %v8751 = vsel %vm68, %v8699, 0
  %8753 = vmatprep.subr.mxu0 0.0
  %8754 = vmatpush1.msra.mxu0 0.0
  %8755 = vmatprep.subr.mxu0 0.0
  %8756 = vmatpush1.msra.mxu0 0.0
  %8757 = vmatprep.subr.mxu0 0.0
  %8758 = vmatpush1.msra.mxu0 0.0
  %8759 = vmatprep.subr.mxu0 0.0
  %8760 = vmatpush1.msra.mxu0 0.0
  %8761 = vmatprep.subr.mxu0 0.0
  %8762 = vmatpush1.msra.mxu0 0.0
  %8763 = vmatprep.subr.mxu0 0.0
  %8764 = vmatpush1.msra.mxu0 0.0
  %8765 = vmatprep.subr.mxu0 0.0
  %8766 = vmatpush1.msra.mxu0 0.0
  %8767 = vmatprep.subr.mxu0 0.0
  %8768 = vmatpush1.msra.mxu0 0.0
  %8769 = vmatprep.subr.mxu0 0.0
  %8770 = vmatpush1.msra.mxu0 0.0
  %8771 = vmatprep.subr.mxu0 0.0
  %8772 = vmatpush1.msra.mxu0 0.0
  %8773 = vmatprep.subr.mxu0 0.0
  %8774 = vmatpush1.msra.mxu0 0.0
  %8775 = vmatprep.subr.mxu0 0.0
  %8776 = vmatpush1.msra.mxu0 0.0
  %8777 = vmatprep.subr.mxu0 0.0
  %8778 = vmatpush1.msra.mxu0 %v8704
  %8779 = vmatprep.subr.mxu0 0.0
  %8780 = vmatpush1.msra.mxu0 %v8703
  %8781 = vmatprep.subr.mxu0 0.0
  %8782 = vmatpush1.msra.mxu0 %v8702
  %8783 = vmatprep.subr.mxu0 0.0
  %8784 = vmatpush1.msra.mxu0 %v8701
  %8785 = vmatprep.subr.mxu0 0.0
  %8786 = vmatpush2.msra.mxu0 0.0
  %8787 = vmatprep.subr.mxu0 0.0
  %8788 = vmatpush2.msra.mxu0 0.0
  %8789 = vmatprep.subr.mxu0 0.0
  %8790 = vmatpush2.msra.mxu0 0.0
  %8791 = vmatprep.subr.mxu0 0.0
  %8792 = vmatpush2.msra.mxu0 0.0
  %8793 = vmatprep.subr.mxu0 0.0
  %8794 = vmatpush2.msra.mxu0 0.0
  %8795 = vmatprep.subr.mxu0 0.0
  %8796 = vmatpush2.msra.mxu0 0.0
  %8797 = vmatprep.subr.mxu0 0.0
  %8798 = vmatpush2.msra.mxu0 0.0
  %8799 = vmatprep.subr.mxu0 0.0
  %8800 = vmatpush2.msra.mxu0 0.0
  %8801 = vmatprep.subr.mxu0 0.0
  %8802 = vmatpush2.msra.mxu0 0.0
  %8803 = vmatprep.subr.mxu0 0.0
  %8804 = vmatpush2.msra.mxu0 0.0
  %8805 = vmatprep.subr.mxu0 0.0
  %8806 = vmatpush2.msra.mxu0 0.0
  %8807 = vmatprep.subr.mxu0 0.0
  %8808 = vmatpush2.msra.mxu0 0.0
  %8809 = vmatprep.subr.mxu0 0.0
  %8810 = vmatpush2.msra.mxu0 0.0
  %8811 = vmatprep.subr.mxu0 0.0
  %8812 = vmatpush2.msra.mxu0 0.0
  %8813 = vmatprep.subr.mxu0 0.0
  %8814 = vmatpush2.msra.mxu0 0.0
  %8815 = vmatprep.subr.mxu0 0.0
  %8816 = vmatpush2.msra.mxu0 0.0
  %8817 = vmatprep.mubr.f32.mxu0 0.0
  %8818 = vmatmul.mubr.f32.gmra.mxu0 %v8706
  %v8819 = vpop.f32.mrf.mxu0
  %v8820 = vadd.f32 0.0, %v8819
  %v8821 = vpop.f32.mrf.mxu0
  %8822 = vmatprep.mubr.f32.mxu0 0.0
  %8823 = vmatmul.mubr.f32.gmra.mxu0 %v8709
  %v8824 = vpop.f32.mrf.mxu0
  %v8825 = vadd.f32 0.0, %v8824
  %v8826 = vpop.f32.mrf.mxu0
  %8827 = vmatprep.mubr.f32.mxu0 0.0
  %8828 = vmatmul.mubr.f32.gmra.mxu0 %v8712
  %v8829 = vpop.f32.mrf.mxu0
  %v8830 = vadd.f32 0.0, %v8829
  %v8831 = vpop.f32.mrf.mxu0
  %8832 = vmatprep.mubr.f32.mxu0 0.0
  %8833 = vmatmul.mubr.f32.gmra.mxu0 %v8715
  %v8834 = vpop.f32.mrf.mxu0
  %v8835 = vadd.f32 0.0, %v8834
  %v8836 = vpop.f32.mrf.mxu0
  %8837 = vmatprep.mubr.f32.mxu0 0.0
  %8838 = vmatmul.mubr.f32.gmra.mxu0 %v8718
  %v8839 = vpop.f32.mrf.mxu0
  %v8840 = vadd.f32 0.0, %v8839
  %v8841 = vpop.f32.mrf.mxu0
  %8842 = vmatprep.mubr.f32.mxu0 0.0
  %8843 = vmatmul.mubr.f32.gmra.mxu0 %v8721
  %v8844 = vpop.f32.mrf.mxu0
  %v8845 = vadd.f32 0.0, %v8844
  %v8846 = vpop.f32.mrf.mxu0
  %8847 = vmatprep.mubr.f32.mxu0 0.0
  %8848 = vmatmul.mubr.f32.gmra.mxu0 %v8724
  %v8849 = vpop.f32.mrf.mxu0
  %v8850 = vadd.f32 0.0, %v8849
  %v8851 = vpop.f32.mrf.mxu0
  %8852 = vmatprep.mubr.f32.mxu0 0.0
  %8853 = vmatmul.mubr.f32.gmra.mxu0 %v8727
  %v8854 = vpop.f32.mrf.mxu0
  %v8855 = vadd.f32 0.0, %v8854
  %v8856 = vpop.f32.mrf.mxu0
  %8857 = vmatprep.mubr.f32.mxu0 0.0
  %8858 = vmatmul.mubr.f32.gmra.mxu0 %v8730
  %v8859 = vpop.f32.mrf.mxu0
  %v8860 = vadd.f32 0.0, %v8859
  %v8861 = vpop.f32.mrf.mxu0
  %8862 = vmatprep.mubr.f32.mxu0 0.0
  %8863 = vmatmul.mubr.f32.gmra.mxu0 %v8733
  %v8864 = vpop.f32.mrf.mxu0
  %v8865 = vadd.f32 0.0, %v8864
  %v8866 = vpop.f32.mrf.mxu0
  %8867 = vmatprep.mubr.f32.mxu0 0.0
  %8868 = vmatmul.mubr.f32.gmra.mxu0 %v8736
  %v8869 = vpop.f32.mrf.mxu0
  %v8870 = vadd.f32 0.0, %v8869
  %v8871 = vpop.f32.mrf.mxu0
  %8872 = vmatprep.mubr.f32.mxu0 0.0
  %8873 = vmatmul.mubr.f32.gmra.mxu0 %v8739
  %v8874 = vpop.f32.mrf.mxu0
  %v8875 = vadd.f32 0.0, %v8874
  %v8876 = vpop.f32.mrf.mxu0
  %8877 = vmatprep.mubr.f32.mxu0 0.0
  %8878 = vmatmul.mubr.f32.gmra.mxu0 %v8742
  %v8879 = vpop.f32.mrf.mxu0
  %v8880 = vadd.f32 0.0, %v8879
  %v8881 = vpop.f32.mrf.mxu0
  %8882 = vmatprep.mubr.f32.mxu0 0.0
  %8883 = vmatmul.mubr.f32.gmra.mxu0 %v8745
  %v8884 = vpop.f32.mrf.mxu0
  %v8885 = vadd.f32 0.0, %v8884
  %v8886 = vpop.f32.mrf.mxu0
  %8887 = vmatprep.mubr.f32.mxu0 0.0
  %8888 = vmatmul.mubr.f32.gmra.mxu0 %v8748
  %v8889 = vpop.f32.mrf.mxu0
  %v8890 = vadd.f32 0.0, %v8889
  %v8891 = vpop.f32.mrf.mxu0
  %8892 = vmatprep.mubr.f32.mxu0 0.0
  %8893 = vmatmul.mubr.f32.gmra.mxu0 %v8751
  %v8894 = vpop.f32.mrf.mxu0
  %v8895 = vadd.f32 0.0, %v8894
  %v8896 = vpop.f32.mrf.mxu0
  %8897 = vdwg.mxu0
  %v8898 = vadd.f32 %v8668, %v8820
  %v8899 = vadd.f32 %v8669, %v8825
  %v8900 = vadd.f32 %v8670, %v8830
  %v8901 = vadd.f32 %v8671, %v8835
  %v8902 = vadd.f32 %v8672, %v8840
  %v8903 = vadd.f32 %v8673, %v8845
  %v8904 = vadd.f32 %v8674, %v8850
  %v8905 = vadd.f32 %v8675, %v8855
  %v8906 = vadd.f32 %v8676, %v8860
  %v8907 = vadd.f32 %v8677, %v8865
  %v8908 = vadd.f32 %v8678, %v8870
  %v8909 = vadd.f32 %v8679, %v8875
  %v8910 = vadd.f32 %v8680, %v8880
  %v8911 = vadd.f32 %v8681, %v8885
  %v8912 = vadd.f32 %v8682, %v8890
  %v8913 = vadd.f32 %v8683, %v8895
  %v8914 = vld [vmem:[%s12] sm:$0x1]
  %v8916 = vlaneseq
  %v8917 = vshrl.u32 %v8916, 7
  %v8918 = vsub.s32 0, %v8917
  %v8919 = vrot.slane %v8914, %v8918
  %v8921 = vadd.f32 %v8898, %v8919
  %v8922 = vadd.f32 %v8899, %v8919
  %v8923 = vadd.f32 %v8900, %v8919
  %v8924 = vadd.f32 %v8901, %v8919
  %v8925 = vadd.f32 %v8902, %v8919
  %v8926 = vadd.f32 %v8903, %v8919
  %v8927 = vadd.f32 %v8904, %v8919
  %v8928 = vadd.f32 %v8905, %v8919
  %v8929 = vadd.f32 %v8906, %v8919
  %v8930 = vadd.f32 %v8907, %v8919
  %v8931 = vadd.f32 %v8908, %v8919
  %v8932 = vadd.f32 %v8909, %v8919
  %v8933 = vadd.f32 %v8910, %v8919
  %v8934 = vadd.f32 %v8911, %v8919
  %v8935 = vadd.f32 %v8912, %v8919
  %v8936 = vadd.f32 %v8913, %v8919
  %v8937 = vsel %vm68, %v8921, 0.0
  %v8938 = vsel %vm68, %v8922, 0.0
  %v8939 = vadd.f32 %v8937, %v8938
  %v8940 = vsel %vm68, %v8923, 0.0
  %v8941 = vadd.f32 %v8939, %v8940
  %v8942 = vsel %vm68, %v8924, 0.0
  %v8943 = vadd.f32 %v8941, %v8942
  %v8944 = vsel %vm68, %v8925, 0.0
  %v8945 = vadd.f32 %v8943, %v8944
  %v8946 = vsel %vm68, %v8926, 0.0
  %v8947 = vadd.f32 %v8945, %v8946
  %v8948 = vsel %vm68, %v8927, 0.0
  %v8949 = vadd.f32 %v8947, %v8948
  %v8950 = vsel %vm68, %v8928, 0.0
  %v8951 = vadd.f32 %v8949, %v8950
  %v8952 = vsel %vm68, %v8929, 0.0
  %v8953 = vadd.f32 %v8951, %v8952
  %v8954 = vsel %vm68, %v8930, 0.0
  %v8955 = vadd.f32 %v8953, %v8954
  %v8956 = vsel %vm68, %v8931, 0.0
  %v8957 = vadd.f32 %v8955, %v8956
  %v8958 = vsel %vm68, %v8932, 0.0
  %v8959 = vadd.f32 %v8957, %v8958
  %v8960 = vsel %vm68, %v8933, 0.0
  %v8961 = vadd.f32 %v8959, %v8960
  %v8962 = vsel %vm68, %v8934, 0.0
  %v8963 = vadd.f32 %v8961, %v8962
  %v8964 = vsel %vm68, %v8935, 0.0
  %v8965 = vadd.f32 %v8963, %v8964
  %v8966 = vsel %vm68, %v8936, 0.0
  %v8967 = vadd.f32 %v8965, %v8966
  %v8968 = vrot.slane %v8967, 4
  %v8969 = vadd.f32 %v8967, %v8968
  %v8970 = vrot.slane %v8969, 2
  %v8971 = vadd.f32 %v8969, %v8970
  %v8972 = vrot.slane %v8971, 1
  %v8973 = vadd.f32 %v8971, %v8972
  %v8974 = vmul.f32 %v8973, %v4365
  %v8975 = vsub.f32 %v8921, %v8974
  %v8976 = vsub.f32 %v8922, %v8974
  %v8977 = vsub.f32 %v8923, %v8974
  %v8978 = vsub.f32 %v8924, %v8974
  %v8979 = vsub.f32 %v8925, %v8974
  %v8980 = vsub.f32 %v8926, %v8974
  %v8981 = vsub.f32 %v8927, %v8974
  %v8982 = vsub.f32 %v8928, %v8974
  %v8983 = vsub.f32 %v8929, %v8974
  %v8984 = vsub.f32 %v8930, %v8974
  %v8985 = vsub.f32 %v8931, %v8974
  %v8986 = vsub.f32 %v8932, %v8974
  %v8987 = vsub.f32 %v8933, %v8974
  %v8988 = vsub.f32 %v8934, %v8974
  %v8989 = vsub.f32 %v8935, %v8974
  %v8990 = vsub.f32 %v8936, %v8974
  %v8991 = vmul.f32 %v8975, %v8975
  %v8992 = vmul.f32 %v8976, %v8976
  %v8993 = vmul.f32 %v8977, %v8977
  %v8994 = vmul.f32 %v8978, %v8978
  %v8995 = vmul.f32 %v8979, %v8979
  %v8996 = vmul.f32 %v8980, %v8980
  %v8997 = vmul.f32 %v8981, %v8981
  %v8998 = vmul.f32 %v8982, %v8982
  %v8999 = vmul.f32 %v8983, %v8983
  %v9000 = vmul.f32 %v8984, %v8984
  %v9001 = vmul.f32 %v8985, %v8985
  %v9002 = vmul.f32 %v8986, %v8986
  %v9003 = vmul.f32 %v8987, %v8987
  %v9004 = vmul.f32 %v8988, %v8988
  %v9005 = vmul.f32 %v8989, %v8989
  %v9006 = vmul.f32 %v8990, %v8990
  %v9007 = vsel %vm68, %v8991, 0.0
  %v9008 = vsel %vm68, %v8992, 0.0
  %v9009 = vadd.f32 %v9007, %v9008
  %v9010 = vsel %vm68, %v8993, 0.0
  %v9011 = vadd.f32 %v9009, %v9010
  %v9012 = vsel %vm68, %v8994, 0.0
  %v9013 = vadd.f32 %v9011, %v9012
  %v9014 = vsel %vm68, %v8995, 0.0
  %v9015 = vadd.f32 %v9013, %v9014
  %v9016 = vsel %vm68, %v8996, 0.0
  %v9017 = vadd.f32 %v9015, %v9016
  %v9018 = vsel %vm68, %v8997, 0.0
  %v9019 = vadd.f32 %v9017, %v9018
  %v9020 = vsel %vm68, %v8998, 0.0
  %v9021 = vadd.f32 %v9019, %v9020
  %v9022 = vsel %vm68, %v8999, 0.0
  %v9023 = vadd.f32 %v9021, %v9022
  %v9024 = vsel %vm68, %v9000, 0.0
  %v9025 = vadd.f32 %v9023, %v9024
  %v9026 = vsel %vm68, %v9001, 0.0
  %v9027 = vadd.f32 %v9025, %v9026
  %v9028 = vsel %vm68, %v9002, 0.0
  %v9029 = vadd.f32 %v9027, %v9028
  %v9030 = vsel %vm68, %v9003, 0.0
  %v9031 = vadd.f32 %v9029, %v9030
  %v9032 = vsel %vm68, %v9004, 0.0
  %v9033 = vadd.f32 %v9031, %v9032
  %v9034 = vsel %vm68, %v9005, 0.0
  %v9035 = vadd.f32 %v9033, %v9034
  %v9036 = vsel %vm68, %v9006, 0.0
  %v9037 = vadd.f32 %v9035, %v9036
  %v9038 = vrot.slane %v9037, 4
  %v9039 = vadd.f32 %v9037, %v9038
  %v9040 = vrot.slane %v9039, 2
  %v9041 = vadd.f32 %v9039, %v9040
  %v9042 = vrot.slane %v9041, 1
  %v9043 = vadd.f32 %v9041, %v9042
  %v9044 = vmul.f32 %v9043, %v4365
  %v9045 = vadd.f32 %v9044, 1e-05
  %v9046 = vrsqrt.pop %v9045
  %v9047 = vmul.f32 %v8975, %v9046
  %v9048 = vmul.f32 %v8976, %v9046
  %v9049 = vmul.f32 %v8977, %v9046
  %v9050 = vmul.f32 %v8978, %v9046
  %v9051 = vmul.f32 %v8979, %v9046
  %v9052 = vmul.f32 %v8980, %v9046
  %v9053 = vmul.f32 %v8981, %v9046
  %v9054 = vmul.f32 %v8982, %v9046
  %v9055 = vmul.f32 %v8983, %v9046
  %v9056 = vmul.f32 %v8984, %v9046
  %v9057 = vmul.f32 %v8985, %v9046
  %v9058 = vmul.f32 %v8986, %v9046
  %v9059 = vmul.f32 %v8987, %v9046
  %v9060 = vmul.f32 %v8988, %v9046
  %v9061 = vmul.f32 %v8989, %v9046
  %v9062 = vmul.f32 %v8990, %v9046
  %v9063 = vld [vmem:[%s13] sm:$0x1]
  %v9065 = vlaneseq
  %v9066 = vshrl.u32 %v9065, 7
  %v9067 = vsub.s32 0, %v9066
  %v9068 = vrot.slane %v9063, %v9067
  %v9070 = vmul.f32 %v9047, %v9068
  %v9071 = vmul.f32 %v9048, %v9068
  %v9072 = vmul.f32 %v9049, %v9068
  %v9073 = vmul.f32 %v9050, %v9068
  %v9074 = vmul.f32 %v9051, %v9068
  %v9075 = vmul.f32 %v9052, %v9068
  %v9076 = vmul.f32 %v9053, %v9068
  %v9077 = vmul.f32 %v9054, %v9068
  %v9078 = vmul.f32 %v9055, %v9068
  %v9079 = vmul.f32 %v9056, %v9068
  %v9080 = vmul.f32 %v9057, %v9068
  %v9081 = vmul.f32 %v9058, %v9068
  %v9082 = vmul.f32 %v9059, %v9068
  %v9083 = vmul.f32 %v9060, %v9068
  %v9084 = vmul.f32 %v9061, %v9068
  %v9085 = vmul.f32 %v9062, %v9068
  %v9086 = vld [vmem:[%s14] sm:$0x1]
  %v9088 = vlaneseq
  %v9089 = vshrl.u32 %v9088, 7
  %v9090 = vsub.s32 0, %v9089
  %v9091 = vrot.slane %v9086, %v9090
  %v9093 = vadd.f32 %v9070, %v9091
  %v9094 = vadd.f32 %v9071, %v9091
  %v9095 = vadd.f32 %v9072, %v9091
  %v9096 = vadd.f32 %v9073, %v9091
  %v9097 = vadd.f32 %v9074, %v9091
  %v9098 = vadd.f32 %v9075, %v9091
  %v9099 = vadd.f32 %v9076, %v9091
  %v9100 = vadd.f32 %v9077, %v9091
  %v9101 = vadd.f32 %v9078, %v9091
  %v9102 = vadd.f32 %v9079, %v9091
  %v9103 = vadd.f32 %v9080, %v9091
  %v9104 = vadd.f32 %v9081, %v9091
  %v9105 = vadd.f32 %v9082, %v9091
  %v9106 = vadd.f32 %v9083, %v9091
  %v9107 = vadd.f32 %v9084, %v9091
  %v9108 = vadd.f32 %v9085, %v9091
  %vm9109 = vcmp.gt.f32.partialorder %v9093, 0.0
  %vm9110 = vcmp.gt.f32.partialorder %v9094, 0.0
  %vm9111 = vcmp.gt.f32.partialorder %v9095, 0.0
  %vm9112 = vcmp.gt.f32.partialorder %v9096, 0.0
  %vm9113 = vcmp.gt.f32.partialorder %v9097, 0.0
  %vm9114 = vcmp.gt.f32.partialorder %v9098, 0.0
  %vm9115 = vcmp.gt.f32.partialorder %v9099, 0.0
  %vm9116 = vcmp.gt.f32.partialorder %v9100, 0.0
  %vm9117 = vcmp.gt.f32.partialorder %v9101, 0.0
  %vm9118 = vcmp.gt.f32.partialorder %v9102, 0.0
  %vm9119 = vcmp.gt.f32.partialorder %v9103, 0.0
  %vm9120 = vcmp.gt.f32.partialorder %v9104, 0.0
  %vm9121 = vcmp.gt.f32.partialorder %v9105, 0.0
  %vm9122 = vcmp.gt.f32.partialorder %v9106, 0.0
  %vm9123 = vcmp.gt.f32.partialorder %v9107, 0.0
  %vm9124 = vcmp.gt.f32.partialorder %v9108, 0.0
  %v9125 = vmul.f32 %v9093, 0.01
  %v9126 = vmul.f32 %v9094, 0.01
  %v9127 = vmul.f32 %v9095, 0.01
  %v9128 = vmul.f32 %v9096, 0.01
  %v9129 = vmul.f32 %v9097, 0.01
  %v9130 = vmul.f32 %v9098, 0.01
  %v9131 = vmul.f32 %v9099, 0.01
  %v9132 = vmul.f32 %v9100, 0.01
  %v9133 = vmul.f32 %v9101, 0.01
  %v9134 = vmul.f32 %v9102, 0.01
  %v9135 = vmul.f32 %v9103, 0.01
  %v9136 = vmul.f32 %v9104, 0.01
  %v9137 = vmul.f32 %v9105, 0.01
  %v9138 = vmul.f32 %v9106, 0.01
  %v9139 = vmul.f32 %v9107, 0.01
  %v9140 = vmul.f32 %v9108, 0.01
  %v9141 = vsel %vm9109, %v9093, %v9125
  %v9142 = vsel %vm9110, %v9094, %v9126
  %v9143 = vsel %vm9111, %v9095, %v9127
  %v9144 = vsel %vm9112, %v9096, %v9128
  %v9145 = vsel %vm9113, %v9097, %v9129
  %v9146 = vsel %vm9114, %v9098, %v9130
  %v9147 = vsel %vm9115, %v9099, %v9131
  %v9148 = vsel %vm9116, %v9100, %v9132
  %v9149 = vsel %vm9117, %v9101, %v9133
  %v9150 = vsel %vm9118, %v9102, %v9134
  %v9151 = vsel %vm9119, %v9103, %v9135
  %v9152 = vsel %vm9120, %v9104, %v9136
  %v9153 = vsel %vm9121, %v9105, %v9137
  %v9154 = vsel %vm9122, %v9106, %v9138
  %v9155 = vsel %vm9123, %v9107, %v9139
  %v9156 = vsel %vm9124, %v9108, %v9140
  %9157 = vst.msk [vmem:[%s126 + $0x1] sm:$0xff] %vm68, %v9141
  %9158 = vst.msk [vmem:[%s126 + $0x11] sm:$0xff] %vm68, %v9142
  %9159 = vst.msk [vmem:[%s126 + $0x21] sm:$0xff] %vm68, %v9143
  %9160 = vst.msk [vmem:[%s126 + $0x31] sm:$0xff] %vm68, %v9144
  %9161 = vst.msk [vmem:[%s126 + $0x41] sm:$0xff] %vm68, %v9145
  %9162 = vst.msk [vmem:[%s126 + $0x51] sm:$0xff] %vm68, %v9146
  %9163 = vst.msk [vmem:[%s126 + $0x61] sm:$0xff] %vm68, %v9147
  %9164 = vst.msk [vmem:[%s126 + $0x71] sm:$0xff] %vm68, %v9148
  %9165 = vst.msk [vmem:[%s126 + $0xa1] sm:$0xff] %vm68, %v9149
  %9166 = vst.msk [vmem:[%s126 + $0xb1] sm:$0xff] %vm68, %v9150
  %9167 = vst.msk [vmem:[%s126 + $0xc1] sm:$0xff] %vm68, %v9151
  %9168 = vst.msk [vmem:[%s126 + $0xd1] sm:$0xff] %vm68, %v9152
  %9169 = vst.msk [vmem:[%s126 + $0xe1] sm:$0xff] %vm68, %v9153
  %9170 = vst.msk [vmem:[%s126 + $0xf1] sm:$0xff] %vm68, %v9154
  %9171 = vst.msk [vmem:[%s126 + $0x101] sm:$0xff] %vm68, %v9155
  %9172 = vst.msk [vmem:[%s126 + $0x111] sm:$0xff] %vm68, %v9156
  %v9173 = vld [vmem:[#allocation2] sm:$0xff]
  %v9174 = vld [vmem:[#allocation2 + $0x10] sm:$0xff]
  %v9175 = vld [vmem:[#allocation2 + $0x20] sm:$0xff]
  %v9176 = vld [vmem:[#allocation2 + $0x30] sm:$0xff]
  %v9177 = vld [vmem:[#allocation2 + $0x40] sm:$0xff]
  %v9178 = vld [vmem:[#allocation2 + $0x50] sm:$0xff]
  %v9179 = vld [vmem:[#allocation2 + $0x60] sm:$0xff]
  %v9180 = vld [vmem:[#allocation2 + $0x70] sm:$0xff]
  %v9181 = vld [vmem:[#allocation2 + $0xa0] sm:$0xff]
  %v9182 = vld [vmem:[#allocation2 + $0xb0] sm:$0xff]
  %v9183 = vld [vmem:[#allocation2 + $0xc0] sm:$0xff]
  %v9184 = vld [vmem:[#allocation2 + $0xd0] sm:$0xff]
  %v9185 = vld [vmem:[#allocation2 + $0xe0] sm:$0xff]
  %v9186 = vld [vmem:[#allocation2 + $0xf0] sm:$0xff]
  %v9187 = vld [vmem:[#allocation2 + $0x100] sm:$0xff]
  %v9188 = vld [vmem:[#allocation2 + $0x110] sm:$0xff]
  %v9189 = vld [vmem:[%s15] sm:$0xff]
  %v9190 = vld [vmem:[%s15 + $0x8] sm:$0xff]
  %v9191 = vld [vmem:[%s15 + $0x10] sm:$0xff]
  %v9192 = vld [vmem:[%s15 + $0x18] sm:$0xff]
  %v9193 = vld [vmem:[#allocation2 + $0x1] sm:$0xff]
  %v9194 = vld [vmem:[#allocation2 + $0x11] sm:$0xff]
  %v9195 = vld [vmem:[#allocation2 + $0x21] sm:$0xff]
  %v9196 = vld [vmem:[#allocation2 + $0x31] sm:$0xff]
  %v9197 = vld [vmem:[#allocation2 + $0x41] sm:$0xff]
  %v9198 = vld [vmem:[#allocation2 + $0x51] sm:$0xff]
  %v9199 = vld [vmem:[#allocation2 + $0x61] sm:$0xff]
  %v9200 = vld [vmem:[#allocation2 + $0x71] sm:$0xff]
  %v9201 = vld [vmem:[#allocation2 + $0xa1] sm:$0xff]
  %v9202 = vld [vmem:[#allocation2 + $0xb1] sm:$0xff]
  %v9203 = vld [vmem:[#allocation2 + $0xc1] sm:$0xff]
  %v9204 = vld [vmem:[#allocation2 + $0xd1] sm:$0xff]
  %v9205 = vld [vmem:[#allocation2 + $0xe1] sm:$0xff]
  %v9206 = vld [vmem:[#allocation2 + $0xf1] sm:$0xff]
  %v9207 = vld [vmem:[#allocation2 + $0x101] sm:$0xff]
  %v9208 = vld [vmem:[#allocation2 + $0x111] sm:$0xff]
  %s9209 = scalar_lea.vmem %s15, 32
  %v9210 = vld [vmem:[%s9209] sm:$0xff]
  %v9211 = vld [vmem:[%s9209 + $0x8] sm:$0xff]
  %v9212 = vld [vmem:[%s9209 + $0x10] sm:$0xff]
  %v9213 = vld [vmem:[%s9209 + $0x18] sm:$0xff]
  %v9215 = vsel %vm68, %v9193, 0
  %v9218 = vsel %vm68, %v9194, 0
  %v9221 = vsel %vm68, %v9195, 0
  %v9224 = vsel %vm68, %v9196, 0
  %v9227 = vsel %vm68, %v9197, 0
  %v9230 = vsel %vm68, %v9198, 0
  %v9233 = vsel %vm68, %v9199, 0
  %v9236 = vsel %vm68, %v9200, 0
  %v9239 = vsel %vm68, %v9201, 0
  %v9242 = vsel %vm68, %v9202, 0
  %v9245 = vsel %vm68, %v9203, 0
  %v9248 = vsel %vm68, %v9204, 0
  %v9251 = vsel %vm68, %v9205, 0
  %v9254 = vsel %vm68, %v9206, 0
  %v9257 = vsel %vm68, %v9207, 0
  %v9260 = vsel %vm68, %v9208, 0
  %9262 = vmatprep.subr.mxu0 0.0
  %9263 = vmatpush1.msra.mxu0 0.0
  %9264 = vmatprep.subr.mxu0 0.0
  %9265 = vmatpush1.msra.mxu0 0.0
  %9266 = vmatprep.subr.mxu0 0.0
  %9267 = vmatpush1.msra.mxu0 0.0
  %9268 = vmatprep.subr.mxu0 0.0
  %9269 = vmatpush1.msra.mxu0 0.0
  %9270 = vmatprep.subr.mxu0 0.0
  %9271 = vmatpush1.msra.mxu0 0.0
  %9272 = vmatprep.subr.mxu0 0.0
  %9273 = vmatpush1.msra.mxu0 0.0
  %9274 = vmatprep.subr.mxu0 0.0
  %9275 = vmatpush1.msra.mxu0 0.0
  %9276 = vmatprep.subr.mxu0 0.0
  %9277 = vmatpush1.msra.mxu0 0.0
  %9278 = vmatprep.subr.mxu0 0.0
  %9279 = vmatpush1.msra.mxu0 0.0
  %9280 = vmatprep.subr.mxu0 0.0
  %9281 = vmatpush1.msra.mxu0 0.0
  %9282 = vmatprep.subr.mxu0 0.0
  %9283 = vmatpush1.msra.mxu0 0.0
  %9284 = vmatprep.subr.mxu0 0.0
  %9285 = vmatpush1.msra.mxu0 0.0
  %9286 = vmatprep.subr.mxu0 0.0
  %9287 = vmatpush1.msra.mxu0 %v9213
  %9288 = vmatprep.subr.mxu0 0.0
  %9289 = vmatpush1.msra.mxu0 %v9212
  %9290 = vmatprep.subr.mxu0 0.0
  %9291 = vmatpush1.msra.mxu0 %v9211
  %9292 = vmatprep.subr.mxu0 0.0
  %9293 = vmatpush1.msra.mxu0 %v9210
  %9294 = vmatprep.subr.mxu0 0.0
  %9295 = vmatpush2.msra.mxu0 0.0
  %9296 = vmatprep.subr.mxu0 0.0
  %9297 = vmatpush2.msra.mxu0 0.0
  %9298 = vmatprep.subr.mxu0 0.0
  %9299 = vmatpush2.msra.mxu0 0.0
  %9300 = vmatprep.subr.mxu0 0.0
  %9301 = vmatpush2.msra.mxu0 0.0
  %9302 = vmatprep.subr.mxu0 0.0
  %9303 = vmatpush2.msra.mxu0 0.0
  %9304 = vmatprep.subr.mxu0 0.0
  %9305 = vmatpush2.msra.mxu0 0.0
  %9306 = vmatprep.subr.mxu0 0.0
  %9307 = vmatpush2.msra.mxu0 0.0
  %9308 = vmatprep.subr.mxu0 0.0
  %9309 = vmatpush2.msra.mxu0 0.0
  %9310 = vmatprep.subr.mxu0 0.0
  %9311 = vmatpush2.msra.mxu0 0.0
  %9312 = vmatprep.subr.mxu0 0.0
  %9313 = vmatpush2.msra.mxu0 0.0
  %9314 = vmatprep.subr.mxu0 0.0
  %9315 = vmatpush2.msra.mxu0 0.0
  %9316 = vmatprep.subr.mxu0 0.0
  %9317 = vmatpush2.msra.mxu0 0.0
  %9318 = vmatprep.subr.mxu0 0.0
  %9319 = vmatpush2.msra.mxu0 0.0
  %9320 = vmatprep.subr.mxu0 0.0
  %9321 = vmatpush2.msra.mxu0 0.0
  %9322 = vmatprep.subr.mxu0 0.0
  %9323 = vmatpush2.msra.mxu0 0.0
  %9324 = vmatprep.subr.mxu0 0.0
  %9325 = vmatpush2.msra.mxu0 0.0
  %9326 = vmatprep.mubr.f32.mxu0 0.0
  %9327 = vmatmul.mubr.f32.gmra.mxu0 %v9215
  %v9328 = vpop.f32.mrf.mxu0
  %v9329 = vadd.f32 0.0, %v9328
  %v9330 = vpop.f32.mrf.mxu0
  %9331 = vmatprep.mubr.f32.mxu0 0.0
  %9332 = vmatmul.mubr.f32.gmra.mxu0 %v9218
  %v9333 = vpop.f32.mrf.mxu0
  %v9334 = vadd.f32 0.0, %v9333
  %v9335 = vpop.f32.mrf.mxu0
  %9336 = vmatprep.mubr.f32.mxu0 0.0
  %9337 = vmatmul.mubr.f32.gmra.mxu0 %v9221
  %v9338 = vpop.f32.mrf.mxu0
  %v9339 = vadd.f32 0.0, %v9338
  %v9340 = vpop.f32.mrf.mxu0
  %9341 = vmatprep.mubr.f32.mxu0 0.0
  %9342 = vmatmul.mubr.f32.gmra.mxu0 %v9224
  %v9343 = vpop.f32.mrf.mxu0
  %v9344 = vadd.f32 0.0, %v9343
  %v9345 = vpop.f32.mrf.mxu0
  %9346 = vmatprep.mubr.f32.mxu0 0.0
  %9347 = vmatmul.mubr.f32.gmra.mxu0 %v9227
  %v9348 = vpop.f32.mrf.mxu0
  %v9349 = vadd.f32 0.0, %v9348
  %v9350 = vpop.f32.mrf.mxu0
  %9351 = vmatprep.mubr.f32.mxu0 0.0
  %9352 = vmatmul.mubr.f32.gmra.mxu0 %v9230
  %v9353 = vpop.f32.mrf.mxu0
  %v9354 = vadd.f32 0.0, %v9353
  %v9355 = vpop.f32.mrf.mxu0
  %9356 = vmatprep.mubr.f32.mxu0 0.0
  %9357 = vmatmul.mubr.f32.gmra.mxu0 %v9233
  %v9358 = vpop.f32.mrf.mxu0
  %v9359 = vadd.f32 0.0, %v9358
  %v9360 = vpop.f32.mrf.mxu0
  %9361 = vmatprep.mubr.f32.mxu0 0.0
  %9362 = vmatmul.mubr.f32.gmra.mxu0 %v9236
  %v9363 = vpop.f32.mrf.mxu0
  %v9364 = vadd.f32 0.0, %v9363
  %v9365 = vpop.f32.mrf.mxu0
  %9366 = vmatprep.mubr.f32.mxu0 0.0
  %9367 = vmatmul.mubr.f32.gmra.mxu0 %v9239
  %v9368 = vpop.f32.mrf.mxu0
  %v9369 = vadd.f32 0.0, %v9368
  %v9370 = vpop.f32.mrf.mxu0
  %9371 = vmatprep.mubr.f32.mxu0 0.0
  %9372 = vmatmul.mubr.f32.gmra.mxu0 %v9242
  %v9373 = vpop.f32.mrf.mxu0
  %v9374 = vadd.f32 0.0, %v9373
  %v9375 = vpop.f32.mrf.mxu0
  %9376 = vmatprep.mubr.f32.mxu0 0.0
  %9377 = vmatmul.mubr.f32.gmra.mxu0 %v9245
  %v9378 = vpop.f32.mrf.mxu0
  %v9379 = vadd.f32 0.0, %v9378
  %v9380 = vpop.f32.mrf.mxu0
  %9381 = vmatprep.mubr.f32.mxu0 0.0
  %9382 = vmatmul.mubr.f32.gmra.mxu0 %v9248
  %v9383 = vpop.f32.mrf.mxu0
  %v9384 = vadd.f32 0.0, %v9383
  %v9385 = vpop.f32.mrf.mxu0
  %9386 = vmatprep.mubr.f32.mxu0 0.0
  %9387 = vmatmul.mubr.f32.gmra.mxu0 %v9251
  %v9388 = vpop.f32.mrf.mxu0
  %v9389 = vadd.f32 0.0, %v9388
  %v9390 = vpop.f32.mrf.mxu0
  %9391 = vmatprep.mubr.f32.mxu0 0.0
  %9392 = vmatmul.mubr.f32.gmra.mxu0 %v9254
  %v9393 = vpop.f32.mrf.mxu0
  %v9394 = vadd.f32 0.0, %v9393
  %v9395 = vpop.f32.mrf.mxu0
  %9396 = vmatprep.mubr.f32.mxu0 0.0
  %9397 = vmatmul.mubr.f32.gmra.mxu0 %v9257
  %v9398 = vpop.f32.mrf.mxu0
  %v9399 = vadd.f32 0.0, %v9398
  %v9400 = vpop.f32.mrf.mxu0
  %9401 = vmatprep.mubr.f32.mxu0 0.0
  %9402 = vmatmul.mubr.f32.gmra.mxu0 %v9260
  %v9403 = vpop.f32.mrf.mxu0
  %v9404 = vadd.f32 0.0, %v9403
  %v9405 = vpop.f32.mrf.mxu0
  %9406 = vdwg.mxu0
  %v9408 = vsel %vm68, %v9173, 0
  %v9411 = vsel %vm68, %v9174, 0
  %v9414 = vsel %vm68, %v9175, 0
  %v9417 = vsel %vm68, %v9176, 0
  %v9420 = vsel %vm68, %v9177, 0
  %v9423 = vsel %vm68, %v9178, 0
  %v9426 = vsel %vm68, %v9179, 0
  %v9429 = vsel %vm68, %v9180, 0
  %v9432 = vsel %vm68, %v9181, 0
  %v9435 = vsel %vm68, %v9182, 0
  %v9438 = vsel %vm68, %v9183, 0
  %v9441 = vsel %vm68, %v9184, 0
  %v9444 = vsel %vm68, %v9185, 0
  %v9447 = vsel %vm68, %v9186, 0
  %v9450 = vsel %vm68, %v9187, 0
  %v9453 = vsel %vm68, %v9188, 0
  %9455 = vmatprep.subr.mxu0 0.0
  %9456 = vmatpush1.msra.mxu0 0.0
  %9457 = vmatprep.subr.mxu0 0.0
  %9458 = vmatpush1.msra.mxu0 0.0
  %9459 = vmatprep.subr.mxu0 0.0
  %9460 = vmatpush1.msra.mxu0 0.0
  %9461 = vmatprep.subr.mxu0 0.0
  %9462 = vmatpush1.msra.mxu0 0.0
  %9463 = vmatprep.subr.mxu0 0.0
  %9464 = vmatpush1.msra.mxu0 0.0
  %9465 = vmatprep.subr.mxu0 0.0
  %9466 = vmatpush1.msra.mxu0 0.0
  %9467 = vmatprep.subr.mxu0 0.0
  %9468 = vmatpush1.msra.mxu0 0.0
  %9469 = vmatprep.subr.mxu0 0.0
  %9470 = vmatpush1.msra.mxu0 0.0
  %9471 = vmatprep.subr.mxu0 0.0
  %9472 = vmatpush1.msra.mxu0 0.0
  %9473 = vmatprep.subr.mxu0 0.0
  %9474 = vmatpush1.msra.mxu0 0.0
  %9475 = vmatprep.subr.mxu0 0.0
  %9476 = vmatpush1.msra.mxu0 0.0
  %9477 = vmatprep.subr.mxu0 0.0
  %9478 = vmatpush1.msra.mxu0 0.0
  %9479 = vmatprep.subr.mxu0 0.0
  %9480 = vmatpush1.msra.mxu0 %v9192
  %9481 = vmatprep.subr.mxu0 0.0
  %9482 = vmatpush1.msra.mxu0 %v9191
  %9483 = vmatprep.subr.mxu0 0.0
  %9484 = vmatpush1.msra.mxu0 %v9190
  %9485 = vmatprep.subr.mxu0 0.0
  %9486 = vmatpush1.msra.mxu0 %v9189
  %9487 = vmatprep.subr.mxu0 0.0
  %9488 = vmatpush2.msra.mxu0 0.0
  %9489 = vmatprep.subr.mxu0 0.0
  %9490 = vmatpush2.msra.mxu0 0.0
  %9491 = vmatprep.subr.mxu0 0.0
  %9492 = vmatpush2.msra.mxu0 0.0
  %9493 = vmatprep.subr.mxu0 0.0
  %9494 = vmatpush2.msra.mxu0 0.0
  %9495 = vmatprep.subr.mxu0 0.0
  %9496 = vmatpush2.msra.mxu0 0.0
  %9497 = vmatprep.subr.mxu0 0.0
  %9498 = vmatpush2.msra.mxu0 0.0
  %9499 = vmatprep.subr.mxu0 0.0
  %9500 = vmatpush2.msra.mxu0 0.0
  %9501 = vmatprep.subr.mxu0 0.0
  %9502 = vmatpush2.msra.mxu0 0.0
  %9503 = vmatprep.subr.mxu0 0.0
  %9504 = vmatpush2.msra.mxu0 0.0
  %9505 = vmatprep.subr.mxu0 0.0
  %9506 = vmatpush2.msra.mxu0 0.0
  %9507 = vmatprep.subr.mxu0 0.0
  %9508 = vmatpush2.msra.mxu0 0.0
  %9509 = vmatprep.subr.mxu0 0.0
  %9510 = vmatpush2.msra.mxu0 0.0
  %9511 = vmatprep.subr.mxu0 0.0
  %9512 = vmatpush2.msra.mxu0 0.0
  %9513 = vmatprep.subr.mxu0 0.0
  %9514 = vmatpush2.msra.mxu0 0.0
  %9515 = vmatprep.subr.mxu0 0.0
  %9516 = vmatpush2.msra.mxu0 0.0
  %9517 = vmatprep.subr.mxu0 0.0
  %9518 = vmatpush2.msra.mxu0 0.0
  %9519 = vmatprep.mubr.f32.mxu0 0.0
  %9520 = vmatmul.mubr.f32.gmra.mxu0 %v9408
  %v9521 = vpop.f32.mrf.mxu0
  %v9522 = vadd.f32 %v9329, %v9521
  %v9523 = vpop.f32.mrf.mxu0
  %9524 = vmatprep.mubr.f32.mxu0 0.0
  %9525 = vmatmul.mubr.f32.gmra.mxu0 %v9411
  %v9526 = vpop.f32.mrf.mxu0
  %v9527 = vadd.f32 %v9334, %v9526
  %v9528 = vpop.f32.mrf.mxu0
  %9529 = vmatprep.mubr.f32.mxu0 0.0
  %9530 = vmatmul.mubr.f32.gmra.mxu0 %v9414
  %v9531 = vpop.f32.mrf.mxu0
  %v9532 = vadd.f32 %v9339, %v9531
  %v9533 = vpop.f32.mrf.mxu0
  %9534 = vmatprep.mubr.f32.mxu0 0.0
  %9535 = vmatmul.mubr.f32.gmra.mxu0 %v9417
  %v9536 = vpop.f32.mrf.mxu0
  %v9537 = vadd.f32 %v9344, %v9536
  %v9538 = vpop.f32.mrf.mxu0
  %9539 = vmatprep.mubr.f32.mxu0 0.0
  %9540 = vmatmul.mubr.f32.gmra.mxu0 %v9420
  %v9541 = vpop.f32.mrf.mxu0
  %v9542 = vadd.f32 %v9349, %v9541
  %v9543 = vpop.f32.mrf.mxu0
  %9544 = vmatprep.mubr.f32.mxu0 0.0
  %9545 = vmatmul.mubr.f32.gmra.mxu0 %v9423
  %v9546 = vpop.f32.mrf.mxu0
  %v9547 = vadd.f32 %v9354, %v9546
  %v9548 = vpop.f32.mrf.mxu0
  %9549 = vmatprep.mubr.f32.mxu0 0.0
  %9550 = vmatmul.mubr.f32.gmra.mxu0 %v9426
  %v9551 = vpop.f32.mrf.mxu0
  %v9552 = vadd.f32 %v9359, %v9551
  %v9553 = vpop.f32.mrf.mxu0
  %9554 = vmatprep.mubr.f32.mxu0 0.0
  %9555 = vmatmul.mubr.f32.gmra.mxu0 %v9429
  %v9556 = vpop.f32.mrf.mxu0
  %v9557 = vadd.f32 %v9364, %v9556
  %v9558 = vpop.f32.mrf.mxu0
  %9559 = vmatprep.mubr.f32.mxu0 0.0
  %9560 = vmatmul.mubr.f32.gmra.mxu0 %v9432
  %v9561 = vpop.f32.mrf.mxu0
  %v9562 = vadd.f32 %v9369, %v9561
  %v9563 = vpop.f32.mrf.mxu0
  %9564 = vmatprep.mubr.f32.mxu0 0.0
  %9565 = vmatmul.mubr.f32.gmra.mxu0 %v9435
  %v9566 = vpop.f32.mrf.mxu0
  %v9567 = vadd.f32 %v9374, %v9566
  %v9568 = vpop.f32.mrf.mxu0
  %9569 = vmatprep.mubr.f32.mxu0 0.0
  %9570 = vmatmul.mubr.f32.gmra.mxu0 %v9438
  %v9571 = vpop.f32.mrf.mxu0
  %v9572 = vadd.f32 %v9379, %v9571
  %v9573 = vpop.f32.mrf.mxu0
  %9574 = vmatprep.mubr.f32.mxu0 0.0
  %9575 = vmatmul.mubr.f32.gmra.mxu0 %v9441
  %v9576 = vpop.f32.mrf.mxu0
  %v9577 = vadd.f32 %v9384, %v9576
  %v9578 = vpop.f32.mrf.mxu0
  %9579 = vmatprep.mubr.f32.mxu0 0.0
  %9580 = vmatmul.mubr.f32.gmra.mxu0 %v9444
  %v9581 = vpop.f32.mrf.mxu0
  %v9582 = vadd.f32 %v9389, %v9581
  %v9583 = vpop.f32.mrf.mxu0
  %9584 = vmatprep.mubr.f32.mxu0 0.0
  %9585 = vmatmul.mubr.f32.gmra.mxu0 %v9447
  %v9586 = vpop.f32.mrf.mxu0
  %v9587 = vadd.f32 %v9394, %v9586
  %v9588 = vpop.f32.mrf.mxu0
  %9589 = vmatprep.mubr.f32.mxu0 0.0
  %9590 = vmatmul.mubr.f32.gmra.mxu0 %v9450
  %v9591 = vpop.f32.mrf.mxu0
  %v9592 = vadd.f32 %v9399, %v9591
  %v9593 = vpop.f32.mrf.mxu0
  %9594 = vmatprep.mubr.f32.mxu0 0.0
  %9595 = vmatmul.mubr.f32.gmra.mxu0 %v9453
  %v9596 = vpop.f32.mrf.mxu0
  %v9597 = vadd.f32 %v9404, %v9596
  %v9598 = vpop.f32.mrf.mxu0
  %9599 = vdwg.mxu0
  %v9600 = vld [vmem:[#allocation2 + $0x2] sm:$0xff]
  %v9601 = vld [vmem:[#allocation2 + $0x12] sm:$0xff]
  %v9602 = vld [vmem:[#allocation2 + $0x22] sm:$0xff]
  %v9603 = vld [vmem:[#allocation2 + $0x32] sm:$0xff]
  %v9604 = vld [vmem:[#allocation2 + $0x42] sm:$0xff]
  %v9605 = vld [vmem:[#allocation2 + $0x52] sm:$0xff]
  %v9606 = vld [vmem:[#allocation2 + $0x62] sm:$0xff]
  %v9607 = vld [vmem:[#allocation2 + $0x72] sm:$0xff]
  %v9608 = vld [vmem:[#allocation2 + $0xa2] sm:$0xff]
  %v9609 = vld [vmem:[#allocation2 + $0xb2] sm:$0xff]
  %v9610 = vld [vmem:[#allocation2 + $0xc2] sm:$0xff]
  %v9611 = vld [vmem:[#allocation2 + $0xd2] sm:$0xff]
  %v9612 = vld [vmem:[#allocation2 + $0xe2] sm:$0xff]
  %v9613 = vld [vmem:[#allocation2 + $0xf2] sm:$0xff]
  %v9614 = vld [vmem:[#allocation2 + $0x102] sm:$0xff]
  %v9615 = vld [vmem:[#allocation2 + $0x112] sm:$0xff]
  %s9616 = scalar_lea.vmem %s15, 64
  %v9617 = vld [vmem:[%s9616] sm:$0xff]
  %v9618 = vld [vmem:[%s9616 + $0x8] sm:$0xff]
  %v9619 = vld [vmem:[%s9616 + $0x10] sm:$0xff]
  %v9620 = vld [vmem:[%s9616 + $0x18] sm:$0xff]
  %v9622 = vsel %vm68, %v9600, 0
  %v9625 = vsel %vm68, %v9601, 0
  %v9628 = vsel %vm68, %v9602, 0
  %v9631 = vsel %vm68, %v9603, 0
  %v9634 = vsel %vm68, %v9604, 0
  %v9637 = vsel %vm68, %v9605, 0
  %v9640 = vsel %vm68, %v9606, 0
  %v9643 = vsel %vm68, %v9607, 0
  %v9646 = vsel %vm68, %v9608, 0
  %v9649 = vsel %vm68, %v9609, 0
  %v9652 = vsel %vm68, %v9610, 0
  %v9655 = vsel %vm68, %v9611, 0
  %v9658 = vsel %vm68, %v9612, 0
  %v9661 = vsel %vm68, %v9613, 0
  %v9664 = vsel %vm68, %v9614, 0
  %v9667 = vsel %vm68, %v9615, 0
  %9669 = vmatprep.subr.mxu0 0.0
  %9670 = vmatpush1.msra.mxu0 0.0
  %9671 = vmatprep.subr.mxu0 0.0
  %9672 = vmatpush1.msra.mxu0 0.0
  %9673 = vmatprep.subr.mxu0 0.0
  %9674 = vmatpush1.msra.mxu0 0.0
  %9675 = vmatprep.subr.mxu0 0.0
  %9676 = vmatpush1.msra.mxu0 0.0
  %9677 = vmatprep.subr.mxu0 0.0
  %9678 = vmatpush1.msra.mxu0 0.0
  %9679 = vmatprep.subr.mxu0 0.0
  %9680 = vmatpush1.msra.mxu0 0.0
  %9681 = vmatprep.subr.mxu0 0.0
  %9682 = vmatpush1.msra.mxu0 0.0
  %9683 = vmatprep.subr.mxu0 0.0
  %9684 = vmatpush1.msra.mxu0 0.0
  %9685 = vmatprep.subr.mxu0 0.0
  %9686 = vmatpush1.msra.mxu0 0.0
  %9687 = vmatprep.subr.mxu0 0.0
  %9688 = vmatpush1.msra.mxu0 0.0
  %9689 = vmatprep.subr.mxu0 0.0
  %9690 = vmatpush1.msra.mxu0 0.0
  %9691 = vmatprep.subr.mxu0 0.0
  %9692 = vmatpush1.msra.mxu0 0.0
  %9693 = vmatprep.subr.mxu0 0.0
  %9694 = vmatpush1.msra.mxu0 %v9620
  %9695 = vmatprep.subr.mxu0 0.0
  %9696 = vmatpush1.msra.mxu0 %v9619
  %9697 = vmatprep.subr.mxu0 0.0
  %9698 = vmatpush1.msra.mxu0 %v9618
  %9699 = vmatprep.subr.mxu0 0.0
  %9700 = vmatpush1.msra.mxu0 %v9617
  %9701 = vmatprep.subr.mxu0 0.0
  %9702 = vmatpush2.msra.mxu0 0.0
  %9703 = vmatprep.subr.mxu0 0.0
  %9704 = vmatpush2.msra.mxu0 0.0
  %9705 = vmatprep.subr.mxu0 0.0
  %9706 = vmatpush2.msra.mxu0 0.0
  %9707 = vmatprep.subr.mxu0 0.0
  %9708 = vmatpush2.msra.mxu0 0.0
  %9709 = vmatprep.subr.mxu0 0.0
  %9710 = vmatpush2.msra.mxu0 0.0
  %9711 = vmatprep.subr.mxu0 0.0
  %9712 = vmatpush2.msra.mxu0 0.0
  %9713 = vmatprep.subr.mxu0 0.0
  %9714 = vmatpush2.msra.mxu0 0.0
  %9715 = vmatprep.subr.mxu0 0.0
  %9716 = vmatpush2.msra.mxu0 0.0
  %9717 = vmatprep.subr.mxu0 0.0
  %9718 = vmatpush2.msra.mxu0 0.0
  %9719 = vmatprep.subr.mxu0 0.0
  %9720 = vmatpush2.msra.mxu0 0.0
  %9721 = vmatprep.subr.mxu0 0.0
  %9722 = vmatpush2.msra.mxu0 0.0
  %9723 = vmatprep.subr.mxu0 0.0
  %9724 = vmatpush2.msra.mxu0 0.0
  %9725 = vmatprep.subr.mxu0 0.0
  %9726 = vmatpush2.msra.mxu0 0.0
  %9727 = vmatprep.subr.mxu0 0.0
  %9728 = vmatpush2.msra.mxu0 0.0
  %9729 = vmatprep.subr.mxu0 0.0
  %9730 = vmatpush2.msra.mxu0 0.0
  %9731 = vmatprep.subr.mxu0 0.0
  %9732 = vmatpush2.msra.mxu0 0.0
  %9733 = vmatprep.mubr.f32.mxu0 0.0
  %9734 = vmatmul.mubr.f32.gmra.mxu0 %v9622
  %v9735 = vpop.f32.mrf.mxu0
  %v9736 = vadd.f32 0.0, %v9735
  %v9737 = vpop.f32.mrf.mxu0
  %9738 = vmatprep.mubr.f32.mxu0 0.0
  %9739 = vmatmul.mubr.f32.gmra.mxu0 %v9625
  %v9740 = vpop.f32.mrf.mxu0
  %v9741 = vadd.f32 0.0, %v9740
  %v9742 = vpop.f32.mrf.mxu0
  %9743 = vmatprep.mubr.f32.mxu0 0.0
  %9744 = vmatmul.mubr.f32.gmra.mxu0 %v9628
  %v9745 = vpop.f32.mrf.mxu0
  %v9746 = vadd.f32 0.0, %v9745
  %v9747 = vpop.f32.mrf.mxu0
  %9748 = vmatprep.mubr.f32.mxu0 0.0
  %9749 = vmatmul.mubr.f32.gmra.mxu0 %v9631
  %v9750 = vpop.f32.mrf.mxu0
  %v9751 = vadd.f32 0.0, %v9750
  %v9752 = vpop.f32.mrf.mxu0
  %9753 = vmatprep.mubr.f32.mxu0 0.0
  %9754 = vmatmul.mubr.f32.gmra.mxu0 %v9634
  %v9755 = vpop.f32.mrf.mxu0
  %v9756 = vadd.f32 0.0, %v9755
  %v9757 = vpop.f32.mrf.mxu0
  %9758 = vmatprep.mubr.f32.mxu0 0.0
  %9759 = vmatmul.mubr.f32.gmra.mxu0 %v9637
  %v9760 = vpop.f32.mrf.mxu0
  %v9761 = vadd.f32 0.0, %v9760
  %v9762 = vpop.f32.mrf.mxu0
  %9763 = vmatprep.mubr.f32.mxu0 0.0
  %9764 = vmatmul.mubr.f32.gmra.mxu0 %v9640
  %v9765 = vpop.f32.mrf.mxu0
  %v9766 = vadd.f32 0.0, %v9765
  %v9767 = vpop.f32.mrf.mxu0
  %9768 = vmatprep.mubr.f32.mxu0 0.0
  %9769 = vmatmul.mubr.f32.gmra.mxu0 %v9643
  %v9770 = vpop.f32.mrf.mxu0
  %v9771 = vadd.f32 0.0, %v9770
  %v9772 = vpop.f32.mrf.mxu0
  %9773 = vmatprep.mubr.f32.mxu0 0.0
  %9774 = vmatmul.mubr.f32.gmra.mxu0 %v9646
  %v9775 = vpop.f32.mrf.mxu0
  %v9776 = vadd.f32 0.0, %v9775
  %v9777 = vpop.f32.mrf.mxu0
  %9778 = vmatprep.mubr.f32.mxu0 0.0
  %9779 = vmatmul.mubr.f32.gmra.mxu0 %v9649
  %v9780 = vpop.f32.mrf.mxu0
  %v9781 = vadd.f32 0.0, %v9780
  %v9782 = vpop.f32.mrf.mxu0
  %9783 = vmatprep.mubr.f32.mxu0 0.0
  %9784 = vmatmul.mubr.f32.gmra.mxu0 %v9652
  %v9785 = vpop.f32.mrf.mxu0
  %v9786 = vadd.f32 0.0, %v9785
  %v9787 = vpop.f32.mrf.mxu0
  %9788 = vmatprep.mubr.f32.mxu0 0.0
  %9789 = vmatmul.mubr.f32.gmra.mxu0 %v9655
  %v9790 = vpop.f32.mrf.mxu0
  %v9791 = vadd.f32 0.0, %v9790
  %v9792 = vpop.f32.mrf.mxu0
  %9793 = vmatprep.mubr.f32.mxu0 0.0
  %9794 = vmatmul.mubr.f32.gmra.mxu0 %v9658
  %v9795 = vpop.f32.mrf.mxu0
  %v9796 = vadd.f32 0.0, %v9795
  %v9797 = vpop.f32.mrf.mxu0
  %9798 = vmatprep.mubr.f32.mxu0 0.0
  %9799 = vmatmul.mubr.f32.gmra.mxu0 %v9661
  %v9800 = vpop.f32.mrf.mxu0
  %v9801 = vadd.f32 0.0, %v9800
  %v9802 = vpop.f32.mrf.mxu0
  %9803 = vmatprep.mubr.f32.mxu0 0.0
  %9804 = vmatmul.mubr.f32.gmra.mxu0 %v9664
  %v9805 = vpop.f32.mrf.mxu0
  %v9806 = vadd.f32 0.0, %v9805
  %v9807 = vpop.f32.mrf.mxu0
  %9808 = vmatprep.mubr.f32.mxu0 0.0
  %9809 = vmatmul.mubr.f32.gmra.mxu0 %v9667
  %v9810 = vpop.f32.mrf.mxu0
  %v9811 = vadd.f32 0.0, %v9810
  %v9812 = vpop.f32.mrf.mxu0
  %9813 = vdwg.mxu0
  %v9814 = vadd.f32 %v9522, %v9736
  %v9815 = vadd.f32 %v9527, %v9741
  %v9816 = vadd.f32 %v9532, %v9746
  %v9817 = vadd.f32 %v9537, %v9751
  %v9818 = vadd.f32 %v9542, %v9756
  %v9819 = vadd.f32 %v9547, %v9761
  %v9820 = vadd.f32 %v9552, %v9766
  %v9821 = vadd.f32 %v9557, %v9771
  %v9822 = vadd.f32 %v9562, %v9776
  %v9823 = vadd.f32 %v9567, %v9781
  %v9824 = vadd.f32 %v9572, %v9786
  %v9825 = vadd.f32 %v9577, %v9791
  %v9826 = vadd.f32 %v9582, %v9796
  %v9827 = vadd.f32 %v9587, %v9801
  %v9828 = vadd.f32 %v9592, %v9806
  %v9829 = vadd.f32 %v9597, %v9811
  %v9830 = vld [vmem:[%s126] sm:$0xff]
  %v9831 = vld [vmem:[%s126 + $0x10] sm:$0xff]
  %v9832 = vld [vmem:[%s126 + $0x20] sm:$0xff]
  %v9833 = vld [vmem:[%s126 + $0x30] sm:$0xff]
  %v9834 = vld [vmem:[%s126 + $0x40] sm:$0xff]
  %v9835 = vld [vmem:[%s126 + $0x50] sm:$0xff]
  %v9836 = vld [vmem:[%s126 + $0x60] sm:$0xff]
  %v9837 = vld [vmem:[%s126 + $0x70] sm:$0xff]
  %v9838 = vld [vmem:[%s126 + $0xa0] sm:$0xff]
  %v9839 = vld [vmem:[%s126 + $0xb0] sm:$0xff]
  %v9840 = vld [vmem:[%s126 + $0xc0] sm:$0xff]
  %v9841 = vld [vmem:[%s126 + $0xd0] sm:$0xff]
  %v9842 = vld [vmem:[%s126 + $0xe0] sm:$0xff]
  %v9843 = vld [vmem:[%s126 + $0xf0] sm:$0xff]
  %v9844 = vld [vmem:[%s126 + $0x100] sm:$0xff]
  %v9845 = vld [vmem:[%s126 + $0x110] sm:$0xff]
  %s9846 = scalar_lea.vmem %s15, 96
  %v9847 = vld [vmem:[%s9846] sm:$0xff]
  %v9848 = vld [vmem:[%s9846 + $0x8] sm:$0xff]
  %v9849 = vld [vmem:[%s9846 + $0x10] sm:$0xff]
  %v9850 = vld [vmem:[%s9846 + $0x18] sm:$0xff]
  %v9852 = vsel %vm68, %v9830, 0
  %v9855 = vsel %vm68, %v9831, 0
  %v9858 = vsel %vm68, %v9832, 0
  %v9861 = vsel %vm68, %v9833, 0
  %v9864 = vsel %vm68, %v9834, 0
  %v9867 = vsel %vm68, %v9835, 0
  %v9870 = vsel %vm68, %v9836, 0
  %v9873 = vsel %vm68, %v9837, 0
  %v9876 = vsel %vm68, %v9838, 0
  %v9879 = vsel %vm68, %v9839, 0
  %v9882 = vsel %vm68, %v9840, 0
  %v9885 = vsel %vm68, %v9841, 0
  %v9888 = vsel %vm68, %v9842, 0
  %v9891 = vsel %vm68, %v9843, 0
  %v9894 = vsel %vm68, %v9844, 0
  %v9897 = vsel %vm68, %v9845, 0
  %9899 = vmatprep.subr.mxu0 0.0
  %9900 = vmatpush1.msra.mxu0 0.0
  %9901 = vmatprep.subr.mxu0 0.0
  %9902 = vmatpush1.msra.mxu0 0.0
  %9903 = vmatprep.subr.mxu0 0.0
  %9904 = vmatpush1.msra.mxu0 0.0
  %9905 = vmatprep.subr.mxu0 0.0
  %9906 = vmatpush1.msra.mxu0 0.0
  %9907 = vmatprep.subr.mxu0 0.0
  %9908 = vmatpush1.msra.mxu0 0.0
  %9909 = vmatprep.subr.mxu0 0.0
  %9910 = vmatpush1.msra.mxu0 0.0
  %9911 = vmatprep.subr.mxu0 0.0
  %9912 = vmatpush1.msra.mxu0 0.0
  %9913 = vmatprep.subr.mxu0 0.0
  %9914 = vmatpush1.msra.mxu0 0.0
  %9915 = vmatprep.subr.mxu0 0.0
  %9916 = vmatpush1.msra.mxu0 0.0
  %9917 = vmatprep.subr.mxu0 0.0
  %9918 = vmatpush1.msra.mxu0 0.0
  %9919 = vmatprep.subr.mxu0 0.0
  %9920 = vmatpush1.msra.mxu0 0.0
  %9921 = vmatprep.subr.mxu0 0.0
  %9922 = vmatpush1.msra.mxu0 0.0
  %9923 = vmatprep.subr.mxu0 0.0
  %9924 = vmatpush1.msra.mxu0 %v9850
  %9925 = vmatprep.subr.mxu0 0.0
  %9926 = vmatpush1.msra.mxu0 %v9849
  %9927 = vmatprep.subr.mxu0 0.0
  %9928 = vmatpush1.msra.mxu0 %v9848
  %9929 = vmatprep.subr.mxu0 0.0
  %9930 = vmatpush1.msra.mxu0 %v9847
  %9931 = vmatprep.subr.mxu0 0.0
  %9932 = vmatpush2.msra.mxu0 0.0
  %9933 = vmatprep.subr.mxu0 0.0
  %9934 = vmatpush2.msra.mxu0 0.0
  %9935 = vmatprep.subr.mxu0 0.0
  %9936 = vmatpush2.msra.mxu0 0.0
  %9937 = vmatprep.subr.mxu0 0.0
  %9938 = vmatpush2.msra.mxu0 0.0
  %9939 = vmatprep.subr.mxu0 0.0
  %9940 = vmatpush2.msra.mxu0 0.0
  %9941 = vmatprep.subr.mxu0 0.0
  %9942 = vmatpush2.msra.mxu0 0.0
  %9943 = vmatprep.subr.mxu0 0.0
  %9944 = vmatpush2.msra.mxu0 0.0
  %9945 = vmatprep.subr.mxu0 0.0
  %9946 = vmatpush2.msra.mxu0 0.0
  %9947 = vmatprep.subr.mxu0 0.0
  %9948 = vmatpush2.msra.mxu0 0.0
  %9949 = vmatprep.subr.mxu0 0.0
  %9950 = vmatpush2.msra.mxu0 0.0
  %9951 = vmatprep.subr.mxu0 0.0
  %9952 = vmatpush2.msra.mxu0 0.0
  %9953 = vmatprep.subr.mxu0 0.0
  %9954 = vmatpush2.msra.mxu0 0.0
  %9955 = vmatprep.subr.mxu0 0.0
  %9956 = vmatpush2.msra.mxu0 0.0
  %9957 = vmatprep.subr.mxu0 0.0
  %9958 = vmatpush2.msra.mxu0 0.0
  %9959 = vmatprep.subr.mxu0 0.0
  %9960 = vmatpush2.msra.mxu0 0.0
  %9961 = vmatprep.subr.mxu0 0.0
  %9962 = vmatpush2.msra.mxu0 0.0
  %9963 = vmatprep.mubr.f32.mxu0 0.0
  %9964 = vmatmul.mubr.f32.gmra.mxu0 %v9852
  %v9965 = vpop.f32.mrf.mxu0
  %v9966 = vadd.f32 0.0, %v9965
  %v9967 = vpop.f32.mrf.mxu0
  %9968 = vmatprep.mubr.f32.mxu0 0.0
  %9969 = vmatmul.mubr.f32.gmra.mxu0 %v9855
  %v9970 = vpop.f32.mrf.mxu0
  %v9971 = vadd.f32 0.0, %v9970
  %v9972 = vpop.f32.mrf.mxu0
  %9973 = vmatprep.mubr.f32.mxu0 0.0
  %9974 = vmatmul.mubr.f32.gmra.mxu0 %v9858
  %v9975 = vpop.f32.mrf.mxu0
  %v9976 = vadd.f32 0.0, %v9975
  %v9977 = vpop.f32.mrf.mxu0
  %9978 = vmatprep.mubr.f32.mxu0 0.0
  %9979 = vmatmul.mubr.f32.gmra.mxu0 %v9861
  %v9980 = vpop.f32.mrf.mxu0
  %v9981 = vadd.f32 0.0, %v9980
  %v9982 = vpop.f32.mrf.mxu0
  %9983 = vmatprep.mubr.f32.mxu0 0.0
  %9984 = vmatmul.mubr.f32.gmra.mxu0 %v9864
  %v9985 = vpop.f32.mrf.mxu0
  %v9986 = vadd.f32 0.0, %v9985
  %v9987 = vpop.f32.mrf.mxu0
  %9988 = vmatprep.mubr.f32.mxu0 0.0
  %9989 = vmatmul.mubr.f32.gmra.mxu0 %v9867
  %v9990 = vpop.f32.mrf.mxu0
  %v9991 = vadd.f32 0.0, %v9990
  %v9992 = vpop.f32.mrf.mxu0
  %9993 = vmatprep.mubr.f32.mxu0 0.0
  %9994 = vmatmul.mubr.f32.gmra.mxu0 %v9870
  %v9995 = vpop.f32.mrf.mxu0
  %v9996 = vadd.f32 0.0, %v9995
  %v9997 = vpop.f32.mrf.mxu0
  %9998 = vmatprep.mubr.f32.mxu0 0.0
  %9999 = vmatmul.mubr.f32.gmra.mxu0 %v9873
  %v10000 = vpop.f32.mrf.mxu0
  %v10001 = vadd.f32 0.0, %v10000
  %v10002 = vpop.f32.mrf.mxu0
  %10003 = vmatprep.mubr.f32.mxu0 0.0
  %10004 = vmatmul.mubr.f32.gmra.mxu0 %v9876
  %v10005 = vpop.f32.mrf.mxu0
  %v10006 = vadd.f32 0.0, %v10005
  %v10007 = vpop.f32.mrf.mxu0
  %10008 = vmatprep.mubr.f32.mxu0 0.0
  %10009 = vmatmul.mubr.f32.gmra.mxu0 %v9879
  %v10010 = vpop.f32.mrf.mxu0
  %v10011 = vadd.f32 0.0, %v10010
  %v10012 = vpop.f32.mrf.mxu0
  %10013 = vmatprep.mubr.f32.mxu0 0.0
  %10014 = vmatmul.mubr.f32.gmra.mxu0 %v9882
  %v10015 = vpop.f32.mrf.mxu0
  %v10016 = vadd.f32 0.0, %v10015
  %v10017 = vpop.f32.mrf.mxu0
  %10018 = vmatprep.mubr.f32.mxu0 0.0
  %10019 = vmatmul.mubr.f32.gmra.mxu0 %v9885
  %v10020 = vpop.f32.mrf.mxu0
  %v10021 = vadd.f32 0.0, %v10020
  %v10022 = vpop.f32.mrf.mxu0
  %10023 = vmatprep.mubr.f32.mxu0 0.0
  %10024 = vmatmul.mubr.f32.gmra.mxu0 %v9888
  %v10025 = vpop.f32.mrf.mxu0
  %v10026 = vadd.f32 0.0, %v10025
  %v10027 = vpop.f32.mrf.mxu0
  %10028 = vmatprep.mubr.f32.mxu0 0.0
  %10029 = vmatmul.mubr.f32.gmra.mxu0 %v9891
  %v10030 = vpop.f32.mrf.mxu0
  %v10031 = vadd.f32 0.0, %v10030
  %v10032 = vpop.f32.mrf.mxu0
  %10033 = vmatprep.mubr.f32.mxu0 0.0
  %10034 = vmatmul.mubr.f32.gmra.mxu0 %v9894
  %v10035 = vpop.f32.mrf.mxu0
  %v10036 = vadd.f32 0.0, %v10035
  %v10037 = vpop.f32.mrf.mxu0
  %10038 = vmatprep.mubr.f32.mxu0 0.0
  %10039 = vmatmul.mubr.f32.gmra.mxu0 %v9897
  %v10040 = vpop.f32.mrf.mxu0
  %v10041 = vadd.f32 0.0, %v10040
  %v10042 = vpop.f32.mrf.mxu0
  %10043 = vdwg.mxu0
  %v10044 = vadd.f32 %v9814, %v9966
  %v10045 = vadd.f32 %v9815, %v9971
  %v10046 = vadd.f32 %v9816, %v9976
  %v10047 = vadd.f32 %v9817, %v9981
  %v10048 = vadd.f32 %v9818, %v9986
  %v10049 = vadd.f32 %v9819, %v9991
  %v10050 = vadd.f32 %v9820, %v9996
  %v10051 = vadd.f32 %v9821, %v10001
  %v10052 = vadd.f32 %v9822, %v10006
  %v10053 = vadd.f32 %v9823, %v10011
  %v10054 = vadd.f32 %v9824, %v10016
  %v10055 = vadd.f32 %v9825, %v10021
  %v10056 = vadd.f32 %v9826, %v10026
  %v10057 = vadd.f32 %v9827, %v10031
  %v10058 = vadd.f32 %v9828, %v10036
  %v10059 = vadd.f32 %v9829, %v10041
  %v10060 = vld [vmem:[%s126 + $0x1] sm:$0xff]
  %v10061 = vld [vmem:[%s126 + $0x11] sm:$0xff]
  %v10062 = vld [vmem:[%s126 + $0x21] sm:$0xff]
  %v10063 = vld [vmem:[%s126 + $0x31] sm:$0xff]
  %v10064 = vld [vmem:[%s126 + $0x41] sm:$0xff]
  %v10065 = vld [vmem:[%s126 + $0x51] sm:$0xff]
  %v10066 = vld [vmem:[%s126 + $0x61] sm:$0xff]
  %v10067 = vld [vmem:[%s126 + $0x71] sm:$0xff]
  %v10068 = vld [vmem:[%s126 + $0xa1] sm:$0xff]
  %v10069 = vld [vmem:[%s126 + $0xb1] sm:$0xff]
  %v10070 = vld [vmem:[%s126 + $0xc1] sm:$0xff]
  %v10071 = vld [vmem:[%s126 + $0xd1] sm:$0xff]
  %v10072 = vld [vmem:[%s126 + $0xe1] sm:$0xff]
  %v10073 = vld [vmem:[%s126 + $0xf1] sm:$0xff]
  %v10074 = vld [vmem:[%s126 + $0x101] sm:$0xff]
  %v10075 = vld [vmem:[%s126 + $0x111] sm:$0xff]
  %s10076 = scalar_lea.vmem %s15, 128
  %v10077 = vld [vmem:[%s10076] sm:$0xff]
  %v10078 = vld [vmem:[%s10076 + $0x8] sm:$0xff]
  %v10079 = vld [vmem:[%s10076 + $0x10] sm:$0xff]
  %v10080 = vld [vmem:[%s10076 + $0x18] sm:$0xff]
  %v10082 = vsel %vm68, %v10060, 0
  %v10085 = vsel %vm68, %v10061, 0
  %v10088 = vsel %vm68, %v10062, 0
  %v10091 = vsel %vm68, %v10063, 0
  %v10094 = vsel %vm68, %v10064, 0
  %v10097 = vsel %vm68, %v10065, 0
  %v10100 = vsel %vm68, %v10066, 0
  %v10103 = vsel %vm68, %v10067, 0
  %v10106 = vsel %vm68, %v10068, 0
  %v10109 = vsel %vm68, %v10069, 0
  %v10112 = vsel %vm68, %v10070, 0
  %v10115 = vsel %vm68, %v10071, 0
  %v10118 = vsel %vm68, %v10072, 0
  %v10121 = vsel %vm68, %v10073, 0
  %v10124 = vsel %vm68, %v10074, 0
  %v10127 = vsel %vm68, %v10075, 0
  %10129 = vmatprep.subr.mxu0 0.0
  %10130 = vmatpush1.msra.mxu0 0.0
  %10131 = vmatprep.subr.mxu0 0.0
  %10132 = vmatpush1.msra.mxu0 0.0
  %10133 = vmatprep.subr.mxu0 0.0
  %10134 = vmatpush1.msra.mxu0 0.0
  %10135 = vmatprep.subr.mxu0 0.0
  %10136 = vmatpush1.msra.mxu0 0.0
  %10137 = vmatprep.subr.mxu0 0.0
  %10138 = vmatpush1.msra.mxu0 0.0
  %10139 = vmatprep.subr.mxu0 0.0
  %10140 = vmatpush1.msra.mxu0 0.0
  %10141 = vmatprep.subr.mxu0 0.0
  %10142 = vmatpush1.msra.mxu0 0.0
  %10143 = vmatprep.subr.mxu0 0.0
  %10144 = vmatpush1.msra.mxu0 0.0
  %10145 = vmatprep.subr.mxu0 0.0
  %10146 = vmatpush1.msra.mxu0 0.0
  %10147 = vmatprep.subr.mxu0 0.0
  %10148 = vmatpush1.msra.mxu0 0.0
  %10149 = vmatprep.subr.mxu0 0.0
  %10150 = vmatpush1.msra.mxu0 0.0
  %10151 = vmatprep.subr.mxu0 0.0
  %10152 = vmatpush1.msra.mxu0 0.0
  %10153 = vmatprep.subr.mxu0 0.0
  %10154 = vmatpush1.msra.mxu0 %v10080
  %10155 = vmatprep.subr.mxu0 0.0
  %10156 = vmatpush1.msra.mxu0 %v10079
  %10157 = vmatprep.subr.mxu0 0.0
  %10158 = vmatpush1.msra.mxu0 %v10078
  %10159 = vmatprep.subr.mxu0 0.0
  %10160 = vmatpush1.msra.mxu0 %v10077
  %10161 = vmatprep.subr.mxu0 0.0
  %10162 = vmatpush2.msra.mxu0 0.0
  %10163 = vmatprep.subr.mxu0 0.0
  %10164 = vmatpush2.msra.mxu0 0.0
  %10165 = vmatprep.subr.mxu0 0.0
  %10166 = vmatpush2.msra.mxu0 0.0
  %10167 = vmatprep.subr.mxu0 0.0
  %10168 = vmatpush2.msra.mxu0 0.0
  %10169 = vmatprep.subr.mxu0 0.0
  %10170 = vmatpush2.msra.mxu0 0.0
  %10171 = vmatprep.subr.mxu0 0.0
  %10172 = vmatpush2.msra.mxu0 0.0
  %10173 = vmatprep.subr.mxu0 0.0
  %10174 = vmatpush2.msra.mxu0 0.0
  %10175 = vmatprep.subr.mxu0 0.0
  %10176 = vmatpush2.msra.mxu0 0.0
  %10177 = vmatprep.subr.mxu0 0.0
  %10178 = vmatpush2.msra.mxu0 0.0
  %10179 = vmatprep.subr.mxu0 0.0
  %10180 = vmatpush2.msra.mxu0 0.0
  %10181 = vmatprep.subr.mxu0 0.0
  %10182 = vmatpush2.msra.mxu0 0.0
  %10183 = vmatprep.subr.mxu0 0.0
  %10184 = vmatpush2.msra.mxu0 0.0
  %10185 = vmatprep.subr.mxu0 0.0
  %10186 = vmatpush2.msra.mxu0 0.0
  %10187 = vmatprep.subr.mxu0 0.0
  %10188 = vmatpush2.msra.mxu0 0.0
  %10189 = vmatprep.subr.mxu0 0.0
  %10190 = vmatpush2.msra.mxu0 0.0
  %10191 = vmatprep.subr.mxu0 0.0
  %10192 = vmatpush2.msra.mxu0 0.0
  %10193 = vmatprep.mubr.f32.mxu0 0.0
  %10194 = vmatmul.mubr.f32.gmra.mxu0 %v10082
  %v10195 = vpop.f32.mrf.mxu0
  %v10196 = vadd.f32 0.0, %v10195
  %v10197 = vpop.f32.mrf.mxu0
  %10198 = vmatprep.mubr.f32.mxu0 0.0
  %10199 = vmatmul.mubr.f32.gmra.mxu0 %v10085
  %v10200 = vpop.f32.mrf.mxu0
  %v10201 = vadd.f32 0.0, %v10200
  %v10202 = vpop.f32.mrf.mxu0
  %10203 = vmatprep.mubr.f32.mxu0 0.0
  %10204 = vmatmul.mubr.f32.gmra.mxu0 %v10088
  %v10205 = vpop.f32.mrf.mxu0
  %v10206 = vadd.f32 0.0, %v10205
  %v10207 = vpop.f32.mrf.mxu0
  %10208 = vmatprep.mubr.f32.mxu0 0.0
  %10209 = vmatmul.mubr.f32.gmra.mxu0 %v10091
  %v10210 = vpop.f32.mrf.mxu0
  %v10211 = vadd.f32 0.0, %v10210
  %v10212 = vpop.f32.mrf.mxu0
  %10213 = vmatprep.mubr.f32.mxu0 0.0
  %10214 = vmatmul.mubr.f32.gmra.mxu0 %v10094
  %v10215 = vpop.f32.mrf.mxu0
  %v10216 = vadd.f32 0.0, %v10215
  %v10217 = vpop.f32.mrf.mxu0
  %10218 = vmatprep.mubr.f32.mxu0 0.0
  %10219 = vmatmul.mubr.f32.gmra.mxu0 %v10097
  %v10220 = vpop.f32.mrf.mxu0
  %v10221 = vadd.f32 0.0, %v10220
  %v10222 = vpop.f32.mrf.mxu0
  %10223 = vmatprep.mubr.f32.mxu0 0.0
  %10224 = vmatmul.mubr.f32.gmra.mxu0 %v10100
  %v10225 = vpop.f32.mrf.mxu0
  %v10226 = vadd.f32 0.0, %v10225
  %v10227 = vpop.f32.mrf.mxu0
  %10228 = vmatprep.mubr.f32.mxu0 0.0
  %10229 = vmatmul.mubr.f32.gmra.mxu0 %v10103
  %v10230 = vpop.f32.mrf.mxu0
  %v10231 = vadd.f32 0.0, %v10230
  %v10232 = vpop.f32.mrf.mxu0
  %10233 = vmatprep.mubr.f32.mxu0 0.0
  %10234 = vmatmul.mubr.f32.gmra.mxu0 %v10106
  %v10235 = vpop.f32.mrf.mxu0
  %v10236 = vadd.f32 0.0, %v10235
  %v10237 = vpop.f32.mrf.mxu0
  %10238 = vmatprep.mubr.f32.mxu0 0.0
  %10239 = vmatmul.mubr.f32.gmra.mxu0 %v10109
  %v10240 = vpop.f32.mrf.mxu0
  %v10241 = vadd.f32 0.0, %v10240
  %v10242 = vpop.f32.mrf.mxu0
  %10243 = vmatprep.mubr.f32.mxu0 0.0
  %10244 = vmatmul.mubr.f32.gmra.mxu0 %v10112
  %v10245 = vpop.f32.mrf.mxu0
  %v10246 = vadd.f32 0.0, %v10245
  %v10247 = vpop.f32.mrf.mxu0
  %10248 = vmatprep.mubr.f32.mxu0 0.0
  %10249 = vmatmul.mubr.f32.gmra.mxu0 %v10115
  %v10250 = vpop.f32.mrf.mxu0
  %v10251 = vadd.f32 0.0, %v10250
  %v10252 = vpop.f32.mrf.mxu0
  %10253 = vmatprep.mubr.f32.mxu0 0.0
  %10254 = vmatmul.mubr.f32.gmra.mxu0 %v10118
  %v10255 = vpop.f32.mrf.mxu0
  %v10256 = vadd.f32 0.0, %v10255
  %v10257 = vpop.f32.mrf.mxu0
  %10258 = vmatprep.mubr.f32.mxu0 0.0
  %10259 = vmatmul.mubr.f32.gmra.mxu0 %v10121
  %v10260 = vpop.f32.mrf.mxu0
  %v10261 = vadd.f32 0.0, %v10260
  %v10262 = vpop.f32.mrf.mxu0
  %10263 = vmatprep.mubr.f32.mxu0 0.0
  %10264 = vmatmul.mubr.f32.gmra.mxu0 %v10124
  %v10265 = vpop.f32.mrf.mxu0
  %v10266 = vadd.f32 0.0, %v10265
  %v10267 = vpop.f32.mrf.mxu0
  %10268 = vmatprep.mubr.f32.mxu0 0.0
  %10269 = vmatmul.mubr.f32.gmra.mxu0 %v10127
  %v10270 = vpop.f32.mrf.mxu0
  %v10271 = vadd.f32 0.0, %v10270
  %v10272 = vpop.f32.mrf.mxu0
  %10273 = vdwg.mxu0
  %v10274 = vadd.f32 %v10044, %v10196
  %v10275 = vadd.f32 %v10045, %v10201
  %v10276 = vadd.f32 %v10046, %v10206
  %v10277 = vadd.f32 %v10047, %v10211
  %v10278 = vadd.f32 %v10048, %v10216
  %v10279 = vadd.f32 %v10049, %v10221
  %v10280 = vadd.f32 %v10050, %v10226
  %v10281 = vadd.f32 %v10051, %v10231
  %v10282 = vadd.f32 %v10052, %v10236
  %v10283 = vadd.f32 %v10053, %v10241
  %v10284 = vadd.f32 %v10054, %v10246
  %v10285 = vadd.f32 %v10055, %v10251
  %v10286 = vadd.f32 %v10056, %v10256
  %v10287 = vadd.f32 %v10057, %v10261
  %v10288 = vadd.f32 %v10058, %v10266
  %v10289 = vadd.f32 %v10059, %v10271
  %v10290 = vld [vmem:[%s126 + $0x2] sm:$0xff]
  %v10291 = vld [vmem:[%s126 + $0x12] sm:$0xff]
  %v10292 = vld [vmem:[%s126 + $0x22] sm:$0xff]
  %v10293 = vld [vmem:[%s126 + $0x32] sm:$0xff]
  %v10294 = vld [vmem:[%s126 + $0x42] sm:$0xff]
  %v10295 = vld [vmem:[%s126 + $0x52] sm:$0xff]
  %v10296 = vld [vmem:[%s126 + $0x62] sm:$0xff]
  %v10297 = vld [vmem:[%s126 + $0x72] sm:$0xff]
  %v10298 = vld [vmem:[%s126 + $0xa2] sm:$0xff]
  %v10299 = vld [vmem:[%s126 + $0xb2] sm:$0xff]
  %v10300 = vld [vmem:[%s126 + $0xc2] sm:$0xff]
  %v10301 = vld [vmem:[%s126 + $0xd2] sm:$0xff]
  %v10302 = vld [vmem:[%s126 + $0xe2] sm:$0xff]
  %v10303 = vld [vmem:[%s126 + $0xf2] sm:$0xff]
  %v10304 = vld [vmem:[%s126 + $0x102] sm:$0xff]
  %v10305 = vld [vmem:[%s126 + $0x112] sm:$0xff]
  %s10306 = scalar_lea.vmem %s15, 160
  %v10307 = vld [vmem:[%s10306] sm:$0xff]
  %v10308 = vld [vmem:[%s10306 + $0x8] sm:$0xff]
  %v10309 = vld [vmem:[%s10306 + $0x10] sm:$0xff]
  %v10310 = vld [vmem:[%s10306 + $0x18] sm:$0xff]
  %v10312 = vsel %vm68, %v10290, 0
  %v10315 = vsel %vm68, %v10291, 0
  %v10318 = vsel %vm68, %v10292, 0
  %v10321 = vsel %vm68, %v10293, 0
  %v10324 = vsel %vm68, %v10294, 0
  %v10327 = vsel %vm68, %v10295, 0
  %v10330 = vsel %vm68, %v10296, 0
  %v10333 = vsel %vm68, %v10297, 0
  %v10336 = vsel %vm68, %v10298, 0
  %v10339 = vsel %vm68, %v10299, 0
  %v10342 = vsel %vm68, %v10300, 0
  %v10345 = vsel %vm68, %v10301, 0
  %v10348 = vsel %vm68, %v10302, 0
  %v10351 = vsel %vm68, %v10303, 0
  %v10354 = vsel %vm68, %v10304, 0
  %v10357 = vsel %vm68, %v10305, 0
  %10359 = vmatprep.subr.mxu0 0.0
  %10360 = vmatpush1.msra.mxu0 0.0
  %10361 = vmatprep.subr.mxu0 0.0
  %10362 = vmatpush1.msra.mxu0 0.0
  %10363 = vmatprep.subr.mxu0 0.0
  %10364 = vmatpush1.msra.mxu0 0.0
  %10365 = vmatprep.subr.mxu0 0.0
  %10366 = vmatpush1.msra.mxu0 0.0
  %10367 = vmatprep.subr.mxu0 0.0
  %10368 = vmatpush1.msra.mxu0 0.0
  %10369 = vmatprep.subr.mxu0 0.0
  %10370 = vmatpush1.msra.mxu0 0.0
  %10371 = vmatprep.subr.mxu0 0.0
  %10372 = vmatpush1.msra.mxu0 0.0
  %10373 = vmatprep.subr.mxu0 0.0
  %10374 = vmatpush1.msra.mxu0 0.0
  %10375 = vmatprep.subr.mxu0 0.0
  %10376 = vmatpush1.msra.mxu0 0.0
  %10377 = vmatprep.subr.mxu0 0.0
  %10378 = vmatpush1.msra.mxu0 0.0
  %10379 = vmatprep.subr.mxu0 0.0
  %10380 = vmatpush1.msra.mxu0 0.0
  %10381 = vmatprep.subr.mxu0 0.0
  %10382 = vmatpush1.msra.mxu0 0.0
  %10383 = vmatprep.subr.mxu0 0.0
  %10384 = vmatpush1.msra.mxu0 %v10310
  %10385 = vmatprep.subr.mxu0 0.0
  %10386 = vmatpush1.msra.mxu0 %v10309
  %10387 = vmatprep.subr.mxu0 0.0
  %10388 = vmatpush1.msra.mxu0 %v10308
  %10389 = vmatprep.subr.mxu0 0.0
  %10390 = vmatpush1.msra.mxu0 %v10307
  %10391 = vmatprep.subr.mxu0 0.0
  %10392 = vmatpush2.msra.mxu0 0.0
  %10393 = vmatprep.subr.mxu0 0.0
  %10394 = vmatpush2.msra.mxu0 0.0
  %10395 = vmatprep.subr.mxu0 0.0
  %10396 = vmatpush2.msra.mxu0 0.0
  %10397 = vmatprep.subr.mxu0 0.0
  %10398 = vmatpush2.msra.mxu0 0.0
  %10399 = vmatprep.subr.mxu0 0.0
  %10400 = vmatpush2.msra.mxu0 0.0
  %10401 = vmatprep.subr.mxu0 0.0
  %10402 = vmatpush2.msra.mxu0 0.0
  %10403 = vmatprep.subr.mxu0 0.0
  %10404 = vmatpush2.msra.mxu0 0.0
  %10405 = vmatprep.subr.mxu0 0.0
  %10406 = vmatpush2.msra.mxu0 0.0
  %10407 = vmatprep.subr.mxu0 0.0
  %10408 = vmatpush2.msra.mxu0 0.0
  %10409 = vmatprep.subr.mxu0 0.0
  %10410 = vmatpush2.msra.mxu0 0.0
  %10411 = vmatprep.subr.mxu0 0.0
  %10412 = vmatpush2.msra.mxu0 0.0
  %10413 = vmatprep.subr.mxu0 0.0
  %10414 = vmatpush2.msra.mxu0 0.0
  %10415 = vmatprep.subr.mxu0 0.0
  %10416 = vmatpush2.msra.mxu0 0.0
  %10417 = vmatprep.subr.mxu0 0.0
  %10418 = vmatpush2.msra.mxu0 0.0
  %10419 = vmatprep.subr.mxu0 0.0
  %10420 = vmatpush2.msra.mxu0 0.0
  %10421 = vmatprep.subr.mxu0 0.0
  %10422 = vmatpush2.msra.mxu0 0.0
  %10423 = vmatprep.mubr.f32.mxu0 0.0
  %10424 = vmatmul.mubr.f32.gmra.mxu0 %v10312
  %v10425 = vpop.f32.mrf.mxu0
  %v10426 = vadd.f32 0.0, %v10425
  %v10427 = vpop.f32.mrf.mxu0
  %10428 = vmatprep.mubr.f32.mxu0 0.0
  %10429 = vmatmul.mubr.f32.gmra.mxu0 %v10315
  %v10430 = vpop.f32.mrf.mxu0
  %v10431 = vadd.f32 0.0, %v10430
  %v10432 = vpop.f32.mrf.mxu0
  %10433 = vmatprep.mubr.f32.mxu0 0.0
  %10434 = vmatmul.mubr.f32.gmra.mxu0 %v10318
  %v10435 = vpop.f32.mrf.mxu0
  %v10436 = vadd.f32 0.0, %v10435
  %v10437 = vpop.f32.mrf.mxu0
  %10438 = vmatprep.mubr.f32.mxu0 0.0
  %10439 = vmatmul.mubr.f32.gmra.mxu0 %v10321
  %v10440 = vpop.f32.mrf.mxu0
  %v10441 = vadd.f32 0.0, %v10440
  %v10442 = vpop.f32.mrf.mxu0
  %10443 = vmatprep.mubr.f32.mxu0 0.0
  %10444 = vmatmul.mubr.f32.gmra.mxu0 %v10324
  %v10445 = vpop.f32.mrf.mxu0
  %v10446 = vadd.f32 0.0, %v10445
  %v10447 = vpop.f32.mrf.mxu0
  %10448 = vmatprep.mubr.f32.mxu0 0.0
  %10449 = vmatmul.mubr.f32.gmra.mxu0 %v10327
  %v10450 = vpop.f32.mrf.mxu0
  %v10451 = vadd.f32 0.0, %v10450
  %v10452 = vpop.f32.mrf.mxu0
  %10453 = vmatprep.mubr.f32.mxu0 0.0
  %10454 = vmatmul.mubr.f32.gmra.mxu0 %v10330
  %v10455 = vpop.f32.mrf.mxu0
  %v10456 = vadd.f32 0.0, %v10455
  %v10457 = vpop.f32.mrf.mxu0
  %10458 = vmatprep.mubr.f32.mxu0 0.0
  %10459 = vmatmul.mubr.f32.gmra.mxu0 %v10333
  %v10460 = vpop.f32.mrf.mxu0
  %v10461 = vadd.f32 0.0, %v10460
  %v10462 = vpop.f32.mrf.mxu0
  %10463 = vmatprep.mubr.f32.mxu0 0.0
  %10464 = vmatmul.mubr.f32.gmra.mxu0 %v10336
  %v10465 = vpop.f32.mrf.mxu0
  %v10466 = vadd.f32 0.0, %v10465
  %v10467 = vpop.f32.mrf.mxu0
  %10468 = vmatprep.mubr.f32.mxu0 0.0
  %10469 = vmatmul.mubr.f32.gmra.mxu0 %v10339
  %v10470 = vpop.f32.mrf.mxu0
  %v10471 = vadd.f32 0.0, %v10470
  %v10472 = vpop.f32.mrf.mxu0
  %10473 = vmatprep.mubr.f32.mxu0 0.0
  %10474 = vmatmul.mubr.f32.gmra.mxu0 %v10342
  %v10475 = vpop.f32.mrf.mxu0
  %v10476 = vadd.f32 0.0, %v10475
  %v10477 = vpop.f32.mrf.mxu0
  %10478 = vmatprep.mubr.f32.mxu0 0.0
  %10479 = vmatmul.mubr.f32.gmra.mxu0 %v10345
  %v10480 = vpop.f32.mrf.mxu0
  %v10481 = vadd.f32 0.0, %v10480
  %v10482 = vpop.f32.mrf.mxu0
  %10483 = vmatprep.mubr.f32.mxu0 0.0
  %10484 = vmatmul.mubr.f32.gmra.mxu0 %v10348
  %v10485 = vpop.f32.mrf.mxu0
  %v10486 = vadd.f32 0.0, %v10485
  %v10487 = vpop.f32.mrf.mxu0
  %10488 = vmatprep.mubr.f32.mxu0 0.0
  %10489 = vmatmul.mubr.f32.gmra.mxu0 %v10351
  %v10490 = vpop.f32.mrf.mxu0
  %v10491 = vadd.f32 0.0, %v10490
  %v10492 = vpop.f32.mrf.mxu0
  %10493 = vmatprep.mubr.f32.mxu0 0.0
  %10494 = vmatmul.mubr.f32.gmra.mxu0 %v10354
  %v10495 = vpop.f32.mrf.mxu0
  %v10496 = vadd.f32 0.0, %v10495
  %v10497 = vpop.f32.mrf.mxu0
  %10498 = vmatprep.mubr.f32.mxu0 0.0
  %10499 = vmatmul.mubr.f32.gmra.mxu0 %v10357
  %v10500 = vpop.f32.mrf.mxu0
  %v10501 = vadd.f32 0.0, %v10500
  %v10502 = vpop.f32.mrf.mxu0
  %10503 = vdwg.mxu0
  %v10504 = vadd.f32 %v10274, %v10426
  %v10505 = vadd.f32 %v10275, %v10431
  %v10506 = vadd.f32 %v10276, %v10436
  %v10507 = vadd.f32 %v10277, %v10441
  %v10508 = vadd.f32 %v10278, %v10446
  %v10509 = vadd.f32 %v10279, %v10451
  %v10510 = vadd.f32 %v10280, %v10456
  %v10511 = vadd.f32 %v10281, %v10461
  %v10512 = vadd.f32 %v10282, %v10466
  %v10513 = vadd.f32 %v10283, %v10471
  %v10514 = vadd.f32 %v10284, %v10476
  %v10515 = vadd.f32 %v10285, %v10481
  %v10516 = vadd.f32 %v10286, %v10486
  %v10517 = vadd.f32 %v10287, %v10491
  %v10518 = vadd.f32 %v10288, %v10496
  %v10519 = vadd.f32 %v10289, %v10501
  %v10520 = vld [vmem:[%s1490] sm:$0xff]
  %v10521 = vld [vmem:[%s1490 + $0x10] sm:$0xff]
  %v10522 = vld [vmem:[%s1490 + $0x20] sm:$0xff]
  %v10523 = vld [vmem:[%s1490 + $0x30] sm:$0xff]
  %v10524 = vld [vmem:[%s1490 + $0x40] sm:$0xff]
  %v10525 = vld [vmem:[%s1490 + $0x50] sm:$0xff]
  %v10526 = vld [vmem:[%s1490 + $0x60] sm:$0xff]
  %v10527 = vld [vmem:[%s1490 + $0x70] sm:$0xff]
  %v10528 = vld [vmem:[%s1490 + $0xa0] sm:$0xff]
  %v10529 = vld [vmem:[%s1490 + $0xb0] sm:$0xff]
  %v10530 = vld [vmem:[%s1490 + $0xc0] sm:$0xff]
  %v10531 = vld [vmem:[%s1490 + $0xd0] sm:$0xff]
  %v10532 = vld [vmem:[%s1490 + $0xe0] sm:$0xff]
  %v10533 = vld [vmem:[%s1490 + $0xf0] sm:$0xff]
  %v10534 = vld [vmem:[%s1490 + $0x100] sm:$0xff]
  %v10535 = vld [vmem:[%s1490 + $0x110] sm:$0xff]
  %s10536 = scalar_lea.vmem %s15, 192
  %v10537 = vld [vmem:[%s10536] sm:$0xff]
  %v10538 = vld [vmem:[%s10536 + $0x8] sm:$0xff]
  %v10539 = vld [vmem:[%s10536 + $0x10] sm:$0xff]
  %v10540 = vld [vmem:[%s10536 + $0x18] sm:$0xff]
  %v10542 = vsel %vm68, %v10520, 0
  %v10545 = vsel %vm68, %v10521, 0
  %v10548 = vsel %vm68, %v10522, 0
  %v10551 = vsel %vm68, %v10523, 0
  %v10554 = vsel %vm68, %v10524, 0
  %v10557 = vsel %vm68, %v10525, 0
  %v10560 = vsel %vm68, %v10526, 0
  %v10563 = vsel %vm68, %v10527, 0
  %v10566 = vsel %vm68, %v10528, 0
  %v10569 = vsel %vm68, %v10529, 0
  %v10572 = vsel %vm68, %v10530, 0
  %v10575 = vsel %vm68, %v10531, 0
  %v10578 = vsel %vm68, %v10532, 0
  %v10581 = vsel %vm68, %v10533, 0
  %v10584 = vsel %vm68, %v10534, 0
  %v10587 = vsel %vm68, %v10535, 0
  %10589 = vmatprep.subr.mxu0 0.0
  %10590 = vmatpush1.msra.mxu0 0.0
  %10591 = vmatprep.subr.mxu0 0.0
  %10592 = vmatpush1.msra.mxu0 0.0
  %10593 = vmatprep.subr.mxu0 0.0
  %10594 = vmatpush1.msra.mxu0 0.0
  %10595 = vmatprep.subr.mxu0 0.0
  %10596 = vmatpush1.msra.mxu0 0.0
  %10597 = vmatprep.subr.mxu0 0.0
  %10598 = vmatpush1.msra.mxu0 0.0
  %10599 = vmatprep.subr.mxu0 0.0
  %10600 = vmatpush1.msra.mxu0 0.0
  %10601 = vmatprep.subr.mxu0 0.0
  %10602 = vmatpush1.msra.mxu0 0.0
  %10603 = vmatprep.subr.mxu0 0.0
  %10604 = vmatpush1.msra.mxu0 0.0
  %10605 = vmatprep.subr.mxu0 0.0
  %10606 = vmatpush1.msra.mxu0 0.0
  %10607 = vmatprep.subr.mxu0 0.0
  %10608 = vmatpush1.msra.mxu0 0.0
  %10609 = vmatprep.subr.mxu0 0.0
  %10610 = vmatpush1.msra.mxu0 0.0
  %10611 = vmatprep.subr.mxu0 0.0
  %10612 = vmatpush1.msra.mxu0 0.0
  %10613 = vmatprep.subr.mxu0 0.0
  %10614 = vmatpush1.msra.mxu0 %v10540
  %10615 = vmatprep.subr.mxu0 0.0
  %10616 = vmatpush1.msra.mxu0 %v10539
  %10617 = vmatprep.subr.mxu0 0.0
  %10618 = vmatpush1.msra.mxu0 %v10538
  %10619 = vmatprep.subr.mxu0 0.0
  %10620 = vmatpush1.msra.mxu0 %v10537
  %10621 = vmatprep.subr.mxu0 0.0
  %10622 = vmatpush2.msra.mxu0 0.0
  %10623 = vmatprep.subr.mxu0 0.0
  %10624 = vmatpush2.msra.mxu0 0.0
  %10625 = vmatprep.subr.mxu0 0.0
  %10626 = vmatpush2.msra.mxu0 0.0
  %10627 = vmatprep.subr.mxu0 0.0
  %10628 = vmatpush2.msra.mxu0 0.0
  %10629 = vmatprep.subr.mxu0 0.0
  %10630 = vmatpush2.msra.mxu0 0.0
  %10631 = vmatprep.subr.mxu0 0.0
  %10632 = vmatpush2.msra.mxu0 0.0
  %10633 = vmatprep.subr.mxu0 0.0
  %10634 = vmatpush2.msra.mxu0 0.0
  %10635 = vmatprep.subr.mxu0 0.0
  %10636 = vmatpush2.msra.mxu0 0.0
  %10637 = vmatprep.subr.mxu0 0.0
  %10638 = vmatpush2.msra.mxu0 0.0
  %10639 = vmatprep.subr.mxu0 0.0
  %10640 = vmatpush2.msra.mxu0 0.0
  %10641 = vmatprep.subr.mxu0 0.0
  %10642 = vmatpush2.msra.mxu0 0.0
  %10643 = vmatprep.subr.mxu0 0.0
  %10644 = vmatpush2.msra.mxu0 0.0
  %10645 = vmatprep.subr.mxu0 0.0
  %10646 = vmatpush2.msra.mxu0 0.0
  %10647 = vmatprep.subr.mxu0 0.0
  %10648 = vmatpush2.msra.mxu0 0.0
  %10649 = vmatprep.subr.mxu0 0.0
  %10650 = vmatpush2.msra.mxu0 0.0
  %10651 = vmatprep.subr.mxu0 0.0
  %10652 = vmatpush2.msra.mxu0 0.0
  %10653 = vmatprep.mubr.f32.mxu0 0.0
  %10654 = vmatmul.mubr.f32.gmra.mxu0 %v10542
  %v10655 = vpop.f32.mrf.mxu0
  %v10656 = vadd.f32 0.0, %v10655
  %v10657 = vpop.f32.mrf.mxu0
  %10658 = vmatprep.mubr.f32.mxu0 0.0
  %10659 = vmatmul.mubr.f32.gmra.mxu0 %v10545
  %v10660 = vpop.f32.mrf.mxu0
  %v10661 = vadd.f32 0.0, %v10660
  %v10662 = vpop.f32.mrf.mxu0
  %10663 = vmatprep.mubr.f32.mxu0 0.0
  %10664 = vmatmul.mubr.f32.gmra.mxu0 %v10548
  %v10665 = vpop.f32.mrf.mxu0
  %v10666 = vadd.f32 0.0, %v10665
  %v10667 = vpop.f32.mrf.mxu0
  %10668 = vmatprep.mubr.f32.mxu0 0.0
  %10669 = vmatmul.mubr.f32.gmra.mxu0 %v10551
  %v10670 = vpop.f32.mrf.mxu0
  %v10671 = vadd.f32 0.0, %v10670
  %v10672 = vpop.f32.mrf.mxu0
  %10673 = vmatprep.mubr.f32.mxu0 0.0
  %10674 = vmatmul.mubr.f32.gmra.mxu0 %v10554
  %v10675 = vpop.f32.mrf.mxu0
  %v10676 = vadd.f32 0.0, %v10675
  %v10677 = vpop.f32.mrf.mxu0
  %10678 = vmatprep.mubr.f32.mxu0 0.0
  %10679 = vmatmul.mubr.f32.gmra.mxu0 %v10557
  %v10680 = vpop.f32.mrf.mxu0
  %v10681 = vadd.f32 0.0, %v10680
  %v10682 = vpop.f32.mrf.mxu0
  %10683 = vmatprep.mubr.f32.mxu0 0.0
  %10684 = vmatmul.mubr.f32.gmra.mxu0 %v10560
  %v10685 = vpop.f32.mrf.mxu0
  %v10686 = vadd.f32 0.0, %v10685
  %v10687 = vpop.f32.mrf.mxu0
  %10688 = vmatprep.mubr.f32.mxu0 0.0
  %10689 = vmatmul.mubr.f32.gmra.mxu0 %v10563
  %v10690 = vpop.f32.mrf.mxu0
  %v10691 = vadd.f32 0.0, %v10690
  %v10692 = vpop.f32.mrf.mxu0
  %10693 = vmatprep.mubr.f32.mxu0 0.0
  %10694 = vmatmul.mubr.f32.gmra.mxu0 %v10566
  %v10695 = vpop.f32.mrf.mxu0
  %v10696 = vadd.f32 0.0, %v10695
  %v10697 = vpop.f32.mrf.mxu0
  %10698 = vmatprep.mubr.f32.mxu0 0.0
  %10699 = vmatmul.mubr.f32.gmra.mxu0 %v10569
  %v10700 = vpop.f32.mrf.mxu0
  %v10701 = vadd.f32 0.0, %v10700
  %v10702 = vpop.f32.mrf.mxu0
  %10703 = vmatprep.mubr.f32.mxu0 0.0
  %10704 = vmatmul.mubr.f32.gmra.mxu0 %v10572
  %v10705 = vpop.f32.mrf.mxu0
  %v10706 = vadd.f32 0.0, %v10705
  %v10707 = vpop.f32.mrf.mxu0
  %10708 = vmatprep.mubr.f32.mxu0 0.0
  %10709 = vmatmul.mubr.f32.gmra.mxu0 %v10575
  %v10710 = vpop.f32.mrf.mxu0
  %v10711 = vadd.f32 0.0, %v10710
  %v10712 = vpop.f32.mrf.mxu0
  %10713 = vmatprep.mubr.f32.mxu0 0.0
  %10714 = vmatmul.mubr.f32.gmra.mxu0 %v10578
  %v10715 = vpop.f32.mrf.mxu0
  %v10716 = vadd.f32 0.0, %v10715
  %v10717 = vpop.f32.mrf.mxu0
  %10718 = vmatprep.mubr.f32.mxu0 0.0
  %10719 = vmatmul.mubr.f32.gmra.mxu0 %v10581
  %v10720 = vpop.f32.mrf.mxu0
  %v10721 = vadd.f32 0.0, %v10720
  %v10722 = vpop.f32.mrf.mxu0
  %10723 = vmatprep.mubr.f32.mxu0 0.0
  %10724 = vmatmul.mubr.f32.gmra.mxu0 %v10584
  %v10725 = vpop.f32.mrf.mxu0
  %v10726 = vadd.f32 0.0, %v10725
  %v10727 = vpop.f32.mrf.mxu0
  %10728 = vmatprep.mubr.f32.mxu0 0.0
  %10729 = vmatmul.mubr.f32.gmra.mxu0 %v10587
  %v10730 = vpop.f32.mrf.mxu0
  %v10731 = vadd.f32 0.0, %v10730
  %v10732 = vpop.f32.mrf.mxu0
  %10733 = vdwg.mxu0
  %v10734 = vadd.f32 %v10504, %v10656
  %v10735 = vadd.f32 %v10505, %v10661
  %v10736 = vadd.f32 %v10506, %v10666
  %v10737 = vadd.f32 %v10507, %v10671
  %v10738 = vadd.f32 %v10508, %v10676
  %v10739 = vadd.f32 %v10509, %v10681
  %v10740 = vadd.f32 %v10510, %v10686
  %v10741 = vadd.f32 %v10511, %v10691
  %v10742 = vadd.f32 %v10512, %v10696
  %v10743 = vadd.f32 %v10513, %v10701
  %v10744 = vadd.f32 %v10514, %v10706
  %v10745 = vadd.f32 %v10515, %v10711
  %v10746 = vadd.f32 %v10516, %v10716
  %v10747 = vadd.f32 %v10517, %v10721
  %v10748 = vadd.f32 %v10518, %v10726
  %v10749 = vadd.f32 %v10519, %v10731
  %v10750 = vld [vmem:[%s1490 + $0x1] sm:$0xff]
  %v10751 = vld [vmem:[%s1490 + $0x11] sm:$0xff]
  %v10752 = vld [vmem:[%s1490 + $0x21] sm:$0xff]
  %v10753 = vld [vmem:[%s1490 + $0x31] sm:$0xff]
  %v10754 = vld [vmem:[%s1490 + $0x41] sm:$0xff]
  %v10755 = vld [vmem:[%s1490 + $0x51] sm:$0xff]
  %v10756 = vld [vmem:[%s1490 + $0x61] sm:$0xff]
  %v10757 = vld [vmem:[%s1490 + $0x71] sm:$0xff]
  %v10758 = vld [vmem:[%s1490 + $0xa1] sm:$0xff]
  %v10759 = vld [vmem:[%s1490 + $0xb1] sm:$0xff]
  %v10760 = vld [vmem:[%s1490 + $0xc1] sm:$0xff]
  %v10761 = vld [vmem:[%s1490 + $0xd1] sm:$0xff]
  %v10762 = vld [vmem:[%s1490 + $0xe1] sm:$0xff]
  %v10763 = vld [vmem:[%s1490 + $0xf1] sm:$0xff]
  %v10764 = vld [vmem:[%s1490 + $0x101] sm:$0xff]
  %v10765 = vld [vmem:[%s1490 + $0x111] sm:$0xff]
  %s10766 = scalar_lea.vmem %s15, 224
  %v10767 = vld [vmem:[%s10766] sm:$0xff]
  %v10768 = vld [vmem:[%s10766 + $0x8] sm:$0xff]
  %v10769 = vld [vmem:[%s10766 + $0x10] sm:$0xff]
  %v10770 = vld [vmem:[%s10766 + $0x18] sm:$0xff]
  %v10772 = vsel %vm68, %v10750, 0
  %v10775 = vsel %vm68, %v10751, 0
  %v10778 = vsel %vm68, %v10752, 0
  %v10781 = vsel %vm68, %v10753, 0
  %v10784 = vsel %vm68, %v10754, 0
  %v10787 = vsel %vm68, %v10755, 0
  %v10790 = vsel %vm68, %v10756, 0
  %v10793 = vsel %vm68, %v10757, 0
  %v10796 = vsel %vm68, %v10758, 0
  %v10799 = vsel %vm68, %v10759, 0
  %v10802 = vsel %vm68, %v10760, 0
  %v10805 = vsel %vm68, %v10761, 0
  %v10808 = vsel %vm68, %v10762, 0
  %v10811 = vsel %vm68, %v10763, 0
  %v10814 = vsel %vm68, %v10764, 0
  %v10817 = vsel %vm68, %v10765, 0
  %10819 = vmatprep.subr.mxu0 0.0
  %10820 = vmatpush1.msra.mxu0 0.0
  %10821 = vmatprep.subr.mxu0 0.0
  %10822 = vmatpush1.msra.mxu0 0.0
  %10823 = vmatprep.subr.mxu0 0.0
  %10824 = vmatpush1.msra.mxu0 0.0
  %10825 = vmatprep.subr.mxu0 0.0
  %10826 = vmatpush1.msra.mxu0 0.0
  %10827 = vmatprep.subr.mxu0 0.0
  %10828 = vmatpush1.msra.mxu0 0.0
  %10829 = vmatprep.subr.mxu0 0.0
  %10830 = vmatpush1.msra.mxu0 0.0
  %10831 = vmatprep.subr.mxu0 0.0
  %10832 = vmatpush1.msra.mxu0 0.0
  %10833 = vmatprep.subr.mxu0 0.0
  %10834 = vmatpush1.msra.mxu0 0.0
  %10835 = vmatprep.subr.mxu0 0.0
  %10836 = vmatpush1.msra.mxu0 0.0
  %10837 = vmatprep.subr.mxu0 0.0
  %10838 = vmatpush1.msra.mxu0 0.0
  %10839 = vmatprep.subr.mxu0 0.0
  %10840 = vmatpush1.msra.mxu0 0.0
  %10841 = vmatprep.subr.mxu0 0.0
  %10842 = vmatpush1.msra.mxu0 0.0
  %10843 = vmatprep.subr.mxu0 0.0
  %10844 = vmatpush1.msra.mxu0 %v10770
  %10845 = vmatprep.subr.mxu0 0.0
  %10846 = vmatpush1.msra.mxu0 %v10769
  %10847 = vmatprep.subr.mxu0 0.0
  %10848 = vmatpush1.msra.mxu0 %v10768
  %10849 = vmatprep.subr.mxu0 0.0
  %10850 = vmatpush1.msra.mxu0 %v10767
  %10851 = vmatprep.subr.mxu0 0.0
  %10852 = vmatpush2.msra.mxu0 0.0
  %10853 = vmatprep.subr.mxu0 0.0
  %10854 = vmatpush2.msra.mxu0 0.0
  %10855 = vmatprep.subr.mxu0 0.0
  %10856 = vmatpush2.msra.mxu0 0.0
  %10857 = vmatprep.subr.mxu0 0.0
  %10858 = vmatpush2.msra.mxu0 0.0
  %10859 = vmatprep.subr.mxu0 0.0
  %10860 = vmatpush2.msra.mxu0 0.0
  %10861 = vmatprep.subr.mxu0 0.0
  %10862 = vmatpush2.msra.mxu0 0.0
  %10863 = vmatprep.subr.mxu0 0.0
  %10864 = vmatpush2.msra.mxu0 0.0
  %10865 = vmatprep.subr.mxu0 0.0
  %10866 = vmatpush2.msra.mxu0 0.0
  %10867 = vmatprep.subr.mxu0 0.0
  %10868 = vmatpush2.msra.mxu0 0.0
  %10869 = vmatprep.subr.mxu0 0.0
  %10870 = vmatpush2.msra.mxu0 0.0
  %10871 = vmatprep.subr.mxu0 0.0
  %10872 = vmatpush2.msra.mxu0 0.0
  %10873 = vmatprep.subr.mxu0 0.0
  %10874 = vmatpush2.msra.mxu0 0.0
  %10875 = vmatprep.subr.mxu0 0.0
  %10876 = vmatpush2.msra.mxu0 0.0
  %10877 = vmatprep.subr.mxu0 0.0
  %10878 = vmatpush2.msra.mxu0 0.0
  %10879 = vmatprep.subr.mxu0 0.0
  %10880 = vmatpush2.msra.mxu0 0.0
  %10881 = vmatprep.subr.mxu0 0.0
  %10882 = vmatpush2.msra.mxu0 0.0
  %10883 = vmatprep.mubr.f32.mxu0 0.0
  %10884 = vmatmul.mubr.f32.gmra.mxu0 %v10772
  %v10885 = vpop.f32.mrf.mxu0
  %v10886 = vadd.f32 0.0, %v10885
  %v10887 = vpop.f32.mrf.mxu0
  %10888 = vmatprep.mubr.f32.mxu0 0.0
  %10889 = vmatmul.mubr.f32.gmra.mxu0 %v10775
  %v10890 = vpop.f32.mrf.mxu0
  %v10891 = vadd.f32 0.0, %v10890
  %v10892 = vpop.f32.mrf.mxu0
  %10893 = vmatprep.mubr.f32.mxu0 0.0
  %10894 = vmatmul.mubr.f32.gmra.mxu0 %v10778
  %v10895 = vpop.f32.mrf.mxu0
  %v10896 = vadd.f32 0.0, %v10895
  %v10897 = vpop.f32.mrf.mxu0
  %10898 = vmatprep.mubr.f32.mxu0 0.0
  %10899 = vmatmul.mubr.f32.gmra.mxu0 %v10781
  %v10900 = vpop.f32.mrf.mxu0
  %v10901 = vadd.f32 0.0, %v10900
  %v10902 = vpop.f32.mrf.mxu0
  %10903 = vmatprep.mubr.f32.mxu0 0.0
  %10904 = vmatmul.mubr.f32.gmra.mxu0 %v10784
  %v10905 = vpop.f32.mrf.mxu0
  %v10906 = vadd.f32 0.0, %v10905
  %v10907 = vpop.f32.mrf.mxu0
  %10908 = vmatprep.mubr.f32.mxu0 0.0
  %10909 = vmatmul.mubr.f32.gmra.mxu0 %v10787
  %v10910 = vpop.f32.mrf.mxu0
  %v10911 = vadd.f32 0.0, %v10910
  %v10912 = vpop.f32.mrf.mxu0
  %10913 = vmatprep.mubr.f32.mxu0 0.0
  %10914 = vmatmul.mubr.f32.gmra.mxu0 %v10790
  %v10915 = vpop.f32.mrf.mxu0
  %v10916 = vadd.f32 0.0, %v10915
  %v10917 = vpop.f32.mrf.mxu0
  %10918 = vmatprep.mubr.f32.mxu0 0.0
  %10919 = vmatmul.mubr.f32.gmra.mxu0 %v10793
  %v10920 = vpop.f32.mrf.mxu0
  %v10921 = vadd.f32 0.0, %v10920
  %v10922 = vpop.f32.mrf.mxu0
  %10923 = vmatprep.mubr.f32.mxu0 0.0
  %10924 = vmatmul.mubr.f32.gmra.mxu0 %v10796
  %v10925 = vpop.f32.mrf.mxu0
  %v10926 = vadd.f32 0.0, %v10925
  %v10927 = vpop.f32.mrf.mxu0
  %10928 = vmatprep.mubr.f32.mxu0 0.0
  %10929 = vmatmul.mubr.f32.gmra.mxu0 %v10799
  %v10930 = vpop.f32.mrf.mxu0
  %v10931 = vadd.f32 0.0, %v10930
  %v10932 = vpop.f32.mrf.mxu0
  %10933 = vmatprep.mubr.f32.mxu0 0.0
  %10934 = vmatmul.mubr.f32.gmra.mxu0 %v10802
  %v10935 = vpop.f32.mrf.mxu0
  %v10936 = vadd.f32 0.0, %v10935
  %v10937 = vpop.f32.mrf.mxu0
  %10938 = vmatprep.mubr.f32.mxu0 0.0
  %10939 = vmatmul.mubr.f32.gmra.mxu0 %v10805
  %v10940 = vpop.f32.mrf.mxu0
  %v10941 = vadd.f32 0.0, %v10940
  %v10942 = vpop.f32.mrf.mxu0
  %10943 = vmatprep.mubr.f32.mxu0 0.0
  %10944 = vmatmul.mubr.f32.gmra.mxu0 %v10808
  %v10945 = vpop.f32.mrf.mxu0
  %v10946 = vadd.f32 0.0, %v10945
  %v10947 = vpop.f32.mrf.mxu0
  %10948 = vmatprep.mubr.f32.mxu0 0.0
  %10949 = vmatmul.mubr.f32.gmra.mxu0 %v10811
  %v10950 = vpop.f32.mrf.mxu0
  %v10951 = vadd.f32 0.0, %v10950
  %v10952 = vpop.f32.mrf.mxu0
  %10953 = vmatprep.mubr.f32.mxu0 0.0
  %10954 = vmatmul.mubr.f32.gmra.mxu0 %v10814
  %v10955 = vpop.f32.mrf.mxu0
  %v10956 = vadd.f32 0.0, %v10955
  %v10957 = vpop.f32.mrf.mxu0
  %10958 = vmatprep.mubr.f32.mxu0 0.0
  %10959 = vmatmul.mubr.f32.gmra.mxu0 %v10817
  %v10960 = vpop.f32.mrf.mxu0
  %v10961 = vadd.f32 0.0, %v10960
  %v10962 = vpop.f32.mrf.mxu0
  %10963 = vdwg.mxu0
  %v10964 = vadd.f32 %v10734, %v10886
  %v10965 = vadd.f32 %v10735, %v10891
  %v10966 = vadd.f32 %v10736, %v10896
  %v10967 = vadd.f32 %v10737, %v10901
  %v10968 = vadd.f32 %v10738, %v10906
  %v10969 = vadd.f32 %v10739, %v10911
  %v10970 = vadd.f32 %v10740, %v10916
  %v10971 = vadd.f32 %v10741, %v10921
  %v10972 = vadd.f32 %v10742, %v10926
  %v10973 = vadd.f32 %v10743, %v10931
  %v10974 = vadd.f32 %v10744, %v10936
  %v10975 = vadd.f32 %v10745, %v10941
  %v10976 = vadd.f32 %v10746, %v10946
  %v10977 = vadd.f32 %v10747, %v10951
  %v10978 = vadd.f32 %v10748, %v10956
  %v10979 = vadd.f32 %v10749, %v10961
  %v10980 = vld [vmem:[%s1490 + $0x2] sm:$0xff]
  %v10981 = vld [vmem:[%s1490 + $0x12] sm:$0xff]
  %v10982 = vld [vmem:[%s1490 + $0x22] sm:$0xff]
  %v10983 = vld [vmem:[%s1490 + $0x32] sm:$0xff]
  %v10984 = vld [vmem:[%s1490 + $0x42] sm:$0xff]
  %v10985 = vld [vmem:[%s1490 + $0x52] sm:$0xff]
  %v10986 = vld [vmem:[%s1490 + $0x62] sm:$0xff]
  %v10987 = vld [vmem:[%s1490 + $0x72] sm:$0xff]
  %v10988 = vld [vmem:[%s1490 + $0xa2] sm:$0xff]
  %v10989 = vld [vmem:[%s1490 + $0xb2] sm:$0xff]
  %v10990 = vld [vmem:[%s1490 + $0xc2] sm:$0xff]
  %v10991 = vld [vmem:[%s1490 + $0xd2] sm:$0xff]
  %v10992 = vld [vmem:[%s1490 + $0xe2] sm:$0xff]
  %v10993 = vld [vmem:[%s1490 + $0xf2] sm:$0xff]
  %v10994 = vld [vmem:[%s1490 + $0x102] sm:$0xff]
  %v10995 = vld [vmem:[%s1490 + $0x112] sm:$0xff]
  %s10996 = scalar_lea.vmem %s15, 256
  %v10997 = vld [vmem:[%s10996] sm:$0xff]
  %v10998 = vld [vmem:[%s10996 + $0x8] sm:$0xff]
  %v10999 = vld [vmem:[%s10996 + $0x10] sm:$0xff]
  %v11000 = vld [vmem:[%s10996 + $0x18] sm:$0xff]
  %v11002 = vsel %vm68, %v10980, 0
  %v11005 = vsel %vm68, %v10981, 0
  %v11008 = vsel %vm68, %v10982, 0
  %v11011 = vsel %vm68, %v10983, 0
  %v11014 = vsel %vm68, %v10984, 0
  %v11017 = vsel %vm68, %v10985, 0
  %v11020 = vsel %vm68, %v10986, 0
  %v11023 = vsel %vm68, %v10987, 0
  %v11026 = vsel %vm68, %v10988, 0
  %v11029 = vsel %vm68, %v10989, 0
  %v11032 = vsel %vm68, %v10990, 0
  %v11035 = vsel %vm68, %v10991, 0
  %v11038 = vsel %vm68, %v10992, 0
  %v11041 = vsel %vm68, %v10993, 0
  %v11044 = vsel %vm68, %v10994, 0
  %v11047 = vsel %vm68, %v10995, 0
  %11049 = vmatprep.subr.mxu0 0.0
  %11050 = vmatpush1.msra.mxu0 0.0
  %11051 = vmatprep.subr.mxu0 0.0
  %11052 = vmatpush1.msra.mxu0 0.0
  %11053 = vmatprep.subr.mxu0 0.0
  %11054 = vmatpush1.msra.mxu0 0.0
  %11055 = vmatprep.subr.mxu0 0.0
  %11056 = vmatpush1.msra.mxu0 0.0
  %11057 = vmatprep.subr.mxu0 0.0
  %11058 = vmatpush1.msra.mxu0 0.0
  %11059 = vmatprep.subr.mxu0 0.0
  %11060 = vmatpush1.msra.mxu0 0.0
  %11061 = vmatprep.subr.mxu0 0.0
  %11062 = vmatpush1.msra.mxu0 0.0
  %11063 = vmatprep.subr.mxu0 0.0
  %11064 = vmatpush1.msra.mxu0 0.0
  %11065 = vmatprep.subr.mxu0 0.0
  %11066 = vmatpush1.msra.mxu0 0.0
  %11067 = vmatprep.subr.mxu0 0.0
  %11068 = vmatpush1.msra.mxu0 0.0
  %11069 = vmatprep.subr.mxu0 0.0
  %11070 = vmatpush1.msra.mxu0 0.0
  %11071 = vmatprep.subr.mxu0 0.0
  %11072 = vmatpush1.msra.mxu0 0.0
  %11073 = vmatprep.subr.mxu0 0.0
  %11074 = vmatpush1.msra.mxu0 %v11000
  %11075 = vmatprep.subr.mxu0 0.0
  %11076 = vmatpush1.msra.mxu0 %v10999
  %11077 = vmatprep.subr.mxu0 0.0
  %11078 = vmatpush1.msra.mxu0 %v10998
  %11079 = vmatprep.subr.mxu0 0.0
  %11080 = vmatpush1.msra.mxu0 %v10997
  %11081 = vmatprep.subr.mxu0 0.0
  %11082 = vmatpush2.msra.mxu0 0.0
  %11083 = vmatprep.subr.mxu0 0.0
  %11084 = vmatpush2.msra.mxu0 0.0
  %11085 = vmatprep.subr.mxu0 0.0
  %11086 = vmatpush2.msra.mxu0 0.0
  %11087 = vmatprep.subr.mxu0 0.0
  %11088 = vmatpush2.msra.mxu0 0.0
  %11089 = vmatprep.subr.mxu0 0.0
  %11090 = vmatpush2.msra.mxu0 0.0
  %11091 = vmatprep.subr.mxu0 0.0
  %11092 = vmatpush2.msra.mxu0 0.0
  %11093 = vmatprep.subr.mxu0 0.0
  %11094 = vmatpush2.msra.mxu0 0.0
  %11095 = vmatprep.subr.mxu0 0.0
  %11096 = vmatpush2.msra.mxu0 0.0
  %11097 = vmatprep.subr.mxu0 0.0
  %11098 = vmatpush2.msra.mxu0 0.0
  %11099 = vmatprep.subr.mxu0 0.0
  %11100 = vmatpush2.msra.mxu0 0.0
  %11101 = vmatprep.subr.mxu0 0.0
  %11102 = vmatpush2.msra.mxu0 0.0
  %11103 = vmatprep.subr.mxu0 0.0
  %11104 = vmatpush2.msra.mxu0 0.0
  %11105 = vmatprep.subr.mxu0 0.0
  %11106 = vmatpush2.msra.mxu0 0.0
  %11107 = vmatprep.subr.mxu0 0.0
  %11108 = vmatpush2.msra.mxu0 0.0
  %11109 = vmatprep.subr.mxu0 0.0
  %11110 = vmatpush2.msra.mxu0 0.0
  %11111 = vmatprep.subr.mxu0 0.0
  %11112 = vmatpush2.msra.mxu0 0.0
  %11113 = vmatprep.mubr.f32.mxu0 0.0
  %11114 = vmatmul.mubr.f32.gmra.mxu0 %v11002
  %v11115 = vpop.f32.mrf.mxu0
  %v11116 = vadd.f32 0.0, %v11115
  %v11117 = vpop.f32.mrf.mxu0
  %11118 = vmatprep.mubr.f32.mxu0 0.0
  %11119 = vmatmul.mubr.f32.gmra.mxu0 %v11005
  %v11120 = vpop.f32.mrf.mxu0
  %v11121 = vadd.f32 0.0, %v11120
  %v11122 = vpop.f32.mrf.mxu0
  %11123 = vmatprep.mubr.f32.mxu0 0.0
  %11124 = vmatmul.mubr.f32.gmra.mxu0 %v11008
  %v11125 = vpop.f32.mrf.mxu0
  %v11126 = vadd.f32 0.0, %v11125
  %v11127 = vpop.f32.mrf.mxu0
  %11128 = vmatprep.mubr.f32.mxu0 0.0
  %11129 = vmatmul.mubr.f32.gmra.mxu0 %v11011
  %v11130 = vpop.f32.mrf.mxu0
  %v11131 = vadd.f32 0.0, %v11130
  %v11132 = vpop.f32.mrf.mxu0
  %11133 = vmatprep.mubr.f32.mxu0 0.0
  %11134 = vmatmul.mubr.f32.gmra.mxu0 %v11014
  %v11135 = vpop.f32.mrf.mxu0
  %v11136 = vadd.f32 0.0, %v11135
  %v11137 = vpop.f32.mrf.mxu0
  %11138 = vmatprep.mubr.f32.mxu0 0.0
  %11139 = vmatmul.mubr.f32.gmra.mxu0 %v11017
  %v11140 = vpop.f32.mrf.mxu0
  %v11141 = vadd.f32 0.0, %v11140
  %v11142 = vpop.f32.mrf.mxu0
  %11143 = vmatprep.mubr.f32.mxu0 0.0
  %11144 = vmatmul.mubr.f32.gmra.mxu0 %v11020
  %v11145 = vpop.f32.mrf.mxu0
  %v11146 = vadd.f32 0.0, %v11145
  %v11147 = vpop.f32.mrf.mxu0
  %11148 = vmatprep.mubr.f32.mxu0 0.0
  %11149 = vmatmul.mubr.f32.gmra.mxu0 %v11023
  %v11150 = vpop.f32.mrf.mxu0
  %v11151 = vadd.f32 0.0, %v11150
  %v11152 = vpop.f32.mrf.mxu0
  %11153 = vmatprep.mubr.f32.mxu0 0.0
  %11154 = vmatmul.mubr.f32.gmra.mxu0 %v11026
  %v11155 = vpop.f32.mrf.mxu0
  %v11156 = vadd.f32 0.0, %v11155
  %v11157 = vpop.f32.mrf.mxu0
  %11158 = vmatprep.mubr.f32.mxu0 0.0
  %11159 = vmatmul.mubr.f32.gmra.mxu0 %v11029
  %v11160 = vpop.f32.mrf.mxu0
  %v11161 = vadd.f32 0.0, %v11160
  %v11162 = vpop.f32.mrf.mxu0
  %11163 = vmatprep.mubr.f32.mxu0 0.0
  %11164 = vmatmul.mubr.f32.gmra.mxu0 %v11032
  %v11165 = vpop.f32.mrf.mxu0
  %v11166 = vadd.f32 0.0, %v11165
  %v11167 = vpop.f32.mrf.mxu0
  %11168 = vmatprep.mubr.f32.mxu0 0.0
  %11169 = vmatmul.mubr.f32.gmra.mxu0 %v11035
  %v11170 = vpop.f32.mrf.mxu0
  %v11171 = vadd.f32 0.0, %v11170
  %v11172 = vpop.f32.mrf.mxu0
  %11173 = vmatprep.mubr.f32.mxu0 0.0
  %11174 = vmatmul.mubr.f32.gmra.mxu0 %v11038
  %v11175 = vpop.f32.mrf.mxu0
  %v11176 = vadd.f32 0.0, %v11175
  %v11177 = vpop.f32.mrf.mxu0
  %11178 = vmatprep.mubr.f32.mxu0 0.0
  %11179 = vmatmul.mubr.f32.gmra.mxu0 %v11041
  %v11180 = vpop.f32.mrf.mxu0
  %v11181 = vadd.f32 0.0, %v11180
  %v11182 = vpop.f32.mrf.mxu0
  %11183 = vmatprep.mubr.f32.mxu0 0.0
  %11184 = vmatmul.mubr.f32.gmra.mxu0 %v11044
  %v11185 = vpop.f32.mrf.mxu0
  %v11186 = vadd.f32 0.0, %v11185
  %v11187 = vpop.f32.mrf.mxu0
  %11188 = vmatprep.mubr.f32.mxu0 0.0
  %11189 = vmatmul.mubr.f32.gmra.mxu0 %v11047
  %v11190 = vpop.f32.mrf.mxu0
  %v11191 = vadd.f32 0.0, %v11190
  %v11192 = vpop.f32.mrf.mxu0
  %11193 = vdwg.mxu0
  %v11194 = vadd.f32 %v10964, %v11116
  %v11195 = vadd.f32 %v10965, %v11121
  %v11196 = vadd.f32 %v10966, %v11126
  %v11197 = vadd.f32 %v10967, %v11131
  %v11198 = vadd.f32 %v10968, %v11136
  %v11199 = vadd.f32 %v10969, %v11141
  %v11200 = vadd.f32 %v10970, %v11146
  %v11201 = vadd.f32 %v10971, %v11151
  %v11202 = vadd.f32 %v10972, %v11156
  %v11203 = vadd.f32 %v10973, %v11161
  %v11204 = vadd.f32 %v10974, %v11166
  %v11205 = vadd.f32 %v10975, %v11171
  %v11206 = vadd.f32 %v10976, %v11176
  %v11207 = vadd.f32 %v10977, %v11181
  %v11208 = vadd.f32 %v10978, %v11186
  %v11209 = vadd.f32 %v10979, %v11191
  %v11210 = vld [vmem:[%s16] sm:$0x1]
  %v11212 = vlaneseq
  %v11213 = vshrl.u32 %v11212, 7
  %v11214 = vsub.s32 0, %v11213
  %v11215 = vrot.slane %v11210, %v11214
  %v11217 = vadd.f32 %v11194, %v11215
  %v11218 = vadd.f32 %v11195, %v11215
  %v11219 = vadd.f32 %v11196, %v11215
  %v11220 = vadd.f32 %v11197, %v11215
  %v11221 = vadd.f32 %v11198, %v11215
  %v11222 = vadd.f32 %v11199, %v11215
  %v11223 = vadd.f32 %v11200, %v11215
  %v11224 = vadd.f32 %v11201, %v11215
  %v11225 = vadd.f32 %v11202, %v11215
  %v11226 = vadd.f32 %v11203, %v11215
  %v11227 = vadd.f32 %v11204, %v11215
  %v11228 = vadd.f32 %v11205, %v11215
  %v11229 = vadd.f32 %v11206, %v11215
  %v11230 = vadd.f32 %v11207, %v11215
  %v11231 = vadd.f32 %v11208, %v11215
  %v11232 = vadd.f32 %v11209, %v11215
  %v11233 = vsel %vm68, %v11217, 0.0
  %v11234 = vsel %vm68, %v11218, 0.0
  %v11235 = vadd.f32 %v11233, %v11234
  %v11236 = vsel %vm68, %v11219, 0.0
  %v11237 = vadd.f32 %v11235, %v11236
  %v11238 = vsel %vm68, %v11220, 0.0
  %v11239 = vadd.f32 %v11237, %v11238
  %v11240 = vsel %vm68, %v11221, 0.0
  %v11241 = vadd.f32 %v11239, %v11240
  %v11242 = vsel %vm68, %v11222, 0.0
  %v11243 = vadd.f32 %v11241, %v11242
  %v11244 = vsel %vm68, %v11223, 0.0
  %v11245 = vadd.f32 %v11243, %v11244
  %v11246 = vsel %vm68, %v11224, 0.0
  %v11247 = vadd.f32 %v11245, %v11246
  %v11248 = vsel %vm68, %v11225, 0.0
  %v11249 = vadd.f32 %v11247, %v11248
  %v11250 = vsel %vm68, %v11226, 0.0
  %v11251 = vadd.f32 %v11249, %v11250
  %v11252 = vsel %vm68, %v11227, 0.0
  %v11253 = vadd.f32 %v11251, %v11252
  %v11254 = vsel %vm68, %v11228, 0.0
  %v11255 = vadd.f32 %v11253, %v11254
  %v11256 = vsel %vm68, %v11229, 0.0
  %v11257 = vadd.f32 %v11255, %v11256
  %v11258 = vsel %vm68, %v11230, 0.0
  %v11259 = vadd.f32 %v11257, %v11258
  %v11260 = vsel %vm68, %v11231, 0.0
  %v11261 = vadd.f32 %v11259, %v11260
  %v11262 = vsel %vm68, %v11232, 0.0
  %v11263 = vadd.f32 %v11261, %v11262
  %v11264 = vrot.slane %v11263, 4
  %v11265 = vadd.f32 %v11263, %v11264
  %v11266 = vrot.slane %v11265, 2
  %v11267 = vadd.f32 %v11265, %v11266
  %v11268 = vrot.slane %v11267, 1
  %v11269 = vadd.f32 %v11267, %v11268
  %v11270 = vmul.f32 %v11269, %v4365
  %v11271 = vsub.f32 %v11217, %v11270
  %v11272 = vsub.f32 %v11218, %v11270
  %v11273 = vsub.f32 %v11219, %v11270
  %v11274 = vsub.f32 %v11220, %v11270
  %v11275 = vsub.f32 %v11221, %v11270
  %v11276 = vsub.f32 %v11222, %v11270
  %v11277 = vsub.f32 %v11223, %v11270
  %v11278 = vsub.f32 %v11224, %v11270
  %v11279 = vsub.f32 %v11225, %v11270
  %v11280 = vsub.f32 %v11226, %v11270
  %v11281 = vsub.f32 %v11227, %v11270
  %v11282 = vsub.f32 %v11228, %v11270
  %v11283 = vsub.f32 %v11229, %v11270
  %v11284 = vsub.f32 %v11230, %v11270
  %v11285 = vsub.f32 %v11231, %v11270
  %v11286 = vsub.f32 %v11232, %v11270
  %v11287 = vmul.f32 %v11271, %v11271
  %v11288 = vmul.f32 %v11272, %v11272
  %v11289 = vmul.f32 %v11273, %v11273
  %v11290 = vmul.f32 %v11274, %v11274
  %v11291 = vmul.f32 %v11275, %v11275
  %v11292 = vmul.f32 %v11276, %v11276
  %v11293 = vmul.f32 %v11277, %v11277
  %v11294 = vmul.f32 %v11278, %v11278
  %v11295 = vmul.f32 %v11279, %v11279
  %v11296 = vmul.f32 %v11280, %v11280
  %v11297 = vmul.f32 %v11281, %v11281
  %v11298 = vmul.f32 %v11282, %v11282
  %v11299 = vmul.f32 %v11283, %v11283
  %v11300 = vmul.f32 %v11284, %v11284
  %v11301 = vmul.f32 %v11285, %v11285
  %v11302 = vmul.f32 %v11286, %v11286
  %v11303 = vsel %vm68, %v11287, 0.0
  %v11304 = vsel %vm68, %v11288, 0.0
  %v11305 = vadd.f32 %v11303, %v11304
  %v11306 = vsel %vm68, %v11289, 0.0
  %v11307 = vadd.f32 %v11305, %v11306
  %v11308 = vsel %vm68, %v11290, 0.0
  %v11309 = vadd.f32 %v11307, %v11308
  %v11310 = vsel %vm68, %v11291, 0.0
  %v11311 = vadd.f32 %v11309, %v11310
  %v11312 = vsel %vm68, %v11292, 0.0
  %v11313 = vadd.f32 %v11311, %v11312
  %v11314 = vsel %vm68, %v11293, 0.0
  %v11315 = vadd.f32 %v11313, %v11314
  %v11316 = vsel %vm68, %v11294, 0.0
  %v11317 = vadd.f32 %v11315, %v11316
  %v11318 = vsel %vm68, %v11295, 0.0
  %v11319 = vadd.f32 %v11317, %v11318
  %v11320 = vsel %vm68, %v11296, 0.0
  %v11321 = vadd.f32 %v11319, %v11320
  %v11322 = vsel %vm68, %v11297, 0.0
  %v11323 = vadd.f32 %v11321, %v11322
  %v11324 = vsel %vm68, %v11298, 0.0
  %v11325 = vadd.f32 %v11323, %v11324
  %v11326 = vsel %vm68, %v11299, 0.0
  %v11327 = vadd.f32 %v11325, %v11326
  %v11328 = vsel %vm68, %v11300, 0.0
  %v11329 = vadd.f32 %v11327, %v11328
  %v11330 = vsel %vm68, %v11301, 0.0
  %v11331 = vadd.f32 %v11329, %v11330
  %v11332 = vsel %vm68, %v11302, 0.0
  %v11333 = vadd.f32 %v11331, %v11332
  %v11334 = vrot.slane %v11333, 4
  %v11335 = vadd.f32 %v11333, %v11334
  %v11336 = vrot.slane %v11335, 2
  %v11337 = vadd.f32 %v11335, %v11336
  %v11338 = vrot.slane %v11337, 1
  %v11339 = vadd.f32 %v11337, %v11338
  %v11340 = vmul.f32 %v11339, %v4365
  %v11341 = vadd.f32 %v11340, 1e-05
  %v11342 = vrsqrt.pop %v11341
  %v11343 = vmul.f32 %v11271, %v11342
  %v11344 = vmul.f32 %v11272, %v11342
  %v11345 = vmul.f32 %v11273, %v11342
  %v11346 = vmul.f32 %v11274, %v11342
  %v11347 = vmul.f32 %v11275, %v11342
  %v11348 = vmul.f32 %v11276, %v11342
  %v11349 = vmul.f32 %v11277, %v11342
  %v11350 = vmul.f32 %v11278, %v11342
  %v11351 = vmul.f32 %v11279, %v11342
  %v11352 = vmul.f32 %v11280, %v11342
  %v11353 = vmul.f32 %v11281, %v11342
  %v11354 = vmul.f32 %v11282, %v11342
  %v11355 = vmul.f32 %v11283, %v11342
  %v11356 = vmul.f32 %v11284, %v11342
  %v11357 = vmul.f32 %v11285, %v11342
  %v11358 = vmul.f32 %v11286, %v11342
  %v11359 = vld [vmem:[%s17] sm:$0x1]
  %v11361 = vlaneseq
  %v11362 = vshrl.u32 %v11361, 7
  %v11363 = vsub.s32 0, %v11362
  %v11364 = vrot.slane %v11359, %v11363
  %v11366 = vmul.f32 %v11343, %v11364
  %v11367 = vmul.f32 %v11344, %v11364
  %v11368 = vmul.f32 %v11345, %v11364
  %v11369 = vmul.f32 %v11346, %v11364
  %v11370 = vmul.f32 %v11347, %v11364
  %v11371 = vmul.f32 %v11348, %v11364
  %v11372 = vmul.f32 %v11349, %v11364
  %v11373 = vmul.f32 %v11350, %v11364
  %v11374 = vmul.f32 %v11351, %v11364
  %v11375 = vmul.f32 %v11352, %v11364
  %v11376 = vmul.f32 %v11353, %v11364
  %v11377 = vmul.f32 %v11354, %v11364
  %v11378 = vmul.f32 %v11355, %v11364
  %v11379 = vmul.f32 %v11356, %v11364
  %v11380 = vmul.f32 %v11357, %v11364
  %v11381 = vmul.f32 %v11358, %v11364
  %v11382 = vld [vmem:[%s18] sm:$0x1]
  %v11384 = vlaneseq
  %v11385 = vshrl.u32 %v11384, 7
  %v11386 = vsub.s32 0, %v11385
  %v11387 = vrot.slane %v11382, %v11386
  %v11389 = vadd.f32 %v11366, %v11387
  %v11390 = vadd.f32 %v11367, %v11387
  %v11391 = vadd.f32 %v11368, %v11387
  %v11392 = vadd.f32 %v11369, %v11387
  %v11393 = vadd.f32 %v11370, %v11387
  %v11394 = vadd.f32 %v11371, %v11387
  %v11395 = vadd.f32 %v11372, %v11387
  %v11396 = vadd.f32 %v11373, %v11387
  %v11397 = vadd.f32 %v11374, %v11387
  %v11398 = vadd.f32 %v11375, %v11387
  %v11399 = vadd.f32 %v11376, %v11387
  %v11400 = vadd.f32 %v11377, %v11387
  %v11401 = vadd.f32 %v11378, %v11387
  %v11402 = vadd.f32 %v11379, %v11387
  %v11403 = vadd.f32 %v11380, %v11387
  %v11404 = vadd.f32 %v11381, %v11387
  %v11405 = vadd.f32 %v6845, %v11389
  %v11406 = vadd.f32 %v6846, %v11390
  %v11407 = vadd.f32 %v6847, %v11391
  %v11408 = vadd.f32 %v6848, %v11392
  %v11409 = vadd.f32 %v6849, %v11393
  %v11410 = vadd.f32 %v6850, %v11394
  %v11411 = vadd.f32 %v6851, %v11395
  %v11412 = vadd.f32 %v6852, %v11396
  %v11413 = vadd.f32 %v6853, %v11397
  %v11414 = vadd.f32 %v6854, %v11398
  %v11415 = vadd.f32 %v6855, %v11399
  %v11416 = vadd.f32 %v6856, %v11400
  %v11417 = vadd.f32 %v6857, %v11401
  %v11418 = vadd.f32 %v6858, %v11402
  %v11419 = vadd.f32 %v6859, %v11403
  %v11420 = vadd.f32 %v6860, %v11404
  %vm11421 = vcmp.gt.f32.partialorder %v11405, 0.0
  %vm11422 = vcmp.gt.f32.partialorder %v11406, 0.0
  %vm11423 = vcmp.gt.f32.partialorder %v11407, 0.0
  %vm11424 = vcmp.gt.f32.partialorder %v11408, 0.0
  %vm11425 = vcmp.gt.f32.partialorder %v11409, 0.0
  %vm11426 = vcmp.gt.f32.partialorder %v11410, 0.0
  %vm11427 = vcmp.gt.f32.partialorder %v11411, 0.0
  %vm11428 = vcmp.gt.f32.partialorder %v11412, 0.0
  %vm11429 = vcmp.gt.f32.partialorder %v11413, 0.0
  %vm11430 = vcmp.gt.f32.partialorder %v11414, 0.0
  %vm11431 = vcmp.gt.f32.partialorder %v11415, 0.0
  %vm11432 = vcmp.gt.f32.partialorder %v11416, 0.0
  %vm11433 = vcmp.gt.f32.partialorder %v11417, 0.0
  %vm11434 = vcmp.gt.f32.partialorder %v11418, 0.0
  %vm11435 = vcmp.gt.f32.partialorder %v11419, 0.0
  %vm11436 = vcmp.gt.f32.partialorder %v11420, 0.0
  %v11437 = vmul.f32 %v11405, 0.01
  %v11438 = vmul.f32 %v11406, 0.01
  %v11439 = vmul.f32 %v11407, 0.01
  %v11440 = vmul.f32 %v11408, 0.01
  %v11441 = vmul.f32 %v11409, 0.01
  %v11442 = vmul.f32 %v11410, 0.01
  %v11443 = vmul.f32 %v11411, 0.01
  %v11444 = vmul.f32 %v11412, 0.01
  %v11445 = vmul.f32 %v11413, 0.01
  %v11446 = vmul.f32 %v11414, 0.01
  %v11447 = vmul.f32 %v11415, 0.01
  %v11448 = vmul.f32 %v11416, 0.01
  %v11449 = vmul.f32 %v11417, 0.01
  %v11450 = vmul.f32 %v11418, 0.01
  %v11451 = vmul.f32 %v11419, 0.01
  %v11452 = vmul.f32 %v11420, 0.01
  %v11453 = vsel %vm11421, %v11405, %v11437
  %v11454 = vsel %vm11422, %v11406, %v11438
  %v11455 = vsel %vm11423, %v11407, %v11439
  %v11456 = vsel %vm11424, %v11408, %v11440
  %v11457 = vsel %vm11425, %v11409, %v11441
  %v11458 = vsel %vm11426, %v11410, %v11442
  %v11459 = vsel %vm11427, %v11411, %v11443
  %v11460 = vsel %vm11428, %v11412, %v11444
  %v11461 = vsel %vm11429, %v11413, %v11445
  %v11462 = vsel %vm11430, %v11414, %v11446
  %v11463 = vsel %vm11431, %v11415, %v11447
  %v11464 = vsel %vm11432, %v11416, %v11448
  %v11465 = vsel %vm11433, %v11417, %v11449
  %v11466 = vsel %vm11434, %v11418, %v11450
  %v11467 = vsel %vm11435, %v11419, %v11451
  %v11468 = vsel %vm11436, %v11420, %v11452
  %v11469 = vld [vmem:[%s19] sm:$0xff]
  %v11470 = vld [vmem:[%s19 + $0x8] sm:$0xff]
  %v11471 = vld [vmem:[%s19 + $0x10] sm:$0xff]
  %v11472 = vld [vmem:[%s19 + $0x18] sm:$0xff]
  %v11473 = vld [vmem:[%s20] sm:$0x1]
  %v11475 = vlaneseq
  %v11476 = vshrl.u32 %v11475, 7
  %v11477 = vsub.s32 0, %v11476
  %v11478 = vrot.slane %v11473, %v11477
  %v11481 = vsel %vm68, %v11453, 0
  %v11484 = vsel %vm68, %v11454, 0
  %v11487 = vsel %vm68, %v11455, 0
  %v11490 = vsel %vm68, %v11456, 0
  %v11493 = vsel %vm68, %v11457, 0
  %v11496 = vsel %vm68, %v11458, 0
  %v11499 = vsel %vm68, %v11459, 0
  %v11502 = vsel %vm68, %v11460, 0
  %v11505 = vsel %vm68, %v11461, 0
  %v11508 = vsel %vm68, %v11462, 0
  %v11511 = vsel %vm68, %v11463, 0
  %v11514 = vsel %vm68, %v11464, 0
  %v11517 = vsel %vm68, %v11465, 0
  %v11520 = vsel %vm68, %v11466, 0
  %v11523 = vsel %vm68, %v11467, 0
  %v11526 = vsel %vm68, %v11468, 0
  %11528 = vmatprep.subr.mxu0 0.0
  %11529 = vmatpush1.msra.mxu0 0.0
  %11530 = vmatprep.subr.mxu0 0.0
  %11531 = vmatpush1.msra.mxu0 0.0
  %11532 = vmatprep.subr.mxu0 0.0
  %11533 = vmatpush1.msra.mxu0 0.0
  %11534 = vmatprep.subr.mxu0 0.0
  %11535 = vmatpush1.msra.mxu0 0.0
  %11536 = vmatprep.subr.mxu0 0.0
  %11537 = vmatpush1.msra.mxu0 0.0
  %11538 = vmatprep.subr.mxu0 0.0
  %11539 = vmatpush1.msra.mxu0 0.0
  %11540 = vmatprep.subr.mxu0 0.0
  %11541 = vmatpush1.msra.mxu0 0.0
  %11542 = vmatprep.subr.mxu0 0.0
  %11543 = vmatpush1.msra.mxu0 0.0
  %11544 = vmatprep.subr.mxu0 0.0
  %11545 = vmatpush1.msra.mxu0 0.0
  %11546 = vmatprep.subr.mxu0 0.0
  %11547 = vmatpush1.msra.mxu0 0.0
  %11548 = vmatprep.subr.mxu0 0.0
  %11549 = vmatpush1.msra.mxu0 0.0
  %11550 = vmatprep.subr.mxu0 0.0
  %11551 = vmatpush1.msra.mxu0 0.0
  %11552 = vmatprep.subr.mxu0 0.0
  %11553 = vmatpush1.msra.mxu0 %v11472
  %11554 = vmatprep.subr.mxu0 0.0
  %11555 = vmatpush1.msra.mxu0 %v11471
  %11556 = vmatprep.subr.mxu0 0.0
  %11557 = vmatpush1.msra.mxu0 %v11470
  %11558 = vmatprep.subr.mxu0 0.0
  %11559 = vmatpush1.msra.mxu0 %v11469
  %11560 = vmatprep.subr.mxu0 0.0
  %11561 = vmatpush2.msra.mxu0 0.0
  %11562 = vmatprep.subr.mxu0 0.0
  %11563 = vmatpush2.msra.mxu0 0.0
  %11564 = vmatprep.subr.mxu0 0.0
  %11565 = vmatpush2.msra.mxu0 0.0
  %11566 = vmatprep.subr.mxu0 0.0
  %11567 = vmatpush2.msra.mxu0 0.0
  %11568 = vmatprep.subr.mxu0 0.0
  %11569 = vmatpush2.msra.mxu0 0.0
  %11570 = vmatprep.subr.mxu0 0.0
  %11571 = vmatpush2.msra.mxu0 0.0
  %11572 = vmatprep.subr.mxu0 0.0
  %11573 = vmatpush2.msra.mxu0 0.0
  %11574 = vmatprep.subr.mxu0 0.0
  %11575 = vmatpush2.msra.mxu0 0.0
  %11576 = vmatprep.subr.mxu0 0.0
  %11577 = vmatpush2.msra.mxu0 0.0
  %11578 = vmatprep.subr.mxu0 0.0
  %11579 = vmatpush2.msra.mxu0 0.0
  %11580 = vmatprep.subr.mxu0 0.0
  %11581 = vmatpush2.msra.mxu0 0.0
  %11582 = vmatprep.subr.mxu0 0.0
  %11583 = vmatpush2.msra.mxu0 0.0
  %11584 = vmatprep.subr.mxu0 0.0
  %11585 = vmatpush2.msra.mxu0 0.0
  %11586 = vmatprep.subr.mxu0 0.0
  %11587 = vmatpush2.msra.mxu0 0.0
  %11588 = vmatprep.subr.mxu0 0.0
  %11589 = vmatpush2.msra.mxu0 0.0
  %11590 = vmatprep.subr.mxu0 0.0
  %11591 = vmatpush2.msra.mxu0 0.0
  %11592 = vmatprep.mubr.f32.mxu0 0.0
  %11593 = vmatmul.mubr.f32.gmra.mxu0 %v11481
  %v11594 = vpop.f32.mrf.mxu0
  %v11595 = vadd.f32 %v11478, %v11594
  %v11596 = vpop.f32.mrf.mxu0
  %11597 = vmatprep.mubr.f32.mxu0 0.0
  %11598 = vmatmul.mubr.f32.gmra.mxu0 %v11484
  %v11599 = vpop.f32.mrf.mxu0
  %v11600 = vadd.f32 %v11478, %v11599
  %v11601 = vpop.f32.mrf.mxu0
  %11602 = vmatprep.mubr.f32.mxu0 0.0
  %11603 = vmatmul.mubr.f32.gmra.mxu0 %v11487
  %v11604 = vpop.f32.mrf.mxu0
  %v11605 = vadd.f32 %v11478, %v11604
  %v11606 = vpop.f32.mrf.mxu0
  %11607 = vmatprep.mubr.f32.mxu0 0.0
  %11608 = vmatmul.mubr.f32.gmra.mxu0 %v11490
  %v11609 = vpop.f32.mrf.mxu0
  %v11610 = vadd.f32 %v11478, %v11609
  %v11611 = vpop.f32.mrf.mxu0
  %11612 = vmatprep.mubr.f32.mxu0 0.0
  %11613 = vmatmul.mubr.f32.gmra.mxu0 %v11493
  %v11614 = vpop.f32.mrf.mxu0
  %v11615 = vadd.f32 %v11478, %v11614
  %v11616 = vpop.f32.mrf.mxu0
  %11617 = vmatprep.mubr.f32.mxu0 0.0
  %11618 = vmatmul.mubr.f32.gmra.mxu0 %v11496
  %v11619 = vpop.f32.mrf.mxu0
  %v11620 = vadd.f32 %v11478, %v11619
  %v11621 = vpop.f32.mrf.mxu0
  %11622 = vmatprep.mubr.f32.mxu0 0.0
  %11623 = vmatmul.mubr.f32.gmra.mxu0 %v11499
  %v11624 = vpop.f32.mrf.mxu0
  %v11625 = vadd.f32 %v11478, %v11624
  %v11626 = vpop.f32.mrf.mxu0
  %11627 = vmatprep.mubr.f32.mxu0 0.0
  %11628 = vmatmul.mubr.f32.gmra.mxu0 %v11502
  %v11629 = vpop.f32.mrf.mxu0
  %v11630 = vadd.f32 %v11478, %v11629
  %v11631 = vpop.f32.mrf.mxu0
  %11632 = vmatprep.mubr.f32.mxu0 0.0
  %11633 = vmatmul.mubr.f32.gmra.mxu0 %v11505
  %v11634 = vpop.f32.mrf.mxu0
  %v11635 = vadd.f32 %v11478, %v11634
  %v11636 = vpop.f32.mrf.mxu0
  %11637 = vmatprep.mubr.f32.mxu0 0.0
  %11638 = vmatmul.mubr.f32.gmra.mxu0 %v11508
  %v11639 = vpop.f32.mrf.mxu0
  %v11640 = vadd.f32 %v11478, %v11639
  %v11641 = vpop.f32.mrf.mxu0
  %11642 = vmatprep.mubr.f32.mxu0 0.0
  %11643 = vmatmul.mubr.f32.gmra.mxu0 %v11511
  %v11644 = vpop.f32.mrf.mxu0
  %v11645 = vadd.f32 %v11478, %v11644
  %v11646 = vpop.f32.mrf.mxu0
  %11647 = vmatprep.mubr.f32.mxu0 0.0
  %11648 = vmatmul.mubr.f32.gmra.mxu0 %v11514
  %v11649 = vpop.f32.mrf.mxu0
  %v11650 = vadd.f32 %v11478, %v11649
  %v11651 = vpop.f32.mrf.mxu0
  %11652 = vmatprep.mubr.f32.mxu0 0.0
  %11653 = vmatmul.mubr.f32.gmra.mxu0 %v11517
  %v11654 = vpop.f32.mrf.mxu0
  %v11655 = vadd.f32 %v11478, %v11654
  %v11656 = vpop.f32.mrf.mxu0
  %11657 = vmatprep.mubr.f32.mxu0 0.0
  %11658 = vmatmul.mubr.f32.gmra.mxu0 %v11520
  %v11659 = vpop.f32.mrf.mxu0
  %v11660 = vadd.f32 %v11478, %v11659
  %v11661 = vpop.f32.mrf.mxu0
  %11662 = vmatprep.mubr.f32.mxu0 0.0
  %11663 = vmatmul.mubr.f32.gmra.mxu0 %v11523
  %v11664 = vpop.f32.mrf.mxu0
  %v11665 = vadd.f32 %v11478, %v11664
  %v11666 = vpop.f32.mrf.mxu0
  %11667 = vmatprep.mubr.f32.mxu0 0.0
  %11668 = vmatmul.mubr.f32.gmra.mxu0 %v11526
  %v11669 = vpop.f32.mrf.mxu0
  %v11670 = vadd.f32 %v11478, %v11669
  %v11671 = vpop.f32.mrf.mxu0
  %11672 = vdwg.mxu0
  %vm11673 = vcmp.gt.f32.partialorder %v11595, 0.0
  %vm11674 = vcmp.gt.f32.partialorder %v11600, 0.0
  %vm11675 = vcmp.gt.f32.partialorder %v11605, 0.0
  %vm11676 = vcmp.gt.f32.partialorder %v11610, 0.0
  %vm11677 = vcmp.gt.f32.partialorder %v11615, 0.0
  %vm11678 = vcmp.gt.f32.partialorder %v11620, 0.0
  %vm11679 = vcmp.gt.f32.partialorder %v11625, 0.0
  %vm11680 = vcmp.gt.f32.partialorder %v11630, 0.0
  %vm11681 = vcmp.gt.f32.partialorder %v11635, 0.0
  %vm11682 = vcmp.gt.f32.partialorder %v11640, 0.0
  %vm11683 = vcmp.gt.f32.partialorder %v11645, 0.0
  %vm11684 = vcmp.gt.f32.partialorder %v11650, 0.0
  %vm11685 = vcmp.gt.f32.partialorder %v11655, 0.0
  %vm11686 = vcmp.gt.f32.partialorder %v11660, 0.0
  %vm11687 = vcmp.gt.f32.partialorder %v11665, 0.0
  %vm11688 = vcmp.gt.f32.partialorder %v11670, 0.0
  %v11689 = vmul.f32 %v11595, 0.01
  %v11690 = vmul.f32 %v11600, 0.01
  %v11691 = vmul.f32 %v11605, 0.01
  %v11692 = vmul.f32 %v11610, 0.01
  %v11693 = vmul.f32 %v11615, 0.01
  %v11694 = vmul.f32 %v11620, 0.01
  %v11695 = vmul.f32 %v11625, 0.01
  %v11696 = vmul.f32 %v11630, 0.01
  %v11697 = vmul.f32 %v11635, 0.01
  %v11698 = vmul.f32 %v11640, 0.01
  %v11699 = vmul.f32 %v11645, 0.01
  %v11700 = vmul.f32 %v11650, 0.01
  %v11701 = vmul.f32 %v11655, 0.01
  %v11702 = vmul.f32 %v11660, 0.01
  %v11703 = vmul.f32 %v11665, 0.01
  %v11704 = vmul.f32 %v11670, 0.01
  %v11705 = vsel %vm11673, %v11595, %v11689
  %v11706 = vsel %vm11674, %v11600, %v11690
  %v11707 = vsel %vm11675, %v11605, %v11691
  %v11708 = vsel %vm11676, %v11610, %v11692
  %v11709 = vsel %vm11677, %v11615, %v11693
  %v11710 = vsel %vm11678, %v11620, %v11694
  %v11711 = vsel %vm11679, %v11625, %v11695
  %v11712 = vsel %vm11680, %v11630, %v11696
  %v11713 = vsel %vm11681, %v11635, %v11697
  %v11714 = vsel %vm11682, %v11640, %v11698
  %v11715 = vsel %vm11683, %v11645, %v11699
  %v11716 = vsel %vm11684, %v11650, %v11700
  %v11717 = vsel %vm11685, %v11655, %v11701
  %v11718 = vsel %vm11686, %v11660, %v11702
  %v11719 = vsel %vm11687, %v11665, %v11703
  %v11720 = vsel %vm11688, %v11670, %v11704
  %vm11721 = vcmask 31744
  %11722 = vst.msk [vmem:[%s21] sm:$0xff] %vm11721, %v11705
  %11723 = vst.msk [vmem:[%s21 + $0x8] sm:$0xff] %vm11721, %v11706
  %11724 = vst.msk [vmem:[%s21 + $0x10] sm:$0xff] %vm11721, %v11707
  %11725 = vst.msk [vmem:[%s21 + $0x18] sm:$0xff] %vm11721, %v11708
  %11726 = vst.msk [vmem:[%s21 + $0x20] sm:$0xff] %vm11721, %v11709
  %11727 = vst.msk [vmem:[%s21 + $0x28] sm:$0xff] %vm11721, %v11710
  %11728 = vst.msk [vmem:[%s21 + $0x30] sm:$0xff] %vm11721, %v11711
  %11729 = vst.msk [vmem:[%s21 + $0x38] sm:$0xff] %vm11721, %v11712
  %11730 = vst.msk [vmem:[%s21 + $0x40] sm:$0xff] %vm11721, %v11713
  %11731 = vst.msk [vmem:[%s21 + $0x48] sm:$0xff] %vm11721, %v11714
  %11732 = vst.msk [vmem:[%s21 + $0x50] sm:$0xff] %vm11721, %v11715
  %11733 = vst.msk [vmem:[%s21 + $0x58] sm:$0xff] %vm11721, %v11716
  %11734 = vst.msk [vmem:[%s21 + $0x60] sm:$0xff] %vm11721, %v11717
  %11735 = vst.msk [vmem:[%s21 + $0x68] sm:$0xff] %vm11721, %v11718
  %11736 = vst.msk [vmem:[%s21 + $0x70] sm:$0xff] %vm11721, %v11719
  %11737 = vst.msk [vmem:[%s21 + $0x78] sm:$0xff] %vm11721, %v11720
  // Predicated region
  $region86: #{policy_value_forward.2} parent=0 // pred_check
    _
  $region87: #{policy_value_forward.2} parent=0 // pred_check_branch
    %11739 = sbr.rel (0) target = $region89
  $region88: #{policy_value_forward.2} parent=0 // pred_region
    _
  $region89: #{policy_value_forward.2} parent=0 // pred_fallthru
    _
  // Predicated region
  $region90: #{policy_value_forward.2} parent=0 // pred_check
    _
  $region91: #{policy_value_forward.2} parent=0 // pred_check_branch
    %11741 = sbr.rel (0) target = $region93
  $region92: #{policy_value_forward.2} parent=0 // pred_region
    _
  $region93: #{policy_value_forward.2} parent=0 // pred_fallthru
    _

</llo_original>
